<compile_context>
chip_gen: v7x
topology: tpu7x:2x2x1
jax: 0.10.0
libtpu: 0.0.40
codegen_flags: <defaults>
</compile_context>

<pallas_src>
import functools

import jax
import jax.numpy as jnp
import numpy as np
from jax.experimental import pallas as pl


def _round_up(x, m):
    return ((x + m - 1) // m) * m


def _full_spec(arr):
    shape = arr.shape
    return pl.BlockSpec(shape, lambda: (0,) * len(shape))


# ---------------------------------------------------------------------------
# Fused Pallas kernel: conv(+bias,ReLU) -> flatten -> Linear(+ReLU) -> MLP
# ---------------------------------------------------------------------------

def _fused_mdp_kernel(slab_ref, par_ref, we_ref, o_ref, *, batch, hw, meta):
    cout = meta["cout"]
    F, H1, H2, A_PAD = meta["F"], meta["H1"], meta["H2"], meta["A_PAD"]
    KKCA_PAD = meta["KKCA_PAD"]
    WK0, BIAS0 = meta["WK0"], meta["BIAS0"]
    W1_0, W2_0, W3_0 = meta["W1_0"], meta["W2_0"], meta["W3_0"]
    HIGH = jax.lax.Precision.HIGHEST

    # ---- Conv2d (valid, stride 1) for the WHOLE batch in one MXU matmul ----
    # slab[s*C_PAD + c, b*HW + p] = obs[b, c, p + shift(s)]; last real row is
    # all-ones (fused conv bias), remaining rows are zero padding.  Garbage at
    # invalid spatial positions p is exactly masked later by zero rows of the
    # re-laid-out encoder weight.
    wk = par_ref[WK0:WK0 + cout, :KKCA_PAD]                  # [Cout, KKCA_PAD]
    conv = jnp.dot(wk, slab_ref[...],
                   preferred_element_type=jnp.float32, precision=HIGH)
    conv = jnp.maximum(conv, 0.0)                            # [Cout, B*HW]

    # ---- (co <-> b) transpose into the encoder LHS [B, Cout*HW] ------------
    # Per-batch rows are assembled with lane-aligned (multiple-of-128) static
    # slices + a minor-dim concat, then placed at their sublane row with an
    # iota mask (cheap VPU select, no sublane-dim concat, no scratch).
    chw = cout * hw
    row_idx = jax.lax.broadcasted_iota(jnp.int32, (batch, chw), 0)
    lhs = jnp.zeros((batch, chw), jnp.float32)
    for b in range(batch):
        row_b = jnp.concatenate(
            [conv[co:co + 1, b * hw:(b + 1) * hw] for co in range(cout)],
            axis=1)                                          # [1, Cout*HW]
        lhs = lhs + jnp.where(row_idx == b,
                              jnp.broadcast_to(row_b, (batch, chw)), 0.0)

    # ---- Encoder Linear + ReLU: single matmul, K = Cout*H*W -----------------
    be = par_ref[BIAS0:BIAS0 + 1, :F]
    feats = jnp.dot(lhs, we_ref[...],
                    preferred_element_type=jnp.float32, precision=HIGH)
    feats = jnp.maximum(feats + be, 0.0)                     # [B, F]

    # ---- MLP: Linear+ReLU x2, linear action head (lane-padded to 128) ------
    w1 = par_ref[W1_0:W1_0 + F, :H1]
    b1 = par_ref[BIAS0 + 1:BIAS0 + 2, :H1]
    h = jnp.maximum(
        jnp.dot(feats, w1, preferred_element_type=jnp.float32,
                precision=HIGH) + b1, 0.0)
    w2 = par_ref[W2_0:W2_0 + H1, :H2]
    b2 = par_ref[BIAS0 + 2:BIAS0 + 3, :H2]
    h = jnp.maximum(
        jnp.dot(h, w2, preferred_element_type=jnp.float32,
                precision=HIGH) + b2, 0.0)
    w3 = par_ref[W3_0:W3_0 + H2, :A_PAD]
    b3 = par_ref[BIAS0 + 3:BIAS0 + 4, :A_PAD]
    o_ref[...] = jnp.dot(h, w3, preferred_element_type=jnp.float32,
                         precision=HIGH) + b3


# ---------------------------------------------------------------------------
# One-time weight re-layout / packing (trace side, numerically exact)
# ---------------------------------------------------------------------------

def pack_params(params, H, W):
    conv_w = params["conv_w"]                    # [Cout, C, K, K]
    cout, cin, K, _ = conv_w.shape
    OH, OW = H - K + 1, W - K + 1
    HW = H * W
    C_PAD = _round_up(cin, 8)
    KKC = K * K * C_PAD
    KKCA_PAD = _round_up(KKC + 1, 8)             # +1 ones-row (fused conv bias)
    F = params["enc_w"].shape[1]
    H1 = params["mlp_w1"].shape[1]
    H2 = params["mlp_w2"].shape[1]
    A = params["mlp_w3"].shape[1]
    A_PAD = _round_up(max(A, 128), 128)
    LANES = max(128, KKCA_PAD, H1, H2, A_PAD)

    # Conv weight rows: wk_aug[co, s*C_PAD + c] = conv_w[co, c, kh, kw] with
    # s = kh*K + kw; column KKC holds the conv bias (hits the slab's ones-row).
    wk = jnp.transpose(conv_w, (0, 2, 3, 1))                      # [Cout,K,K,C]
    wk = jnp.pad(wk, ((0, 0), (0, 0), (0, 0), (0, C_PAD - cin)))
    wk = wk.reshape(cout, KKC)
    wk_aug = jnp.concatenate([wk, params["conv_b"].reshape(cout, 1)], axis=1)

    # Encoder weight re-laid out on the full HxW grid (zero rows at spatial
    # positions the valid conv never produces) and flattened to [Cout*H*W, F]:
    # "flatten(NCHW) -> Linear" becomes one matmul with no activation reshape,
    # and the zero rows exactly mask the conv garbage at invalid positions.
    we = params["enc_w"].reshape(cout, OH, OW, F)
    we = jnp.pad(we, ((0, 0), (0, H - OH), (0, W - OW), (0, 0)))
    we = we.reshape(cout * HW, F).astype(jnp.float32)

    w3 = jnp.pad(params["mlp_w3"], ((0, 0), (0, A_PAD - A)))      # lane-dense head
    b3 = jnp.pad(params["mlp_b3"].reshape(1, -1), ((0, 0), (0, A_PAD - A)))

    # All remaining (small) parameters packed into ONE [rows, 128] buffer so
    # the kernel needs just two parameter DMAs.  Every sub-block starts on an
    # 8-row boundary; unused lanes/rows are zero.
    WK0 = 0
    BIAS0 = _round_up(cout, 8)
    W1_0 = BIAS0 + 8
    W2_0 = W1_0 + _round_up(F, 8)
    W3_0 = W2_0 + _round_up(H1, 8)
    ROWS = W3_0 + _round_up(H2, 8)
    buf = jnp.zeros((ROWS, LANES), jnp.float32)
    buf = buf.at[WK0:WK0 + cout, :KKC + 1].set(wk_aug)
    buf = buf.at[BIAS0, :F].set(params["enc_b"].reshape(-1))
    buf = buf.at[BIAS0 + 1, :H1].set(params["mlp_b1"].reshape(-1))
    buf = buf.at[BIAS0 + 2, :H2].set(params["mlp_b2"].reshape(-1))
    buf = buf.at[BIAS0 + 3, :A_PAD].set(b3.reshape(-1))
    buf = buf.at[W1_0:W1_0 + F, :H1].set(params["mlp_w1"])
    buf = buf.at[W2_0:W2_0 + H1, :H2].set(params["mlp_w2"])
    buf = buf.at[W3_0:W3_0 + H2, :A_PAD].set(w3)

    meta = dict(K=K, C_PAD=C_PAD, KKCA_PAD=KKCA_PAD, cout=cout, F=F, H1=H1,
                H2=H2, A=A, A_PAD=A_PAD, WK0=WK0, BIAS0=BIAS0,
                W1_0=W1_0, W2_0=W2_0, W3_0=W3_0)
    return {"par": buf, "we": we, "meta": meta}


# ---------------------------------------------------------------------------
# Forward pass: per-call im2col slab prep (XLA) + one pallas_call
# ---------------------------------------------------------------------------

def mdp_model_forward(packed, obs_nchw):
    """obs_nchw: [B, C, H, W] float32 -> actions [B, action_size]."""
    meta = packed["meta"]
    B, C, H, W = obs_nchw.shape
    K, C_PAD, KKCA_PAD = meta["K"], meta["C_PAD"], meta["KKCA_PAD"]
    A, A_PAD = meta["A"], meta["A_PAD"]
    HW = H * W
    KK = K * K
    max_shift = (K - 1) * W + (K - 1)

    # Pre-shifted im2col slab (built once per call by XLA; ~K*K x obs bytes):
    #   slab[s*C_PAD + c, b*HW + p] = obs[b, c, p + (s//K)*W + (s%K)]
    # plus a ones-row (fused conv bias) and zero rows up to KKCA_PAD.
    y = obs_nchw.astype(jnp.float32).reshape(B, C, HW)
    y = jnp.pad(y, ((0, 0), (0, C_PAD - C), (0, max_shift)))
    shifted = [y[:, :, kh * W + kw: kh * W + kw + HW]
               for kh in range(K) for kw in range(K)]          # [B, C_PAD, HW] each
    slab = jnp.stack(shifted, axis=1)                          # [B, KK, C_PAD, HW]
    slab = slab.transpose(1, 2, 0, 3).reshape(KK * C_PAD, B * HW)
    slab = jnp.concatenate(
        [slab, jnp.ones((1, B * HW), jnp.float32)], axis=0)    # bias ones-row
    slab = jnp.pad(slab, ((0, KKCA_PAD - (KK * C_PAD + 1)), (0, 0)))

    args = (slab, packed["par"], packed["we"])
    kernel = functools.partial(_fused_mdp_kernel, batch=B, hw=HW, meta=meta)

    out = pl.pallas_call(
        kernel,
        out_shape=jax.ShapeDtypeStruct((B, A_PAD), jnp.float32),
        in_specs=[_full_spec(a) for a in args],
        out_specs=pl.BlockSpec((B, A_PAD), lambda: (0, 0)),
    )(*args)
    return out[:, :A]


# ---------------------------------------------------------------------------
# Exact float64 NumPy reference (precision-controlled correctness check)
# ---------------------------------------------------------------------------

def mdp_model_forward_reference_f64(params, obs):
    p = {k: np.asarray(jax.device_get(v), np.float64) for k, v in params.items()}
    x = np.asarray(jax.device_get(obs), np.float64)
    B, C, H, W = x.shape
    cout, _, K, _ = p["conv_w"].shape
    OH, OW = H - K + 1, W - K + 1
    conv = np.zeros((B, cout, OH, OW), np.float64)
    for kh in range(K):
        for kw in range(K):
            conv += np.einsum("oc,bchw->bohw", p["conv_w"][:, :, kh, kw],
                              x[:, :, kh:kh + OH, kw:kw + OW])
    conv = np.maximum(conv + p["conv_b"].reshape(1, cout, 1, 1), 0.0)
    feats = conv.reshape(B, cout * OH * OW)
    feats = np.maximum(feats @ p["enc_w"] + p["enc_b"], 0.0)
    h = np.maximum(feats @ p["mlp_w1"] + p["mlp_b1"], 0.0)
    h = np.maximum(h @ p["mlp_w2"] + p["mlp_b2"], 0.0)
    return h @ p["mlp_w3"] + p["mlp_b3"]


# ---------------------------------------------------------------------------
# Deterministic parameter construction
# ---------------------------------------------------------------------------

def make_params(key, C, K, Cout, OH, OW, features_dim, hidden_sizes, action_size):
    ks = jax.random.split(key, 6)
    flat_conv = Cout * OH * OW

    def lin(k, fan_in, fan_out):
        bound = 1.0 / jnp.sqrt(fan_in)
        kw, kb = jax.random.split(k)
        w = jax.random.uniform(kw, (fan_in, fan_out), jnp.float32, -bound, bound)
        b = jax.random.uniform(kb, (1, fan_out), jnp.float32, -bound, bound)
        return w, b

    conv_bound = 1.0 / jnp.sqrt(C * K * K)
    params = {
        "conv_w": jax.random.uniform(ks[0], (Cout, C, K, K), jnp.float32,
                                     -conv_bound, conv_bound),
        "conv_b": jax.random.uniform(ks[1], (Cout,), jnp.float32,
                                     -conv_bound, conv_bound),
    }
    params["enc_w"], params["enc_b"] = lin(ks[2], flat_conv, features_dim)
    params["mlp_w1"], params["mlp_b1"] = lin(ks[3], features_dim, hidden_sizes[0])
    params["mlp_w2"], params["mlp_b2"] = lin(ks[4], hidden_sizes[0], hidden_sizes[1])
    params["mlp_w3"], params["mlp_b3"] = lin(ks[5], hidden_sizes[1], action_size)
    return params


# ---------------------------------------------------------------------------
# Main
# ---------------------------------------------------------------------------

if __name__ == "__main__":
    B, C, H, W = 2, 4, 16, 16            # observation batch, NCHW
    K, Cout = 3, 8                        # conv kernel / output channels
    OH, OW = H - K + 1, W - K + 1
    features_dim = 32
    hidden_sizes = [32, 32]
    action_size = 4

    key = jax.random.PRNGKey(0)
    k_obs, k_par = jax.random.split(key)

    obs = jax.random.normal(k_obs, (B, C, H, W), jnp.float32)
    params = make_params(k_par, C, K, Cout, OH, OW,
                         features_dim, hidden_sizes, action_size)

    packed = pack_params(params, H, W)    # one-time weight re-layout / packing

    fwd = jax.jit(functools.partial(mdp_model_forward, packed))
    actions = fwd(obs)
    jax.block_until_ready(actions)

    assert actions.shape == (B, action_size)
    assert actions.dtype == jnp.float32

    # Exact float64 reference; kernel matmuls run at f32 HIGHEST precision, so
    # 1e-4 is a genuine correctness bar (any indexing / re-layout bug is O(0.1)).
    ref = mdp_model_forward_reference_f64(params, obs)
    max_err = float(np.max(np.abs(
        np.asarray(jax.device_get(actions), np.float64) - ref)))
    assert max_err < 1e-4, f"mismatch vs reference: max abs err {max_err}"

    print("KERNEL_OK")
</pallas_src>

<mosaic_0001>
module attributes {stable_mosaic.version = 11 : i64} {
  func.func @_fused_mdp_kernel(%arg0: memref<80x512xf32, #tpu.memory_space<vmem>>, %arg1: memref<112x128xf32, #tpu.memory_space<vmem>>, %arg2: memref<2048x32xf32, #tpu.memory_space<vmem>>, %arg3: memref<2x128xf32, #tpu.memory_space<vmem>>) attributes {dimension_semantics = [], scalar_prefetch = 0 : i64, scratch_operands = 0 : i64, tpu.core_type = #tpu.core_type<tc>} {
    %c0 = arith.constant 0 : index
    %c0_0 = arith.constant 0 : index
    %0 = vector.load %arg1[%c0, %c0_0] : memref<112x128xf32, #tpu.memory_space<vmem>>, vector<8x80xf32>
    %c0_1 = arith.constant 0 : index
    %c0_2 = arith.constant 0 : index
    %1 = vector.load %arg0[%c0_1, %c0_2] : memref<80x512xf32, #tpu.memory_space<vmem>>, vector<80x512xf32>
    %cst = arith.constant dense<0.000000e+00> : vector<8x512xf32>
    %2 = tpu.matmul %0, %1, %cst {dimension_numbers = #tpu.dot_dimension_numbers<[1], [0], [0], [1], [0, 0, 1, 1], [], []>, precision = #tpu.contract_precision<fp32>} : vector<8x80xf32>, vector<80x512xf32>, vector<8x512xf32> -> vector<8x512xf32>
    %cst_3 = arith.constant 0.000000e+00 : f32
    %3 = vector.broadcast %cst_3 : f32 to vector<8x512xf32>
    %4 = arith.maximumf %2, %3 : vector<8x512xf32>
    %5 = tpu.iota {dimensions = array<i32: 0>} : vector<2x2048xi32>
    %cst_4 = arith.constant 0.000000e+00 : f32
    %6 = vector.broadcast %cst_4 : f32 to vector<2x2048xf32>
    %7 = vector.extract_strided_slice %4 {offsets = [0, 0], sizes = [1, 256], strides = [1, 1]} : vector<8x512xf32> to vector<1x256xf32>
    %8 = vector.extract_strided_slice %4 {offsets = [1, 0], sizes = [1, 256], strides = [1, 1]} : vector<8x512xf32> to vector<1x256xf32>
    %9 = vector.extract_strided_slice %4 {offsets = [2, 0], sizes = [1, 256], strides = [1, 1]} : vector<8x512xf32> to vector<1x256xf32>
    %10 = vector.extract_strided_slice %4 {offsets = [3, 0], sizes = [1, 256], strides = [1, 1]} : vector<8x512xf32> to vector<1x256xf32>
    %11 = vector.extract_strided_slice %4 {offsets = [4, 0], sizes = [1, 256], strides = [1, 1]} : vector<8x512xf32> to vector<1x256xf32>
    %12 = vector.extract_strided_slice %4 {offsets = [5, 0], sizes = [1, 256], strides = [1, 1]} : vector<8x512xf32> to vector<1x256xf32>
    %13 = vector.extract_strided_slice %4 {offsets = [6, 0], sizes = [1, 256], strides = [1, 1]} : vector<8x512xf32> to vector<1x256xf32>
    %14 = vector.extract_strided_slice %4 {offsets = [7, 0], sizes = [1, 256], strides = [1, 1]} : vector<8x512xf32> to vector<1x256xf32>
    %15 = tpu.concatenate %7, %8, %9, %10, %11, %12, %13, %14 in 1 : vector<1x256xf32>, vector<1x256xf32>, vector<1x256xf32>, vector<1x256xf32>, vector<1x256xf32>, vector<1x256xf32>, vector<1x256xf32>, vector<1x256xf32> -> vector<1x2048xf32>
    %c0_i32 = arith.constant 0 : i32
    %16 = vector.broadcast %c0_i32 : i32 to vector<2x2048xi32>
    %17 = arith.cmpi eq, %5, %16 : vector<2x2048xi32>
    %18 = vector.shape_cast %15 : vector<1x2048xf32> to vector<1x2048xf32>
    %19 = vector.broadcast %18 : vector<1x2048xf32> to vector<2x2048xf32>
    %cst_5 = arith.constant 0.000000e+00 : f32
    %20 = vector.broadcast %cst_5 : f32 to vector<2x2048xf32>
    %21 = arith.select %17, %19, %20 : vector<2x2048xi1>, vector<2x2048xf32>
    %22 = arith.addf %6, %21 : vector<2x2048xf32>
    %23 = vector.extract_strided_slice %4 {offsets = [0, 256], sizes = [1, 256], strides = [1, 1]} : vector<8x512xf32> to vector<1x256xf32>
    %24 = vector.extract_strided_slice %4 {offsets = [1, 256], sizes = [1, 256], strides = [1, 1]} : vector<8x512xf32> to vector<1x256xf32>
    %25 = vector.extract_strided_slice %4 {offsets = [2, 256], sizes = [1, 256], strides = [1, 1]} : vector<8x512xf32> to vector<1x256xf32>
    %26 = vector.extract_strided_slice %4 {offsets = [3, 256], sizes = [1, 256], strides = [1, 1]} : vector<8x512xf32> to vector<1x256xf32>
    %27 = vector.extract_strided_slice %4 {offsets = [4, 256], sizes = [1, 256], strides = [1, 1]} : vector<8x512xf32> to vector<1x256xf32>
    %28 = vector.extract_strided_slice %4 {offsets = [5, 256], sizes = [1, 256], strides = [1, 1]} : vector<8x512xf32> to vector<1x256xf32>
    %29 = vector.extract_strided_slice %4 {offsets = [6, 256], sizes = [1, 256], strides = [1, 1]} : vector<8x512xf32> to vector<1x256xf32>
    %30 = vector.extract_strided_slice %4 {offsets = [7, 256], sizes = [1, 256], strides = [1, 1]} : vector<8x512xf32> to vector<1x256xf32>
    %31 = tpu.concatenate %23, %24, %25, %26, %27, %28, %29, %30 in 1 : vector<1x256xf32>, vector<1x256xf32>, vector<1x256xf32>, vector<1x256xf32>, vector<1x256xf32>, vector<1x256xf32>, vector<1x256xf32>, vector<1x256xf32> -> vector<1x2048xf32>
    %c1_i32 = arith.constant 1 : i32
    %32 = vector.broadcast %c1_i32 : i32 to vector<2x2048xi32>
    %33 = arith.cmpi eq, %5, %32 : vector<2x2048xi32>
    %34 = vector.shape_cast %31 : vector<1x2048xf32> to vector<1x2048xf32>
    %35 = vector.broadcast %34 : vector<1x2048xf32> to vector<2x2048xf32>
    %cst_6 = arith.constant 0.000000e+00 : f32
    %36 = vector.broadcast %cst_6 : f32 to vector<2x2048xf32>
    %37 = arith.select %33, %35, %36 : vector<2x2048xi1>, vector<2x2048xf32>
    %38 = arith.addf %22, %37 : vector<2x2048xf32>
    %c8 = arith.constant 8 : index
    %c0_7 = arith.constant 0 : index
    %39 = vector.load %arg1[%c8, %c0_7] : memref<112x128xf32, #tpu.memory_space<vmem>>, vector<1x32xf32>
    %c0_8 = arith.constant 0 : index
    %c0_9 = arith.constant 0 : index
    %40 = vector.load %arg2[%c0_8, %c0_9] : memref<2048x32xf32, #tpu.memory_space<vmem>>, vector<2048x32xf32>
    %cst_10 = arith.constant dense<0.000000e+00> : vector<2x32xf32>
    %41 = tpu.matmul %38, %40, %cst_10 {dimension_numbers = #tpu.dot_dimension_numbers<[1], [0], [0], [1], [0, 0, 1, 1], [], []>, precision = #tpu.contract_precision<fp32>} : vector<2x2048xf32>, vector<2048x32xf32>, vector<2x32xf32> -> vector<2x32xf32>
    %42 = vector.broadcast %39 : vector<1x32xf32> to vector<2x32xf32>
    %43 = arith.addf %41, %42 : vector<2x32xf32>
    %cst_11 = arith.constant 0.000000e+00 : f32
    %44 = vector.broadcast %cst_11 : f32 to vector<2x32xf32>
    %45 = arith.maximumf %43, %44 : vector<2x32xf32>
    %c16 = arith.constant 16 : index
    %c0_12 = arith.constant 0 : index
    %46 = vector.load %arg1[%c16, %c0_12] : memref<112x128xf32, #tpu.memory_space<vmem>>, vector<32x32xf32>
    %c9 = arith.constant 9 : index
    %c0_13 = arith.constant 0 : index
    %47 = vector.load %arg1[%c9, %c0_13] : memref<112x128xf32, #tpu.memory_space<vmem>>, vector<1x32xf32>
    %cst_14 = arith.constant dense<0.000000e+00> : vector<2x32xf32>
    %48 = tpu.matmul %45, %46, %cst_14 {dimension_numbers = #tpu.dot_dimension_numbers<[1], [0], [0], [1], [0, 0, 1, 1], [], []>, precision = #tpu.contract_precision<fp32>} : vector<2x32xf32>, vector<32x32xf32>, vector<2x32xf32> -> vector<2x32xf32>
    %49 = vector.broadcast %47 : vector<1x32xf32> to vector<2x32xf32>
    %50 = arith.addf %48, %49 : vector<2x32xf32>
    %cst_15 = arith.constant 0.000000e+00 : f32
    %51 = vector.broadcast %cst_15 : f32 to vector<2x32xf32>
    %52 = arith.maximumf %50, %51 : vector<2x32xf32>
    %c48 = arith.constant 48 : index
    %c0_16 = arith.constant 0 : index
    %53 = vector.load %arg1[%c48, %c0_16] : memref<112x128xf32, #tpu.memory_space<vmem>>, vector<32x32xf32>
    %c10 = arith.constant 10 : index
    %c0_17 = arith.constant 0 : index
    %54 = vector.load %arg1[%c10, %c0_17] : memref<112x128xf32, #tpu.memory_space<vmem>>, vector<1x32xf32>
    %cst_18 = arith.constant dense<0.000000e+00> : vector<2x32xf32>
    %55 = tpu.matmul %52, %53, %cst_18 {dimension_numbers = #tpu.dot_dimension_numbers<[1], [0], [0], [1], [0, 0, 1, 1], [], []>, precision = #tpu.contract_precision<fp32>} : vector<2x32xf32>, vector<32x32xf32>, vector<2x32xf32> -> vector<2x32xf32>
    %56 = vector.broadcast %54 : vector<1x32xf32> to vector<2x32xf32>
    %57 = arith.addf %55, %56 : vector<2x32xf32>
    %cst_19 = arith.constant 0.000000e+00 : f32
    %58 = vector.broadcast %cst_19 : f32 to vector<2x32xf32>
    %59 = arith.maximumf %57, %58 : vector<2x32xf32>
    %c80 = arith.constant 80 : index
    %c0_20 = arith.constant 0 : index
    %60 = vector.load %arg1[%c80, %c0_20] : memref<112x128xf32, #tpu.memory_space<vmem>>, vector<32x128xf32>
    %c11 = arith.constant 11 : index
    %c0_21 = arith.constant 0 : index
    %61 = vector.load %arg1[%c11, %c0_21] : memref<112x128xf32, #tpu.memory_space<vmem>>, vector<1x128xf32>
    %cst_22 = arith.constant dense<0.000000e+00> : vector<2x128xf32>
    %62 = tpu.matmul %59, %60, %cst_22 {dimension_numbers = #tpu.dot_dimension_numbers<[1], [0], [0], [1], [0, 0, 1, 1], [], []>, precision = #tpu.contract_precision<fp32>} : vector<2x32xf32>, vector<32x128xf32>, vector<2x128xf32> -> vector<2x128xf32>
    %63 = vector.broadcast %61 : vector<1x128xf32> to vector<2x128xf32>
    %64 = arith.addf %62, %63 : vector<2x128xf32>
    %c0_23 = arith.constant 0 : index
    %c0_24 = arith.constant 0 : index
    %65 = vector.load %arg3[%c0_23, %c0_24] : memref<2x128xf32, #tpu.memory_space<vmem>>, vector<2x128xf32>
    tpu.vector_store %arg3[%c0_23, %c0_24], %64 {strides = array<i32>} : memref<2x128xf32, #tpu.memory_space<vmem>>, vector<2x128xf32>,
    return
  }
}

</mosaic_0001>

<llo_original>
// kernel: mdp_model_forward.1
$region0: #{mdp_model_forward.1}
  #allocation0 [shape = 'u32[]', space=smem, size = 0x4, offset = 0x4, fixed_abs, tag = 'smem constant byte address 0x4 - core index']
  #allocation1 [shape = 'u32[144,128]{1,0:T(1,128)}', space=vmem, size = 0x12000, scoped, tag = 'internal scratch']
  %s0 = inlined_call_operand.vmem [shape: f32[80,512], index: 0, kind: input, shape index: {}]
  %s1 = inlined_call_operand.vmem [shape: f32[112,128], index: 1, kind: input, shape index: {}]
  %s2 = inlined_call_operand.hbm [shape: f32[2048,32], index: 2, kind: input, shape index: {}]
  %s3 = inlined_call_operand.hbm [shape: f32[2,128], index: 3, kind: output, shape index: {}]
  %s4 = sld [smem:[#allocation0]]
  $region26: #{mdp_model_forward.1} parent=0
    _
  %s6 = ssub.s32 1, %s4
  %s7 = scalar_select 0, %s6, %s4
  $region1: #{mdp_model_forward.1} parent=0
    #allocation2 [shape = 'u8[1048576]{0}', space=vmem, size = 0x100000, scoped, tag = 'input window, operand 2, single buffered']
    #allocation3 [shape = 's32[1]{0}', space=sflag, size = 0x4, scoped, tag = 'scoped memory for mdp_model_forward.1']
    #allocation4 [shape = 's32[1]{0}', space=sflag, size = 0x4, scoped, tag = 'scoped memory for mdp_model_forward.1']
    #allocation5 [shape = 'u8[1024]{0}', space=vmem, size = 0x400, scoped, tag = 'output window, operand 0, single buffered']
    %8 = vsyncpa [#allocation3], 0
    %9 = vsyncpa [#allocation4], 0
    // Predicated region
    $region2: #{mdp_model_forward.1} parent=1 // pred_check
      _
    $region3: #{mdp_model_forward.1} parent=1 // pred_check_branch
      %11 = sbr.rel (0) target = $region5
    $region4: #{mdp_model_forward.1} parent=1 // pred_region
      _
    $region5: #{mdp_model_forward.1} parent=1 // pred_fallthru
      _
    // Predicated region
    $region6: #{mdp_model_forward.1} parent=1 // pred_check
      _
    $region7: #{mdp_model_forward.1} parent=1 // pred_check_branch
      %13 = sbr.rel (0) target = $region9
    $region8: #{mdp_model_forward.1} parent=1 // pred_region
      _
    $region9: #{mdp_model_forward.1} parent=1 // pred_fallthru
      _
    // Predicated region
    $region10: #{mdp_model_forward.1} parent=1 // pred_check
      _
    $region11: #{mdp_model_forward.1} parent=1 // pred_check_branch
      %15 = sbr.rel (0) target = $region13
    $region12: #{mdp_model_forward.1} parent=1 // pred_region
      %s17 = ssub.s32 32768, 32768
      %18 = vsyncadd [#allocation3], %s17
      %s19 = sshll.u32 [#allocation2], 4
      %s20 = int_to_ptr.vmem [resolvable:$true] %s19
      %25 = dma.hbm_to_vmem [thread:$0]  %s2, 32768, %s20, [#allocation3], 128, 128, 8
    $region13: #{mdp_model_forward.1} parent=1 // pred_fallthru
      _
    // Predicated region
    $region14: #{mdp_model_forward.1} parent=1 // pred_check
      _
    $region15: #{mdp_model_forward.1} parent=1 // pred_check_branch
      %27 = sbr.rel (0) target = $region17
    $region16: #{mdp_model_forward.1} parent=1 // pred_region
      %28 = dma.done [#allocation3], 32768
    $region17: #{mdp_model_forward.1} parent=1 // pred_fallthru
      _
    %v29 = vld [vmem:[%s1] sm:$0xff]
    %v30 = vld [vmem:[%s0] sm:$0xff]
    %v31 = vld [vmem:[%s0 + $0x8] sm:$0xff]
    %v32 = vld [vmem:[%s0 + $0x10] sm:$0xff]
    %v33 = vld [vmem:[%s0 + $0x18] sm:$0xff]
    %v34 = vld [vmem:[%s0 + $0x20] sm:$0xff]
    %v35 = vld [vmem:[%s0 + $0x28] sm:$0xff]
    %v36 = vld [vmem:[%s0 + $0x30] sm:$0xff]
    %v37 = vld [vmem:[%s0 + $0x38] sm:$0xff]
    %v38 = vld [vmem:[%s0 + $0x40] sm:$0xff]
    %v39 = vld [vmem:[%s0 + $0x48] sm:$0xff]
    %v40 = vld [vmem:[%s0 + $0x50] sm:$0xff]
    %v41 = vld [vmem:[%s0 + $0x58] sm:$0xff]
    %v42 = vld [vmem:[%s0 + $0x60] sm:$0xff]
    %v43 = vld [vmem:[%s0 + $0x68] sm:$0xff]
    %v44 = vld [vmem:[%s0 + $0x70] sm:$0xff]
    %v45 = vld [vmem:[%s0 + $0x78] sm:$0xff]
    %v46 = vld [vmem:[%s0 + $0x80] sm:$0xff]
    %v47 = vld [vmem:[%s0 + $0x88] sm:$0xff]
    %v48 = vld [vmem:[%s0 + $0x90] sm:$0xff]
    %v49 = vld [vmem:[%s0 + $0x98] sm:$0xff]
    %v50 = vld [vmem:[%s0 + $0xa0] sm:$0xff]
    %v51 = vld [vmem:[%s0 + $0xa8] sm:$0xff]
    %v52 = vld [vmem:[%s0 + $0xb0] sm:$0xff]
    %v53 = vld [vmem:[%s0 + $0xb8] sm:$0xff]
    %v54 = vld [vmem:[%s0 + $0xc0] sm:$0xff]
    %v55 = vld [vmem:[%s0 + $0xc8] sm:$0xff]
    %v56 = vld [vmem:[%s0 + $0xd0] sm:$0xff]
    %v57 = vld [vmem:[%s0 + $0xd8] sm:$0xff]
    %v58 = vld [vmem:[%s0 + $0xe0] sm:$0xff]
    %v59 = vld [vmem:[%s0 + $0xe8] sm:$0xff]
    %v60 = vld [vmem:[%s0 + $0xf0] sm:$0xff]
    %v61 = vld [vmem:[%s0 + $0xf8] sm:$0xff]
    %v62 = vld [vmem:[%s0 + $0x100] sm:$0xff]
    %v63 = vld [vmem:[%s0 + $0x108] sm:$0xff]
    %v64 = vld [vmem:[%s0 + $0x110] sm:$0xff]
    %v65 = vld [vmem:[%s0 + $0x118] sm:$0xff]
    %v66 = vld [vmem:[%s0 + $0x120] sm:$0xff]
    %v67 = vld [vmem:[%s0 + $0x128] sm:$0xff]
    %v68 = vld [vmem:[%s0 + $0x130] sm:$0xff]
    %v69 = vld [vmem:[%s0 + $0x138] sm:$0xff]
    %vm70 = vcmask 654336
    %v72 = vsel %vm70, %v29, 0
    %v74 = vand.u32 %v31, 4294901760
    %75 = vmatprep.subr.mxu0 %v74
    %v76 = vand.u32 %v30, 4294901760
    %77 = vmatpush1.msra.mxu0 %v76
    %v78 = vand.u32 %v35, 4294901760
    %79 = vmatprep.subr.mxu0 %v78
    %v80 = vand.u32 %v34, 4294901760
    %81 = vmatpush1.msra.mxu0 %v80
    %v82 = vand.u32 %v39, 4294901760
    %83 = vmatprep.subr.mxu0 %v82
    %v84 = vand.u32 %v38, 4294901760
    %85 = vmatpush1.msra.mxu0 %v84
    %v86 = vand.u32 %v43, 4294901760
    %87 = vmatprep.subr.mxu0 %v86
    %v88 = vand.u32 %v42, 4294901760
    %89 = vmatpush1.msra.mxu0 %v88
    %v90 = vand.u32 %v47, 4294901760
    %91 = vmatprep.subr.mxu0 %v90
    %v92 = vand.u32 %v46, 4294901760
    %93 = vmatpush1.msra.mxu0 %v92
    %v94 = vand.u32 %v51, 4294901760
    %95 = vmatprep.subr.mxu0 %v94
    %v96 = vand.u32 %v50, 4294901760
    %97 = vmatpush1.msra.mxu0 %v96
    %v98 = vand.u32 %v55, 4294901760
    %99 = vmatprep.subr.mxu0 %v98
    %v100 = vand.u32 %v54, 4294901760
    %101 = vmatpush1.msra.mxu0 %v100
    %v102 = vand.u32 %v59, 4294901760
    %103 = vmatprep.subr.mxu0 %v102
    %v104 = vand.u32 %v58, 4294901760
    %105 = vmatpush1.msra.mxu0 %v104
    %v106 = vand.u32 %v63, 4294901760
    %107 = vmatprep.subr.mxu0 %v106
    %v108 = vand.u32 %v62, 4294901760
    %109 = vmatpush1.msra.mxu0 %v108
    %v110 = vand.u32 %v67, 4294901760
    %111 = vmatprep.subr.mxu0 %v110
    %v112 = vand.u32 %v66, 4294901760
    %113 = vmatpush1.msra.mxu0 %v112
    %114 = vmatprep.subr.mxu0 0.0
    %115 = vmatpush1.msra.mxu0 0.0
    %116 = vmatprep.subr.mxu0 0.0
    %117 = vmatpush1.msra.mxu0 0.0
    %118 = vmatprep.subr.mxu0 0.0
    %119 = vmatpush1.msra.mxu0 0.0
    %120 = vmatprep.subr.mxu0 0.0
    %121 = vmatpush1.msra.mxu0 0.0
    %122 = vmatprep.subr.mxu0 0.0
    %123 = vmatpush1.msra.mxu0 0.0
    %124 = vmatprep.subr.mxu0 0.0
    %125 = vmatpush1.msra.mxu0 0.0
    %126 = vmatprep.subr.mxu0 0.0
    %127 = vmatpush1.msra.mxu0 0.0
    %128 = vmatprep.subr.mxu0 0.0
    %129 = vmatpush1.msra.mxu0 0.0
    %130 = vmatprep.subr.mxu0 0.0
    %131 = vmatpush1.msra.mxu0 0.0
    %132 = vmatprep.subr.mxu0 0.0
    %133 = vmatpush1.msra.mxu0 0.0
    %134 = vmatprep.subr.mxu0 0.0
    %135 = vmatpush1.msra.mxu0 0.0
    %136 = vmatprep.subr.mxu0 0.0
    %137 = vmatpush1.msra.mxu0 0.0
    %138 = vmatprep.subr.mxu0 0.0
    %139 = vmatpush1.msra.mxu0 0.0
    %140 = vmatprep.subr.mxu0 0.0
    %141 = vmatpush1.msra.mxu0 0.0
    %142 = vmatprep.subr.mxu0 0.0
    %143 = vmatpush1.msra.mxu0 0.0
    %144 = vmatprep.subr.mxu0 0.0
    %145 = vmatpush1.msra.mxu0 0.0
    %146 = vmatprep.subr.mxu0 0.0
    %147 = vmatpush1.msra.mxu0 0.0
    %148 = vmatprep.subr.mxu0 0.0
    %149 = vmatpush1.msra.mxu0 0.0
    %150 = vmatprep.subr.mxu0 0.0
    %151 = vmatpush1.msra.mxu0 0.0
    %152 = vmatprep.subr.mxu0 0.0
    %153 = vmatpush1.msra.mxu0 0.0
    %154 = vmatprep.subr.mxu0 0.0
    %155 = vmatpush1.msra.mxu0 0.0
    %156 = vmatprep.subr.mxu0 0.0
    %157 = vmatpush1.msra.mxu0 0.0
    %158 = vmatprep.mubr.f32.mxu0 0.0
    %v159 = vand.u32 %v72, 4294901760
    %v160 = vsub.f32 %v72, %v159
    %v161 = vand.u32 %v160, 4294901760
    %v162 = vsub.f32 %v160, %v161
    %v163 = vand.u32 %v162, 4294901760
    %164 = vmatmul.mubr.f32.gmra.mrb[0].mxu0 %v163
    %v165 = vpop.f32.mrb[0].mxu0
    %v166 = vadd.f32 0.0, %v165
    %v167 = vpop.f32.mrb[0].mxu0
    %v168 = vadd.f32 0.0, %v167
    %169 = vdwg.mxu0
    %v170 = vand.u32 %v31, 4294901760
    %v171 = vsub.f32 %v31, %v170
    %v172 = vand.u32 %v171, 4294901760
    %v173 = vsub.f32 %v171, %v172
    %v174 = vand.u32 %v173, 4294901760
    %175 = vmatprep.subr.mxu0 %v174
    %v176 = vand.u32 %v30, 4294901760
    %v177 = vsub.f32 %v30, %v176
    %v178 = vand.u32 %v177, 4294901760
    %v179 = vsub.f32 %v177, %v178
    %v180 = vand.u32 %v179, 4294901760
    %181 = vmatpush1.msra.mxu0 %v180
    %v182 = vand.u32 %v35, 4294901760
    %v183 = vsub.f32 %v35, %v182
    %v184 = vand.u32 %v183, 4294901760
    %v185 = vsub.f32 %v183, %v184
    %v186 = vand.u32 %v185, 4294901760
    %187 = vmatprep.subr.mxu0 %v186
    %v188 = vand.u32 %v34, 4294901760
    %v189 = vsub.f32 %v34, %v188
    %v190 = vand.u32 %v189, 4294901760
    %v191 = vsub.f32 %v189, %v190
    %v192 = vand.u32 %v191, 4294901760
    %193 = vmatpush1.msra.mxu0 %v192
    %v194 = vand.u32 %v39, 4294901760
    %v195 = vsub.f32 %v39, %v194
    %v196 = vand.u32 %v195, 4294901760
    %v197 = vsub.f32 %v195, %v196
    %v198 = vand.u32 %v197, 4294901760
    %199 = vmatprep.subr.mxu0 %v198
    %v200 = vand.u32 %v38, 4294901760
    %v201 = vsub.f32 %v38, %v200
    %v202 = vand.u32 %v201, 4294901760
    %v203 = vsub.f32 %v201, %v202
    %v204 = vand.u32 %v203, 4294901760
    %205 = vmatpush1.msra.mxu0 %v204
    %v206 = vand.u32 %v43, 4294901760
    %v207 = vsub.f32 %v43, %v206
    %v208 = vand.u32 %v207, 4294901760
    %v209 = vsub.f32 %v207, %v208
    %v210 = vand.u32 %v209, 4294901760
    %211 = vmatprep.subr.mxu0 %v210
    %v212 = vand.u32 %v42, 4294901760
    %v213 = vsub.f32 %v42, %v212
    %v214 = vand.u32 %v213, 4294901760
    %v215 = vsub.f32 %v213, %v214
    %v216 = vand.u32 %v215, 4294901760
    %217 = vmatpush1.msra.mxu0 %v216
    %v218 = vand.u32 %v47, 4294901760
    %v219 = vsub.f32 %v47, %v218
    %v220 = vand.u32 %v219, 4294901760
    %v221 = vsub.f32 %v219, %v220
    %v222 = vand.u32 %v221, 4294901760
    %223 = vmatprep.subr.mxu0 %v222
    %v224 = vand.u32 %v46, 4294901760
    %v225 = vsub.f32 %v46, %v224
    %v226 = vand.u32 %v225, 4294901760
    %v227 = vsub.f32 %v225, %v226
    %v228 = vand.u32 %v227, 4294901760
    %229 = vmatpush1.msra.mxu0 %v228
    %v230 = vand.u32 %v51, 4294901760
    %v231 = vsub.f32 %v51, %v230
    %v232 = vand.u32 %v231, 4294901760
    %v233 = vsub.f32 %v231, %v232
    %v234 = vand.u32 %v233, 4294901760
    %235 = vmatprep.subr.mxu0 %v234
    %v236 = vand.u32 %v50, 4294901760
    %v237 = vsub.f32 %v50, %v236
    %v238 = vand.u32 %v237, 4294901760
    %v239 = vsub.f32 %v237, %v238
    %v240 = vand.u32 %v239, 4294901760
    %241 = vmatpush1.msra.mxu0 %v240
    %v242 = vand.u32 %v55, 4294901760
    %v243 = vsub.f32 %v55, %v242
    %v244 = vand.u32 %v243, 4294901760
    %v245 = vsub.f32 %v243, %v244
    %v246 = vand.u32 %v245, 4294901760
    %247 = vmatprep.subr.mxu0 %v246
    %v248 = vand.u32 %v54, 4294901760
    %v249 = vsub.f32 %v54, %v248
    %v250 = vand.u32 %v249, 4294901760
    %v251 = vsub.f32 %v249, %v250
    %v252 = vand.u32 %v251, 4294901760
    %253 = vmatpush1.msra.mxu0 %v252
    %v254 = vand.u32 %v59, 4294901760
    %v255 = vsub.f32 %v59, %v254
    %v256 = vand.u32 %v255, 4294901760
    %v257 = vsub.f32 %v255, %v256
    %v258 = vand.u32 %v257, 4294901760
    %259 = vmatprep.subr.mxu0 %v258
    %v260 = vand.u32 %v58, 4294901760
    %v261 = vsub.f32 %v58, %v260
    %v262 = vand.u32 %v261, 4294901760
    %v263 = vsub.f32 %v261, %v262
    %v264 = vand.u32 %v263, 4294901760
    %265 = vmatpush1.msra.mxu0 %v264
    %v266 = vand.u32 %v63, 4294901760
    %v267 = vsub.f32 %v63, %v266
    %v268 = vand.u32 %v267, 4294901760
    %v269 = vsub.f32 %v267, %v268
    %v270 = vand.u32 %v269, 4294901760
    %271 = vmatprep.subr.mxu0 %v270
    %v272 = vand.u32 %v62, 4294901760
    %v273 = vsub.f32 %v62, %v272
    %v274 = vand.u32 %v273, 4294901760
    %v275 = vsub.f32 %v273, %v274
    %v276 = vand.u32 %v275, 4294901760
    %277 = vmatpush1.msra.mxu0 %v276
    %v278 = vand.u32 %v67, 4294901760
    %v279 = vsub.f32 %v67, %v278
    %v280 = vand.u32 %v279, 4294901760
    %v281 = vsub.f32 %v279, %v280
    %v282 = vand.u32 %v281, 4294901760
    %283 = vmatprep.subr.mxu0 %v282
    %v284 = vand.u32 %v66, 4294901760
    %v285 = vsub.f32 %v66, %v284
    %v286 = vand.u32 %v285, 4294901760
    %v287 = vsub.f32 %v285, %v286
    %v288 = vand.u32 %v287, 4294901760
    %289 = vmatpush1.msra.mxu0 %v288
    %290 = vmatprep.subr.mxu0 0.0
    %291 = vmatpush1.msra.mxu0 0.0
    %292 = vmatprep.subr.mxu0 0.0
    %293 = vmatpush1.msra.mxu0 0.0
    %294 = vmatprep.subr.mxu0 0.0
    %295 = vmatpush1.msra.mxu0 0.0
    %296 = vmatprep.subr.mxu0 0.0
    %297 = vmatpush1.msra.mxu0 0.0
    %298 = vmatprep.subr.mxu0 0.0
    %299 = vmatpush1.msra.mxu0 0.0
    %300 = vmatprep.subr.mxu0 0.0
    %301 = vmatpush1.msra.mxu0 0.0
    %302 = vmatprep.subr.mxu0 0.0
    %303 = vmatpush1.msra.mxu0 0.0
    %304 = vmatprep.subr.mxu0 0.0
    %305 = vmatpush1.msra.mxu0 0.0
    %306 = vmatprep.subr.mxu0 0.0
    %307 = vmatpush1.msra.mxu0 0.0
    %308 = vmatprep.subr.mxu0 0.0
    %309 = vmatpush1.msra.mxu0 0.0
    %310 = vmatprep.subr.mxu0 0.0
    %311 = vmatpush1.msra.mxu0 0.0
    %312 = vmatprep.subr.mxu0 0.0
    %313 = vmatpush1.msra.mxu0 0.0
    %314 = vmatprep.subr.mxu0 0.0
    %315 = vmatpush1.msra.mxu0 0.0
    %316 = vmatprep.subr.mxu0 0.0
    %317 = vmatpush1.msra.mxu0 0.0
    %318 = vmatprep.subr.mxu0 0.0
    %319 = vmatpush1.msra.mxu0 0.0
    %320 = vmatprep.subr.mxu0 0.0
    %321 = vmatpush1.msra.mxu0 0.0
    %322 = vmatprep.subr.mxu0 0.0
    %323 = vmatpush1.msra.mxu0 0.0
    %324 = vmatprep.subr.mxu0 0.0
    %325 = vmatpush1.msra.mxu0 0.0
    %326 = vmatprep.subr.mxu0 0.0
    %327 = vmatpush1.msra.mxu0 0.0
    %328 = vmatprep.subr.mxu0 0.0
    %329 = vmatpush1.msra.mxu0 0.0
    %330 = vmatprep.subr.mxu0 0.0
    %331 = vmatpush1.msra.mxu0 0.0
    %332 = vmatprep.subr.mxu0 0.0
    %333 = vmatpush1.msra.mxu0 0.0
    %334 = vmatprep.mubr.f32.mxu0 0.0
    %v335 = vand.u32 %v72, 4294901760
    %336 = vmatmul.mubr.f32.gmra.mrb[0].mxu0 %v335
    %v337 = vpop.f32.mrb[0].mxu0
    %v338 = vadd.f32 %v166, %v337
    %v339 = vpop.f32.mrb[0].mxu0
    %v340 = vadd.f32 %v168, %v339
    %341 = vdwg.mxu0
    %v342 = vand.u32 %v31, 4294901760
    %v343 = vsub.f32 %v31, %v342
    %344 = vmatprep.subr.mxu0 %v343
    %v345 = vand.u32 %v30, 4294901760
    %v346 = vsub.f32 %v30, %v345
    %347 = vmatpush1.msra.mxu0 %v346
    %v348 = vand.u32 %v35, 4294901760
    %v349 = vsub.f32 %v35, %v348
    %350 = vmatprep.subr.mxu0 %v349
    %v351 = vand.u32 %v34, 4294901760
    %v352 = vsub.f32 %v34, %v351
    %353 = vmatpush1.msra.mxu0 %v352
    %v354 = vand.u32 %v39, 4294901760
    %v355 = vsub.f32 %v39, %v354
    %356 = vmatprep.subr.mxu0 %v355
    %v357 = vand.u32 %v38, 4294901760
    %v358 = vsub.f32 %v38, %v357
    %359 = vmatpush1.msra.mxu0 %v358
    %v360 = vand.u32 %v43, 4294901760
    %v361 = vsub.f32 %v43, %v360
    %362 = vmatprep.subr.mxu0 %v361
    %v363 = vand.u32 %v42, 4294901760
    %v364 = vsub.f32 %v42, %v363
    %365 = vmatpush1.msra.mxu0 %v364
    %v366 = vand.u32 %v47, 4294901760
    %v367 = vsub.f32 %v47, %v366
    %368 = vmatprep.subr.mxu0 %v367
    %v369 = vand.u32 %v46, 4294901760
    %v370 = vsub.f32 %v46, %v369
    %371 = vmatpush1.msra.mxu0 %v370
    %v372 = vand.u32 %v51, 4294901760
    %v373 = vsub.f32 %v51, %v372
    %374 = vmatprep.subr.mxu0 %v373
    %v375 = vand.u32 %v50, 4294901760
    %v376 = vsub.f32 %v50, %v375
    %377 = vmatpush1.msra.mxu0 %v376
    %v378 = vand.u32 %v55, 4294901760
    %v379 = vsub.f32 %v55, %v378
    %380 = vmatprep.subr.mxu0 %v379
    %v381 = vand.u32 %v54, 4294901760
    %v382 = vsub.f32 %v54, %v381
    %383 = vmatpush1.msra.mxu0 %v382
    %v384 = vand.u32 %v59, 4294901760
    %v385 = vsub.f32 %v59, %v384
    %386 = vmatprep.subr.mxu0 %v385
    %v387 = vand.u32 %v58, 4294901760
    %v388 = vsub.f32 %v58, %v387
    %389 = vmatpush1.msra.mxu0 %v388
    %v390 = vand.u32 %v63, 4294901760
    %v391 = vsub.f32 %v63, %v390
    %392 = vmatprep.subr.mxu0 %v391
    %v393 = vand.u32 %v62, 4294901760
    %v394 = vsub.f32 %v62, %v393
    %395 = vmatpush1.msra.mxu0 %v394
    %v396 = vand.u32 %v67, 4294901760
    %v397 = vsub.f32 %v67, %v396
    %398 = vmatprep.subr.mxu0 %v397
    %v399 = vand.u32 %v66, 4294901760
    %v400 = vsub.f32 %v66, %v399
    %401 = vmatpush1.msra.mxu0 %v400
    %402 = vmatprep.subr.mxu0 0.0
    %403 = vmatpush1.msra.mxu0 0.0
    %404 = vmatprep.subr.mxu0 0.0
    %405 = vmatpush1.msra.mxu0 0.0
    %406 = vmatprep.subr.mxu0 0.0
    %407 = vmatpush1.msra.mxu0 0.0
    %408 = vmatprep.subr.mxu0 0.0
    %409 = vmatpush1.msra.mxu0 0.0
    %410 = vmatprep.subr.mxu0 0.0
    %411 = vmatpush1.msra.mxu0 0.0
    %412 = vmatprep.subr.mxu0 0.0
    %413 = vmatpush1.msra.mxu0 0.0
    %414 = vmatprep.subr.mxu0 0.0
    %415 = vmatpush1.msra.mxu0 0.0
    %416 = vmatprep.subr.mxu0 0.0
    %417 = vmatpush1.msra.mxu0 0.0
    %418 = vmatprep.subr.mxu0 0.0
    %419 = vmatpush1.msra.mxu0 0.0
    %420 = vmatprep.subr.mxu0 0.0
    %421 = vmatpush1.msra.mxu0 0.0
    %422 = vmatprep.subr.mxu0 0.0
    %423 = vmatpush1.msra.mxu0 0.0
    %424 = vmatprep.subr.mxu0 0.0
    %425 = vmatpush1.msra.mxu0 0.0
    %426 = vmatprep.subr.mxu0 0.0
    %427 = vmatpush1.msra.mxu0 0.0
    %428 = vmatprep.subr.mxu0 0.0
    %429 = vmatpush1.msra.mxu0 0.0
    %430 = vmatprep.subr.mxu0 0.0
    %431 = vmatpush1.msra.mxu0 0.0
    %432 = vmatprep.subr.mxu0 0.0
    %433 = vmatpush1.msra.mxu0 0.0
    %434 = vmatprep.subr.mxu0 0.0
    %435 = vmatpush1.msra.mxu0 0.0
    %436 = vmatprep.subr.mxu0 0.0
    %437 = vmatpush1.msra.mxu0 0.0
    %438 = vmatprep.subr.mxu0 0.0
    %439 = vmatpush1.msra.mxu0 0.0
    %440 = vmatprep.subr.mxu0 0.0
    %441 = vmatpush1.msra.mxu0 0.0
    %442 = vmatprep.subr.mxu0 0.0
    %443 = vmatpush1.msra.mxu0 0.0
    %444 = vmatprep.subr.mxu0 0.0
    %445 = vmatpush1.msra.mxu0 0.0
    %446 = vmatprep.mubr.f32.mxu0 0.0
    %v447 = vand.u32 %v72, 4294901760
    %v448 = vsub.f32 %v72, %v447
    %449 = vmatmul.mubr.f32.gmra.mrb[0].mxu0 %v448
    %v450 = vpop.f32.mrb[0].mxu0
    %v451 = vadd.f32 %v338, %v450
    %v452 = vpop.f32.mrb[0].mxu0
    %v453 = vadd.f32 %v340, %v452
    %454 = vdwg.mxu0
    %v455 = vand.u32 %v31, 4294901760
    %456 = vmatprep.subr.mxu0 %v455
    %v457 = vand.u32 %v30, 4294901760
    %458 = vmatpush1.msra.mxu0 %v457
    %v459 = vand.u32 %v35, 4294901760
    %460 = vmatprep.subr.mxu0 %v459
    %v461 = vand.u32 %v34, 4294901760
    %462 = vmatpush1.msra.mxu0 %v461
    %v463 = vand.u32 %v39, 4294901760
    %464 = vmatprep.subr.mxu0 %v463
    %v465 = vand.u32 %v38, 4294901760
    %466 = vmatpush1.msra.mxu0 %v465
    %v467 = vand.u32 %v43, 4294901760
    %468 = vmatprep.subr.mxu0 %v467
    %v469 = vand.u32 %v42, 4294901760
    %470 = vmatpush1.msra.mxu0 %v469
    %v471 = vand.u32 %v47, 4294901760
    %472 = vmatprep.subr.mxu0 %v471
    %v473 = vand.u32 %v46, 4294901760
    %474 = vmatpush1.msra.mxu0 %v473
    %v475 = vand.u32 %v51, 4294901760
    %476 = vmatprep.subr.mxu0 %v475
    %v477 = vand.u32 %v50, 4294901760
    %478 = vmatpush1.msra.mxu0 %v477
    %v479 = vand.u32 %v55, 4294901760
    %480 = vmatprep.subr.mxu0 %v479
    %v481 = vand.u32 %v54, 4294901760
    %482 = vmatpush1.msra.mxu0 %v481
    %v483 = vand.u32 %v59, 4294901760
    %484 = vmatprep.subr.mxu0 %v483
    %v485 = vand.u32 %v58, 4294901760
    %486 = vmatpush1.msra.mxu0 %v485
    %v487 = vand.u32 %v63, 4294901760
    %488 = vmatprep.subr.mxu0 %v487
    %v489 = vand.u32 %v62, 4294901760
    %490 = vmatpush1.msra.mxu0 %v489
    %v491 = vand.u32 %v67, 4294901760
    %492 = vmatprep.subr.mxu0 %v491
    %v493 = vand.u32 %v66, 4294901760
    %494 = vmatpush1.msra.mxu0 %v493
    %495 = vmatprep.subr.mxu0 0.0
    %496 = vmatpush1.msra.mxu0 0.0
    %497 = vmatprep.subr.mxu0 0.0
    %498 = vmatpush1.msra.mxu0 0.0
    %499 = vmatprep.subr.mxu0 0.0
    %500 = vmatpush1.msra.mxu0 0.0
    %501 = vmatprep.subr.mxu0 0.0
    %502 = vmatpush1.msra.mxu0 0.0
    %503 = vmatprep.subr.mxu0 0.0
    %504 = vmatpush1.msra.mxu0 0.0
    %505 = vmatprep.subr.mxu0 0.0
    %506 = vmatpush1.msra.mxu0 0.0
    %507 = vmatprep.subr.mxu0 0.0
    %508 = vmatpush1.msra.mxu0 0.0
    %509 = vmatprep.subr.mxu0 0.0
    %510 = vmatpush1.msra.mxu0 0.0
    %511 = vmatprep.subr.mxu0 0.0
    %512 = vmatpush1.msra.mxu0 0.0
    %513 = vmatprep.subr.mxu0 0.0
    %514 = vmatpush1.msra.mxu0 0.0
    %515 = vmatprep.subr.mxu0 0.0
    %516 = vmatpush1.msra.mxu0 0.0
    %517 = vmatprep.subr.mxu0 0.0
    %518 = vmatpush1.msra.mxu0 0.0
    %519 = vmatprep.subr.mxu0 0.0
    %520 = vmatpush1.msra.mxu0 0.0
    %521 = vmatprep.subr.mxu0 0.0
    %522 = vmatpush1.msra.mxu0 0.0
    %523 = vmatprep.subr.mxu0 0.0
    %524 = vmatpush1.msra.mxu0 0.0
    %525 = vmatprep.subr.mxu0 0.0
    %526 = vmatpush1.msra.mxu0 0.0
    %527 = vmatprep.subr.mxu0 0.0
    %528 = vmatpush1.msra.mxu0 0.0
    %529 = vmatprep.subr.mxu0 0.0
    %530 = vmatpush1.msra.mxu0 0.0
    %531 = vmatprep.subr.mxu0 0.0
    %532 = vmatpush1.msra.mxu0 0.0
    %533 = vmatprep.subr.mxu0 0.0
    %534 = vmatpush1.msra.mxu0 0.0
    %535 = vmatprep.subr.mxu0 0.0
    %536 = vmatpush1.msra.mxu0 0.0
    %537 = vmatprep.subr.mxu0 0.0
    %538 = vmatpush1.msra.mxu0 0.0
    %539 = vmatprep.mubr.f32.mxu0 0.0
    %v540 = vand.u32 %v72, 4294901760
    %v541 = vsub.f32 %v72, %v540
    %v542 = vand.u32 %v541, 4294901760
    %543 = vmatmul.mubr.f32.gmra.mrb[0].mxu0 %v542
    %v544 = vpop.f32.mrb[0].mxu0
    %v545 = vadd.f32 %v451, %v544
    %v546 = vpop.f32.mrb[0].mxu0
    %v547 = vadd.f32 %v453, %v546
    %548 = vdwg.mxu0
    %v549 = vand.u32 %v31, 4294901760
    %v550 = vsub.f32 %v31, %v549
    %v551 = vand.u32 %v550, 4294901760
    %552 = vmatprep.subr.mxu0 %v551
    %v553 = vand.u32 %v30, 4294901760
    %v554 = vsub.f32 %v30, %v553
    %v555 = vand.u32 %v554, 4294901760
    %556 = vmatpush1.msra.mxu0 %v555
    %v557 = vand.u32 %v35, 4294901760
    %v558 = vsub.f32 %v35, %v557
    %v559 = vand.u32 %v558, 4294901760
    %560 = vmatprep.subr.mxu0 %v559
    %v561 = vand.u32 %v34, 4294901760
    %v562 = vsub.f32 %v34, %v561
    %v563 = vand.u32 %v562, 4294901760
    %564 = vmatpush1.msra.mxu0 %v563
    %v565 = vand.u32 %v39, 4294901760
    %v566 = vsub.f32 %v39, %v565
    %v567 = vand.u32 %v566, 4294901760
    %568 = vmatprep.subr.mxu0 %v567
    %v569 = vand.u32 %v38, 4294901760
    %v570 = vsub.f32 %v38, %v569
    %v571 = vand.u32 %v570, 4294901760
    %572 = vmatpush1.msra.mxu0 %v571
    %v573 = vand.u32 %v43, 4294901760
    %v574 = vsub.f32 %v43, %v573
    %v575 = vand.u32 %v574, 4294901760
    %576 = vmatprep.subr.mxu0 %v575
    %v577 = vand.u32 %v42, 4294901760
    %v578 = vsub.f32 %v42, %v577
    %v579 = vand.u32 %v578, 4294901760
    %580 = vmatpush1.msra.mxu0 %v579
    %v581 = vand.u32 %v47, 4294901760
    %v582 = vsub.f32 %v47, %v581
    %v583 = vand.u32 %v582, 4294901760
    %584 = vmatprep.subr.mxu0 %v583
    %v585 = vand.u32 %v46, 4294901760
    %v586 = vsub.f32 %v46, %v585
    %v587 = vand.u32 %v586, 4294901760
    %588 = vmatpush1.msra.mxu0 %v587
    %v589 = vand.u32 %v51, 4294901760
    %v590 = vsub.f32 %v51, %v589
    %v591 = vand.u32 %v590, 4294901760
    %592 = vmatprep.subr.mxu0 %v591
    %v593 = vand.u32 %v50, 4294901760
    %v594 = vsub.f32 %v50, %v593
    %v595 = vand.u32 %v594, 4294901760
    %596 = vmatpush1.msra.mxu0 %v595
    %v597 = vand.u32 %v55, 4294901760
    %v598 = vsub.f32 %v55, %v597
    %v599 = vand.u32 %v598, 4294901760
    %600 = vmatprep.subr.mxu0 %v599
    %v601 = vand.u32 %v54, 4294901760
    %v602 = vsub.f32 %v54, %v601
    %v603 = vand.u32 %v602, 4294901760
    %604 = vmatpush1.msra.mxu0 %v603
    %v605 = vand.u32 %v59, 4294901760
    %v606 = vsub.f32 %v59, %v605
    %v607 = vand.u32 %v606, 4294901760
    %608 = vmatprep.subr.mxu0 %v607
    %v609 = vand.u32 %v58, 4294901760
    %v610 = vsub.f32 %v58, %v609
    %v611 = vand.u32 %v610, 4294901760
    %612 = vmatpush1.msra.mxu0 %v611
    %v613 = vand.u32 %v63, 4294901760
    %v614 = vsub.f32 %v63, %v613
    %v615 = vand.u32 %v614, 4294901760
    %616 = vmatprep.subr.mxu0 %v615
    %v617 = vand.u32 %v62, 4294901760
    %v618 = vsub.f32 %v62, %v617
    %v619 = vand.u32 %v618, 4294901760
    %620 = vmatpush1.msra.mxu0 %v619
    %v621 = vand.u32 %v67, 4294901760
    %v622 = vsub.f32 %v67, %v621
    %v623 = vand.u32 %v622, 4294901760
    %624 = vmatprep.subr.mxu0 %v623
    %v625 = vand.u32 %v66, 4294901760
    %v626 = vsub.f32 %v66, %v625
    %v627 = vand.u32 %v626, 4294901760
    %628 = vmatpush1.msra.mxu0 %v627
    %629 = vmatprep.subr.mxu0 0.0
    %630 = vmatpush1.msra.mxu0 0.0
    %631 = vmatprep.subr.mxu0 0.0
    %632 = vmatpush1.msra.mxu0 0.0
    %633 = vmatprep.subr.mxu0 0.0
    %634 = vmatpush1.msra.mxu0 0.0
    %635 = vmatprep.subr.mxu0 0.0
    %636 = vmatpush1.msra.mxu0 0.0
    %637 = vmatprep.subr.mxu0 0.0
    %638 = vmatpush1.msra.mxu0 0.0
    %639 = vmatprep.subr.mxu0 0.0
    %640 = vmatpush1.msra.mxu0 0.0
    %641 = vmatprep.subr.mxu0 0.0
    %642 = vmatpush1.msra.mxu0 0.0
    %643 = vmatprep.subr.mxu0 0.0
    %644 = vmatpush1.msra.mxu0 0.0
    %645 = vmatprep.subr.mxu0 0.0
    %646 = vmatpush1.msra.mxu0 0.0
    %647 = vmatprep.subr.mxu0 0.0
    %648 = vmatpush1.msra.mxu0 0.0
    %649 = vmatprep.subr.mxu0 0.0
    %650 = vmatpush1.msra.mxu0 0.0
    %651 = vmatprep.subr.mxu0 0.0
    %652 = vmatpush1.msra.mxu0 0.0
    %653 = vmatprep.subr.mxu0 0.0
    %654 = vmatpush1.msra.mxu0 0.0
    %655 = vmatprep.subr.mxu0 0.0
    %656 = vmatpush1.msra.mxu0 0.0
    %657 = vmatprep.subr.mxu0 0.0
    %658 = vmatpush1.msra.mxu0 0.0
    %659 = vmatprep.subr.mxu0 0.0
    %660 = vmatpush1.msra.mxu0 0.0
    %661 = vmatprep.subr.mxu0 0.0
    %662 = vmatpush1.msra.mxu0 0.0
    %663 = vmatprep.subr.mxu0 0.0
    %664 = vmatpush1.msra.mxu0 0.0
    %665 = vmatprep.subr.mxu0 0.0
    %666 = vmatpush1.msra.mxu0 0.0
    %667 = vmatprep.subr.mxu0 0.0
    %668 = vmatpush1.msra.mxu0 0.0
    %669 = vmatprep.subr.mxu0 0.0
    %670 = vmatpush1.msra.mxu0 0.0
    %671 = vmatprep.subr.mxu0 0.0
    %672 = vmatpush1.msra.mxu0 0.0
    %673 = vmatprep.mubr.f32.mxu0 0.0
    %v674 = vand.u32 %v72, 4294901760
    %675 = vmatmul.mubr.f32.gmra.mrb[0].mxu0 %v674
    %v676 = vpop.f32.mrb[0].mxu0
    %v677 = vadd.f32 %v545, %v676
    %v678 = vpop.f32.mrb[0].mxu0
    %v679 = vadd.f32 %v547, %v678
    %680 = vdwg.mxu0
    %v681 = vand.u32 %v31, 4294901760
    %682 = vmatprep.subr.mxu0 %v681
    %v683 = vand.u32 %v30, 4294901760
    %684 = vmatpush1.msra.mxu0 %v683
    %v685 = vand.u32 %v35, 4294901760
    %686 = vmatprep.subr.mxu0 %v685
    %v687 = vand.u32 %v34, 4294901760
    %688 = vmatpush1.msra.mxu0 %v687
    %v689 = vand.u32 %v39, 4294901760
    %690 = vmatprep.subr.mxu0 %v689
    %v691 = vand.u32 %v38, 4294901760
    %692 = vmatpush1.msra.mxu0 %v691
    %v693 = vand.u32 %v43, 4294901760
    %694 = vmatprep.subr.mxu0 %v693
    %v695 = vand.u32 %v42, 4294901760
    %696 = vmatpush1.msra.mxu0 %v695
    %v697 = vand.u32 %v47, 4294901760
    %698 = vmatprep.subr.mxu0 %v697
    %v699 = vand.u32 %v46, 4294901760
    %700 = vmatpush1.msra.mxu0 %v699
    %v701 = vand.u32 %v51, 4294901760
    %702 = vmatprep.subr.mxu0 %v701
    %v703 = vand.u32 %v50, 4294901760
    %704 = vmatpush1.msra.mxu0 %v703
    %v705 = vand.u32 %v55, 4294901760
    %706 = vmatprep.subr.mxu0 %v705
    %v707 = vand.u32 %v54, 4294901760
    %708 = vmatpush1.msra.mxu0 %v707
    %v709 = vand.u32 %v59, 4294901760
    %710 = vmatprep.subr.mxu0 %v709
    %v711 = vand.u32 %v58, 4294901760
    %712 = vmatpush1.msra.mxu0 %v711
    %v713 = vand.u32 %v63, 4294901760
    %714 = vmatprep.subr.mxu0 %v713
    %v715 = vand.u32 %v62, 4294901760
    %716 = vmatpush1.msra.mxu0 %v715
    %v717 = vand.u32 %v67, 4294901760
    %718 = vmatprep.subr.mxu0 %v717
    %v719 = vand.u32 %v66, 4294901760
    %720 = vmatpush1.msra.mxu0 %v719
    %721 = vmatprep.subr.mxu0 0.0
    %722 = vmatpush1.msra.mxu0 0.0
    %723 = vmatprep.subr.mxu0 0.0
    %724 = vmatpush1.msra.mxu0 0.0
    %725 = vmatprep.subr.mxu0 0.0
    %726 = vmatpush1.msra.mxu0 0.0
    %727 = vmatprep.subr.mxu0 0.0
    %728 = vmatpush1.msra.mxu0 0.0
    %729 = vmatprep.subr.mxu0 0.0
    %730 = vmatpush1.msra.mxu0 0.0
    %731 = vmatprep.subr.mxu0 0.0
    %732 = vmatpush1.msra.mxu0 0.0
    %733 = vmatprep.subr.mxu0 0.0
    %734 = vmatpush1.msra.mxu0 0.0
    %735 = vmatprep.subr.mxu0 0.0
    %736 = vmatpush1.msra.mxu0 0.0
    %737 = vmatprep.subr.mxu0 0.0
    %738 = vmatpush1.msra.mxu0 0.0
    %739 = vmatprep.subr.mxu0 0.0
    %740 = vmatpush1.msra.mxu0 0.0
    %741 = vmatprep.subr.mxu0 0.0
    %742 = vmatpush1.msra.mxu0 0.0
    %743 = vmatprep.subr.mxu0 0.0
    %744 = vmatpush1.msra.mxu0 0.0
    %745 = vmatprep.subr.mxu0 0.0
    %746 = vmatpush1.msra.mxu0 0.0
    %747 = vmatprep.subr.mxu0 0.0
    %748 = vmatpush1.msra.mxu0 0.0
    %749 = vmatprep.subr.mxu0 0.0
    %750 = vmatpush1.msra.mxu0 0.0
    %751 = vmatprep.subr.mxu0 0.0
    %752 = vmatpush1.msra.mxu0 0.0
    %753 = vmatprep.subr.mxu0 0.0
    %754 = vmatpush1.msra.mxu0 0.0
    %755 = vmatprep.subr.mxu0 0.0
    %756 = vmatpush1.msra.mxu0 0.0
    %757 = vmatprep.subr.mxu0 0.0
    %758 = vmatpush1.msra.mxu0 0.0
    %759 = vmatprep.subr.mxu0 0.0
    %760 = vmatpush1.msra.mxu0 0.0
    %761 = vmatprep.subr.mxu0 0.0
    %762 = vmatpush1.msra.mxu0 0.0
    %763 = vmatprep.subr.mxu0 0.0
    %764 = vmatpush1.msra.mxu0 0.0
    %765 = vmatprep.mubr.f32.mxu0 0.0
    %v766 = vand.u32 %v72, 4294901760
    %767 = vmatmul.mubr.f32.gmra.mrb[0].mxu0 %v766
    %v768 = vpop.f32.mrb[0].mxu0
    %v769 = vadd.f32 %v677, %v768
    %v770 = vpop.f32.mrb[0].mxu0
    %v771 = vadd.f32 %v679, %v770
    %772 = vdwg.mxu0
    %v773 = vand.u32 %v33, 4294901760
    %774 = vmatprep.subr.mxu0 %v773
    %v775 = vand.u32 %v32, 4294901760
    %776 = vmatpush1.msra.mxu0 %v775
    %v777 = vand.u32 %v37, 4294901760
    %778 = vmatprep.subr.mxu0 %v777
    %v779 = vand.u32 %v36, 4294901760
    %780 = vmatpush1.msra.mxu0 %v779
    %v781 = vand.u32 %v41, 4294901760
    %782 = vmatprep.subr.mxu0 %v781
    %v783 = vand.u32 %v40, 4294901760
    %784 = vmatpush1.msra.mxu0 %v783
    %v785 = vand.u32 %v45, 4294901760
    %786 = vmatprep.subr.mxu0 %v785
    %v787 = vand.u32 %v44, 4294901760
    %788 = vmatpush1.msra.mxu0 %v787
    %v789 = vand.u32 %v49, 4294901760
    %790 = vmatprep.subr.mxu0 %v789
    %v791 = vand.u32 %v48, 4294901760
    %792 = vmatpush1.msra.mxu0 %v791
    %v793 = vand.u32 %v53, 4294901760
    %794 = vmatprep.subr.mxu0 %v793
    %v795 = vand.u32 %v52, 4294901760
    %796 = vmatpush1.msra.mxu0 %v795
    %v797 = vand.u32 %v57, 4294901760
    %798 = vmatprep.subr.mxu0 %v797
    %v799 = vand.u32 %v56, 4294901760
    %800 = vmatpush1.msra.mxu0 %v799
    %v801 = vand.u32 %v61, 4294901760
    %802 = vmatprep.subr.mxu0 %v801
    %v803 = vand.u32 %v60, 4294901760
    %804 = vmatpush1.msra.mxu0 %v803
    %v805 = vand.u32 %v65, 4294901760
    %806 = vmatprep.subr.mxu0 %v805
    %v807 = vand.u32 %v64, 4294901760
    %808 = vmatpush1.msra.mxu0 %v807
    %v809 = vand.u32 %v69, 4294901760
    %810 = vmatprep.subr.mxu0 %v809
    %v811 = vand.u32 %v68, 4294901760
    %812 = vmatpush1.msra.mxu0 %v811
    %813 = vmatprep.subr.mxu0 0.0
    %814 = vmatpush1.msra.mxu0 0.0
    %815 = vmatprep.subr.mxu0 0.0
    %816 = vmatpush1.msra.mxu0 0.0
    %817 = vmatprep.subr.mxu0 0.0
    %818 = vmatpush1.msra.mxu0 0.0
    %819 = vmatprep.subr.mxu0 0.0
    %820 = vmatpush1.msra.mxu0 0.0
    %821 = vmatprep.subr.mxu0 0.0
    %822 = vmatpush1.msra.mxu0 0.0
    %823 = vmatprep.subr.mxu0 0.0
    %824 = vmatpush1.msra.mxu0 0.0
    %825 = vmatprep.subr.mxu0 0.0
    %826 = vmatpush1.msra.mxu0 0.0
    %827 = vmatprep.subr.mxu0 0.0
    %828 = vmatpush1.msra.mxu0 0.0
    %829 = vmatprep.subr.mxu0 0.0
    %830 = vmatpush1.msra.mxu0 0.0
    %831 = vmatprep.subr.mxu0 0.0
    %832 = vmatpush1.msra.mxu0 0.0
    %833 = vmatprep.subr.mxu0 0.0
    %834 = vmatpush1.msra.mxu0 0.0
    %835 = vmatprep.subr.mxu0 0.0
    %836 = vmatpush1.msra.mxu0 0.0
    %837 = vmatprep.subr.mxu0 0.0
    %838 = vmatpush1.msra.mxu0 0.0
    %839 = vmatprep.subr.mxu0 0.0
    %840 = vmatpush1.msra.mxu0 0.0
    %841 = vmatprep.subr.mxu0 0.0
    %842 = vmatpush1.msra.mxu0 0.0
    %843 = vmatprep.subr.mxu0 0.0
    %844 = vmatpush1.msra.mxu0 0.0
    %845 = vmatprep.subr.mxu0 0.0
    %846 = vmatpush1.msra.mxu0 0.0
    %847 = vmatprep.subr.mxu0 0.0
    %848 = vmatpush1.msra.mxu0 0.0
    %849 = vmatprep.subr.mxu0 0.0
    %850 = vmatpush1.msra.mxu0 0.0
    %851 = vmatprep.subr.mxu0 0.0
    %852 = vmatpush1.msra.mxu0 0.0
    %853 = vmatprep.subr.mxu0 0.0
    %854 = vmatpush1.msra.mxu0 0.0
    %855 = vmatprep.subr.mxu0 0.0
    %856 = vmatpush1.msra.mxu0 0.0
    %857 = vmatprep.mubr.f32.mxu0 0.0
    %v858 = vand.u32 %v72, 4294901760
    %v859 = vsub.f32 %v72, %v858
    %v860 = vand.u32 %v859, 4294901760
    %v861 = vsub.f32 %v859, %v860
    %v862 = vand.u32 %v861, 4294901760
    %863 = vmatmul.mubr.f32.gmra.mrb[0].mxu0 %v862
    %v864 = vpop.f32.mrb[0].mxu0
    %v865 = vadd.f32 0.0, %v864
    %v866 = vpop.f32.mrb[0].mxu0
    %v867 = vadd.f32 0.0, %v866
    %868 = vdwg.mxu0
    %v869 = vand.u32 %v33, 4294901760
    %v870 = vsub.f32 %v33, %v869
    %v871 = vand.u32 %v870, 4294901760
    %v872 = vsub.f32 %v870, %v871
    %v873 = vand.u32 %v872, 4294901760
    %874 = vmatprep.subr.mxu0 %v873
    %v875 = vand.u32 %v32, 4294901760
    %v876 = vsub.f32 %v32, %v875
    %v877 = vand.u32 %v876, 4294901760
    %v878 = vsub.f32 %v876, %v877
    %v879 = vand.u32 %v878, 4294901760
    %880 = vmatpush1.msra.mxu0 %v879
    %v881 = vand.u32 %v37, 4294901760
    %v882 = vsub.f32 %v37, %v881
    %v883 = vand.u32 %v882, 4294901760
    %v884 = vsub.f32 %v882, %v883
    %v885 = vand.u32 %v884, 4294901760
    %886 = vmatprep.subr.mxu0 %v885
    %v887 = vand.u32 %v36, 4294901760
    %v888 = vsub.f32 %v36, %v887
    %v889 = vand.u32 %v888, 4294901760
    %v890 = vsub.f32 %v888, %v889
    %v891 = vand.u32 %v890, 4294901760
    %892 = vmatpush1.msra.mxu0 %v891
    %v893 = vand.u32 %v41, 4294901760
    %v894 = vsub.f32 %v41, %v893
    %v895 = vand.u32 %v894, 4294901760
    %v896 = vsub.f32 %v894, %v895
    %v897 = vand.u32 %v896, 4294901760
    %898 = vmatprep.subr.mxu0 %v897
    %v899 = vand.u32 %v40, 4294901760
    %v900 = vsub.f32 %v40, %v899
    %v901 = vand.u32 %v900, 4294901760
    %v902 = vsub.f32 %v900, %v901
    %v903 = vand.u32 %v902, 4294901760
    %904 = vmatpush1.msra.mxu0 %v903
    %v905 = vand.u32 %v45, 4294901760
    %v906 = vsub.f32 %v45, %v905
    %v907 = vand.u32 %v906, 4294901760
    %v908 = vsub.f32 %v906, %v907
    %v909 = vand.u32 %v908, 4294901760
    %910 = vmatprep.subr.mxu0 %v909
    %v911 = vand.u32 %v44, 4294901760
    %v912 = vsub.f32 %v44, %v911
    %v913 = vand.u32 %v912, 4294901760
    %v914 = vsub.f32 %v912, %v913
    %v915 = vand.u32 %v914, 4294901760
    %916 = vmatpush1.msra.mxu0 %v915
    %v917 = vand.u32 %v49, 4294901760
    %v918 = vsub.f32 %v49, %v917
    %v919 = vand.u32 %v918, 4294901760
    %v920 = vsub.f32 %v918, %v919
    %v921 = vand.u32 %v920, 4294901760
    %922 = vmatprep.subr.mxu0 %v921
    %v923 = vand.u32 %v48, 4294901760
    %v924 = vsub.f32 %v48, %v923
    %v925 = vand.u32 %v924, 4294901760
    %v926 = vsub.f32 %v924, %v925
    %v927 = vand.u32 %v926, 4294901760
    %928 = vmatpush1.msra.mxu0 %v927
    %v929 = vand.u32 %v53, 4294901760
    %v930 = vsub.f32 %v53, %v929
    %v931 = vand.u32 %v930, 4294901760
    %v932 = vsub.f32 %v930, %v931
    %v933 = vand.u32 %v932, 4294901760
    %934 = vmatprep.subr.mxu0 %v933
    %v935 = vand.u32 %v52, 4294901760
    %v936 = vsub.f32 %v52, %v935
    %v937 = vand.u32 %v936, 4294901760
    %v938 = vsub.f32 %v936, %v937
    %v939 = vand.u32 %v938, 4294901760
    %940 = vmatpush1.msra.mxu0 %v939
    %v941 = vand.u32 %v57, 4294901760
    %v942 = vsub.f32 %v57, %v941
    %v943 = vand.u32 %v942, 4294901760
    %v944 = vsub.f32 %v942, %v943
    %v945 = vand.u32 %v944, 4294901760
    %946 = vmatprep.subr.mxu0 %v945
    %v947 = vand.u32 %v56, 4294901760
    %v948 = vsub.f32 %v56, %v947
    %v949 = vand.u32 %v948, 4294901760
    %v950 = vsub.f32 %v948, %v949
    %v951 = vand.u32 %v950, 4294901760
    %952 = vmatpush1.msra.mxu0 %v951
    %v953 = vand.u32 %v61, 4294901760
    %v954 = vsub.f32 %v61, %v953
    %v955 = vand.u32 %v954, 4294901760
    %v956 = vsub.f32 %v954, %v955
    %v957 = vand.u32 %v956, 4294901760
    %958 = vmatprep.subr.mxu0 %v957
    %v959 = vand.u32 %v60, 4294901760
    %v960 = vsub.f32 %v60, %v959
    %v961 = vand.u32 %v960, 4294901760
    %v962 = vsub.f32 %v960, %v961
    %v963 = vand.u32 %v962, 4294901760
    %964 = vmatpush1.msra.mxu0 %v963
    %v965 = vand.u32 %v65, 4294901760
    %v966 = vsub.f32 %v65, %v965
    %v967 = vand.u32 %v966, 4294901760
    %v968 = vsub.f32 %v966, %v967
    %v969 = vand.u32 %v968, 4294901760
    %970 = vmatprep.subr.mxu0 %v969
    %v971 = vand.u32 %v64, 4294901760
    %v972 = vsub.f32 %v64, %v971
    %v973 = vand.u32 %v972, 4294901760
    %v974 = vsub.f32 %v972, %v973
    %v975 = vand.u32 %v974, 4294901760
    %976 = vmatpush1.msra.mxu0 %v975
    %v977 = vand.u32 %v69, 4294901760
    %v978 = vsub.f32 %v69, %v977
    %v979 = vand.u32 %v978, 4294901760
    %v980 = vsub.f32 %v978, %v979
    %v981 = vand.u32 %v980, 4294901760
    %982 = vmatprep.subr.mxu0 %v981
    %v983 = vand.u32 %v68, 4294901760
    %v984 = vsub.f32 %v68, %v983
    %v985 = vand.u32 %v984, 4294901760
    %v986 = vsub.f32 %v984, %v985
    %v987 = vand.u32 %v986, 4294901760
    %988 = vmatpush1.msra.mxu0 %v987
    %989 = vmatprep.subr.mxu0 0.0
    %990 = vmatpush1.msra.mxu0 0.0
    %991 = vmatprep.subr.mxu0 0.0
    %992 = vmatpush1.msra.mxu0 0.0
    %993 = vmatprep.subr.mxu0 0.0
    %994 = vmatpush1.msra.mxu0 0.0
    %995 = vmatprep.subr.mxu0 0.0
    %996 = vmatpush1.msra.mxu0 0.0
    %997 = vmatprep.subr.mxu0 0.0
    %998 = vmatpush1.msra.mxu0 0.0
    %999 = vmatprep.subr.mxu0 0.0
    %1000 = vmatpush1.msra.mxu0 0.0
    %1001 = vmatprep.subr.mxu0 0.0
    %1002 = vmatpush1.msra.mxu0 0.0
    %1003 = vmatprep.subr.mxu0 0.0
    %1004 = vmatpush1.msra.mxu0 0.0
    %1005 = vmatprep.subr.mxu0 0.0
    %1006 = vmatpush1.msra.mxu0 0.0
    %1007 = vmatprep.subr.mxu0 0.0
    %1008 = vmatpush1.msra.mxu0 0.0
    %1009 = vmatprep.subr.mxu0 0.0
    %1010 = vmatpush1.msra.mxu0 0.0
    %1011 = vmatprep.subr.mxu0 0.0
    %1012 = vmatpush1.msra.mxu0 0.0
    %1013 = vmatprep.subr.mxu0 0.0
    %1014 = vmatpush1.msra.mxu0 0.0
    %1015 = vmatprep.subr.mxu0 0.0
    %1016 = vmatpush1.msra.mxu0 0.0
    %1017 = vmatprep.subr.mxu0 0.0
    %1018 = vmatpush1.msra.mxu0 0.0
    %1019 = vmatprep.subr.mxu0 0.0
    %1020 = vmatpush1.msra.mxu0 0.0
    %1021 = vmatprep.subr.mxu0 0.0
    %1022 = vmatpush1.msra.mxu0 0.0
    %1023 = vmatprep.subr.mxu0 0.0
    %1024 = vmatpush1.msra.mxu0 0.0
    %1025 = vmatprep.subr.mxu0 0.0
    %1026 = vmatpush1.msra.mxu0 0.0
    %1027 = vmatprep.subr.mxu0 0.0
    %1028 = vmatpush1.msra.mxu0 0.0
    %1029 = vmatprep.subr.mxu0 0.0
    %1030 = vmatpush1.msra.mxu0 0.0
    %1031 = vmatprep.subr.mxu0 0.0
    %1032 = vmatpush1.msra.mxu0 0.0
    %1033 = vmatprep.mubr.f32.mxu0 0.0
    %v1034 = vand.u32 %v72, 4294901760
    %1035 = vmatmul.mubr.f32.gmra.mrb[0].mxu0 %v1034
    %v1036 = vpop.f32.mrb[0].mxu0
    %v1037 = vadd.f32 %v865, %v1036
    %v1038 = vpop.f32.mrb[0].mxu0
    %v1039 = vadd.f32 %v867, %v1038
    %1040 = vdwg.mxu0
    %v1041 = vand.u32 %v33, 4294901760
    %v1042 = vsub.f32 %v33, %v1041
    %1043 = vmatprep.subr.mxu0 %v1042
    %v1044 = vand.u32 %v32, 4294901760
    %v1045 = vsub.f32 %v32, %v1044
    %1046 = vmatpush1.msra.mxu0 %v1045
    %v1047 = vand.u32 %v37, 4294901760
    %v1048 = vsub.f32 %v37, %v1047
    %1049 = vmatprep.subr.mxu0 %v1048
    %v1050 = vand.u32 %v36, 4294901760
    %v1051 = vsub.f32 %v36, %v1050
    %1052 = vmatpush1.msra.mxu0 %v1051
    %v1053 = vand.u32 %v41, 4294901760
    %v1054 = vsub.f32 %v41, %v1053
    %1055 = vmatprep.subr.mxu0 %v1054
    %v1056 = vand.u32 %v40, 4294901760
    %v1057 = vsub.f32 %v40, %v1056
    %1058 = vmatpush1.msra.mxu0 %v1057
    %v1059 = vand.u32 %v45, 4294901760
    %v1060 = vsub.f32 %v45, %v1059
    %1061 = vmatprep.subr.mxu0 %v1060
    %v1062 = vand.u32 %v44, 4294901760
    %v1063 = vsub.f32 %v44, %v1062
    %1064 = vmatpush1.msra.mxu0 %v1063
    %v1065 = vand.u32 %v49, 4294901760
    %v1066 = vsub.f32 %v49, %v1065
    %1067 = vmatprep.subr.mxu0 %v1066
    %v1068 = vand.u32 %v48, 4294901760
    %v1069 = vsub.f32 %v48, %v1068
    %1070 = vmatpush1.msra.mxu0 %v1069
    %v1071 = vand.u32 %v53, 4294901760
    %v1072 = vsub.f32 %v53, %v1071
    %1073 = vmatprep.subr.mxu0 %v1072
    %v1074 = vand.u32 %v52, 4294901760
    %v1075 = vsub.f32 %v52, %v1074
    %1076 = vmatpush1.msra.mxu0 %v1075
    %v1077 = vand.u32 %v57, 4294901760
    %v1078 = vsub.f32 %v57, %v1077
    %1079 = vmatprep.subr.mxu0 %v1078
    %v1080 = vand.u32 %v56, 4294901760
    %v1081 = vsub.f32 %v56, %v1080
    %1082 = vmatpush1.msra.mxu0 %v1081
    %v1083 = vand.u32 %v61, 4294901760
    %v1084 = vsub.f32 %v61, %v1083
    %1085 = vmatprep.subr.mxu0 %v1084
    %v1086 = vand.u32 %v60, 4294901760
    %v1087 = vsub.f32 %v60, %v1086
    %1088 = vmatpush1.msra.mxu0 %v1087
    %v1089 = vand.u32 %v65, 4294901760
    %v1090 = vsub.f32 %v65, %v1089
    %1091 = vmatprep.subr.mxu0 %v1090
    %v1092 = vand.u32 %v64, 4294901760
    %v1093 = vsub.f32 %v64, %v1092
    %1094 = vmatpush1.msra.mxu0 %v1093
    %v1095 = vand.u32 %v69, 4294901760
    %v1096 = vsub.f32 %v69, %v1095
    %1097 = vmatprep.subr.mxu0 %v1096
    %v1098 = vand.u32 %v68, 4294901760
    %v1099 = vsub.f32 %v68, %v1098
    %1100 = vmatpush1.msra.mxu0 %v1099
    %1101 = vmatprep.subr.mxu0 0.0
    %1102 = vmatpush1.msra.mxu0 0.0
    %1103 = vmatprep.subr.mxu0 0.0
    %1104 = vmatpush1.msra.mxu0 0.0
    %1105 = vmatprep.subr.mxu0 0.0
    %1106 = vmatpush1.msra.mxu0 0.0
    %1107 = vmatprep.subr.mxu0 0.0
    %1108 = vmatpush1.msra.mxu0 0.0
    %1109 = vmatprep.subr.mxu0 0.0
    %1110 = vmatpush1.msra.mxu0 0.0
    %1111 = vmatprep.subr.mxu0 0.0
    %1112 = vmatpush1.msra.mxu0 0.0
    %1113 = vmatprep.subr.mxu0 0.0
    %1114 = vmatpush1.msra.mxu0 0.0
    %1115 = vmatprep.subr.mxu0 0.0
    %1116 = vmatpush1.msra.mxu0 0.0
    %1117 = vmatprep.subr.mxu0 0.0
    %1118 = vmatpush1.msra.mxu0 0.0
    %1119 = vmatprep.subr.mxu0 0.0
    %1120 = vmatpush1.msra.mxu0 0.0
    %1121 = vmatprep.subr.mxu0 0.0
    %1122 = vmatpush1.msra.mxu0 0.0
    %1123 = vmatprep.subr.mxu0 0.0
    %1124 = vmatpush1.msra.mxu0 0.0
    %1125 = vmatprep.subr.mxu0 0.0
    %1126 = vmatpush1.msra.mxu0 0.0
    %1127 = vmatprep.subr.mxu0 0.0
    %1128 = vmatpush1.msra.mxu0 0.0
    %1129 = vmatprep.subr.mxu0 0.0
    %1130 = vmatpush1.msra.mxu0 0.0
    %1131 = vmatprep.subr.mxu0 0.0
    %1132 = vmatpush1.msra.mxu0 0.0
    %1133 = vmatprep.subr.mxu0 0.0
    %1134 = vmatpush1.msra.mxu0 0.0
    %1135 = vmatprep.subr.mxu0 0.0
    %1136 = vmatpush1.msra.mxu0 0.0
    %1137 = vmatprep.subr.mxu0 0.0
    %1138 = vmatpush1.msra.mxu0 0.0
    %1139 = vmatprep.subr.mxu0 0.0
    %1140 = vmatpush1.msra.mxu0 0.0
    %1141 = vmatprep.subr.mxu0 0.0
    %1142 = vmatpush1.msra.mxu0 0.0
    %1143 = vmatprep.subr.mxu0 0.0
    %1144 = vmatpush1.msra.mxu0 0.0
    %1145 = vmatprep.mubr.f32.mxu0 0.0
    %v1146 = vand.u32 %v72, 4294901760
    %v1147 = vsub.f32 %v72, %v1146
    %1148 = vmatmul.mubr.f32.gmra.mrb[0].mxu0 %v1147
    %v1149 = vpop.f32.mrb[0].mxu0
    %v1150 = vadd.f32 %v1037, %v1149
    %v1151 = vpop.f32.mrb[0].mxu0
    %v1152 = vadd.f32 %v1039, %v1151
    %1153 = vdwg.mxu0
    %v1154 = vand.u32 %v33, 4294901760
    %1155 = vmatprep.subr.mxu0 %v1154
    %v1156 = vand.u32 %v32, 4294901760
    %1157 = vmatpush1.msra.mxu0 %v1156
    %v1158 = vand.u32 %v37, 4294901760
    %1159 = vmatprep.subr.mxu0 %v1158
    %v1160 = vand.u32 %v36, 4294901760
    %1161 = vmatpush1.msra.mxu0 %v1160
    %v1162 = vand.u32 %v41, 4294901760
    %1163 = vmatprep.subr.mxu0 %v1162
    %v1164 = vand.u32 %v40, 4294901760
    %1165 = vmatpush1.msra.mxu0 %v1164
    %v1166 = vand.u32 %v45, 4294901760
    %1167 = vmatprep.subr.mxu0 %v1166
    %v1168 = vand.u32 %v44, 4294901760
    %1169 = vmatpush1.msra.mxu0 %v1168
    %v1170 = vand.u32 %v49, 4294901760
    %1171 = vmatprep.subr.mxu0 %v1170
    %v1172 = vand.u32 %v48, 4294901760
    %1173 = vmatpush1.msra.mxu0 %v1172
    %v1174 = vand.u32 %v53, 4294901760
    %1175 = vmatprep.subr.mxu0 %v1174
    %v1176 = vand.u32 %v52, 4294901760
    %1177 = vmatpush1.msra.mxu0 %v1176
    %v1178 = vand.u32 %v57, 4294901760
    %1179 = vmatprep.subr.mxu0 %v1178
    %v1180 = vand.u32 %v56, 4294901760
    %1181 = vmatpush1.msra.mxu0 %v1180
    %v1182 = vand.u32 %v61, 4294901760
    %1183 = vmatprep.subr.mxu0 %v1182
    %v1184 = vand.u32 %v60, 4294901760
    %1185 = vmatpush1.msra.mxu0 %v1184
    %v1186 = vand.u32 %v65, 4294901760
    %1187 = vmatprep.subr.mxu0 %v1186
    %v1188 = vand.u32 %v64, 4294901760
    %1189 = vmatpush1.msra.mxu0 %v1188
    %v1190 = vand.u32 %v69, 4294901760
    %1191 = vmatprep.subr.mxu0 %v1190
    %v1192 = vand.u32 %v68, 4294901760
    %1193 = vmatpush1.msra.mxu0 %v1192
    %1194 = vmatprep.subr.mxu0 0.0
    %1195 = vmatpush1.msra.mxu0 0.0
    %1196 = vmatprep.subr.mxu0 0.0
    %1197 = vmatpush1.msra.mxu0 0.0
    %1198 = vmatprep.subr.mxu0 0.0
    %1199 = vmatpush1.msra.mxu0 0.0
    %1200 = vmatprep.subr.mxu0 0.0
    %1201 = vmatpush1.msra.mxu0 0.0
    %1202 = vmatprep.subr.mxu0 0.0
    %1203 = vmatpush1.msra.mxu0 0.0
    %1204 = vmatprep.subr.mxu0 0.0
    %1205 = vmatpush1.msra.mxu0 0.0
    %1206 = vmatprep.subr.mxu0 0.0
    %1207 = vmatpush1.msra.mxu0 0.0
    %1208 = vmatprep.subr.mxu0 0.0
    %1209 = vmatpush1.msra.mxu0 0.0
    %1210 = vmatprep.subr.mxu0 0.0
    %1211 = vmatpush1.msra.mxu0 0.0
    %1212 = vmatprep.subr.mxu0 0.0
    %1213 = vmatpush1.msra.mxu0 0.0
    %1214 = vmatprep.subr.mxu0 0.0
    %1215 = vmatpush1.msra.mxu0 0.0
    %1216 = vmatprep.subr.mxu0 0.0
    %1217 = vmatpush1.msra.mxu0 0.0
    %1218 = vmatprep.subr.mxu0 0.0
    %1219 = vmatpush1.msra.mxu0 0.0
    %1220 = vmatprep.subr.mxu0 0.0
    %1221 = vmatpush1.msra.mxu0 0.0
    %1222 = vmatprep.subr.mxu0 0.0
    %1223 = vmatpush1.msra.mxu0 0.0
    %1224 = vmatprep.subr.mxu0 0.0
    %1225 = vmatpush1.msra.mxu0 0.0
    %1226 = vmatprep.subr.mxu0 0.0
    %1227 = vmatpush1.msra.mxu0 0.0
    %1228 = vmatprep.subr.mxu0 0.0
    %1229 = vmatpush1.msra.mxu0 0.0
    %1230 = vmatprep.subr.mxu0 0.0
    %1231 = vmatpush1.msra.mxu0 0.0
    %1232 = vmatprep.subr.mxu0 0.0
    %1233 = vmatpush1.msra.mxu0 0.0
    %1234 = vmatprep.subr.mxu0 0.0
    %1235 = vmatpush1.msra.mxu0 0.0
    %1236 = vmatprep.subr.mxu0 0.0
    %1237 = vmatpush1.msra.mxu0 0.0
    %1238 = vmatprep.mubr.f32.mxu0 0.0
    %v1239 = vand.u32 %v72, 4294901760
    %v1240 = vsub.f32 %v72, %v1239
    %v1241 = vand.u32 %v1240, 4294901760
    %1242 = vmatmul.mubr.f32.gmra.mrb[0].mxu0 %v1241
    %v1243 = vpop.f32.mrb[0].mxu0
    %v1244 = vadd.f32 %v1150, %v1243
    %v1245 = vpop.f32.mrb[0].mxu0
    %v1246 = vadd.f32 %v1152, %v1245
    %1247 = vdwg.mxu0
    %v1248 = vand.u32 %v33, 4294901760
    %v1249 = vsub.f32 %v33, %v1248
    %v1250 = vand.u32 %v1249, 4294901760
    %1251 = vmatprep.subr.mxu0 %v1250
    %v1252 = vand.u32 %v32, 4294901760
    %v1253 = vsub.f32 %v32, %v1252
    %v1254 = vand.u32 %v1253, 4294901760
    %1255 = vmatpush1.msra.mxu0 %v1254
    %v1256 = vand.u32 %v37, 4294901760
    %v1257 = vsub.f32 %v37, %v1256
    %v1258 = vand.u32 %v1257, 4294901760
    %1259 = vmatprep.subr.mxu0 %v1258
    %v1260 = vand.u32 %v36, 4294901760
    %v1261 = vsub.f32 %v36, %v1260
    %v1262 = vand.u32 %v1261, 4294901760
    %1263 = vmatpush1.msra.mxu0 %v1262
    %v1264 = vand.u32 %v41, 4294901760
    %v1265 = vsub.f32 %v41, %v1264
    %v1266 = vand.u32 %v1265, 4294901760
    %1267 = vmatprep.subr.mxu0 %v1266
    %v1268 = vand.u32 %v40, 4294901760
    %v1269 = vsub.f32 %v40, %v1268
    %v1270 = vand.u32 %v1269, 4294901760
    %1271 = vmatpush1.msra.mxu0 %v1270
    %v1272 = vand.u32 %v45, 4294901760
    %v1273 = vsub.f32 %v45, %v1272
    %v1274 = vand.u32 %v1273, 4294901760
    %1275 = vmatprep.subr.mxu0 %v1274
    %v1276 = vand.u32 %v44, 4294901760
    %v1277 = vsub.f32 %v44, %v1276
    %v1278 = vand.u32 %v1277, 4294901760
    %1279 = vmatpush1.msra.mxu0 %v1278
    %v1280 = vand.u32 %v49, 4294901760
    %v1281 = vsub.f32 %v49, %v1280
    %v1282 = vand.u32 %v1281, 4294901760
    %1283 = vmatprep.subr.mxu0 %v1282
    %v1284 = vand.u32 %v48, 4294901760
    %v1285 = vsub.f32 %v48, %v1284
    %v1286 = vand.u32 %v1285, 4294901760
    %1287 = vmatpush1.msra.mxu0 %v1286
    %v1288 = vand.u32 %v53, 4294901760
    %v1289 = vsub.f32 %v53, %v1288
    %v1290 = vand.u32 %v1289, 4294901760
    %1291 = vmatprep.subr.mxu0 %v1290
    %v1292 = vand.u32 %v52, 4294901760
    %v1293 = vsub.f32 %v52, %v1292
    %v1294 = vand.u32 %v1293, 4294901760
    %1295 = vmatpush1.msra.mxu0 %v1294
    %v1296 = vand.u32 %v57, 4294901760
    %v1297 = vsub.f32 %v57, %v1296
    %v1298 = vand.u32 %v1297, 4294901760
    %1299 = vmatprep.subr.mxu0 %v1298
    %v1300 = vand.u32 %v56, 4294901760
    %v1301 = vsub.f32 %v56, %v1300
    %v1302 = vand.u32 %v1301, 4294901760
    %1303 = vmatpush1.msra.mxu0 %v1302
    %v1304 = vand.u32 %v61, 4294901760
    %v1305 = vsub.f32 %v61, %v1304
    %v1306 = vand.u32 %v1305, 4294901760
    %1307 = vmatprep.subr.mxu0 %v1306
    %v1308 = vand.u32 %v60, 4294901760
    %v1309 = vsub.f32 %v60, %v1308
    %v1310 = vand.u32 %v1309, 4294901760
    %1311 = vmatpush1.msra.mxu0 %v1310
    %v1312 = vand.u32 %v65, 4294901760
    %v1313 = vsub.f32 %v65, %v1312
    %v1314 = vand.u32 %v1313, 4294901760
    %1315 = vmatprep.subr.mxu0 %v1314
    %v1316 = vand.u32 %v64, 4294901760
    %v1317 = vsub.f32 %v64, %v1316
    %v1318 = vand.u32 %v1317, 4294901760
    %1319 = vmatpush1.msra.mxu0 %v1318
    %v1320 = vand.u32 %v69, 4294901760
    %v1321 = vsub.f32 %v69, %v1320
    %v1322 = vand.u32 %v1321, 4294901760
    %1323 = vmatprep.subr.mxu0 %v1322
    %v1324 = vand.u32 %v68, 4294901760
    %v1325 = vsub.f32 %v68, %v1324
    %v1326 = vand.u32 %v1325, 4294901760
    %1327 = vmatpush1.msra.mxu0 %v1326
    %1328 = vmatprep.subr.mxu0 0.0
    %1329 = vmatpush1.msra.mxu0 0.0
    %1330 = vmatprep.subr.mxu0 0.0
    %1331 = vmatpush1.msra.mxu0 0.0
    %1332 = vmatprep.subr.mxu0 0.0
    %1333 = vmatpush1.msra.mxu0 0.0
    %1334 = vmatprep.subr.mxu0 0.0
    %1335 = vmatpush1.msra.mxu0 0.0
    %1336 = vmatprep.subr.mxu0 0.0
    %1337 = vmatpush1.msra.mxu0 0.0
    %1338 = vmatprep.subr.mxu0 0.0
    %1339 = vmatpush1.msra.mxu0 0.0
    %1340 = vmatprep.subr.mxu0 0.0
    %1341 = vmatpush1.msra.mxu0 0.0
    %1342 = vmatprep.subr.mxu0 0.0
    %1343 = vmatpush1.msra.mxu0 0.0
    %1344 = vmatprep.subr.mxu0 0.0
    %1345 = vmatpush1.msra.mxu0 0.0
    %1346 = vmatprep.subr.mxu0 0.0
    %1347 = vmatpush1.msra.mxu0 0.0
    %1348 = vmatprep.subr.mxu0 0.0
    %1349 = vmatpush1.msra.mxu0 0.0
    %1350 = vmatprep.subr.mxu0 0.0
    %1351 = vmatpush1.msra.mxu0 0.0
    %1352 = vmatprep.subr.mxu0 0.0
    %1353 = vmatpush1.msra.mxu0 0.0
    %1354 = vmatprep.subr.mxu0 0.0
    %1355 = vmatpush1.msra.mxu0 0.0
    %1356 = vmatprep.subr.mxu0 0.0
    %1357 = vmatpush1.msra.mxu0 0.0
    %1358 = vmatprep.subr.mxu0 0.0
    %1359 = vmatpush1.msra.mxu0 0.0
    %1360 = vmatprep.subr.mxu0 0.0
    %1361 = vmatpush1.msra.mxu0 0.0
    %1362 = vmatprep.subr.mxu0 0.0
    %1363 = vmatpush1.msra.mxu0 0.0
    %1364 = vmatprep.subr.mxu0 0.0
    %1365 = vmatpush1.msra.mxu0 0.0
    %1366 = vmatprep.subr.mxu0 0.0
    %1367 = vmatpush1.msra.mxu0 0.0
    %1368 = vmatprep.subr.mxu0 0.0
    %1369 = vmatpush1.msra.mxu0 0.0
    %1370 = vmatprep.subr.mxu0 0.0
    %1371 = vmatpush1.msra.mxu0 0.0
    %1372 = vmatprep.mubr.f32.mxu0 0.0
    %v1373 = vand.u32 %v72, 4294901760
    %1374 = vmatmul.mubr.f32.gmra.mrb[0].mxu0 %v1373
    %v1375 = vpop.f32.mrb[0].mxu0
    %v1376 = vadd.f32 %v1244, %v1375
    %v1377 = vpop.f32.mrb[0].mxu0
    %v1378 = vadd.f32 %v1246, %v1377
    %1379 = vdwg.mxu0
    %v1380 = vand.u32 %v33, 4294901760
    %1381 = vmatprep.subr.mxu0 %v1380
    %v1382 = vand.u32 %v32, 4294901760
    %1383 = vmatpush1.msra.mxu0 %v1382
    %v1384 = vand.u32 %v37, 4294901760
    %1385 = vmatprep.subr.mxu0 %v1384
    %v1386 = vand.u32 %v36, 4294901760
    %1387 = vmatpush1.msra.mxu0 %v1386
    %v1388 = vand.u32 %v41, 4294901760
    %1389 = vmatprep.subr.mxu0 %v1388
    %v1390 = vand.u32 %v40, 4294901760
    %1391 = vmatpush1.msra.mxu0 %v1390
    %v1392 = vand.u32 %v45, 4294901760
    %1393 = vmatprep.subr.mxu0 %v1392
    %v1394 = vand.u32 %v44, 4294901760
    %1395 = vmatpush1.msra.mxu0 %v1394
    %v1396 = vand.u32 %v49, 4294901760
    %1397 = vmatprep.subr.mxu0 %v1396
    %v1398 = vand.u32 %v48, 4294901760
    %1399 = vmatpush1.msra.mxu0 %v1398
    %v1400 = vand.u32 %v53, 4294901760
    %1401 = vmatprep.subr.mxu0 %v1400
    %v1402 = vand.u32 %v52, 4294901760
    %1403 = vmatpush1.msra.mxu0 %v1402
    %v1404 = vand.u32 %v57, 4294901760
    %1405 = vmatprep.subr.mxu0 %v1404
    %v1406 = vand.u32 %v56, 4294901760
    %1407 = vmatpush1.msra.mxu0 %v1406
    %v1408 = vand.u32 %v61, 4294901760
    %1409 = vmatprep.subr.mxu0 %v1408
    %v1410 = vand.u32 %v60, 4294901760
    %1411 = vmatpush1.msra.mxu0 %v1410
    %v1412 = vand.u32 %v65, 4294901760
    %1413 = vmatprep.subr.mxu0 %v1412
    %v1414 = vand.u32 %v64, 4294901760
    %1415 = vmatpush1.msra.mxu0 %v1414
    %v1416 = vand.u32 %v69, 4294901760
    %1417 = vmatprep.subr.mxu0 %v1416
    %v1418 = vand.u32 %v68, 4294901760
    %1419 = vmatpush1.msra.mxu0 %v1418
    %1420 = vmatprep.subr.mxu0 0.0
    %1421 = vmatpush1.msra.mxu0 0.0
    %1422 = vmatprep.subr.mxu0 0.0
    %1423 = vmatpush1.msra.mxu0 0.0
    %1424 = vmatprep.subr.mxu0 0.0
    %1425 = vmatpush1.msra.mxu0 0.0
    %1426 = vmatprep.subr.mxu0 0.0
    %1427 = vmatpush1.msra.mxu0 0.0
    %1428 = vmatprep.subr.mxu0 0.0
    %1429 = vmatpush1.msra.mxu0 0.0
    %1430 = vmatprep.subr.mxu0 0.0
    %1431 = vmatpush1.msra.mxu0 0.0
    %1432 = vmatprep.subr.mxu0 0.0
    %1433 = vmatpush1.msra.mxu0 0.0
    %1434 = vmatprep.subr.mxu0 0.0
    %1435 = vmatpush1.msra.mxu0 0.0
    %1436 = vmatprep.subr.mxu0 0.0
    %1437 = vmatpush1.msra.mxu0 0.0
    %1438 = vmatprep.subr.mxu0 0.0
    %1439 = vmatpush1.msra.mxu0 0.0
    %1440 = vmatprep.subr.mxu0 0.0
    %1441 = vmatpush1.msra.mxu0 0.0
    %1442 = vmatprep.subr.mxu0 0.0
    %1443 = vmatpush1.msra.mxu0 0.0
    %1444 = vmatprep.subr.mxu0 0.0
    %1445 = vmatpush1.msra.mxu0 0.0
    %1446 = vmatprep.subr.mxu0 0.0
    %1447 = vmatpush1.msra.mxu0 0.0
    %1448 = vmatprep.subr.mxu0 0.0
    %1449 = vmatpush1.msra.mxu0 0.0
    %1450 = vmatprep.subr.mxu0 0.0
    %1451 = vmatpush1.msra.mxu0 0.0
    %1452 = vmatprep.subr.mxu0 0.0
    %1453 = vmatpush1.msra.mxu0 0.0
    %1454 = vmatprep.subr.mxu0 0.0
    %1455 = vmatpush1.msra.mxu0 0.0
    %1456 = vmatprep.subr.mxu0 0.0
    %1457 = vmatpush1.msra.mxu0 0.0
    %1458 = vmatprep.subr.mxu0 0.0
    %1459 = vmatpush1.msra.mxu0 0.0
    %1460 = vmatprep.subr.mxu0 0.0
    %1461 = vmatpush1.msra.mxu0 0.0
    %1462 = vmatprep.subr.mxu0 0.0
    %1463 = vmatpush1.msra.mxu0 0.0
    %1464 = vmatprep.mubr.f32.mxu0 0.0
    %v1465 = vand.u32 %v72, 4294901760
    %1466 = vmatmul.mubr.f32.gmra.mrb[0].mxu0 %v1465
    %v1467 = vpop.f32.mrb[0].mxu0
    %v1468 = vadd.f32 %v1376, %v1467
    %v1469 = vpop.f32.mrb[0].mxu0
    %v1470 = vadd.f32 %v1378, %v1469
    %1471 = vdwg.mxu0
    %v1472 = vmax.f32 %v769, 0.0
    %v1473 = vmax.f32 %v771, 0.0
    %v1474 = vmax.f32 %v1468, 0.0
    %v1475 = vmax.f32 %v1470, 0.0
    %v1476 = vlaneseq
    %v1477 = vshrl.u32 %v1476, 7
    %v1480 = vrot.slane %v1472, 1
    %v1481 = vrot.slane %v1473, 1
    %v1484 = vrot.slane %v1472, 2
    %v1485 = vrot.slane %v1473, 2
    %v1488 = vrot.slane %v1472, 3
    %v1489 = vrot.slane %v1473, 3
    %v1492 = vrot.slane %v1472, 4
    %v1493 = vrot.slane %v1473, 4
    %v1496 = vrot.slane %v1472, 5
    %v1497 = vrot.slane %v1473, 5
    %v1500 = vrot.slane %v1472, 6
    %v1501 = vrot.slane %v1473, 6
    %v1504 = vrot.slane %v1472, 7
    %v1505 = vrot.slane %v1473, 7
    %vm1508 = vcmp.eq.s32.totalorder %v1477, 0
    %v1509 = vlaneseq
    %v1510 = vshrl.u32 %v1509, 7
    %v1511 = vsub.s32 0, %v1510
    %v1512 = vrot.slane %v1472, %v1511
    %v1513 = vlaneseq
    %v1514 = vshrl.u32 %v1513, 7
    %v1515 = vsub.s32 0, %v1514
    %v1516 = vrot.slane %v1473, %v1515
    %v1517 = vlaneseq
    %v1518 = vshrl.u32 %v1517, 7
    %v1519 = vsub.s32 0, %v1518
    %v1520 = vrot.slane %v1480, %v1519
    %v1521 = vlaneseq
    %v1522 = vshrl.u32 %v1521, 7
    %v1523 = vsub.s32 0, %v1522
    %v1524 = vrot.slane %v1481, %v1523
    %v1525 = vlaneseq
    %v1526 = vshrl.u32 %v1525, 7
    %v1527 = vsub.s32 0, %v1526
    %v1528 = vrot.slane %v1484, %v1527
    %v1529 = vlaneseq
    %v1530 = vshrl.u32 %v1529, 7
    %v1531 = vsub.s32 0, %v1530
    %v1532 = vrot.slane %v1485, %v1531
    %v1533 = vlaneseq
    %v1534 = vshrl.u32 %v1533, 7
    %v1535 = vsub.s32 0, %v1534
    %v1536 = vrot.slane %v1488, %v1535
    %v1537 = vlaneseq
    %v1538 = vshrl.u32 %v1537, 7
    %v1539 = vsub.s32 0, %v1538
    %v1540 = vrot.slane %v1489, %v1539
    %v1541 = vlaneseq
    %v1542 = vshrl.u32 %v1541, 7
    %v1543 = vsub.s32 0, %v1542
    %v1544 = vrot.slane %v1492, %v1543
    %v1545 = vlaneseq
    %v1546 = vshrl.u32 %v1545, 7
    %v1547 = vsub.s32 0, %v1546
    %v1548 = vrot.slane %v1493, %v1547
    %v1549 = vlaneseq
    %v1550 = vshrl.u32 %v1549, 7
    %v1551 = vsub.s32 0, %v1550
    %v1552 = vrot.slane %v1496, %v1551
    %v1553 = vlaneseq
    %v1554 = vshrl.u32 %v1553, 7
    %v1555 = vsub.s32 0, %v1554
    %v1556 = vrot.slane %v1497, %v1555
    %v1557 = vlaneseq
    %v1558 = vshrl.u32 %v1557, 7
    %v1559 = vsub.s32 0, %v1558
    %v1560 = vrot.slane %v1500, %v1559
    %v1561 = vlaneseq
    %v1562 = vshrl.u32 %v1561, 7
    %v1563 = vsub.s32 0, %v1562
    %v1564 = vrot.slane %v1501, %v1563
    %v1565 = vlaneseq
    %v1566 = vshrl.u32 %v1565, 7
    %v1567 = vsub.s32 0, %v1566
    %v1568 = vrot.slane %v1504, %v1567
    %v1569 = vlaneseq
    %v1570 = vshrl.u32 %v1569, 7
    %v1571 = vsub.s32 0, %v1570
    %v1572 = vrot.slane %v1505, %v1571
    %v1573 = vsel %vm1508, %v1512, 0.0
    %v1574 = vsel %vm1508, %v1516, 0.0
    %v1575 = vsel %vm1508, %v1520, 0.0
    %v1576 = vsel %vm1508, %v1524, 0.0
    %v1577 = vsel %vm1508, %v1528, 0.0
    %v1578 = vsel %vm1508, %v1532, 0.0
    %v1579 = vsel %vm1508, %v1536, 0.0
    %v1580 = vsel %vm1508, %v1540, 0.0
    %v1581 = vsel %vm1508, %v1544, 0.0
    %v1582 = vsel %vm1508, %v1548, 0.0
    %v1583 = vsel %vm1508, %v1552, 0.0
    %v1584 = vsel %vm1508, %v1556, 0.0
    %v1585 = vsel %vm1508, %v1560, 0.0
    %v1586 = vsel %vm1508, %v1564, 0.0
    %v1587 = vsel %vm1508, %v1568, 0.0
    %v1588 = vsel %vm1508, %v1572, 0.0
    %v1589 = vadd.f32 %v1573, 0.0
    %v1590 = vadd.f32 %v1574, 0.0
    %v1591 = vadd.f32 %v1575, 0.0
    %v1592 = vadd.f32 %v1576, 0.0
    %v1593 = vadd.f32 %v1577, 0.0
    %v1594 = vadd.f32 %v1578, 0.0
    %v1595 = vadd.f32 %v1579, 0.0
    %v1596 = vadd.f32 %v1580, 0.0
    %v1597 = vadd.f32 %v1581, 0.0
    %v1598 = vadd.f32 %v1582, 0.0
    %v1599 = vadd.f32 %v1583, 0.0
    %v1600 = vadd.f32 %v1584, 0.0
    %v1601 = vadd.f32 %v1585, 0.0
    %v1602 = vadd.f32 %v1586, 0.0
    %v1603 = vadd.f32 %v1587, 0.0
    %v1604 = vadd.f32 %v1588, 0.0
    %v1607 = vrot.slane %v1474, 1
    %v1608 = vrot.slane %v1475, 1
    %v1611 = vrot.slane %v1474, 2
    %v1612 = vrot.slane %v1475, 2
    %v1615 = vrot.slane %v1474, 3
    %v1616 = vrot.slane %v1475, 3
    %v1619 = vrot.slane %v1474, 4
    %v1620 = vrot.slane %v1475, 4
    %v1623 = vrot.slane %v1474, 5
    %v1624 = vrot.slane %v1475, 5
    %v1627 = vrot.slane %v1474, 6
    %v1628 = vrot.slane %v1475, 6
    %v1631 = vrot.slane %v1474, 7
    %v1632 = vrot.slane %v1475, 7
    %vm1635 = vcmp.eq.s32.totalorder %v1477, 1
    %v1636 = vlaneseq
    %v1637 = vshrl.u32 %v1636, 7
    %v1638 = vsub.s32 0, %v1637
    %v1639 = vrot.slane %v1474, %v1638
    %v1640 = vlaneseq
    %v1641 = vshrl.u32 %v1640, 7
    %v1642 = vsub.s32 0, %v1641
    %v1643 = vrot.slane %v1475, %v1642
    %v1644 = vlaneseq
    %v1645 = vshrl.u32 %v1644, 7
    %v1646 = vsub.s32 0, %v1645
    %v1647 = vrot.slane %v1607, %v1646
    %v1648 = vlaneseq
    %v1649 = vshrl.u32 %v1648, 7
    %v1650 = vsub.s32 0, %v1649
    %v1651 = vrot.slane %v1608, %v1650
    %v1652 = vlaneseq
    %v1653 = vshrl.u32 %v1652, 7
    %v1654 = vsub.s32 0, %v1653
    %v1655 = vrot.slane %v1611, %v1654
    %v1656 = vlaneseq
    %v1657 = vshrl.u32 %v1656, 7
    %v1658 = vsub.s32 0, %v1657
    %v1659 = vrot.slane %v1612, %v1658
    %v1660 = vlaneseq
    %v1661 = vshrl.u32 %v1660, 7
    %v1662 = vsub.s32 0, %v1661
    %v1663 = vrot.slane %v1615, %v1662
    %v1664 = vlaneseq
    %v1665 = vshrl.u32 %v1664, 7
    %v1666 = vsub.s32 0, %v1665
    %v1667 = vrot.slane %v1616, %v1666
    %v1668 = vlaneseq
    %v1669 = vshrl.u32 %v1668, 7
    %v1670 = vsub.s32 0, %v1669
    %v1671 = vrot.slane %v1619, %v1670
    %v1672 = vlaneseq
    %v1673 = vshrl.u32 %v1672, 7
    %v1674 = vsub.s32 0, %v1673
    %v1675 = vrot.slane %v1620, %v1674
    %v1676 = vlaneseq
    %v1677 = vshrl.u32 %v1676, 7
    %v1678 = vsub.s32 0, %v1677
    %v1679 = vrot.slane %v1623, %v1678
    %v1680 = vlaneseq
    %v1681 = vshrl.u32 %v1680, 7
    %v1682 = vsub.s32 0, %v1681
    %v1683 = vrot.slane %v1624, %v1682
    %v1684 = vlaneseq
    %v1685 = vshrl.u32 %v1684, 7
    %v1686 = vsub.s32 0, %v1685
    %v1687 = vrot.slane %v1627, %v1686
    %v1688 = vlaneseq
    %v1689 = vshrl.u32 %v1688, 7
    %v1690 = vsub.s32 0, %v1689
    %v1691 = vrot.slane %v1628, %v1690
    %v1692 = vlaneseq
    %v1693 = vshrl.u32 %v1692, 7
    %v1694 = vsub.s32 0, %v1693
    %v1695 = vrot.slane %v1631, %v1694
    %v1696 = vlaneseq
    %v1697 = vshrl.u32 %v1696, 7
    %v1698 = vsub.s32 0, %v1697
    %v1699 = vrot.slane %v1632, %v1698
    %v1700 = vsel %vm1635, %v1639, 0.0
    %v1701 = vsel %vm1635, %v1643, 0.0
    %v1702 = vsel %vm1635, %v1647, 0.0
    %v1703 = vsel %vm1635, %v1651, 0.0
    %v1704 = vsel %vm1635, %v1655, 0.0
    %v1705 = vsel %vm1635, %v1659, 0.0
    %v1706 = vsel %vm1635, %v1663, 0.0
    %v1707 = vsel %vm1635, %v1667, 0.0
    %v1708 = vsel %vm1635, %v1671, 0.0
    %v1709 = vsel %vm1635, %v1675, 0.0
    %v1710 = vsel %vm1635, %v1679, 0.0
    %v1711 = vsel %vm1635, %v1683, 0.0
    %v1712 = vsel %vm1635, %v1687, 0.0
    %v1713 = vsel %vm1635, %v1691, 0.0
    %v1714 = vsel %vm1635, %v1695, 0.0
    %v1715 = vsel %vm1635, %v1699, 0.0
    %v1716 = vadd.f32 %v1589, %v1700
    %v1717 = vadd.f32 %v1590, %v1701
    %v1718 = vadd.f32 %v1591, %v1702
    %v1719 = vadd.f32 %v1592, %v1703
    %v1720 = vadd.f32 %v1593, %v1704
    %v1721 = vadd.f32 %v1594, %v1705
    %v1722 = vadd.f32 %v1595, %v1706
    %v1723 = vadd.f32 %v1596, %v1707
    %v1724 = vadd.f32 %v1597, %v1708
    %v1725 = vadd.f32 %v1598, %v1709
    %v1726 = vadd.f32 %v1599, %v1710
    %v1727 = vadd.f32 %v1600, %v1711
    %v1728 = vadd.f32 %v1601, %v1712
    %v1729 = vadd.f32 %v1602, %v1713
    %v1730 = vadd.f32 %v1603, %v1714
    %v1731 = vadd.f32 %v1604, %v1715
    %v1732 = vld [vmem:[%s1 + $0x8] sm:$0x1]
    %v1733 = vld [vmem:[#allocation2] sm:$0xff]
    %v1734 = vld [vmem:[#allocation2 + $0x8] sm:$0xff]
    %v1735 = vld [vmem:[#allocation2 + $0x10] sm:$0xff]
    %v1736 = vld [vmem:[#allocation2 + $0x18] sm:$0xff]
    %v1737 = vld [vmem:[#allocation2 + $0x20] sm:$0xff]
    %v1738 = vld [vmem:[#allocation2 + $0x28] sm:$0xff]
    %v1739 = vld [vmem:[#allocation2 + $0x30] sm:$0xff]
    %v1740 = vld [vmem:[#allocation2 + $0x38] sm:$0xff]
    %v1741 = vld [vmem:[#allocation2 + $0x40] sm:$0xff]
    %v1742 = vld [vmem:[#allocation2 + $0x48] sm:$0xff]
    %v1743 = vld [vmem:[#allocation2 + $0x50] sm:$0xff]
    %v1744 = vld [vmem:[#allocation2 + $0x58] sm:$0xff]
    %v1745 = vld [vmem:[#allocation2 + $0x60] sm:$0xff]
    %v1746 = vld [vmem:[#allocation2 + $0x68] sm:$0xff]
    %v1747 = vld [vmem:[#allocation2 + $0x70] sm:$0xff]
    %v1748 = vld [vmem:[#allocation2 + $0x78] sm:$0xff]
    %v1749 = vld [vmem:[#allocation2 + $0x80] sm:$0xff]
    %v1750 = vld [vmem:[#allocation2 + $0x88] sm:$0xff]
    %v1751 = vld [vmem:[#allocation2 + $0x90] sm:$0xff]
    %v1752 = vld [vmem:[#allocation2 + $0x98] sm:$0xff]
    %v1753 = vld [vmem:[#allocation2 + $0xa0] sm:$0xff]
    %v1754 = vld [vmem:[#allocation2 + $0xa8] sm:$0xff]
    %v1755 = vld [vmem:[#allocation2 + $0xb0] sm:$0xff]
    %v1756 = vld [vmem:[#allocation2 + $0xb8] sm:$0xff]
    %v1757 = vld [vmem:[#allocation2 + $0xc0] sm:$0xff]
    %v1758 = vld [vmem:[#allocation2 + $0xc8] sm:$0xff]
    %v1759 = vld [vmem:[#allocation2 + $0xd0] sm:$0xff]
    %v1760 = vld [vmem:[#allocation2 + $0xd8] sm:$0xff]
    %v1761 = vld [vmem:[#allocation2 + $0xe0] sm:$0xff]
    %v1762 = vld [vmem:[#allocation2 + $0xe8] sm:$0xff]
    %v1763 = vld [vmem:[#allocation2 + $0xf0] sm:$0xff]
    %v1764 = vld [vmem:[#allocation2 + $0xf8] sm:$0xff]
    %v1765 = vld [vmem:[#allocation2 + $0x100] sm:$0xff]
    %v1766 = vld [vmem:[#allocation2 + $0x108] sm:$0xff]
    %v1767 = vld [vmem:[#allocation2 + $0x110] sm:$0xff]
    %v1768 = vld [vmem:[#allocation2 + $0x118] sm:$0xff]
    %v1769 = vld [vmem:[#allocation2 + $0x120] sm:$0xff]
    %v1770 = vld [vmem:[#allocation2 + $0x128] sm:$0xff]
    %v1771 = vld [vmem:[#allocation2 + $0x130] sm:$0xff]
    %v1772 = vld [vmem:[#allocation2 + $0x138] sm:$0xff]
    %v1773 = vld [vmem:[#allocation2 + $0x140] sm:$0xff]
    %v1774 = vld [vmem:[#allocation2 + $0x148] sm:$0xff]
    %v1775 = vld [vmem:[#allocation2 + $0x150] sm:$0xff]
    %v1776 = vld [vmem:[#allocation2 + $0x158] sm:$0xff]
    %v1777 = vld [vmem:[#allocation2 + $0x160] sm:$0xff]
    %v1778 = vld [vmem:[#allocation2 + $0x168] sm:$0xff]
    %v1779 = vld [vmem:[#allocation2 + $0x170] sm:$0xff]
    %v1780 = vld [vmem:[#allocation2 + $0x178] sm:$0xff]
    %v1781 = vld [vmem:[#allocation2 + $0x180] sm:$0xff]
    %v1782 = vld [vmem:[#allocation2 + $0x188] sm:$0xff]
    %v1783 = vld [vmem:[#allocation2 + $0x190] sm:$0xff]
    %v1784 = vld [vmem:[#allocation2 + $0x198] sm:$0xff]
    %v1785 = vld [vmem:[#allocation2 + $0x1a0] sm:$0xff]
    %v1786 = vld [vmem:[#allocation2 + $0x1a8] sm:$0xff]
    %v1787 = vld [vmem:[#allocation2 + $0x1b0] sm:$0xff]
    %v1788 = vld [vmem:[#allocation2 + $0x1b8] sm:$0xff]
    %v1789 = vld [vmem:[#allocation2 + $0x1c0] sm:$0xff]
    %v1790 = vld [vmem:[#allocation2 + $0x1c8] sm:$0xff]
    %v1791 = vld [vmem:[#allocation2 + $0x1d0] sm:$0xff]
    %v1792 = vld [vmem:[#allocation2 + $0x1d8] sm:$0xff]
    %v1793 = vld [vmem:[#allocation2 + $0x1e0] sm:$0xff]
    %v1794 = vld [vmem:[#allocation2 + $0x1e8] sm:$0xff]
    %v1795 = vld [vmem:[#allocation2 + $0x1f0] sm:$0xff]
    %v1796 = vld [vmem:[#allocation2 + $0x1f8] sm:$0xff]
    %v1797 = vld [vmem:[#allocation2 + $0x200] sm:$0xff]
    %v1798 = vld [vmem:[#allocation2 + $0x208] sm:$0xff]
    %v1799 = vld [vmem:[#allocation2 + $0x210] sm:$0xff]
    %v1800 = vld [vmem:[#allocation2 + $0x218] sm:$0xff]
    %v1801 = vld [vmem:[#allocation2 + $0x220] sm:$0xff]
    %v1802 = vld [vmem:[#allocation2 + $0x228] sm:$0xff]
    %v1803 = vld [vmem:[#allocation2 + $0x230] sm:$0xff]
    %v1804 = vld [vmem:[#allocation2 + $0x238] sm:$0xff]
    %v1805 = vld [vmem:[#allocation2 + $0x240] sm:$0xff]
    %v1806 = vld [vmem:[#allocation2 + $0x248] sm:$0xff]
    %v1807 = vld [vmem:[#allocation2 + $0x250] sm:$0xff]
    %v1808 = vld [vmem:[#allocation2 + $0x258] sm:$0xff]
    %v1809 = vld [vmem:[#allocation2 + $0x260] sm:$0xff]
    %v1810 = vld [vmem:[#allocation2 + $0x268] sm:$0xff]
    %v1811 = vld [vmem:[#allocation2 + $0x270] sm:$0xff]
    %v1812 = vld [vmem:[#allocation2 + $0x278] sm:$0xff]
    %v1813 = vld [vmem:[#allocation2 + $0x280] sm:$0xff]
    %v1814 = vld [vmem:[#allocation2 + $0x288] sm:$0xff]
    %v1815 = vld [vmem:[#allocation2 + $0x290] sm:$0xff]
    %v1816 = vld [vmem:[#allocation2 + $0x298] sm:$0xff]
    %v1817 = vld [vmem:[#allocation2 + $0x2a0] sm:$0xff]
    %v1818 = vld [vmem:[#allocation2 + $0x2a8] sm:$0xff]
    %v1819 = vld [vmem:[#allocation2 + $0x2b0] sm:$0xff]
    %v1820 = vld [vmem:[#allocation2 + $0x2b8] sm:$0xff]
    %v1821 = vld [vmem:[#allocation2 + $0x2c0] sm:$0xff]
    %v1822 = vld [vmem:[#allocation2 + $0x2c8] sm:$0xff]
    %v1823 = vld [vmem:[#allocation2 + $0x2d0] sm:$0xff]
    %v1824 = vld [vmem:[#allocation2 + $0x2d8] sm:$0xff]
    %v1825 = vld [vmem:[#allocation2 + $0x2e0] sm:$0xff]
    %v1826 = vld [vmem:[#allocation2 + $0x2e8] sm:$0xff]
    %v1827 = vld [vmem:[#allocation2 + $0x2f0] sm:$0xff]
    %v1828 = vld [vmem:[#allocation2 + $0x2f8] sm:$0xff]
    %v1829 = vld [vmem:[#allocation2 + $0x300] sm:$0xff]
    %v1830 = vld [vmem:[#allocation2 + $0x308] sm:$0xff]
    %v1831 = vld [vmem:[#allocation2 + $0x310] sm:$0xff]
    %v1832 = vld [vmem:[#allocation2 + $0x318] sm:$0xff]
    %v1833 = vld [vmem:[#allocation2 + $0x320] sm:$0xff]
    %v1834 = vld [vmem:[#allocation2 + $0x328] sm:$0xff]
    %v1835 = vld [vmem:[#allocation2 + $0x330] sm:$0xff]
    %v1836 = vld [vmem:[#allocation2 + $0x338] sm:$0xff]
    %v1837 = vld [vmem:[#allocation2 + $0x340] sm:$0xff]
    %v1838 = vld [vmem:[#allocation2 + $0x348] sm:$0xff]
    %v1839 = vld [vmem:[#allocation2 + $0x350] sm:$0xff]
    %v1840 = vld [vmem:[#allocation2 + $0x358] sm:$0xff]
    %v1841 = vld [vmem:[#allocation2 + $0x360] sm:$0xff]
    %v1842 = vld [vmem:[#allocation2 + $0x368] sm:$0xff]
    %v1843 = vld [vmem:[#allocation2 + $0x370] sm:$0xff]
    %v1844 = vld [vmem:[#allocation2 + $0x378] sm:$0xff]
    %v1845 = vld [vmem:[#allocation2 + $0x380] sm:$0xff]
    %v1846 = vld [vmem:[#allocation2 + $0x388] sm:$0xff]
    %v1847 = vld [vmem:[#allocation2 + $0x390] sm:$0xff]
    %v1848 = vld [vmem:[#allocation2 + $0x398] sm:$0xff]
    %v1849 = vld [vmem:[#allocation2 + $0x3a0] sm:$0xff]
    %v1850 = vld [vmem:[#allocation2 + $0x3a8] sm:$0xff]
    %v1851 = vld [vmem:[#allocation2 + $0x3b0] sm:$0xff]
    %v1852 = vld [vmem:[#allocation2 + $0x3b8] sm:$0xff]
    %v1853 = vld [vmem:[#allocation2 + $0x3c0] sm:$0xff]
    %v1854 = vld [vmem:[#allocation2 + $0x3c8] sm:$0xff]
    %v1855 = vld [vmem:[#allocation2 + $0x3d0] sm:$0xff]
    %v1856 = vld [vmem:[#allocation2 + $0x3d8] sm:$0xff]
    %v1857 = vld [vmem:[#allocation2 + $0x3e0] sm:$0xff]
    %v1858 = vld [vmem:[#allocation2 + $0x3e8] sm:$0xff]
    %v1859 = vld [vmem:[#allocation2 + $0x3f0] sm:$0xff]
    %v1860 = vld [vmem:[#allocation2 + $0x3f8] sm:$0xff]
    %v1861 = vld [vmem:[#allocation2 + $0x400] sm:$0xff]
    %v1862 = vld [vmem:[#allocation2 + $0x408] sm:$0xff]
    %v1863 = vld [vmem:[#allocation2 + $0x410] sm:$0xff]
    %v1864 = vld [vmem:[#allocation2 + $0x418] sm:$0xff]
    %v1865 = vld [vmem:[#allocation2 + $0x420] sm:$0xff]
    %v1866 = vld [vmem:[#allocation2 + $0x428] sm:$0xff]
    %v1867 = vld [vmem:[#allocation2 + $0x430] sm:$0xff]
    %v1868 = vld [vmem:[#allocation2 + $0x438] sm:$0xff]
    %v1869 = vld [vmem:[#allocation2 + $0x440] sm:$0xff]
    %v1870 = vld [vmem:[#allocation2 + $0x448] sm:$0xff]
    %v1871 = vld [vmem:[#allocation2 + $0x450] sm:$0xff]
    %v1872 = vld [vmem:[#allocation2 + $0x458] sm:$0xff]
    %v1873 = vld [vmem:[#allocation2 + $0x460] sm:$0xff]
    %v1874 = vld [vmem:[#allocation2 + $0x468] sm:$0xff]
    %v1875 = vld [vmem:[#allocation2 + $0x470] sm:$0xff]
    %v1876 = vld [vmem:[#allocation2 + $0x478] sm:$0xff]
    %v1877 = vld [vmem:[#allocation2 + $0x480] sm:$0xff]
    %v1878 = vld [vmem:[#allocation2 + $0x488] sm:$0xff]
    %v1879 = vld [vmem:[#allocation2 + $0x490] sm:$0xff]
    %v1880 = vld [vmem:[#allocation2 + $0x498] sm:$0xff]
    %v1881 = vld [vmem:[#allocation2 + $0x4a0] sm:$0xff]
    %v1882 = vld [vmem:[#allocation2 + $0x4a8] sm:$0xff]
    %v1883 = vld [vmem:[#allocation2 + $0x4b0] sm:$0xff]
    %v1884 = vld [vmem:[#allocation2 + $0x4b8] sm:$0xff]
    %v1885 = vld [vmem:[#allocation2 + $0x4c0] sm:$0xff]
    %v1886 = vld [vmem:[#allocation2 + $0x4c8] sm:$0xff]
    %v1887 = vld [vmem:[#allocation2 + $0x4d0] sm:$0xff]
    %v1888 = vld [vmem:[#allocation2 + $0x4d8] sm:$0xff]
    %v1889 = vld [vmem:[#allocation2 + $0x4e0] sm:$0xff]
    %v1890 = vld [vmem:[#allocation2 + $0x4e8] sm:$0xff]
    %v1891 = vld [vmem:[#allocation2 + $0x4f0] sm:$0xff]
    %v1892 = vld [vmem:[#allocation2 + $0x4f8] sm:$0xff]
    %v1893 = vld [vmem:[#allocation2 + $0x500] sm:$0xff]
    %v1894 = vld [vmem:[#allocation2 + $0x508] sm:$0xff]
    %v1895 = vld [vmem:[#allocation2 + $0x510] sm:$0xff]
    %v1896 = vld [vmem:[#allocation2 + $0x518] sm:$0xff]
    %v1897 = vld [vmem:[#allocation2 + $0x520] sm:$0xff]
    %v1898 = vld [vmem:[#allocation2 + $0x528] sm:$0xff]
    %v1899 = vld [vmem:[#allocation2 + $0x530] sm:$0xff]
    %v1900 = vld [vmem:[#allocation2 + $0x538] sm:$0xff]
    %v1901 = vld [vmem:[#allocation2 + $0x540] sm:$0xff]
    %v1902 = vld [vmem:[#allocation2 + $0x548] sm:$0xff]
    %v1903 = vld [vmem:[#allocation2 + $0x550] sm:$0xff]
    %v1904 = vld [vmem:[#allocation2 + $0x558] sm:$0xff]
    %v1905 = vld [vmem:[#allocation2 + $0x560] sm:$0xff]
    %v1906 = vld [vmem:[#allocation2 + $0x568] sm:$0xff]
    %v1907 = vld [vmem:[#allocation2 + $0x570] sm:$0xff]
    %v1908 = vld [vmem:[#allocation2 + $0x578] sm:$0xff]
    %v1909 = vld [vmem:[#allocation2 + $0x580] sm:$0xff]
    %v1910 = vld [vmem:[#allocation2 + $0x588] sm:$0xff]
    %v1911 = vld [vmem:[#allocation2 + $0x590] sm:$0xff]
    %v1912 = vld [vmem:[#allocation2 + $0x598] sm:$0xff]
    %v1913 = vld [vmem:[#allocation2 + $0x5a0] sm:$0xff]
    %v1914 = vld [vmem:[#allocation2 + $0x5a8] sm:$0xff]
    %v1915 = vld [vmem:[#allocation2 + $0x5b0] sm:$0xff]
    %v1916 = vld [vmem:[#allocation2 + $0x5b8] sm:$0xff]
    %v1917 = vld [vmem:[#allocation2 + $0x5c0] sm:$0xff]
    %v1918 = vld [vmem:[#allocation2 + $0x5c8] sm:$0xff]
    %v1919 = vld [vmem:[#allocation2 + $0x5d0] sm:$0xff]
    %v1920 = vld [vmem:[#allocation2 + $0x5d8] sm:$0xff]
    %v1921 = vld [vmem:[#allocation2 + $0x5e0] sm:$0xff]
    %v1922 = vld [vmem:[#allocation2 + $0x5e8] sm:$0xff]
    %v1923 = vld [vmem:[#allocation2 + $0x5f0] sm:$0xff]
    %v1924 = vld [vmem:[#allocation2 + $0x5f8] sm:$0xff]
    %v1925 = vld [vmem:[#allocation2 + $0x600] sm:$0xff]
    %v1926 = vld [vmem:[#allocation2 + $0x608] sm:$0xff]
    %v1927 = vld [vmem:[#allocation2 + $0x610] sm:$0xff]
    %v1928 = vld [vmem:[#allocation2 + $0x618] sm:$0xff]
    %v1929 = vld [vmem:[#allocation2 + $0x620] sm:$0xff]
    %v1930 = vld [vmem:[#allocation2 + $0x628] sm:$0xff]
    %v1931 = vld [vmem:[#allocation2 + $0x630] sm:$0xff]
    %v1932 = vld [vmem:[#allocation2 + $0x638] sm:$0xff]
    %v1933 = vld [vmem:[#allocation2 + $0x640] sm:$0xff]
    %v1934 = vld [vmem:[#allocation2 + $0x648] sm:$0xff]
    %v1935 = vld [vmem:[#allocation2 + $0x650] sm:$0xff]
    %v1936 = vld [vmem:[#allocation2 + $0x658] sm:$0xff]
    %v1937 = vld [vmem:[#allocation2 + $0x660] sm:$0xff]
    %v1938 = vld [vmem:[#allocation2 + $0x668] sm:$0xff]
    %v1939 = vld [vmem:[#allocation2 + $0x670] sm:$0xff]
    %v1940 = vld [vmem:[#allocation2 + $0x678] sm:$0xff]
    %v1941 = vld [vmem:[#allocation2 + $0x680] sm:$0xff]
    %v1942 = vld [vmem:[#allocation2 + $0x688] sm:$0xff]
    %v1943 = vld [vmem:[#allocation2 + $0x690] sm:$0xff]
    %v1944 = vld [vmem:[#allocation2 + $0x698] sm:$0xff]
    %v1945 = vld [vmem:[#allocation2 + $0x6a0] sm:$0xff]
    %v1946 = vld [vmem:[#allocation2 + $0x6a8] sm:$0xff]
    %v1947 = vld [vmem:[#allocation2 + $0x6b0] sm:$0xff]
    %v1948 = vld [vmem:[#allocation2 + $0x6b8] sm:$0xff]
    %v1949 = vld [vmem:[#allocation2 + $0x6c0] sm:$0xff]
    %v1950 = vld [vmem:[#allocation2 + $0x6c8] sm:$0xff]
    %v1951 = vld [vmem:[#allocation2 + $0x6d0] sm:$0xff]
    %v1952 = vld [vmem:[#allocation2 + $0x6d8] sm:$0xff]
    %v1953 = vld [vmem:[#allocation2 + $0x6e0] sm:$0xff]
    %v1954 = vld [vmem:[#allocation2 + $0x6e8] sm:$0xff]
    %v1955 = vld [vmem:[#allocation2 + $0x6f0] sm:$0xff]
    %v1956 = vld [vmem:[#allocation2 + $0x6f8] sm:$0xff]
    %v1957 = vld [vmem:[#allocation2 + $0x700] sm:$0xff]
    %v1958 = vld [vmem:[#allocation2 + $0x708] sm:$0xff]
    %v1959 = vld [vmem:[#allocation2 + $0x710] sm:$0xff]
    %v1960 = vld [vmem:[#allocation2 + $0x718] sm:$0xff]
    %v1961 = vld [vmem:[#allocation2 + $0x720] sm:$0xff]
    %v1962 = vld [vmem:[#allocation2 + $0x728] sm:$0xff]
    %v1963 = vld [vmem:[#allocation2 + $0x730] sm:$0xff]
    %v1964 = vld [vmem:[#allocation2 + $0x738] sm:$0xff]
    %v1965 = vld [vmem:[#allocation2 + $0x740] sm:$0xff]
    %v1966 = vld [vmem:[#allocation2 + $0x748] sm:$0xff]
    %v1967 = vld [vmem:[#allocation2 + $0x750] sm:$0xff]
    %v1968 = vld [vmem:[#allocation2 + $0x758] sm:$0xff]
    %v1969 = vld [vmem:[#allocation2 + $0x760] sm:$0xff]
    %v1970 = vld [vmem:[#allocation2 + $0x768] sm:$0xff]
    %v1971 = vld [vmem:[#allocation2 + $0x770] sm:$0xff]
    %v1972 = vld [vmem:[#allocation2 + $0x778] sm:$0xff]
    %v1973 = vld [vmem:[#allocation2 + $0x780] sm:$0xff]
    %v1974 = vld [vmem:[#allocation2 + $0x788] sm:$0xff]
    %v1975 = vld [vmem:[#allocation2 + $0x790] sm:$0xff]
    %v1976 = vld [vmem:[#allocation2 + $0x798] sm:$0xff]
    %v1977 = vld [vmem:[#allocation2 + $0x7a0] sm:$0xff]
    %v1978 = vld [vmem:[#allocation2 + $0x7a8] sm:$0xff]
    %v1979 = vld [vmem:[#allocation2 + $0x7b0] sm:$0xff]
    %v1980 = vld [vmem:[#allocation2 + $0x7b8] sm:$0xff]
    %v1981 = vld [vmem:[#allocation2 + $0x7c0] sm:$0xff]
    %v1982 = vld [vmem:[#allocation2 + $0x7c8] sm:$0xff]
    %v1983 = vld [vmem:[#allocation2 + $0x7d0] sm:$0xff]
    %v1984 = vld [vmem:[#allocation2 + $0x7d8] sm:$0xff]
    %v1985 = vld [vmem:[#allocation2 + $0x7e0] sm:$0xff]
    %v1986 = vld [vmem:[#allocation2 + $0x7e8] sm:$0xff]
    %v1987 = vld [vmem:[#allocation2 + $0x7f0] sm:$0xff]
    %v1988 = vld [vmem:[#allocation2 + $0x7f8] sm:$0xff]
    %v1989 = vlaneseq
    %v1990 = vshrl.u32 %v1989, 7
    %v1991 = vsub.s32 0, %v1990
    %v1992 = vrot.slane %v1732, %v1991
    %1993 = vmatprep.subr.mxu0 0.0
    %v1994 = vand.u32 %v1733, 4294901760
    %1995 = vmatpush1.msra.mxu0 %v1994
    %1996 = vmatprep.subr.mxu0 0.0
    %v1997 = vand.u32 %v1734, 4294901760
    %1998 = vmatpush1.msra.mxu0 %v1997
    %1999 = vmatprep.subr.mxu0 0.0
    %v2000 = vand.u32 %v1735, 4294901760
    %2001 = vmatpush1.msra.mxu0 %v2000
    %2002 = vmatprep.subr.mxu0 0.0
    %v2003 = vand.u32 %v1736, 4294901760
    %2004 = vmatpush1.msra.mxu0 %v2003
    %2005 = vmatprep.subr.mxu0 0.0
    %v2006 = vand.u32 %v1737, 4294901760
    %2007 = vmatpush1.msra.mxu0 %v2006
    %2008 = vmatprep.subr.mxu0 0.0
    %v2009 = vand.u32 %v1738, 4294901760
    %2010 = vmatpush1.msra.mxu0 %v2009
    %2011 = vmatprep.subr.mxu0 0.0
    %v2012 = vand.u32 %v1739, 4294901760
    %2013 = vmatpush1.msra.mxu0 %v2012
    %2014 = vmatprep.subr.mxu0 0.0
    %v2015 = vand.u32 %v1740, 4294901760
    %2016 = vmatpush1.msra.mxu0 %v2015
    %2017 = vmatprep.subr.mxu0 0.0
    %v2018 = vand.u32 %v1741, 4294901760
    %2019 = vmatpush1.msra.mxu0 %v2018
    %2020 = vmatprep.subr.mxu0 0.0
    %v2021 = vand.u32 %v1742, 4294901760
    %2022 = vmatpush1.msra.mxu0 %v2021
    %2023 = vmatprep.subr.mxu0 0.0
    %v2024 = vand.u32 %v1743, 4294901760
    %2025 = vmatpush1.msra.mxu0 %v2024
    %2026 = vmatprep.subr.mxu0 0.0
    %v2027 = vand.u32 %v1744, 4294901760
    %2028 = vmatpush1.msra.mxu0 %v2027
    %2029 = vmatprep.subr.mxu0 0.0
    %v2030 = vand.u32 %v1745, 4294901760
    %2031 = vmatpush1.msra.mxu0 %v2030
    %2032 = vmatprep.subr.mxu0 0.0
    %v2033 = vand.u32 %v1746, 4294901760
    %2034 = vmatpush1.msra.mxu0 %v2033
    %2035 = vmatprep.subr.mxu0 0.0
    %v2036 = vand.u32 %v1747, 4294901760
    %2037 = vmatpush1.msra.mxu0 %v2036
    %2038 = vmatprep.subr.mxu0 0.0
    %v2039 = vand.u32 %v1748, 4294901760
    %2040 = vmatpush1.msra.mxu0 %v2039
    %2041 = vmatprep.subr.mxu0 0.0
    %v2042 = vand.u32 %v1749, 4294901760
    %2043 = vmatpush1.msra.mxu0 %v2042
    %2044 = vmatprep.subr.mxu0 0.0
    %v2045 = vand.u32 %v1750, 4294901760
    %2046 = vmatpush1.msra.mxu0 %v2045
    %2047 = vmatprep.subr.mxu0 0.0
    %v2048 = vand.u32 %v1751, 4294901760
    %2049 = vmatpush1.msra.mxu0 %v2048
    %2050 = vmatprep.subr.mxu0 0.0
    %v2051 = vand.u32 %v1752, 4294901760
    %2052 = vmatpush1.msra.mxu0 %v2051
    %2053 = vmatprep.subr.mxu0 0.0
    %v2054 = vand.u32 %v1753, 4294901760
    %2055 = vmatpush1.msra.mxu0 %v2054
    %2056 = vmatprep.subr.mxu0 0.0
    %v2057 = vand.u32 %v1754, 4294901760
    %2058 = vmatpush1.msra.mxu0 %v2057
    %2059 = vmatprep.subr.mxu0 0.0
    %v2060 = vand.u32 %v1755, 4294901760
    %2061 = vmatpush1.msra.mxu0 %v2060
    %2062 = vmatprep.subr.mxu0 0.0
    %v2063 = vand.u32 %v1756, 4294901760
    %2064 = vmatpush1.msra.mxu0 %v2063
    %2065 = vmatprep.subr.mxu0 0.0
    %v2066 = vand.u32 %v1757, 4294901760
    %2067 = vmatpush1.msra.mxu0 %v2066
    %2068 = vmatprep.subr.mxu0 0.0
    %v2069 = vand.u32 %v1758, 4294901760
    %2070 = vmatpush1.msra.mxu0 %v2069
    %2071 = vmatprep.subr.mxu0 0.0
    %v2072 = vand.u32 %v1759, 4294901760
    %2073 = vmatpush1.msra.mxu0 %v2072
    %2074 = vmatprep.subr.mxu0 0.0
    %v2075 = vand.u32 %v1760, 4294901760
    %2076 = vmatpush1.msra.mxu0 %v2075
    %2077 = vmatprep.subr.mxu0 0.0
    %v2078 = vand.u32 %v1761, 4294901760
    %2079 = vmatpush1.msra.mxu0 %v2078
    %2080 = vmatprep.subr.mxu0 0.0
    %v2081 = vand.u32 %v1762, 4294901760
    %2082 = vmatpush1.msra.mxu0 %v2081
    %2083 = vmatprep.subr.mxu0 0.0
    %v2084 = vand.u32 %v1763, 4294901760
    %2085 = vmatpush1.msra.mxu0 %v2084
    %2086 = vmatprep.subr.mxu0 0.0
    %v2087 = vand.u32 %v1764, 4294901760
    %2088 = vmatpush1.msra.mxu0 %v2087
    %v2089 = vand.u32 %v1717, 4294901760
    %v2090 = vsub.f32 %v1717, %v2089
    %v2091 = vand.u32 %v2090, 4294901760
    %v2092 = vsub.f32 %v2090, %v2091
    %v2093 = vand.u32 %v2092, 4294901760
    %2094 = vmatprep.mubr.f32.mxu0 %v2093
    %v2095 = vand.u32 %v1716, 4294901760
    %v2096 = vsub.f32 %v1716, %v2095
    %v2097 = vand.u32 %v2096, 4294901760
    %v2098 = vsub.f32 %v2096, %v2097
    %v2099 = vand.u32 %v2098, 4294901760
    %2100 = vmatmul.mubr.f32.gmra.mrb[0].mxu0 %v2099
    %v2101 = vpop.f32.mrb[0].mxu0
    %v2102 = vadd.f32 %v1992, %v2101
    %v2103 = vpop.f32.mrb[0].mxu0
    %2104 = vdwg.mxu0
    %2105 = vmatprep.subr.mxu0 0.0
    %v2106 = vand.u32 %v1733, 4294901760
    %v2107 = vsub.f32 %v1733, %v2106
    %v2108 = vand.u32 %v2107, 4294901760
    %v2109 = vsub.f32 %v2107, %v2108
    %v2110 = vand.u32 %v2109, 4294901760
    %2111 = vmatpush1.msra.mxu0 %v2110
    %2112 = vmatprep.subr.mxu0 0.0
    %v2113 = vand.u32 %v1734, 4294901760
    %v2114 = vsub.f32 %v1734, %v2113
    %v2115 = vand.u32 %v2114, 4294901760
    %v2116 = vsub.f32 %v2114, %v2115
    %v2117 = vand.u32 %v2116, 4294901760
    %2118 = vmatpush1.msra.mxu0 %v2117
    %2119 = vmatprep.subr.mxu0 0.0
    %v2120 = vand.u32 %v1735, 4294901760
    %v2121 = vsub.f32 %v1735, %v2120
    %v2122 = vand.u32 %v2121, 4294901760
    %v2123 = vsub.f32 %v2121, %v2122
    %v2124 = vand.u32 %v2123, 4294901760
    %2125 = vmatpush1.msra.mxu0 %v2124
    %2126 = vmatprep.subr.mxu0 0.0
    %v2127 = vand.u32 %v1736, 4294901760
    %v2128 = vsub.f32 %v1736, %v2127
    %v2129 = vand.u32 %v2128, 4294901760
    %v2130 = vsub.f32 %v2128, %v2129
    %v2131 = vand.u32 %v2130, 4294901760
    %2132 = vmatpush1.msra.mxu0 %v2131
    %2133 = vmatprep.subr.mxu0 0.0
    %v2134 = vand.u32 %v1737, 4294901760
    %v2135 = vsub.f32 %v1737, %v2134
    %v2136 = vand.u32 %v2135, 4294901760
    %v2137 = vsub.f32 %v2135, %v2136
    %v2138 = vand.u32 %v2137, 4294901760
    %2139 = vmatpush1.msra.mxu0 %v2138
    %2140 = vmatprep.subr.mxu0 0.0
    %v2141 = vand.u32 %v1738, 4294901760
    %v2142 = vsub.f32 %v1738, %v2141
    %v2143 = vand.u32 %v2142, 4294901760
    %v2144 = vsub.f32 %v2142, %v2143
    %v2145 = vand.u32 %v2144, 4294901760
    %2146 = vmatpush1.msra.mxu0 %v2145
    %2147 = vmatprep.subr.mxu0 0.0
    %v2148 = vand.u32 %v1739, 4294901760
    %v2149 = vsub.f32 %v1739, %v2148
    %v2150 = vand.u32 %v2149, 4294901760
    %v2151 = vsub.f32 %v2149, %v2150
    %v2152 = vand.u32 %v2151, 4294901760
    %2153 = vmatpush1.msra.mxu0 %v2152
    %2154 = vmatprep.subr.mxu0 0.0
    %v2155 = vand.u32 %v1740, 4294901760
    %v2156 = vsub.f32 %v1740, %v2155
    %v2157 = vand.u32 %v2156, 4294901760
    %v2158 = vsub.f32 %v2156, %v2157
    %v2159 = vand.u32 %v2158, 4294901760
    %2160 = vmatpush1.msra.mxu0 %v2159
    %2161 = vmatprep.subr.mxu0 0.0
    %v2162 = vand.u32 %v1741, 4294901760
    %v2163 = vsub.f32 %v1741, %v2162
    %v2164 = vand.u32 %v2163, 4294901760
    %v2165 = vsub.f32 %v2163, %v2164
    %v2166 = vand.u32 %v2165, 4294901760
    %2167 = vmatpush1.msra.mxu0 %v2166
    %2168 = vmatprep.subr.mxu0 0.0
    %v2169 = vand.u32 %v1742, 4294901760
    %v2170 = vsub.f32 %v1742, %v2169
    %v2171 = vand.u32 %v2170, 4294901760
    %v2172 = vsub.f32 %v2170, %v2171
    %v2173 = vand.u32 %v2172, 4294901760
    %2174 = vmatpush1.msra.mxu0 %v2173
    %2175 = vmatprep.subr.mxu0 0.0
    %v2176 = vand.u32 %v1743, 4294901760
    %v2177 = vsub.f32 %v1743, %v2176
    %v2178 = vand.u32 %v2177, 4294901760
    %v2179 = vsub.f32 %v2177, %v2178
    %v2180 = vand.u32 %v2179, 4294901760
    %2181 = vmatpush1.msra.mxu0 %v2180
    %2182 = vmatprep.subr.mxu0 0.0
    %v2183 = vand.u32 %v1744, 4294901760
    %v2184 = vsub.f32 %v1744, %v2183
    %v2185 = vand.u32 %v2184, 4294901760
    %v2186 = vsub.f32 %v2184, %v2185
    %v2187 = vand.u32 %v2186, 4294901760
    %2188 = vmatpush1.msra.mxu0 %v2187
    %2189 = vmatprep.subr.mxu0 0.0
    %v2190 = vand.u32 %v1745, 4294901760
    %v2191 = vsub.f32 %v1745, %v2190
    %v2192 = vand.u32 %v2191, 4294901760
    %v2193 = vsub.f32 %v2191, %v2192
    %v2194 = vand.u32 %v2193, 4294901760
    %2195 = vmatpush1.msra.mxu0 %v2194
    %2196 = vmatprep.subr.mxu0 0.0
    %v2197 = vand.u32 %v1746, 4294901760
    %v2198 = vsub.f32 %v1746, %v2197
    %v2199 = vand.u32 %v2198, 4294901760
    %v2200 = vsub.f32 %v2198, %v2199
    %v2201 = vand.u32 %v2200, 4294901760
    %2202 = vmatpush1.msra.mxu0 %v2201
    %2203 = vmatprep.subr.mxu0 0.0
    %v2204 = vand.u32 %v1747, 4294901760
    %v2205 = vsub.f32 %v1747, %v2204
    %v2206 = vand.u32 %v2205, 4294901760
    %v2207 = vsub.f32 %v2205, %v2206
    %v2208 = vand.u32 %v2207, 4294901760
    %2209 = vmatpush1.msra.mxu0 %v2208
    %2210 = vmatprep.subr.mxu0 0.0
    %v2211 = vand.u32 %v1748, 4294901760
    %v2212 = vsub.f32 %v1748, %v2211
    %v2213 = vand.u32 %v2212, 4294901760
    %v2214 = vsub.f32 %v2212, %v2213
    %v2215 = vand.u32 %v2214, 4294901760
    %2216 = vmatpush1.msra.mxu0 %v2215
    %2217 = vmatprep.subr.mxu0 0.0
    %v2218 = vand.u32 %v1749, 4294901760
    %v2219 = vsub.f32 %v1749, %v2218
    %v2220 = vand.u32 %v2219, 4294901760
    %v2221 = vsub.f32 %v2219, %v2220
    %v2222 = vand.u32 %v2221, 4294901760
    %2223 = vmatpush1.msra.mxu0 %v2222
    %2224 = vmatprep.subr.mxu0 0.0
    %v2225 = vand.u32 %v1750, 4294901760
    %v2226 = vsub.f32 %v1750, %v2225
    %v2227 = vand.u32 %v2226, 4294901760
    %v2228 = vsub.f32 %v2226, %v2227
    %v2229 = vand.u32 %v2228, 4294901760
    %2230 = vmatpush1.msra.mxu0 %v2229
    %2231 = vmatprep.subr.mxu0 0.0
    %v2232 = vand.u32 %v1751, 4294901760
    %v2233 = vsub.f32 %v1751, %v2232
    %v2234 = vand.u32 %v2233, 4294901760
    %v2235 = vsub.f32 %v2233, %v2234
    %v2236 = vand.u32 %v2235, 4294901760
    %2237 = vmatpush1.msra.mxu0 %v2236
    %2238 = vmatprep.subr.mxu0 0.0
    %v2239 = vand.u32 %v1752, 4294901760
    %v2240 = vsub.f32 %v1752, %v2239
    %v2241 = vand.u32 %v2240, 4294901760
    %v2242 = vsub.f32 %v2240, %v2241
    %v2243 = vand.u32 %v2242, 4294901760
    %2244 = vmatpush1.msra.mxu0 %v2243
    %2245 = vmatprep.subr.mxu0 0.0
    %v2246 = vand.u32 %v1753, 4294901760
    %v2247 = vsub.f32 %v1753, %v2246
    %v2248 = vand.u32 %v2247, 4294901760
    %v2249 = vsub.f32 %v2247, %v2248
    %v2250 = vand.u32 %v2249, 4294901760
    %2251 = vmatpush1.msra.mxu0 %v2250
    %2252 = vmatprep.subr.mxu0 0.0
    %v2253 = vand.u32 %v1754, 4294901760
    %v2254 = vsub.f32 %v1754, %v2253
    %v2255 = vand.u32 %v2254, 4294901760
    %v2256 = vsub.f32 %v2254, %v2255
    %v2257 = vand.u32 %v2256, 4294901760
    %2258 = vmatpush1.msra.mxu0 %v2257
    %2259 = vmatprep.subr.mxu0 0.0
    %v2260 = vand.u32 %v1755, 4294901760
    %v2261 = vsub.f32 %v1755, %v2260
    %v2262 = vand.u32 %v2261, 4294901760
    %v2263 = vsub.f32 %v2261, %v2262
    %v2264 = vand.u32 %v2263, 4294901760
    %2265 = vmatpush1.msra.mxu0 %v2264
    %2266 = vmatprep.subr.mxu0 0.0
    %v2267 = vand.u32 %v1756, 4294901760
    %v2268 = vsub.f32 %v1756, %v2267
    %v2269 = vand.u32 %v2268, 4294901760
    %v2270 = vsub.f32 %v2268, %v2269
    %v2271 = vand.u32 %v2270, 4294901760
    %2272 = vmatpush1.msra.mxu0 %v2271
    %2273 = vmatprep.subr.mxu0 0.0
    %v2274 = vand.u32 %v1757, 4294901760
    %v2275 = vsub.f32 %v1757, %v2274
    %v2276 = vand.u32 %v2275, 4294901760
    %v2277 = vsub.f32 %v2275, %v2276
    %v2278 = vand.u32 %v2277, 4294901760
    %2279 = vmatpush1.msra.mxu0 %v2278
    %2280 = vmatprep.subr.mxu0 0.0
    %v2281 = vand.u32 %v1758, 4294901760
    %v2282 = vsub.f32 %v1758, %v2281
    %v2283 = vand.u32 %v2282, 4294901760
    %v2284 = vsub.f32 %v2282, %v2283
    %v2285 = vand.u32 %v2284, 4294901760
    %2286 = vmatpush1.msra.mxu0 %v2285
    %2287 = vmatprep.subr.mxu0 0.0
    %v2288 = vand.u32 %v1759, 4294901760
    %v2289 = vsub.f32 %v1759, %v2288
    %v2290 = vand.u32 %v2289, 4294901760
    %v2291 = vsub.f32 %v2289, %v2290
    %v2292 = vand.u32 %v2291, 4294901760
    %2293 = vmatpush1.msra.mxu0 %v2292
    %2294 = vmatprep.subr.mxu0 0.0
    %v2295 = vand.u32 %v1760, 4294901760
    %v2296 = vsub.f32 %v1760, %v2295
    %v2297 = vand.u32 %v2296, 4294901760
    %v2298 = vsub.f32 %v2296, %v2297
    %v2299 = vand.u32 %v2298, 4294901760
    %2300 = vmatpush1.msra.mxu0 %v2299
    %2301 = vmatprep.subr.mxu0 0.0
    %v2302 = vand.u32 %v1761, 4294901760
    %v2303 = vsub.f32 %v1761, %v2302
    %v2304 = vand.u32 %v2303, 4294901760
    %v2305 = vsub.f32 %v2303, %v2304
    %v2306 = vand.u32 %v2305, 4294901760
    %2307 = vmatpush1.msra.mxu0 %v2306
    %2308 = vmatprep.subr.mxu0 0.0
    %v2309 = vand.u32 %v1762, 4294901760
    %v2310 = vsub.f32 %v1762, %v2309
    %v2311 = vand.u32 %v2310, 4294901760
    %v2312 = vsub.f32 %v2310, %v2311
    %v2313 = vand.u32 %v2312, 4294901760
    %2314 = vmatpush1.msra.mxu0 %v2313
    %2315 = vmatprep.subr.mxu0 0.0
    %v2316 = vand.u32 %v1763, 4294901760
    %v2317 = vsub.f32 %v1763, %v2316
    %v2318 = vand.u32 %v2317, 4294901760
    %v2319 = vsub.f32 %v2317, %v2318
    %v2320 = vand.u32 %v2319, 4294901760
    %2321 = vmatpush1.msra.mxu0 %v2320
    %2322 = vmatprep.subr.mxu0 0.0
    %v2323 = vand.u32 %v1764, 4294901760
    %v2324 = vsub.f32 %v1764, %v2323
    %v2325 = vand.u32 %v2324, 4294901760
    %v2326 = vsub.f32 %v2324, %v2325
    %v2327 = vand.u32 %v2326, 4294901760
    %2328 = vmatpush1.msra.mxu0 %v2327
    %v2329 = vand.u32 %v1717, 4294901760
    %2330 = vmatprep.mubr.f32.mxu0 %v2329
    %v2331 = vand.u32 %v1716, 4294901760
    %2332 = vmatmul.mubr.f32.gmra.mrb[0].mxu0 %v2331
    %v2333 = vpop.f32.mrb[0].mxu0
    %v2334 = vadd.f32 %v2102, %v2333
    %v2335 = vpop.f32.mrb[0].mxu0
    %2336 = vdwg.mxu0
    %2337 = vmatprep.subr.mxu0 0.0
    %v2338 = vand.u32 %v1733, 4294901760
    %v2339 = vsub.f32 %v1733, %v2338
    %2340 = vmatpush1.msra.mxu0 %v2339
    %2341 = vmatprep.subr.mxu0 0.0
    %v2342 = vand.u32 %v1734, 4294901760
    %v2343 = vsub.f32 %v1734, %v2342
    %2344 = vmatpush1.msra.mxu0 %v2343
    %2345 = vmatprep.subr.mxu0 0.0
    %v2346 = vand.u32 %v1735, 4294901760
    %v2347 = vsub.f32 %v1735, %v2346
    %2348 = vmatpush1.msra.mxu0 %v2347
    %2349 = vmatprep.subr.mxu0 0.0
    %v2350 = vand.u32 %v1736, 4294901760
    %v2351 = vsub.f32 %v1736, %v2350
    %2352 = vmatpush1.msra.mxu0 %v2351
    %2353 = vmatprep.subr.mxu0 0.0
    %v2354 = vand.u32 %v1737, 4294901760
    %v2355 = vsub.f32 %v1737, %v2354
    %2356 = vmatpush1.msra.mxu0 %v2355
    %2357 = vmatprep.subr.mxu0 0.0
    %v2358 = vand.u32 %v1738, 4294901760
    %v2359 = vsub.f32 %v1738, %v2358
    %2360 = vmatpush1.msra.mxu0 %v2359
    %2361 = vmatprep.subr.mxu0 0.0
    %v2362 = vand.u32 %v1739, 4294901760
    %v2363 = vsub.f32 %v1739, %v2362
    %2364 = vmatpush1.msra.mxu0 %v2363
    %2365 = vmatprep.subr.mxu0 0.0
    %v2366 = vand.u32 %v1740, 4294901760
    %v2367 = vsub.f32 %v1740, %v2366
    %2368 = vmatpush1.msra.mxu0 %v2367
    %2369 = vmatprep.subr.mxu0 0.0
    %v2370 = vand.u32 %v1741, 4294901760
    %v2371 = vsub.f32 %v1741, %v2370
    %2372 = vmatpush1.msra.mxu0 %v2371
    %2373 = vmatprep.subr.mxu0 0.0
    %v2374 = vand.u32 %v1742, 4294901760
    %v2375 = vsub.f32 %v1742, %v2374
    %2376 = vmatpush1.msra.mxu0 %v2375
    %2377 = vmatprep.subr.mxu0 0.0
    %v2378 = vand.u32 %v1743, 4294901760
    %v2379 = vsub.f32 %v1743, %v2378
    %2380 = vmatpush1.msra.mxu0 %v2379
    %2381 = vmatprep.subr.mxu0 0.0
    %v2382 = vand.u32 %v1744, 4294901760
    %v2383 = vsub.f32 %v1744, %v2382
    %2384 = vmatpush1.msra.mxu0 %v2383
    %2385 = vmatprep.subr.mxu0 0.0
    %v2386 = vand.u32 %v1745, 4294901760
    %v2387 = vsub.f32 %v1745, %v2386
    %2388 = vmatpush1.msra.mxu0 %v2387
    %2389 = vmatprep.subr.mxu0 0.0
    %v2390 = vand.u32 %v1746, 4294901760
    %v2391 = vsub.f32 %v1746, %v2390
    %2392 = vmatpush1.msra.mxu0 %v2391
    %2393 = vmatprep.subr.mxu0 0.0
    %v2394 = vand.u32 %v1747, 4294901760
    %v2395 = vsub.f32 %v1747, %v2394
    %2396 = vmatpush1.msra.mxu0 %v2395
    %2397 = vmatprep.subr.mxu0 0.0
    %v2398 = vand.u32 %v1748, 4294901760
    %v2399 = vsub.f32 %v1748, %v2398
    %2400 = vmatpush1.msra.mxu0 %v2399
    %2401 = vmatprep.subr.mxu0 0.0
    %v2402 = vand.u32 %v1749, 4294901760
    %v2403 = vsub.f32 %v1749, %v2402
    %2404 = vmatpush1.msra.mxu0 %v2403
    %2405 = vmatprep.subr.mxu0 0.0
    %v2406 = vand.u32 %v1750, 4294901760
    %v2407 = vsub.f32 %v1750, %v2406
    %2408 = vmatpush1.msra.mxu0 %v2407
    %2409 = vmatprep.subr.mxu0 0.0
    %v2410 = vand.u32 %v1751, 4294901760
    %v2411 = vsub.f32 %v1751, %v2410
    %2412 = vmatpush1.msra.mxu0 %v2411
    %2413 = vmatprep.subr.mxu0 0.0
    %v2414 = vand.u32 %v1752, 4294901760
    %v2415 = vsub.f32 %v1752, %v2414
    %2416 = vmatpush1.msra.mxu0 %v2415
    %2417 = vmatprep.subr.mxu0 0.0
    %v2418 = vand.u32 %v1753, 4294901760
    %v2419 = vsub.f32 %v1753, %v2418
    %2420 = vmatpush1.msra.mxu0 %v2419
    %2421 = vmatprep.subr.mxu0 0.0
    %v2422 = vand.u32 %v1754, 4294901760
    %v2423 = vsub.f32 %v1754, %v2422
    %2424 = vmatpush1.msra.mxu0 %v2423
    %2425 = vmatprep.subr.mxu0 0.0
    %v2426 = vand.u32 %v1755, 4294901760
    %v2427 = vsub.f32 %v1755, %v2426
    %2428 = vmatpush1.msra.mxu0 %v2427
    %2429 = vmatprep.subr.mxu0 0.0
    %v2430 = vand.u32 %v1756, 4294901760
    %v2431 = vsub.f32 %v1756, %v2430
    %2432 = vmatpush1.msra.mxu0 %v2431
    %2433 = vmatprep.subr.mxu0 0.0
    %v2434 = vand.u32 %v1757, 4294901760
    %v2435 = vsub.f32 %v1757, %v2434
    %2436 = vmatpush1.msra.mxu0 %v2435
    %2437 = vmatprep.subr.mxu0 0.0
    %v2438 = vand.u32 %v1758, 4294901760
    %v2439 = vsub.f32 %v1758, %v2438
    %2440 = vmatpush1.msra.mxu0 %v2439
    %2441 = vmatprep.subr.mxu0 0.0
    %v2442 = vand.u32 %v1759, 4294901760
    %v2443 = vsub.f32 %v1759, %v2442
    %2444 = vmatpush1.msra.mxu0 %v2443
    %2445 = vmatprep.subr.mxu0 0.0
    %v2446 = vand.u32 %v1760, 4294901760
    %v2447 = vsub.f32 %v1760, %v2446
    %2448 = vmatpush1.msra.mxu0 %v2447
    %2449 = vmatprep.subr.mxu0 0.0
    %v2450 = vand.u32 %v1761, 4294901760
    %v2451 = vsub.f32 %v1761, %v2450
    %2452 = vmatpush1.msra.mxu0 %v2451
    %2453 = vmatprep.subr.mxu0 0.0
    %v2454 = vand.u32 %v1762, 4294901760
    %v2455 = vsub.f32 %v1762, %v2454
    %2456 = vmatpush1.msra.mxu0 %v2455
    %2457 = vmatprep.subr.mxu0 0.0
    %v2458 = vand.u32 %v1763, 4294901760
    %v2459 = vsub.f32 %v1763, %v2458
    %2460 = vmatpush1.msra.mxu0 %v2459
    %2461 = vmatprep.subr.mxu0 0.0
    %v2462 = vand.u32 %v1764, 4294901760
    %v2463 = vsub.f32 %v1764, %v2462
    %2464 = vmatpush1.msra.mxu0 %v2463
    %v2465 = vand.u32 %v1717, 4294901760
    %v2466 = vsub.f32 %v1717, %v2465
    %2467 = vmatprep.mubr.f32.mxu0 %v2466
    %v2468 = vand.u32 %v1716, 4294901760
    %v2469 = vsub.f32 %v1716, %v2468
    %2470 = vmatmul.mubr.f32.gmra.mrb[0].mxu0 %v2469
    %v2471 = vpop.f32.mrb[0].mxu0
    %v2472 = vadd.f32 %v2334, %v2471
    %v2473 = vpop.f32.mrb[0].mxu0
    %2474 = vdwg.mxu0
    %2475 = vmatprep.subr.mxu0 0.0
    %v2476 = vand.u32 %v1733, 4294901760
    %2477 = vmatpush1.msra.mxu0 %v2476
    %2478 = vmatprep.subr.mxu0 0.0
    %v2479 = vand.u32 %v1734, 4294901760
    %2480 = vmatpush1.msra.mxu0 %v2479
    %2481 = vmatprep.subr.mxu0 0.0
    %v2482 = vand.u32 %v1735, 4294901760
    %2483 = vmatpush1.msra.mxu0 %v2482
    %2484 = vmatprep.subr.mxu0 0.0
    %v2485 = vand.u32 %v1736, 4294901760
    %2486 = vmatpush1.msra.mxu0 %v2485
    %2487 = vmatprep.subr.mxu0 0.0
    %v2488 = vand.u32 %v1737, 4294901760
    %2489 = vmatpush1.msra.mxu0 %v2488
    %2490 = vmatprep.subr.mxu0 0.0
    %v2491 = vand.u32 %v1738, 4294901760
    %2492 = vmatpush1.msra.mxu0 %v2491
    %2493 = vmatprep.subr.mxu0 0.0
    %v2494 = vand.u32 %v1739, 4294901760
    %2495 = vmatpush1.msra.mxu0 %v2494
    %2496 = vmatprep.subr.mxu0 0.0
    %v2497 = vand.u32 %v1740, 4294901760
    %2498 = vmatpush1.msra.mxu0 %v2497
    %2499 = vmatprep.subr.mxu0 0.0
    %v2500 = vand.u32 %v1741, 4294901760
    %2501 = vmatpush1.msra.mxu0 %v2500
    %2502 = vmatprep.subr.mxu0 0.0
    %v2503 = vand.u32 %v1742, 4294901760
    %2504 = vmatpush1.msra.mxu0 %v2503
    %2505 = vmatprep.subr.mxu0 0.0
    %v2506 = vand.u32 %v1743, 4294901760
    %2507 = vmatpush1.msra.mxu0 %v2506
    %2508 = vmatprep.subr.mxu0 0.0
    %v2509 = vand.u32 %v1744, 4294901760
    %2510 = vmatpush1.msra.mxu0 %v2509
    %2511 = vmatprep.subr.mxu0 0.0
    %v2512 = vand.u32 %v1745, 4294901760
    %2513 = vmatpush1.msra.mxu0 %v2512
    %2514 = vmatprep.subr.mxu0 0.0
    %v2515 = vand.u32 %v1746, 4294901760
    %2516 = vmatpush1.msra.mxu0 %v2515
    %2517 = vmatprep.subr.mxu0 0.0
    %v2518 = vand.u32 %v1747, 4294901760
    %2519 = vmatpush1.msra.mxu0 %v2518
    %2520 = vmatprep.subr.mxu0 0.0
    %v2521 = vand.u32 %v1748, 4294901760
    %2522 = vmatpush1.msra.mxu0 %v2521
    %2523 = vmatprep.subr.mxu0 0.0
    %v2524 = vand.u32 %v1749, 4294901760
    %2525 = vmatpush1.msra.mxu0 %v2524
    %2526 = vmatprep.subr.mxu0 0.0
    %v2527 = vand.u32 %v1750, 4294901760
    %2528 = vmatpush1.msra.mxu0 %v2527
    %2529 = vmatprep.subr.mxu0 0.0
    %v2530 = vand.u32 %v1751, 4294901760
    %2531 = vmatpush1.msra.mxu0 %v2530
    %2532 = vmatprep.subr.mxu0 0.0
    %v2533 = vand.u32 %v1752, 4294901760
    %2534 = vmatpush1.msra.mxu0 %v2533
    %2535 = vmatprep.subr.mxu0 0.0
    %v2536 = vand.u32 %v1753, 4294901760
    %2537 = vmatpush1.msra.mxu0 %v2536
    %2538 = vmatprep.subr.mxu0 0.0
    %v2539 = vand.u32 %v1754, 4294901760
    %2540 = vmatpush1.msra.mxu0 %v2539
    %2541 = vmatprep.subr.mxu0 0.0
    %v2542 = vand.u32 %v1755, 4294901760
    %2543 = vmatpush1.msra.mxu0 %v2542
    %2544 = vmatprep.subr.mxu0 0.0
    %v2545 = vand.u32 %v1756, 4294901760
    %2546 = vmatpush1.msra.mxu0 %v2545
    %2547 = vmatprep.subr.mxu0 0.0
    %v2548 = vand.u32 %v1757, 4294901760
    %2549 = vmatpush1.msra.mxu0 %v2548
    %2550 = vmatprep.subr.mxu0 0.0
    %v2551 = vand.u32 %v1758, 4294901760
    %2552 = vmatpush1.msra.mxu0 %v2551
    %2553 = vmatprep.subr.mxu0 0.0
    %v2554 = vand.u32 %v1759, 4294901760
    %2555 = vmatpush1.msra.mxu0 %v2554
    %2556 = vmatprep.subr.mxu0 0.0
    %v2557 = vand.u32 %v1760, 4294901760
    %2558 = vmatpush1.msra.mxu0 %v2557
    %2559 = vmatprep.subr.mxu0 0.0
    %v2560 = vand.u32 %v1761, 4294901760
    %2561 = vmatpush1.msra.mxu0 %v2560
    %2562 = vmatprep.subr.mxu0 0.0
    %v2563 = vand.u32 %v1762, 4294901760
    %2564 = vmatpush1.msra.mxu0 %v2563
    %2565 = vmatprep.subr.mxu0 0.0
    %v2566 = vand.u32 %v1763, 4294901760
    %2567 = vmatpush1.msra.mxu0 %v2566
    %2568 = vmatprep.subr.mxu0 0.0
    %v2569 = vand.u32 %v1764, 4294901760
    %2570 = vmatpush1.msra.mxu0 %v2569
    %v2571 = vand.u32 %v1717, 4294901760
    %v2572 = vsub.f32 %v1717, %v2571
    %v2573 = vand.u32 %v2572, 4294901760
    %2574 = vmatprep.mubr.f32.mxu0 %v2573
    %v2575 = vand.u32 %v1716, 4294901760
    %v2576 = vsub.f32 %v1716, %v2575
    %v2577 = vand.u32 %v2576, 4294901760
    %2578 = vmatmul.mubr.f32.gmra.mrb[0].mxu0 %v2577
    %v2579 = vpop.f32.mrb[0].mxu0
    %v2580 = vadd.f32 %v2472, %v2579
    %v2581 = vpop.f32.mrb[0].mxu0
    %2582 = vdwg.mxu0
    %2583 = vmatprep.subr.mxu0 0.0
    %v2584 = vand.u32 %v1733, 4294901760
    %v2585 = vsub.f32 %v1733, %v2584
    %v2586 = vand.u32 %v2585, 4294901760
    %2587 = vmatpush1.msra.mxu0 %v2586
    %2588 = vmatprep.subr.mxu0 0.0
    %v2589 = vand.u32 %v1734, 4294901760
    %v2590 = vsub.f32 %v1734, %v2589
    %v2591 = vand.u32 %v2590, 4294901760
    %2592 = vmatpush1.msra.mxu0 %v2591
    %2593 = vmatprep.subr.mxu0 0.0
    %v2594 = vand.u32 %v1735, 4294901760
    %v2595 = vsub.f32 %v1735, %v2594
    %v2596 = vand.u32 %v2595, 4294901760
    %2597 = vmatpush1.msra.mxu0 %v2596
    %2598 = vmatprep.subr.mxu0 0.0
    %v2599 = vand.u32 %v1736, 4294901760
    %v2600 = vsub.f32 %v1736, %v2599
    %v2601 = vand.u32 %v2600, 4294901760
    %2602 = vmatpush1.msra.mxu0 %v2601
    %2603 = vmatprep.subr.mxu0 0.0
    %v2604 = vand.u32 %v1737, 4294901760
    %v2605 = vsub.f32 %v1737, %v2604
    %v2606 = vand.u32 %v2605, 4294901760
    %2607 = vmatpush1.msra.mxu0 %v2606
    %2608 = vmatprep.subr.mxu0 0.0
    %v2609 = vand.u32 %v1738, 4294901760
    %v2610 = vsub.f32 %v1738, %v2609
    %v2611 = vand.u32 %v2610, 4294901760
    %2612 = vmatpush1.msra.mxu0 %v2611
    %2613 = vmatprep.subr.mxu0 0.0
    %v2614 = vand.u32 %v1739, 4294901760
    %v2615 = vsub.f32 %v1739, %v2614
    %v2616 = vand.u32 %v2615, 4294901760
    %2617 = vmatpush1.msra.mxu0 %v2616
    %2618 = vmatprep.subr.mxu0 0.0
    %v2619 = vand.u32 %v1740, 4294901760
    %v2620 = vsub.f32 %v1740, %v2619
    %v2621 = vand.u32 %v2620, 4294901760
    %2622 = vmatpush1.msra.mxu0 %v2621
    %2623 = vmatprep.subr.mxu0 0.0
    %v2624 = vand.u32 %v1741, 4294901760
    %v2625 = vsub.f32 %v1741, %v2624
    %v2626 = vand.u32 %v2625, 4294901760
    %2627 = vmatpush1.msra.mxu0 %v2626
    %2628 = vmatprep.subr.mxu0 0.0
    %v2629 = vand.u32 %v1742, 4294901760
    %v2630 = vsub.f32 %v1742, %v2629
    %v2631 = vand.u32 %v2630, 4294901760
    %2632 = vmatpush1.msra.mxu0 %v2631
    %2633 = vmatprep.subr.mxu0 0.0
    %v2634 = vand.u32 %v1743, 4294901760
    %v2635 = vsub.f32 %v1743, %v2634
    %v2636 = vand.u32 %v2635, 4294901760
    %2637 = vmatpush1.msra.mxu0 %v2636
    %2638 = vmatprep.subr.mxu0 0.0
    %v2639 = vand.u32 %v1744, 4294901760
    %v2640 = vsub.f32 %v1744, %v2639
    %v2641 = vand.u32 %v2640, 4294901760
    %2642 = vmatpush1.msra.mxu0 %v2641
    %2643 = vmatprep.subr.mxu0 0.0
    %v2644 = vand.u32 %v1745, 4294901760
    %v2645 = vsub.f32 %v1745, %v2644
    %v2646 = vand.u32 %v2645, 4294901760
    %2647 = vmatpush1.msra.mxu0 %v2646
    %2648 = vmatprep.subr.mxu0 0.0
    %v2649 = vand.u32 %v1746, 4294901760
    %v2650 = vsub.f32 %v1746, %v2649
    %v2651 = vand.u32 %v2650, 4294901760
    %2652 = vmatpush1.msra.mxu0 %v2651
    %2653 = vmatprep.subr.mxu0 0.0
    %v2654 = vand.u32 %v1747, 4294901760
    %v2655 = vsub.f32 %v1747, %v2654
    %v2656 = vand.u32 %v2655, 4294901760
    %2657 = vmatpush1.msra.mxu0 %v2656
    %2658 = vmatprep.subr.mxu0 0.0
    %v2659 = vand.u32 %v1748, 4294901760
    %v2660 = vsub.f32 %v1748, %v2659
    %v2661 = vand.u32 %v2660, 4294901760
    %2662 = vmatpush1.msra.mxu0 %v2661
    %2663 = vmatprep.subr.mxu0 0.0
    %v2664 = vand.u32 %v1749, 4294901760
    %v2665 = vsub.f32 %v1749, %v2664
    %v2666 = vand.u32 %v2665, 4294901760
    %2667 = vmatpush1.msra.mxu0 %v2666
    %2668 = vmatprep.subr.mxu0 0.0
    %v2669 = vand.u32 %v1750, 4294901760
    %v2670 = vsub.f32 %v1750, %v2669
    %v2671 = vand.u32 %v2670, 4294901760
    %2672 = vmatpush1.msra.mxu0 %v2671
    %2673 = vmatprep.subr.mxu0 0.0
    %v2674 = vand.u32 %v1751, 4294901760
    %v2675 = vsub.f32 %v1751, %v2674
    %v2676 = vand.u32 %v2675, 4294901760
    %2677 = vmatpush1.msra.mxu0 %v2676
    %2678 = vmatprep.subr.mxu0 0.0
    %v2679 = vand.u32 %v1752, 4294901760
    %v2680 = vsub.f32 %v1752, %v2679
    %v2681 = vand.u32 %v2680, 4294901760
    %2682 = vmatpush1.msra.mxu0 %v2681
    %2683 = vmatprep.subr.mxu0 0.0
    %v2684 = vand.u32 %v1753, 4294901760
    %v2685 = vsub.f32 %v1753, %v2684
    %v2686 = vand.u32 %v2685, 4294901760
    %2687 = vmatpush1.msra.mxu0 %v2686
    %2688 = vmatprep.subr.mxu0 0.0
    %v2689 = vand.u32 %v1754, 4294901760
    %v2690 = vsub.f32 %v1754, %v2689
    %v2691 = vand.u32 %v2690, 4294901760
    %2692 = vmatpush1.msra.mxu0 %v2691
    %2693 = vmatprep.subr.mxu0 0.0
    %v2694 = vand.u32 %v1755, 4294901760
    %v2695 = vsub.f32 %v1755, %v2694
    %v2696 = vand.u32 %v2695, 4294901760
    %2697 = vmatpush1.msra.mxu0 %v2696
    %2698 = vmatprep.subr.mxu0 0.0
    %v2699 = vand.u32 %v1756, 4294901760
    %v2700 = vsub.f32 %v1756, %v2699
    %v2701 = vand.u32 %v2700, 4294901760
    %2702 = vmatpush1.msra.mxu0 %v2701
    %2703 = vmatprep.subr.mxu0 0.0
    %v2704 = vand.u32 %v1757, 4294901760
    %v2705 = vsub.f32 %v1757, %v2704
    %v2706 = vand.u32 %v2705, 4294901760
    %2707 = vmatpush1.msra.mxu0 %v2706
    %2708 = vmatprep.subr.mxu0 0.0
    %v2709 = vand.u32 %v1758, 4294901760
    %v2710 = vsub.f32 %v1758, %v2709
    %v2711 = vand.u32 %v2710, 4294901760
    %2712 = vmatpush1.msra.mxu0 %v2711
    %2713 = vmatprep.subr.mxu0 0.0
    %v2714 = vand.u32 %v1759, 4294901760
    %v2715 = vsub.f32 %v1759, %v2714
    %v2716 = vand.u32 %v2715, 4294901760
    %2717 = vmatpush1.msra.mxu0 %v2716
    %2718 = vmatprep.subr.mxu0 0.0
    %v2719 = vand.u32 %v1760, 4294901760
    %v2720 = vsub.f32 %v1760, %v2719
    %v2721 = vand.u32 %v2720, 4294901760
    %2722 = vmatpush1.msra.mxu0 %v2721
    %2723 = vmatprep.subr.mxu0 0.0
    %v2724 = vand.u32 %v1761, 4294901760
    %v2725 = vsub.f32 %v1761, %v2724
    %v2726 = vand.u32 %v2725, 4294901760
    %2727 = vmatpush1.msra.mxu0 %v2726
    %2728 = vmatprep.subr.mxu0 0.0
    %v2729 = vand.u32 %v1762, 4294901760
    %v2730 = vsub.f32 %v1762, %v2729
    %v2731 = vand.u32 %v2730, 4294901760
    %2732 = vmatpush1.msra.mxu0 %v2731
    %2733 = vmatprep.subr.mxu0 0.0
    %v2734 = vand.u32 %v1763, 4294901760
    %v2735 = vsub.f32 %v1763, %v2734
    %v2736 = vand.u32 %v2735, 4294901760
    %2737 = vmatpush1.msra.mxu0 %v2736
    %2738 = vmatprep.subr.mxu0 0.0
    %v2739 = vand.u32 %v1764, 4294901760
    %v2740 = vsub.f32 %v1764, %v2739
    %v2741 = vand.u32 %v2740, 4294901760
    %2742 = vmatpush1.msra.mxu0 %v2741
    %v2743 = vand.u32 %v1717, 4294901760
    %2744 = vmatprep.mubr.f32.mxu0 %v2743
    %v2745 = vand.u32 %v1716, 4294901760
    %2746 = vmatmul.mubr.f32.gmra.mrb[0].mxu0 %v2745
    %v2747 = vpop.f32.mrb[0].mxu0
    %v2748 = vadd.f32 %v2580, %v2747
    %v2749 = vpop.f32.mrb[0].mxu0
    %2750 = vdwg.mxu0
    %2751 = vmatprep.subr.mxu0 0.0
    %v2752 = vand.u32 %v1733, 4294901760
    %2753 = vmatpush1.msra.mxu0 %v2752
    %2754 = vmatprep.subr.mxu0 0.0
    %v2755 = vand.u32 %v1734, 4294901760
    %2756 = vmatpush1.msra.mxu0 %v2755
    %2757 = vmatprep.subr.mxu0 0.0
    %v2758 = vand.u32 %v1735, 4294901760
    %2759 = vmatpush1.msra.mxu0 %v2758
    %2760 = vmatprep.subr.mxu0 0.0
    %v2761 = vand.u32 %v1736, 4294901760
    %2762 = vmatpush1.msra.mxu0 %v2761
    %2763 = vmatprep.subr.mxu0 0.0
    %v2764 = vand.u32 %v1737, 4294901760
    %2765 = vmatpush1.msra.mxu0 %v2764
    %2766 = vmatprep.subr.mxu0 0.0
    %v2767 = vand.u32 %v1738, 4294901760
    %2768 = vmatpush1.msra.mxu0 %v2767
    %2769 = vmatprep.subr.mxu0 0.0
    %v2770 = vand.u32 %v1739, 4294901760
    %2771 = vmatpush1.msra.mxu0 %v2770
    %2772 = vmatprep.subr.mxu0 0.0
    %v2773 = vand.u32 %v1740, 4294901760
    %2774 = vmatpush1.msra.mxu0 %v2773
    %2775 = vmatprep.subr.mxu0 0.0
    %v2776 = vand.u32 %v1741, 4294901760
    %2777 = vmatpush1.msra.mxu0 %v2776
    %2778 = vmatprep.subr.mxu0 0.0
    %v2779 = vand.u32 %v1742, 4294901760
    %2780 = vmatpush1.msra.mxu0 %v2779
    %2781 = vmatprep.subr.mxu0 0.0
    %v2782 = vand.u32 %v1743, 4294901760
    %2783 = vmatpush1.msra.mxu0 %v2782
    %2784 = vmatprep.subr.mxu0 0.0
    %v2785 = vand.u32 %v1744, 4294901760
    %2786 = vmatpush1.msra.mxu0 %v2785
    %2787 = vmatprep.subr.mxu0 0.0
    %v2788 = vand.u32 %v1745, 4294901760
    %2789 = vmatpush1.msra.mxu0 %v2788
    %2790 = vmatprep.subr.mxu0 0.0
    %v2791 = vand.u32 %v1746, 4294901760
    %2792 = vmatpush1.msra.mxu0 %v2791
    %2793 = vmatprep.subr.mxu0 0.0
    %v2794 = vand.u32 %v1747, 4294901760
    %2795 = vmatpush1.msra.mxu0 %v2794
    %2796 = vmatprep.subr.mxu0 0.0
    %v2797 = vand.u32 %v1748, 4294901760
    %2798 = vmatpush1.msra.mxu0 %v2797
    %2799 = vmatprep.subr.mxu0 0.0
    %v2800 = vand.u32 %v1749, 4294901760
    %2801 = vmatpush1.msra.mxu0 %v2800
    %2802 = vmatprep.subr.mxu0 0.0
    %v2803 = vand.u32 %v1750, 4294901760
    %2804 = vmatpush1.msra.mxu0 %v2803
    %2805 = vmatprep.subr.mxu0 0.0
    %v2806 = vand.u32 %v1751, 4294901760
    %2807 = vmatpush1.msra.mxu0 %v2806
    %2808 = vmatprep.subr.mxu0 0.0
    %v2809 = vand.u32 %v1752, 4294901760
    %2810 = vmatpush1.msra.mxu0 %v2809
    %2811 = vmatprep.subr.mxu0 0.0
    %v2812 = vand.u32 %v1753, 4294901760
    %2813 = vmatpush1.msra.mxu0 %v2812
    %2814 = vmatprep.subr.mxu0 0.0
    %v2815 = vand.u32 %v1754, 4294901760
    %2816 = vmatpush1.msra.mxu0 %v2815
    %2817 = vmatprep.subr.mxu0 0.0
    %v2818 = vand.u32 %v1755, 4294901760
    %2819 = vmatpush1.msra.mxu0 %v2818
    %2820 = vmatprep.subr.mxu0 0.0
    %v2821 = vand.u32 %v1756, 4294901760
    %2822 = vmatpush1.msra.mxu0 %v2821
    %2823 = vmatprep.subr.mxu0 0.0
    %v2824 = vand.u32 %v1757, 4294901760
    %2825 = vmatpush1.msra.mxu0 %v2824
    %2826 = vmatprep.subr.mxu0 0.0
    %v2827 = vand.u32 %v1758, 4294901760
    %2828 = vmatpush1.msra.mxu0 %v2827
    %2829 = vmatprep.subr.mxu0 0.0
    %v2830 = vand.u32 %v1759, 4294901760
    %2831 = vmatpush1.msra.mxu0 %v2830
    %2832 = vmatprep.subr.mxu0 0.0
    %v2833 = vand.u32 %v1760, 4294901760
    %2834 = vmatpush1.msra.mxu0 %v2833
    %2835 = vmatprep.subr.mxu0 0.0
    %v2836 = vand.u32 %v1761, 4294901760
    %2837 = vmatpush1.msra.mxu0 %v2836
    %2838 = vmatprep.subr.mxu0 0.0
    %v2839 = vand.u32 %v1762, 4294901760
    %2840 = vmatpush1.msra.mxu0 %v2839
    %2841 = vmatprep.subr.mxu0 0.0
    %v2842 = vand.u32 %v1763, 4294901760
    %2843 = vmatpush1.msra.mxu0 %v2842
    %2844 = vmatprep.subr.mxu0 0.0
    %v2845 = vand.u32 %v1764, 4294901760
    %2846 = vmatpush1.msra.mxu0 %v2845
    %v2847 = vand.u32 %v1717, 4294901760
    %2848 = vmatprep.mubr.f32.mxu0 %v2847
    %v2849 = vand.u32 %v1716, 4294901760
    %2850 = vmatmul.mubr.f32.gmra.mrb[0].mxu0 %v2849
    %v2851 = vpop.f32.mrb[0].mxu0
    %v2852 = vadd.f32 %v2748, %v2851
    %v2853 = vpop.f32.mrb[0].mxu0
    %2854 = vdwg.mxu0
    %2855 = vmatprep.subr.mxu0 0.0
    %v2856 = vand.u32 %v1765, 4294901760
    %2857 = vmatpush1.msra.mxu0 %v2856
    %2858 = vmatprep.subr.mxu0 0.0
    %v2859 = vand.u32 %v1766, 4294901760
    %2860 = vmatpush1.msra.mxu0 %v2859
    %2861 = vmatprep.subr.mxu0 0.0
    %v2862 = vand.u32 %v1767, 4294901760
    %2863 = vmatpush1.msra.mxu0 %v2862
    %2864 = vmatprep.subr.mxu0 0.0
    %v2865 = vand.u32 %v1768, 4294901760
    %2866 = vmatpush1.msra.mxu0 %v2865
    %2867 = vmatprep.subr.mxu0 0.0
    %v2868 = vand.u32 %v1769, 4294901760
    %2869 = vmatpush1.msra.mxu0 %v2868
    %2870 = vmatprep.subr.mxu0 0.0
    %v2871 = vand.u32 %v1770, 4294901760
    %2872 = vmatpush1.msra.mxu0 %v2871
    %2873 = vmatprep.subr.mxu0 0.0
    %v2874 = vand.u32 %v1771, 4294901760
    %2875 = vmatpush1.msra.mxu0 %v2874
    %2876 = vmatprep.subr.mxu0 0.0
    %v2877 = vand.u32 %v1772, 4294901760
    %2878 = vmatpush1.msra.mxu0 %v2877
    %2879 = vmatprep.subr.mxu0 0.0
    %v2880 = vand.u32 %v1773, 4294901760
    %2881 = vmatpush1.msra.mxu0 %v2880
    %2882 = vmatprep.subr.mxu0 0.0
    %v2883 = vand.u32 %v1774, 4294901760
    %2884 = vmatpush1.msra.mxu0 %v2883
    %2885 = vmatprep.subr.mxu0 0.0
    %v2886 = vand.u32 %v1775, 4294901760
    %2887 = vmatpush1.msra.mxu0 %v2886
    %2888 = vmatprep.subr.mxu0 0.0
    %v2889 = vand.u32 %v1776, 4294901760
    %2890 = vmatpush1.msra.mxu0 %v2889
    %2891 = vmatprep.subr.mxu0 0.0
    %v2892 = vand.u32 %v1777, 4294901760
    %2893 = vmatpush1.msra.mxu0 %v2892
    %2894 = vmatprep.subr.mxu0 0.0
    %v2895 = vand.u32 %v1778, 4294901760
    %2896 = vmatpush1.msra.mxu0 %v2895
    %2897 = vmatprep.subr.mxu0 0.0
    %v2898 = vand.u32 %v1779, 4294901760
    %2899 = vmatpush1.msra.mxu0 %v2898
    %2900 = vmatprep.subr.mxu0 0.0
    %v2901 = vand.u32 %v1780, 4294901760
    %2902 = vmatpush1.msra.mxu0 %v2901
    %2903 = vmatprep.subr.mxu0 0.0
    %v2904 = vand.u32 %v1781, 4294901760
    %2905 = vmatpush1.msra.mxu0 %v2904
    %2906 = vmatprep.subr.mxu0 0.0
    %v2907 = vand.u32 %v1782, 4294901760
    %2908 = vmatpush1.msra.mxu0 %v2907
    %2909 = vmatprep.subr.mxu0 0.0
    %v2910 = vand.u32 %v1783, 4294901760
    %2911 = vmatpush1.msra.mxu0 %v2910
    %2912 = vmatprep.subr.mxu0 0.0
    %v2913 = vand.u32 %v1784, 4294901760
    %2914 = vmatpush1.msra.mxu0 %v2913
    %2915 = vmatprep.subr.mxu0 0.0
    %v2916 = vand.u32 %v1785, 4294901760
    %2917 = vmatpush1.msra.mxu0 %v2916
    %2918 = vmatprep.subr.mxu0 0.0
    %v2919 = vand.u32 %v1786, 4294901760
    %2920 = vmatpush1.msra.mxu0 %v2919
    %2921 = vmatprep.subr.mxu0 0.0
    %v2922 = vand.u32 %v1787, 4294901760
    %2923 = vmatpush1.msra.mxu0 %v2922
    %2924 = vmatprep.subr.mxu0 0.0
    %v2925 = vand.u32 %v1788, 4294901760
    %2926 = vmatpush1.msra.mxu0 %v2925
    %2927 = vmatprep.subr.mxu0 0.0
    %v2928 = vand.u32 %v1789, 4294901760
    %2929 = vmatpush1.msra.mxu0 %v2928
    %2930 = vmatprep.subr.mxu0 0.0
    %v2931 = vand.u32 %v1790, 4294901760
    %2932 = vmatpush1.msra.mxu0 %v2931
    %2933 = vmatprep.subr.mxu0 0.0
    %v2934 = vand.u32 %v1791, 4294901760
    %2935 = vmatpush1.msra.mxu0 %v2934
    %2936 = vmatprep.subr.mxu0 0.0
    %v2937 = vand.u32 %v1792, 4294901760
    %2938 = vmatpush1.msra.mxu0 %v2937
    %2939 = vmatprep.subr.mxu0 0.0
    %v2940 = vand.u32 %v1793, 4294901760
    %2941 = vmatpush1.msra.mxu0 %v2940
    %2942 = vmatprep.subr.mxu0 0.0
    %v2943 = vand.u32 %v1794, 4294901760
    %2944 = vmatpush1.msra.mxu0 %v2943
    %2945 = vmatprep.subr.mxu0 0.0
    %v2946 = vand.u32 %v1795, 4294901760
    %2947 = vmatpush1.msra.mxu0 %v2946
    %2948 = vmatprep.subr.mxu0 0.0
    %v2949 = vand.u32 %v1796, 4294901760
    %2950 = vmatpush1.msra.mxu0 %v2949
    %v2951 = vand.u32 %v1719, 4294901760
    %v2952 = vsub.f32 %v1719, %v2951
    %v2953 = vand.u32 %v2952, 4294901760
    %v2954 = vsub.f32 %v2952, %v2953
    %v2955 = vand.u32 %v2954, 4294901760
    %2956 = vmatprep.mubr.f32.mxu0 %v2955
    %v2957 = vand.u32 %v1718, 4294901760
    %v2958 = vsub.f32 %v1718, %v2957
    %v2959 = vand.u32 %v2958, 4294901760
    %v2960 = vsub.f32 %v2958, %v2959
    %v2961 = vand.u32 %v2960, 4294901760
    %2962 = vmatmul.mubr.f32.gmra.mrb[0].mxu0 %v2961
    %v2963 = vpop.f32.mrb[0].mxu0
    %v2964 = vadd.f32 %v2852, %v2963
    %v2965 = vpop.f32.mrb[0].mxu0
    %2966 = vdwg.mxu0
    %2967 = vmatprep.subr.mxu0 0.0
    %v2968 = vand.u32 %v1765, 4294901760
    %v2969 = vsub.f32 %v1765, %v2968
    %v2970 = vand.u32 %v2969, 4294901760
    %v2971 = vsub.f32 %v2969, %v2970
    %v2972 = vand.u32 %v2971, 4294901760
    %2973 = vmatpush1.msra.mxu0 %v2972
    %2974 = vmatprep.subr.mxu0 0.0
    %v2975 = vand.u32 %v1766, 4294901760
    %v2976 = vsub.f32 %v1766, %v2975
    %v2977 = vand.u32 %v2976, 4294901760
    %v2978 = vsub.f32 %v2976, %v2977
    %v2979 = vand.u32 %v2978, 4294901760
    %2980 = vmatpush1.msra.mxu0 %v2979
    %2981 = vmatprep.subr.mxu0 0.0
    %v2982 = vand.u32 %v1767, 4294901760
    %v2983 = vsub.f32 %v1767, %v2982
    %v2984 = vand.u32 %v2983, 4294901760
    %v2985 = vsub.f32 %v2983, %v2984
    %v2986 = vand.u32 %v2985, 4294901760
    %2987 = vmatpush1.msra.mxu0 %v2986
    %2988 = vmatprep.subr.mxu0 0.0
    %v2989 = vand.u32 %v1768, 4294901760
    %v2990 = vsub.f32 %v1768, %v2989
    %v2991 = vand.u32 %v2990, 4294901760
    %v2992 = vsub.f32 %v2990, %v2991
    %v2993 = vand.u32 %v2992, 4294901760
    %2994 = vmatpush1.msra.mxu0 %v2993
    %2995 = vmatprep.subr.mxu0 0.0
    %v2996 = vand.u32 %v1769, 4294901760
    %v2997 = vsub.f32 %v1769, %v2996
    %v2998 = vand.u32 %v2997, 4294901760
    %v2999 = vsub.f32 %v2997, %v2998
    %v3000 = vand.u32 %v2999, 4294901760
    %3001 = vmatpush1.msra.mxu0 %v3000
    %3002 = vmatprep.subr.mxu0 0.0
    %v3003 = vand.u32 %v1770, 4294901760
    %v3004 = vsub.f32 %v1770, %v3003
    %v3005 = vand.u32 %v3004, 4294901760
    %v3006 = vsub.f32 %v3004, %v3005
    %v3007 = vand.u32 %v3006, 4294901760
    %3008 = vmatpush1.msra.mxu0 %v3007
    %3009 = vmatprep.subr.mxu0 0.0
    %v3010 = vand.u32 %v1771, 4294901760
    %v3011 = vsub.f32 %v1771, %v3010
    %v3012 = vand.u32 %v3011, 4294901760
    %v3013 = vsub.f32 %v3011, %v3012
    %v3014 = vand.u32 %v3013, 4294901760
    %3015 = vmatpush1.msra.mxu0 %v3014
    %3016 = vmatprep.subr.mxu0 0.0
    %v3017 = vand.u32 %v1772, 4294901760
    %v3018 = vsub.f32 %v1772, %v3017
    %v3019 = vand.u32 %v3018, 4294901760
    %v3020 = vsub.f32 %v3018, %v3019
    %v3021 = vand.u32 %v3020, 4294901760
    %3022 = vmatpush1.msra.mxu0 %v3021
    %3023 = vmatprep.subr.mxu0 0.0
    %v3024 = vand.u32 %v1773, 4294901760
    %v3025 = vsub.f32 %v1773, %v3024
    %v3026 = vand.u32 %v3025, 4294901760
    %v3027 = vsub.f32 %v3025, %v3026
    %v3028 = vand.u32 %v3027, 4294901760
    %3029 = vmatpush1.msra.mxu0 %v3028
    %3030 = vmatprep.subr.mxu0 0.0
    %v3031 = vand.u32 %v1774, 4294901760
    %v3032 = vsub.f32 %v1774, %v3031
    %v3033 = vand.u32 %v3032, 4294901760
    %v3034 = vsub.f32 %v3032, %v3033
    %v3035 = vand.u32 %v3034, 4294901760
    %3036 = vmatpush1.msra.mxu0 %v3035
    %3037 = vmatprep.subr.mxu0 0.0
    %v3038 = vand.u32 %v1775, 4294901760
    %v3039 = vsub.f32 %v1775, %v3038
    %v3040 = vand.u32 %v3039, 4294901760
    %v3041 = vsub.f32 %v3039, %v3040
    %v3042 = vand.u32 %v3041, 4294901760
    %3043 = vmatpush1.msra.mxu0 %v3042
    %3044 = vmatprep.subr.mxu0 0.0
    %v3045 = vand.u32 %v1776, 4294901760
    %v3046 = vsub.f32 %v1776, %v3045
    %v3047 = vand.u32 %v3046, 4294901760
    %v3048 = vsub.f32 %v3046, %v3047
    %v3049 = vand.u32 %v3048, 4294901760
    %3050 = vmatpush1.msra.mxu0 %v3049
    %3051 = vmatprep.subr.mxu0 0.0
    %v3052 = vand.u32 %v1777, 4294901760
    %v3053 = vsub.f32 %v1777, %v3052
    %v3054 = vand.u32 %v3053, 4294901760
    %v3055 = vsub.f32 %v3053, %v3054
    %v3056 = vand.u32 %v3055, 4294901760
    %3057 = vmatpush1.msra.mxu0 %v3056
    %3058 = vmatprep.subr.mxu0 0.0
    %v3059 = vand.u32 %v1778, 4294901760
    %v3060 = vsub.f32 %v1778, %v3059
    %v3061 = vand.u32 %v3060, 4294901760
    %v3062 = vsub.f32 %v3060, %v3061
    %v3063 = vand.u32 %v3062, 4294901760
    %3064 = vmatpush1.msra.mxu0 %v3063
    %3065 = vmatprep.subr.mxu0 0.0
    %v3066 = vand.u32 %v1779, 4294901760
    %v3067 = vsub.f32 %v1779, %v3066
    %v3068 = vand.u32 %v3067, 4294901760
    %v3069 = vsub.f32 %v3067, %v3068
    %v3070 = vand.u32 %v3069, 4294901760
    %3071 = vmatpush1.msra.mxu0 %v3070
    %3072 = vmatprep.subr.mxu0 0.0
    %v3073 = vand.u32 %v1780, 4294901760
    %v3074 = vsub.f32 %v1780, %v3073
    %v3075 = vand.u32 %v3074, 4294901760
    %v3076 = vsub.f32 %v3074, %v3075
    %v3077 = vand.u32 %v3076, 4294901760
    %3078 = vmatpush1.msra.mxu0 %v3077
    %3079 = vmatprep.subr.mxu0 0.0
    %v3080 = vand.u32 %v1781, 4294901760
    %v3081 = vsub.f32 %v1781, %v3080
    %v3082 = vand.u32 %v3081, 4294901760
    %v3083 = vsub.f32 %v3081, %v3082
    %v3084 = vand.u32 %v3083, 4294901760
    %3085 = vmatpush1.msra.mxu0 %v3084
    %3086 = vmatprep.subr.mxu0 0.0
    %v3087 = vand.u32 %v1782, 4294901760
    %v3088 = vsub.f32 %v1782, %v3087
    %v3089 = vand.u32 %v3088, 4294901760
    %v3090 = vsub.f32 %v3088, %v3089
    %v3091 = vand.u32 %v3090, 4294901760
    %3092 = vmatpush1.msra.mxu0 %v3091
    %3093 = vmatprep.subr.mxu0 0.0
    %v3094 = vand.u32 %v1783, 4294901760
    %v3095 = vsub.f32 %v1783, %v3094
    %v3096 = vand.u32 %v3095, 4294901760
    %v3097 = vsub.f32 %v3095, %v3096
    %v3098 = vand.u32 %v3097, 4294901760
    %3099 = vmatpush1.msra.mxu0 %v3098
    %3100 = vmatprep.subr.mxu0 0.0
    %v3101 = vand.u32 %v1784, 4294901760
    %v3102 = vsub.f32 %v1784, %v3101
    %v3103 = vand.u32 %v3102, 4294901760
    %v3104 = vsub.f32 %v3102, %v3103
    %v3105 = vand.u32 %v3104, 4294901760
    %3106 = vmatpush1.msra.mxu0 %v3105
    %3107 = vmatprep.subr.mxu0 0.0
    %v3108 = vand.u32 %v1785, 4294901760
    %v3109 = vsub.f32 %v1785, %v3108
    %v3110 = vand.u32 %v3109, 4294901760
    %v3111 = vsub.f32 %v3109, %v3110
    %v3112 = vand.u32 %v3111, 4294901760
    %3113 = vmatpush1.msra.mxu0 %v3112
    %3114 = vmatprep.subr.mxu0 0.0
    %v3115 = vand.u32 %v1786, 4294901760
    %v3116 = vsub.f32 %v1786, %v3115
    %v3117 = vand.u32 %v3116, 4294901760
    %v3118 = vsub.f32 %v3116, %v3117
    %v3119 = vand.u32 %v3118, 4294901760
    %3120 = vmatpush1.msra.mxu0 %v3119
    %3121 = vmatprep.subr.mxu0 0.0
    %v3122 = vand.u32 %v1787, 4294901760
    %v3123 = vsub.f32 %v1787, %v3122
    %v3124 = vand.u32 %v3123, 4294901760
    %v3125 = vsub.f32 %v3123, %v3124
    %v3126 = vand.u32 %v3125, 4294901760
    %3127 = vmatpush1.msra.mxu0 %v3126
    %3128 = vmatprep.subr.mxu0 0.0
    %v3129 = vand.u32 %v1788, 4294901760
    %v3130 = vsub.f32 %v1788, %v3129
    %v3131 = vand.u32 %v3130, 4294901760
    %v3132 = vsub.f32 %v3130, %v3131
    %v3133 = vand.u32 %v3132, 4294901760
    %3134 = vmatpush1.msra.mxu0 %v3133
    %3135 = vmatprep.subr.mxu0 0.0
    %v3136 = vand.u32 %v1789, 4294901760
    %v3137 = vsub.f32 %v1789, %v3136
    %v3138 = vand.u32 %v3137, 4294901760
    %v3139 = vsub.f32 %v3137, %v3138
    %v3140 = vand.u32 %v3139, 4294901760
    %3141 = vmatpush1.msra.mxu0 %v3140
    %3142 = vmatprep.subr.mxu0 0.0
    %v3143 = vand.u32 %v1790, 4294901760
    %v3144 = vsub.f32 %v1790, %v3143
    %v3145 = vand.u32 %v3144, 4294901760
    %v3146 = vsub.f32 %v3144, %v3145
    %v3147 = vand.u32 %v3146, 4294901760
    %3148 = vmatpush1.msra.mxu0 %v3147
    %3149 = vmatprep.subr.mxu0 0.0
    %v3150 = vand.u32 %v1791, 4294901760
    %v3151 = vsub.f32 %v1791, %v3150
    %v3152 = vand.u32 %v3151, 4294901760
    %v3153 = vsub.f32 %v3151, %v3152
    %v3154 = vand.u32 %v3153, 4294901760
    %3155 = vmatpush1.msra.mxu0 %v3154
    %3156 = vmatprep.subr.mxu0 0.0
    %v3157 = vand.u32 %v1792, 4294901760
    %v3158 = vsub.f32 %v1792, %v3157
    %v3159 = vand.u32 %v3158, 4294901760
    %v3160 = vsub.f32 %v3158, %v3159
    %v3161 = vand.u32 %v3160, 4294901760
    %3162 = vmatpush1.msra.mxu0 %v3161
    %3163 = vmatprep.subr.mxu0 0.0
    %v3164 = vand.u32 %v1793, 4294901760
    %v3165 = vsub.f32 %v1793, %v3164
    %v3166 = vand.u32 %v3165, 4294901760
    %v3167 = vsub.f32 %v3165, %v3166
    %v3168 = vand.u32 %v3167, 4294901760
    %3169 = vmatpush1.msra.mxu0 %v3168
    %3170 = vmatprep.subr.mxu0 0.0
    %v3171 = vand.u32 %v1794, 4294901760
    %v3172 = vsub.f32 %v1794, %v3171
    %v3173 = vand.u32 %v3172, 4294901760
    %v3174 = vsub.f32 %v3172, %v3173
    %v3175 = vand.u32 %v3174, 4294901760
    %3176 = vmatpush1.msra.mxu0 %v3175
    %3177 = vmatprep.subr.mxu0 0.0
    %v3178 = vand.u32 %v1795, 4294901760
    %v3179 = vsub.f32 %v1795, %v3178
    %v3180 = vand.u32 %v3179, 4294901760
    %v3181 = vsub.f32 %v3179, %v3180
    %v3182 = vand.u32 %v3181, 4294901760
    %3183 = vmatpush1.msra.mxu0 %v3182
    %3184 = vmatprep.subr.mxu0 0.0
    %v3185 = vand.u32 %v1796, 4294901760
    %v3186 = vsub.f32 %v1796, %v3185
    %v3187 = vand.u32 %v3186, 4294901760
    %v3188 = vsub.f32 %v3186, %v3187
    %v3189 = vand.u32 %v3188, 4294901760
    %3190 = vmatpush1.msra.mxu0 %v3189
    %v3191 = vand.u32 %v1719, 4294901760
    %3192 = vmatprep.mubr.f32.mxu0 %v3191
    %v3193 = vand.u32 %v1718, 4294901760
    %3194 = vmatmul.mubr.f32.gmra.mrb[0].mxu0 %v3193
    %v3195 = vpop.f32.mrb[0].mxu0
    %v3196 = vadd.f32 %v2964, %v3195
    %v3197 = vpop.f32.mrb[0].mxu0
    %3198 = vdwg.mxu0
    %3199 = vmatprep.subr.mxu0 0.0
    %v3200 = vand.u32 %v1765, 4294901760
    %v3201 = vsub.f32 %v1765, %v3200
    %3202 = vmatpush1.msra.mxu0 %v3201
    %3203 = vmatprep.subr.mxu0 0.0
    %v3204 = vand.u32 %v1766, 4294901760
    %v3205 = vsub.f32 %v1766, %v3204
    %3206 = vmatpush1.msra.mxu0 %v3205
    %3207 = vmatprep.subr.mxu0 0.0
    %v3208 = vand.u32 %v1767, 4294901760
    %v3209 = vsub.f32 %v1767, %v3208
    %3210 = vmatpush1.msra.mxu0 %v3209
    %3211 = vmatprep.subr.mxu0 0.0
    %v3212 = vand.u32 %v1768, 4294901760
    %v3213 = vsub.f32 %v1768, %v3212
    %3214 = vmatpush1.msra.mxu0 %v3213
    %3215 = vmatprep.subr.mxu0 0.0
    %v3216 = vand.u32 %v1769, 4294901760
    %v3217 = vsub.f32 %v1769, %v3216
    %3218 = vmatpush1.msra.mxu0 %v3217
    %3219 = vmatprep.subr.mxu0 0.0
    %v3220 = vand.u32 %v1770, 4294901760
    %v3221 = vsub.f32 %v1770, %v3220
    %3222 = vmatpush1.msra.mxu0 %v3221
    %3223 = vmatprep.subr.mxu0 0.0
    %v3224 = vand.u32 %v1771, 4294901760
    %v3225 = vsub.f32 %v1771, %v3224
    %3226 = vmatpush1.msra.mxu0 %v3225
    %3227 = vmatprep.subr.mxu0 0.0
    %v3228 = vand.u32 %v1772, 4294901760
    %v3229 = vsub.f32 %v1772, %v3228
    %3230 = vmatpush1.msra.mxu0 %v3229
    %3231 = vmatprep.subr.mxu0 0.0
    %v3232 = vand.u32 %v1773, 4294901760
    %v3233 = vsub.f32 %v1773, %v3232
    %3234 = vmatpush1.msra.mxu0 %v3233
    %3235 = vmatprep.subr.mxu0 0.0
    %v3236 = vand.u32 %v1774, 4294901760
    %v3237 = vsub.f32 %v1774, %v3236
    %3238 = vmatpush1.msra.mxu0 %v3237
    %3239 = vmatprep.subr.mxu0 0.0
    %v3240 = vand.u32 %v1775, 4294901760
    %v3241 = vsub.f32 %v1775, %v3240
    %3242 = vmatpush1.msra.mxu0 %v3241
    %3243 = vmatprep.subr.mxu0 0.0
    %v3244 = vand.u32 %v1776, 4294901760
    %v3245 = vsub.f32 %v1776, %v3244
    %3246 = vmatpush1.msra.mxu0 %v3245
    %3247 = vmatprep.subr.mxu0 0.0
    %v3248 = vand.u32 %v1777, 4294901760
    %v3249 = vsub.f32 %v1777, %v3248
    %3250 = vmatpush1.msra.mxu0 %v3249
    %3251 = vmatprep.subr.mxu0 0.0
    %v3252 = vand.u32 %v1778, 4294901760
    %v3253 = vsub.f32 %v1778, %v3252
    %3254 = vmatpush1.msra.mxu0 %v3253
    %3255 = vmatprep.subr.mxu0 0.0
    %v3256 = vand.u32 %v1779, 4294901760
    %v3257 = vsub.f32 %v1779, %v3256
    %3258 = vmatpush1.msra.mxu0 %v3257
    %3259 = vmatprep.subr.mxu0 0.0
    %v3260 = vand.u32 %v1780, 4294901760
    %v3261 = vsub.f32 %v1780, %v3260
    %3262 = vmatpush1.msra.mxu0 %v3261
    %3263 = vmatprep.subr.mxu0 0.0
    %v3264 = vand.u32 %v1781, 4294901760
    %v3265 = vsub.f32 %v1781, %v3264
    %3266 = vmatpush1.msra.mxu0 %v3265
    %3267 = vmatprep.subr.mxu0 0.0
    %v3268 = vand.u32 %v1782, 4294901760
    %v3269 = vsub.f32 %v1782, %v3268
    %3270 = vmatpush1.msra.mxu0 %v3269
    %3271 = vmatprep.subr.mxu0 0.0
    %v3272 = vand.u32 %v1783, 4294901760
    %v3273 = vsub.f32 %v1783, %v3272
    %3274 = vmatpush1.msra.mxu0 %v3273
    %3275 = vmatprep.subr.mxu0 0.0
    %v3276 = vand.u32 %v1784, 4294901760
    %v3277 = vsub.f32 %v1784, %v3276
    %3278 = vmatpush1.msra.mxu0 %v3277
    %3279 = vmatprep.subr.mxu0 0.0
    %v3280 = vand.u32 %v1785, 4294901760
    %v3281 = vsub.f32 %v1785, %v3280
    %3282 = vmatpush1.msra.mxu0 %v3281
    %3283 = vmatprep.subr.mxu0 0.0
    %v3284 = vand.u32 %v1786, 4294901760
    %v3285 = vsub.f32 %v1786, %v3284
    %3286 = vmatpush1.msra.mxu0 %v3285
    %3287 = vmatprep.subr.mxu0 0.0
    %v3288 = vand.u32 %v1787, 4294901760
    %v3289 = vsub.f32 %v1787, %v3288
    %3290 = vmatpush1.msra.mxu0 %v3289
    %3291 = vmatprep.subr.mxu0 0.0
    %v3292 = vand.u32 %v1788, 4294901760
    %v3293 = vsub.f32 %v1788, %v3292
    %3294 = vmatpush1.msra.mxu0 %v3293
    %3295 = vmatprep.subr.mxu0 0.0
    %v3296 = vand.u32 %v1789, 4294901760
    %v3297 = vsub.f32 %v1789, %v3296
    %3298 = vmatpush1.msra.mxu0 %v3297
    %3299 = vmatprep.subr.mxu0 0.0
    %v3300 = vand.u32 %v1790, 4294901760
    %v3301 = vsub.f32 %v1790, %v3300
    %3302 = vmatpush1.msra.mxu0 %v3301
    %3303 = vmatprep.subr.mxu0 0.0
    %v3304 = vand.u32 %v1791, 4294901760
    %v3305 = vsub.f32 %v1791, %v3304
    %3306 = vmatpush1.msra.mxu0 %v3305
    %3307 = vmatprep.subr.mxu0 0.0
    %v3308 = vand.u32 %v1792, 4294901760
    %v3309 = vsub.f32 %v1792, %v3308
    %3310 = vmatpush1.msra.mxu0 %v3309
    %3311 = vmatprep.subr.mxu0 0.0
    %v3312 = vand.u32 %v1793, 4294901760
    %v3313 = vsub.f32 %v1793, %v3312
    %3314 = vmatpush1.msra.mxu0 %v3313
    %3315 = vmatprep.subr.mxu0 0.0
    %v3316 = vand.u32 %v1794, 4294901760
    %v3317 = vsub.f32 %v1794, %v3316
    %3318 = vmatpush1.msra.mxu0 %v3317
    %3319 = vmatprep.subr.mxu0 0.0
    %v3320 = vand.u32 %v1795, 4294901760
    %v3321 = vsub.f32 %v1795, %v3320
    %3322 = vmatpush1.msra.mxu0 %v3321
    %3323 = vmatprep.subr.mxu0 0.0
    %v3324 = vand.u32 %v1796, 4294901760
    %v3325 = vsub.f32 %v1796, %v3324
    %3326 = vmatpush1.msra.mxu0 %v3325
    %v3327 = vand.u32 %v1719, 4294901760
    %v3328 = vsub.f32 %v1719, %v3327
    %3329 = vmatprep.mubr.f32.mxu0 %v3328
    %v3330 = vand.u32 %v1718, 4294901760
    %v3331 = vsub.f32 %v1718, %v3330
    %3332 = vmatmul.mubr.f32.gmra.mrb[0].mxu0 %v3331
    %v3333 = vpop.f32.mrb[0].mxu0
    %v3334 = vadd.f32 %v3196, %v3333
    %v3335 = vpop.f32.mrb[0].mxu0
    %3336 = vdwg.mxu0
    %3337 = vmatprep.subr.mxu0 0.0
    %v3338 = vand.u32 %v1765, 4294901760
    %3339 = vmatpush1.msra.mxu0 %v3338
    %3340 = vmatprep.subr.mxu0 0.0
    %v3341 = vand.u32 %v1766, 4294901760
    %3342 = vmatpush1.msra.mxu0 %v3341
    %3343 = vmatprep.subr.mxu0 0.0
    %v3344 = vand.u32 %v1767, 4294901760
    %3345 = vmatpush1.msra.mxu0 %v3344
    %3346 = vmatprep.subr.mxu0 0.0
    %v3347 = vand.u32 %v1768, 4294901760
    %3348 = vmatpush1.msra.mxu0 %v3347
    %3349 = vmatprep.subr.mxu0 0.0
    %v3350 = vand.u32 %v1769, 4294901760
    %3351 = vmatpush1.msra.mxu0 %v3350
    %3352 = vmatprep.subr.mxu0 0.0
    %v3353 = vand.u32 %v1770, 4294901760
    %3354 = vmatpush1.msra.mxu0 %v3353
    %3355 = vmatprep.subr.mxu0 0.0
    %v3356 = vand.u32 %v1771, 4294901760
    %3357 = vmatpush1.msra.mxu0 %v3356
    %3358 = vmatprep.subr.mxu0 0.0
    %v3359 = vand.u32 %v1772, 4294901760
    %3360 = vmatpush1.msra.mxu0 %v3359
    %3361 = vmatprep.subr.mxu0 0.0
    %v3362 = vand.u32 %v1773, 4294901760
    %3363 = vmatpush1.msra.mxu0 %v3362
    %3364 = vmatprep.subr.mxu0 0.0
    %v3365 = vand.u32 %v1774, 4294901760
    %3366 = vmatpush1.msra.mxu0 %v3365
    %3367 = vmatprep.subr.mxu0 0.0
    %v3368 = vand.u32 %v1775, 4294901760
    %3369 = vmatpush1.msra.mxu0 %v3368
    %3370 = vmatprep.subr.mxu0 0.0
    %v3371 = vand.u32 %v1776, 4294901760
    %3372 = vmatpush1.msra.mxu0 %v3371
    %3373 = vmatprep.subr.mxu0 0.0
    %v3374 = vand.u32 %v1777, 4294901760
    %3375 = vmatpush1.msra.mxu0 %v3374
    %3376 = vmatprep.subr.mxu0 0.0
    %v3377 = vand.u32 %v1778, 4294901760
    %3378 = vmatpush1.msra.mxu0 %v3377
    %3379 = vmatprep.subr.mxu0 0.0
    %v3380 = vand.u32 %v1779, 4294901760
    %3381 = vmatpush1.msra.mxu0 %v3380
    %3382 = vmatprep.subr.mxu0 0.0
    %v3383 = vand.u32 %v1780, 4294901760
    %3384 = vmatpush1.msra.mxu0 %v3383
    %3385 = vmatprep.subr.mxu0 0.0
    %v3386 = vand.u32 %v1781, 4294901760
    %3387 = vmatpush1.msra.mxu0 %v3386
    %3388 = vmatprep.subr.mxu0 0.0
    %v3389 = vand.u32 %v1782, 4294901760
    %3390 = vmatpush1.msra.mxu0 %v3389
    %3391 = vmatprep.subr.mxu0 0.0
    %v3392 = vand.u32 %v1783, 4294901760
    %3393 = vmatpush1.msra.mxu0 %v3392
    %3394 = vmatprep.subr.mxu0 0.0
    %v3395 = vand.u32 %v1784, 4294901760
    %3396 = vmatpush1.msra.mxu0 %v3395
    %3397 = vmatprep.subr.mxu0 0.0
    %v3398 = vand.u32 %v1785, 4294901760
    %3399 = vmatpush1.msra.mxu0 %v3398
    %3400 = vmatprep.subr.mxu0 0.0
    %v3401 = vand.u32 %v1786, 4294901760
    %3402 = vmatpush1.msra.mxu0 %v3401
    %3403 = vmatprep.subr.mxu0 0.0
    %v3404 = vand.u32 %v1787, 4294901760
    %3405 = vmatpush1.msra.mxu0 %v3404
    %3406 = vmatprep.subr.mxu0 0.0
    %v3407 = vand.u32 %v1788, 4294901760
    %3408 = vmatpush1.msra.mxu0 %v3407
    %3409 = vmatprep.subr.mxu0 0.0
    %v3410 = vand.u32 %v1789, 4294901760
    %3411 = vmatpush1.msra.mxu0 %v3410
    %3412 = vmatprep.subr.mxu0 0.0
    %v3413 = vand.u32 %v1790, 4294901760
    %3414 = vmatpush1.msra.mxu0 %v3413
    %3415 = vmatprep.subr.mxu0 0.0
    %v3416 = vand.u32 %v1791, 4294901760
    %3417 = vmatpush1.msra.mxu0 %v3416
    %3418 = vmatprep.subr.mxu0 0.0
    %v3419 = vand.u32 %v1792, 4294901760
    %3420 = vmatpush1.msra.mxu0 %v3419
    %3421 = vmatprep.subr.mxu0 0.0
    %v3422 = vand.u32 %v1793, 4294901760
    %3423 = vmatpush1.msra.mxu0 %v3422
    %3424 = vmatprep.subr.mxu0 0.0
    %v3425 = vand.u32 %v1794, 4294901760
    %3426 = vmatpush1.msra.mxu0 %v3425
    %3427 = vmatprep.subr.mxu0 0.0
    %v3428 = vand.u32 %v1795, 4294901760
    %3429 = vmatpush1.msra.mxu0 %v3428
    %3430 = vmatprep.subr.mxu0 0.0
    %v3431 = vand.u32 %v1796, 4294901760
    %3432 = vmatpush1.msra.mxu0 %v3431
    %v3433 = vand.u32 %v1719, 4294901760
    %v3434 = vsub.f32 %v1719, %v3433
    %v3435 = vand.u32 %v3434, 4294901760
    %3436 = vmatprep.mubr.f32.mxu0 %v3435
    %v3437 = vand.u32 %v1718, 4294901760
    %v3438 = vsub.f32 %v1718, %v3437
    %v3439 = vand.u32 %v3438, 4294901760
    %3440 = vmatmul.mubr.f32.gmra.mrb[0].mxu0 %v3439
    %v3441 = vpop.f32.mrb[0].mxu0
    %v3442 = vadd.f32 %v3334, %v3441
    %v3443 = vpop.f32.mrb[0].mxu0
    %3444 = vdwg.mxu0
    %3445 = vmatprep.subr.mxu0 0.0
    %v3446 = vand.u32 %v1765, 4294901760
    %v3447 = vsub.f32 %v1765, %v3446
    %v3448 = vand.u32 %v3447, 4294901760
    %3449 = vmatpush1.msra.mxu0 %v3448
    %3450 = vmatprep.subr.mxu0 0.0
    %v3451 = vand.u32 %v1766, 4294901760
    %v3452 = vsub.f32 %v1766, %v3451
    %v3453 = vand.u32 %v3452, 4294901760
    %3454 = vmatpush1.msra.mxu0 %v3453
    %3455 = vmatprep.subr.mxu0 0.0
    %v3456 = vand.u32 %v1767, 4294901760
    %v3457 = vsub.f32 %v1767, %v3456
    %v3458 = vand.u32 %v3457, 4294901760
    %3459 = vmatpush1.msra.mxu0 %v3458
    %3460 = vmatprep.subr.mxu0 0.0
    %v3461 = vand.u32 %v1768, 4294901760
    %v3462 = vsub.f32 %v1768, %v3461
    %v3463 = vand.u32 %v3462, 4294901760
    %3464 = vmatpush1.msra.mxu0 %v3463
    %3465 = vmatprep.subr.mxu0 0.0
    %v3466 = vand.u32 %v1769, 4294901760
    %v3467 = vsub.f32 %v1769, %v3466
    %v3468 = vand.u32 %v3467, 4294901760
    %3469 = vmatpush1.msra.mxu0 %v3468
    %3470 = vmatprep.subr.mxu0 0.0
    %v3471 = vand.u32 %v1770, 4294901760
    %v3472 = vsub.f32 %v1770, %v3471
    %v3473 = vand.u32 %v3472, 4294901760
    %3474 = vmatpush1.msra.mxu0 %v3473
    %3475 = vmatprep.subr.mxu0 0.0
    %v3476 = vand.u32 %v1771, 4294901760
    %v3477 = vsub.f32 %v1771, %v3476
    %v3478 = vand.u32 %v3477, 4294901760
    %3479 = vmatpush1.msra.mxu0 %v3478
    %3480 = vmatprep.subr.mxu0 0.0
    %v3481 = vand.u32 %v1772, 4294901760
    %v3482 = vsub.f32 %v1772, %v3481
    %v3483 = vand.u32 %v3482, 4294901760
    %3484 = vmatpush1.msra.mxu0 %v3483
    %3485 = vmatprep.subr.mxu0 0.0
    %v3486 = vand.u32 %v1773, 4294901760
    %v3487 = vsub.f32 %v1773, %v3486
    %v3488 = vand.u32 %v3487, 4294901760
    %3489 = vmatpush1.msra.mxu0 %v3488
    %3490 = vmatprep.subr.mxu0 0.0
    %v3491 = vand.u32 %v1774, 4294901760
    %v3492 = vsub.f32 %v1774, %v3491
    %v3493 = vand.u32 %v3492, 4294901760
    %3494 = vmatpush1.msra.mxu0 %v3493
    %3495 = vmatprep.subr.mxu0 0.0
    %v3496 = vand.u32 %v1775, 4294901760
    %v3497 = vsub.f32 %v1775, %v3496
    %v3498 = vand.u32 %v3497, 4294901760
    %3499 = vmatpush1.msra.mxu0 %v3498
    %3500 = vmatprep.subr.mxu0 0.0
    %v3501 = vand.u32 %v1776, 4294901760
    %v3502 = vsub.f32 %v1776, %v3501
    %v3503 = vand.u32 %v3502, 4294901760
    %3504 = vmatpush1.msra.mxu0 %v3503
    %3505 = vmatprep.subr.mxu0 0.0
    %v3506 = vand.u32 %v1777, 4294901760
    %v3507 = vsub.f32 %v1777, %v3506
    %v3508 = vand.u32 %v3507, 4294901760
    %3509 = vmatpush1.msra.mxu0 %v3508
    %3510 = vmatprep.subr.mxu0 0.0
    %v3511 = vand.u32 %v1778, 4294901760
    %v3512 = vsub.f32 %v1778, %v3511
    %v3513 = vand.u32 %v3512, 4294901760
    %3514 = vmatpush1.msra.mxu0 %v3513
    %3515 = vmatprep.subr.mxu0 0.0
    %v3516 = vand.u32 %v1779, 4294901760
    %v3517 = vsub.f32 %v1779, %v3516
    %v3518 = vand.u32 %v3517, 4294901760
    %3519 = vmatpush1.msra.mxu0 %v3518
    %3520 = vmatprep.subr.mxu0 0.0
    %v3521 = vand.u32 %v1780, 4294901760
    %v3522 = vsub.f32 %v1780, %v3521
    %v3523 = vand.u32 %v3522, 4294901760
    %3524 = vmatpush1.msra.mxu0 %v3523
    %3525 = vmatprep.subr.mxu0 0.0
    %v3526 = vand.u32 %v1781, 4294901760
    %v3527 = vsub.f32 %v1781, %v3526
    %v3528 = vand.u32 %v3527, 4294901760
    %3529 = vmatpush1.msra.mxu0 %v3528
    %3530 = vmatprep.subr.mxu0 0.0
    %v3531 = vand.u32 %v1782, 4294901760
    %v3532 = vsub.f32 %v1782, %v3531
    %v3533 = vand.u32 %v3532, 4294901760
    %3534 = vmatpush1.msra.mxu0 %v3533
    %3535 = vmatprep.subr.mxu0 0.0
    %v3536 = vand.u32 %v1783, 4294901760
    %v3537 = vsub.f32 %v1783, %v3536
    %v3538 = vand.u32 %v3537, 4294901760
    %3539 = vmatpush1.msra.mxu0 %v3538
    %3540 = vmatprep.subr.mxu0 0.0
    %v3541 = vand.u32 %v1784, 4294901760
    %v3542 = vsub.f32 %v1784, %v3541
    %v3543 = vand.u32 %v3542, 4294901760
    %3544 = vmatpush1.msra.mxu0 %v3543
    %3545 = vmatprep.subr.mxu0 0.0
    %v3546 = vand.u32 %v1785, 4294901760
    %v3547 = vsub.f32 %v1785, %v3546
    %v3548 = vand.u32 %v3547, 4294901760
    %3549 = vmatpush1.msra.mxu0 %v3548
    %3550 = vmatprep.subr.mxu0 0.0
    %v3551 = vand.u32 %v1786, 4294901760
    %v3552 = vsub.f32 %v1786, %v3551
    %v3553 = vand.u32 %v3552, 4294901760
    %3554 = vmatpush1.msra.mxu0 %v3553
    %3555 = vmatprep.subr.mxu0 0.0
    %v3556 = vand.u32 %v1787, 4294901760
    %v3557 = vsub.f32 %v1787, %v3556
    %v3558 = vand.u32 %v3557, 4294901760
    %3559 = vmatpush1.msra.mxu0 %v3558
    %3560 = vmatprep.subr.mxu0 0.0
    %v3561 = vand.u32 %v1788, 4294901760
    %v3562 = vsub.f32 %v1788, %v3561
    %v3563 = vand.u32 %v3562, 4294901760
    %3564 = vmatpush1.msra.mxu0 %v3563
    %3565 = vmatprep.subr.mxu0 0.0
    %v3566 = vand.u32 %v1789, 4294901760
    %v3567 = vsub.f32 %v1789, %v3566
    %v3568 = vand.u32 %v3567, 4294901760
    %3569 = vmatpush1.msra.mxu0 %v3568
    %3570 = vmatprep.subr.mxu0 0.0
    %v3571 = vand.u32 %v1790, 4294901760
    %v3572 = vsub.f32 %v1790, %v3571
    %v3573 = vand.u32 %v3572, 4294901760
    %3574 = vmatpush1.msra.mxu0 %v3573
    %3575 = vmatprep.subr.mxu0 0.0
    %v3576 = vand.u32 %v1791, 4294901760
    %v3577 = vsub.f32 %v1791, %v3576
    %v3578 = vand.u32 %v3577, 4294901760
    %3579 = vmatpush1.msra.mxu0 %v3578
    %3580 = vmatprep.subr.mxu0 0.0
    %v3581 = vand.u32 %v1792, 4294901760
    %v3582 = vsub.f32 %v1792, %v3581
    %v3583 = vand.u32 %v3582, 4294901760
    %3584 = vmatpush1.msra.mxu0 %v3583
    %3585 = vmatprep.subr.mxu0 0.0
    %v3586 = vand.u32 %v1793, 4294901760
    %v3587 = vsub.f32 %v1793, %v3586
    %v3588 = vand.u32 %v3587, 4294901760
    %3589 = vmatpush1.msra.mxu0 %v3588
    %3590 = vmatprep.subr.mxu0 0.0
    %v3591 = vand.u32 %v1794, 4294901760
    %v3592 = vsub.f32 %v1794, %v3591
    %v3593 = vand.u32 %v3592, 4294901760
    %3594 = vmatpush1.msra.mxu0 %v3593
    %3595 = vmatprep.subr.mxu0 0.0
    %v3596 = vand.u32 %v1795, 4294901760
    %v3597 = vsub.f32 %v1795, %v3596
    %v3598 = vand.u32 %v3597, 4294901760
    %3599 = vmatpush1.msra.mxu0 %v3598
    %3600 = vmatprep.subr.mxu0 0.0
    %v3601 = vand.u32 %v1796, 4294901760
    %v3602 = vsub.f32 %v1796, %v3601
    %v3603 = vand.u32 %v3602, 4294901760
    %3604 = vmatpush1.msra.mxu0 %v3603
    %v3605 = vand.u32 %v1719, 4294901760
    %3606 = vmatprep.mubr.f32.mxu0 %v3605
    %v3607 = vand.u32 %v1718, 4294901760
    %3608 = vmatmul.mubr.f32.gmra.mrb[0].mxu0 %v3607
    %v3609 = vpop.f32.mrb[0].mxu0
    %v3610 = vadd.f32 %v3442, %v3609
    %v3611 = vpop.f32.mrb[0].mxu0
    %3612 = vdwg.mxu0
    %3613 = vmatprep.subr.mxu0 0.0
    %v3614 = vand.u32 %v1765, 4294901760
    %3615 = vmatpush1.msra.mxu0 %v3614
    %3616 = vmatprep.subr.mxu0 0.0
    %v3617 = vand.u32 %v1766, 4294901760
    %3618 = vmatpush1.msra.mxu0 %v3617
    %3619 = vmatprep.subr.mxu0 0.0
    %v3620 = vand.u32 %v1767, 4294901760
    %3621 = vmatpush1.msra.mxu0 %v3620
    %3622 = vmatprep.subr.mxu0 0.0
    %v3623 = vand.u32 %v1768, 4294901760
    %3624 = vmatpush1.msra.mxu0 %v3623
    %3625 = vmatprep.subr.mxu0 0.0
    %v3626 = vand.u32 %v1769, 4294901760
    %3627 = vmatpush1.msra.mxu0 %v3626
    %3628 = vmatprep.subr.mxu0 0.0
    %v3629 = vand.u32 %v1770, 4294901760
    %3630 = vmatpush1.msra.mxu0 %v3629
    %3631 = vmatprep.subr.mxu0 0.0
    %v3632 = vand.u32 %v1771, 4294901760
    %3633 = vmatpush1.msra.mxu0 %v3632
    %3634 = vmatprep.subr.mxu0 0.0
    %v3635 = vand.u32 %v1772, 4294901760
    %3636 = vmatpush1.msra.mxu0 %v3635
    %3637 = vmatprep.subr.mxu0 0.0
    %v3638 = vand.u32 %v1773, 4294901760
    %3639 = vmatpush1.msra.mxu0 %v3638
    %3640 = vmatprep.subr.mxu0 0.0
    %v3641 = vand.u32 %v1774, 4294901760
    %3642 = vmatpush1.msra.mxu0 %v3641
    %3643 = vmatprep.subr.mxu0 0.0
    %v3644 = vand.u32 %v1775, 4294901760
    %3645 = vmatpush1.msra.mxu0 %v3644
    %3646 = vmatprep.subr.mxu0 0.0
    %v3647 = vand.u32 %v1776, 4294901760
    %3648 = vmatpush1.msra.mxu0 %v3647
    %3649 = vmatprep.subr.mxu0 0.0
    %v3650 = vand.u32 %v1777, 4294901760
    %3651 = vmatpush1.msra.mxu0 %v3650
    %3652 = vmatprep.subr.mxu0 0.0
    %v3653 = vand.u32 %v1778, 4294901760
    %3654 = vmatpush1.msra.mxu0 %v3653
    %3655 = vmatprep.subr.mxu0 0.0
    %v3656 = vand.u32 %v1779, 4294901760
    %3657 = vmatpush1.msra.mxu0 %v3656
    %3658 = vmatprep.subr.mxu0 0.0
    %v3659 = vand.u32 %v1780, 4294901760
    %3660 = vmatpush1.msra.mxu0 %v3659
    %3661 = vmatprep.subr.mxu0 0.0
    %v3662 = vand.u32 %v1781, 4294901760
    %3663 = vmatpush1.msra.mxu0 %v3662
    %3664 = vmatprep.subr.mxu0 0.0
    %v3665 = vand.u32 %v1782, 4294901760
    %3666 = vmatpush1.msra.mxu0 %v3665
    %3667 = vmatprep.subr.mxu0 0.0
    %v3668 = vand.u32 %v1783, 4294901760
    %3669 = vmatpush1.msra.mxu0 %v3668
    %3670 = vmatprep.subr.mxu0 0.0
    %v3671 = vand.u32 %v1784, 4294901760
    %3672 = vmatpush1.msra.mxu0 %v3671
    %3673 = vmatprep.subr.mxu0 0.0
    %v3674 = vand.u32 %v1785, 4294901760
    %3675 = vmatpush1.msra.mxu0 %v3674
    %3676 = vmatprep.subr.mxu0 0.0
    %v3677 = vand.u32 %v1786, 4294901760
    %3678 = vmatpush1.msra.mxu0 %v3677
    %3679 = vmatprep.subr.mxu0 0.0
    %v3680 = vand.u32 %v1787, 4294901760
    %3681 = vmatpush1.msra.mxu0 %v3680
    %3682 = vmatprep.subr.mxu0 0.0
    %v3683 = vand.u32 %v1788, 4294901760
    %3684 = vmatpush1.msra.mxu0 %v3683
    %3685 = vmatprep.subr.mxu0 0.0
    %v3686 = vand.u32 %v1789, 4294901760
    %3687 = vmatpush1.msra.mxu0 %v3686
    %3688 = vmatprep.subr.mxu0 0.0
    %v3689 = vand.u32 %v1790, 4294901760
    %3690 = vmatpush1.msra.mxu0 %v3689
    %3691 = vmatprep.subr.mxu0 0.0
    %v3692 = vand.u32 %v1791, 4294901760
    %3693 = vmatpush1.msra.mxu0 %v3692
    %3694 = vmatprep.subr.mxu0 0.0
    %v3695 = vand.u32 %v1792, 4294901760
    %3696 = vmatpush1.msra.mxu0 %v3695
    %3697 = vmatprep.subr.mxu0 0.0
    %v3698 = vand.u32 %v1793, 4294901760
    %3699 = vmatpush1.msra.mxu0 %v3698
    %3700 = vmatprep.subr.mxu0 0.0
    %v3701 = vand.u32 %v1794, 4294901760
    %3702 = vmatpush1.msra.mxu0 %v3701
    %3703 = vmatprep.subr.mxu0 0.0
    %v3704 = vand.u32 %v1795, 4294901760
    %3705 = vmatpush1.msra.mxu0 %v3704
    %3706 = vmatprep.subr.mxu0 0.0
    %v3707 = vand.u32 %v1796, 4294901760
    %3708 = vmatpush1.msra.mxu0 %v3707
    %v3709 = vand.u32 %v1719, 4294901760
    %3710 = vmatprep.mubr.f32.mxu0 %v3709
    %v3711 = vand.u32 %v1718, 4294901760
    %3712 = vmatmul.mubr.f32.gmra.mrb[0].mxu0 %v3711
    %v3713 = vpop.f32.mrb[0].mxu0
    %v3714 = vadd.f32 %v3610, %v3713
    %v3715 = vpop.f32.mrb[0].mxu0
    %3716 = vdwg.mxu0
    %3717 = vmatprep.subr.mxu0 0.0
    %v3718 = vand.u32 %v1797, 4294901760
    %3719 = vmatpush1.msra.mxu0 %v3718
    %3720 = vmatprep.subr.mxu0 0.0
    %v3721 = vand.u32 %v1798, 4294901760
    %3722 = vmatpush1.msra.mxu0 %v3721
    %3723 = vmatprep.subr.mxu0 0.0
    %v3724 = vand.u32 %v1799, 4294901760
    %3725 = vmatpush1.msra.mxu0 %v3724
    %3726 = vmatprep.subr.mxu0 0.0
    %v3727 = vand.u32 %v1800, 4294901760
    %3728 = vmatpush1.msra.mxu0 %v3727
    %3729 = vmatprep.subr.mxu0 0.0
    %v3730 = vand.u32 %v1801, 4294901760
    %3731 = vmatpush1.msra.mxu0 %v3730
    %3732 = vmatprep.subr.mxu0 0.0
    %v3733 = vand.u32 %v1802, 4294901760
    %3734 = vmatpush1.msra.mxu0 %v3733
    %3735 = vmatprep.subr.mxu0 0.0
    %v3736 = vand.u32 %v1803, 4294901760
    %3737 = vmatpush1.msra.mxu0 %v3736
    %3738 = vmatprep.subr.mxu0 0.0
    %v3739 = vand.u32 %v1804, 4294901760
    %3740 = vmatpush1.msra.mxu0 %v3739
    %3741 = vmatprep.subr.mxu0 0.0
    %v3742 = vand.u32 %v1805, 4294901760
    %3743 = vmatpush1.msra.mxu0 %v3742
    %3744 = vmatprep.subr.mxu0 0.0
    %v3745 = vand.u32 %v1806, 4294901760
    %3746 = vmatpush1.msra.mxu0 %v3745
    %3747 = vmatprep.subr.mxu0 0.0
    %v3748 = vand.u32 %v1807, 4294901760
    %3749 = vmatpush1.msra.mxu0 %v3748
    %3750 = vmatprep.subr.mxu0 0.0
    %v3751 = vand.u32 %v1808, 4294901760
    %3752 = vmatpush1.msra.mxu0 %v3751
    %3753 = vmatprep.subr.mxu0 0.0
    %v3754 = vand.u32 %v1809, 4294901760
    %3755 = vmatpush1.msra.mxu0 %v3754
    %3756 = vmatprep.subr.mxu0 0.0
    %v3757 = vand.u32 %v1810, 4294901760
    %3758 = vmatpush1.msra.mxu0 %v3757
    %3759 = vmatprep.subr.mxu0 0.0
    %v3760 = vand.u32 %v1811, 4294901760
    %3761 = vmatpush1.msra.mxu0 %v3760
    %3762 = vmatprep.subr.mxu0 0.0
    %v3763 = vand.u32 %v1812, 4294901760
    %3764 = vmatpush1.msra.mxu0 %v3763
    %3765 = vmatprep.subr.mxu0 0.0
    %v3766 = vand.u32 %v1813, 4294901760
    %3767 = vmatpush1.msra.mxu0 %v3766
    %3768 = vmatprep.subr.mxu0 0.0
    %v3769 = vand.u32 %v1814, 4294901760
    %3770 = vmatpush1.msra.mxu0 %v3769
    %3771 = vmatprep.subr.mxu0 0.0
    %v3772 = vand.u32 %v1815, 4294901760
    %3773 = vmatpush1.msra.mxu0 %v3772
    %3774 = vmatprep.subr.mxu0 0.0
    %v3775 = vand.u32 %v1816, 4294901760
    %3776 = vmatpush1.msra.mxu0 %v3775
    %3777 = vmatprep.subr.mxu0 0.0
    %v3778 = vand.u32 %v1817, 4294901760
    %3779 = vmatpush1.msra.mxu0 %v3778
    %3780 = vmatprep.subr.mxu0 0.0
    %v3781 = vand.u32 %v1818, 4294901760
    %3782 = vmatpush1.msra.mxu0 %v3781
    %3783 = vmatprep.subr.mxu0 0.0
    %v3784 = vand.u32 %v1819, 4294901760
    %3785 = vmatpush1.msra.mxu0 %v3784
    %3786 = vmatprep.subr.mxu0 0.0
    %v3787 = vand.u32 %v1820, 4294901760
    %3788 = vmatpush1.msra.mxu0 %v3787
    %3789 = vmatprep.subr.mxu0 0.0
    %v3790 = vand.u32 %v1821, 4294901760
    %3791 = vmatpush1.msra.mxu0 %v3790
    %3792 = vmatprep.subr.mxu0 0.0
    %v3793 = vand.u32 %v1822, 4294901760
    %3794 = vmatpush1.msra.mxu0 %v3793
    %3795 = vmatprep.subr.mxu0 0.0
    %v3796 = vand.u32 %v1823, 4294901760
    %3797 = vmatpush1.msra.mxu0 %v3796
    %3798 = vmatprep.subr.mxu0 0.0
    %v3799 = vand.u32 %v1824, 4294901760
    %3800 = vmatpush1.msra.mxu0 %v3799
    %3801 = vmatprep.subr.mxu0 0.0
    %v3802 = vand.u32 %v1825, 4294901760
    %3803 = vmatpush1.msra.mxu0 %v3802
    %3804 = vmatprep.subr.mxu0 0.0
    %v3805 = vand.u32 %v1826, 4294901760
    %3806 = vmatpush1.msra.mxu0 %v3805
    %3807 = vmatprep.subr.mxu0 0.0
    %v3808 = vand.u32 %v1827, 4294901760
    %3809 = vmatpush1.msra.mxu0 %v3808
    %3810 = vmatprep.subr.mxu0 0.0
    %v3811 = vand.u32 %v1828, 4294901760
    %3812 = vmatpush1.msra.mxu0 %v3811
    %v3813 = vand.u32 %v1721, 4294901760
    %v3814 = vsub.f32 %v1721, %v3813
    %v3815 = vand.u32 %v3814, 4294901760
    %v3816 = vsub.f32 %v3814, %v3815
    %v3817 = vand.u32 %v3816, 4294901760
    %3818 = vmatprep.mubr.f32.mxu0 %v3817
    %v3819 = vand.u32 %v1720, 4294901760
    %v3820 = vsub.f32 %v1720, %v3819
    %v3821 = vand.u32 %v3820, 4294901760
    %v3822 = vsub.f32 %v3820, %v3821
    %v3823 = vand.u32 %v3822, 4294901760
    %3824 = vmatmul.mubr.f32.gmra.mrb[0].mxu0 %v3823
    %v3825 = vpop.f32.mrb[0].mxu0
    %v3826 = vadd.f32 %v3714, %v3825
    %v3827 = vpop.f32.mrb[0].mxu0
    %3828 = vdwg.mxu0
    %3829 = vmatprep.subr.mxu0 0.0
    %v3830 = vand.u32 %v1797, 4294901760
    %v3831 = vsub.f32 %v1797, %v3830
    %v3832 = vand.u32 %v3831, 4294901760
    %v3833 = vsub.f32 %v3831, %v3832
    %v3834 = vand.u32 %v3833, 4294901760
    %3835 = vmatpush1.msra.mxu0 %v3834
    %3836 = vmatprep.subr.mxu0 0.0
    %v3837 = vand.u32 %v1798, 4294901760
    %v3838 = vsub.f32 %v1798, %v3837
    %v3839 = vand.u32 %v3838, 4294901760
    %v3840 = vsub.f32 %v3838, %v3839
    %v3841 = vand.u32 %v3840, 4294901760
    %3842 = vmatpush1.msra.mxu0 %v3841
    %3843 = vmatprep.subr.mxu0 0.0
    %v3844 = vand.u32 %v1799, 4294901760
    %v3845 = vsub.f32 %v1799, %v3844
    %v3846 = vand.u32 %v3845, 4294901760
    %v3847 = vsub.f32 %v3845, %v3846
    %v3848 = vand.u32 %v3847, 4294901760
    %3849 = vmatpush1.msra.mxu0 %v3848
    %3850 = vmatprep.subr.mxu0 0.0
    %v3851 = vand.u32 %v1800, 4294901760
    %v3852 = vsub.f32 %v1800, %v3851
    %v3853 = vand.u32 %v3852, 4294901760
    %v3854 = vsub.f32 %v3852, %v3853
    %v3855 = vand.u32 %v3854, 4294901760
    %3856 = vmatpush1.msra.mxu0 %v3855
    %3857 = vmatprep.subr.mxu0 0.0
    %v3858 = vand.u32 %v1801, 4294901760
    %v3859 = vsub.f32 %v1801, %v3858
    %v3860 = vand.u32 %v3859, 4294901760
    %v3861 = vsub.f32 %v3859, %v3860
    %v3862 = vand.u32 %v3861, 4294901760
    %3863 = vmatpush1.msra.mxu0 %v3862
    %3864 = vmatprep.subr.mxu0 0.0
    %v3865 = vand.u32 %v1802, 4294901760
    %v3866 = vsub.f32 %v1802, %v3865
    %v3867 = vand.u32 %v3866, 4294901760
    %v3868 = vsub.f32 %v3866, %v3867
    %v3869 = vand.u32 %v3868, 4294901760
    %3870 = vmatpush1.msra.mxu0 %v3869
    %3871 = vmatprep.subr.mxu0 0.0
    %v3872 = vand.u32 %v1803, 4294901760
    %v3873 = vsub.f32 %v1803, %v3872
    %v3874 = vand.u32 %v3873, 4294901760
    %v3875 = vsub.f32 %v3873, %v3874
    %v3876 = vand.u32 %v3875, 4294901760
    %3877 = vmatpush1.msra.mxu0 %v3876
    %3878 = vmatprep.subr.mxu0 0.0
    %v3879 = vand.u32 %v1804, 4294901760
    %v3880 = vsub.f32 %v1804, %v3879
    %v3881 = vand.u32 %v3880, 4294901760
    %v3882 = vsub.f32 %v3880, %v3881
    %v3883 = vand.u32 %v3882, 4294901760
    %3884 = vmatpush1.msra.mxu0 %v3883
    %3885 = vmatprep.subr.mxu0 0.0
    %v3886 = vand.u32 %v1805, 4294901760
    %v3887 = vsub.f32 %v1805, %v3886
    %v3888 = vand.u32 %v3887, 4294901760
    %v3889 = vsub.f32 %v3887, %v3888
    %v3890 = vand.u32 %v3889, 4294901760
    %3891 = vmatpush1.msra.mxu0 %v3890
    %3892 = vmatprep.subr.mxu0 0.0
    %v3893 = vand.u32 %v1806, 4294901760
    %v3894 = vsub.f32 %v1806, %v3893
    %v3895 = vand.u32 %v3894, 4294901760
    %v3896 = vsub.f32 %v3894, %v3895
    %v3897 = vand.u32 %v3896, 4294901760
    %3898 = vmatpush1.msra.mxu0 %v3897
    %3899 = vmatprep.subr.mxu0 0.0
    %v3900 = vand.u32 %v1807, 4294901760
    %v3901 = vsub.f32 %v1807, %v3900
    %v3902 = vand.u32 %v3901, 4294901760
    %v3903 = vsub.f32 %v3901, %v3902
    %v3904 = vand.u32 %v3903, 4294901760
    %3905 = vmatpush1.msra.mxu0 %v3904
    %3906 = vmatprep.subr.mxu0 0.0
    %v3907 = vand.u32 %v1808, 4294901760
    %v3908 = vsub.f32 %v1808, %v3907
    %v3909 = vand.u32 %v3908, 4294901760
    %v3910 = vsub.f32 %v3908, %v3909
    %v3911 = vand.u32 %v3910, 4294901760
    %3912 = vmatpush1.msra.mxu0 %v3911
    %3913 = vmatprep.subr.mxu0 0.0
    %v3914 = vand.u32 %v1809, 4294901760
    %v3915 = vsub.f32 %v1809, %v3914
    %v3916 = vand.u32 %v3915, 4294901760
    %v3917 = vsub.f32 %v3915, %v3916
    %v3918 = vand.u32 %v3917, 4294901760
    %3919 = vmatpush1.msra.mxu0 %v3918
    %3920 = vmatprep.subr.mxu0 0.0
    %v3921 = vand.u32 %v1810, 4294901760
    %v3922 = vsub.f32 %v1810, %v3921
    %v3923 = vand.u32 %v3922, 4294901760
    %v3924 = vsub.f32 %v3922, %v3923
    %v3925 = vand.u32 %v3924, 4294901760
    %3926 = vmatpush1.msra.mxu0 %v3925
    %3927 = vmatprep.subr.mxu0 0.0
    %v3928 = vand.u32 %v1811, 4294901760
    %v3929 = vsub.f32 %v1811, %v3928
    %v3930 = vand.u32 %v3929, 4294901760
    %v3931 = vsub.f32 %v3929, %v3930
    %v3932 = vand.u32 %v3931, 4294901760
    %3933 = vmatpush1.msra.mxu0 %v3932
    %3934 = vmatprep.subr.mxu0 0.0
    %v3935 = vand.u32 %v1812, 4294901760
    %v3936 = vsub.f32 %v1812, %v3935
    %v3937 = vand.u32 %v3936, 4294901760
    %v3938 = vsub.f32 %v3936, %v3937
    %v3939 = vand.u32 %v3938, 4294901760
    %3940 = vmatpush1.msra.mxu0 %v3939
    %3941 = vmatprep.subr.mxu0 0.0
    %v3942 = vand.u32 %v1813, 4294901760
    %v3943 = vsub.f32 %v1813, %v3942
    %v3944 = vand.u32 %v3943, 4294901760
    %v3945 = vsub.f32 %v3943, %v3944
    %v3946 = vand.u32 %v3945, 4294901760
    %3947 = vmatpush1.msra.mxu0 %v3946
    %3948 = vmatprep.subr.mxu0 0.0
    %v3949 = vand.u32 %v1814, 4294901760
    %v3950 = vsub.f32 %v1814, %v3949
    %v3951 = vand.u32 %v3950, 4294901760
    %v3952 = vsub.f32 %v3950, %v3951
    %v3953 = vand.u32 %v3952, 4294901760
    %3954 = vmatpush1.msra.mxu0 %v3953
    %3955 = vmatprep.subr.mxu0 0.0
    %v3956 = vand.u32 %v1815, 4294901760
    %v3957 = vsub.f32 %v1815, %v3956
    %v3958 = vand.u32 %v3957, 4294901760
    %v3959 = vsub.f32 %v3957, %v3958
    %v3960 = vand.u32 %v3959, 4294901760
    %3961 = vmatpush1.msra.mxu0 %v3960
    %3962 = vmatprep.subr.mxu0 0.0
    %v3963 = vand.u32 %v1816, 4294901760
    %v3964 = vsub.f32 %v1816, %v3963
    %v3965 = vand.u32 %v3964, 4294901760
    %v3966 = vsub.f32 %v3964, %v3965
    %v3967 = vand.u32 %v3966, 4294901760
    %3968 = vmatpush1.msra.mxu0 %v3967
    %3969 = vmatprep.subr.mxu0 0.0
    %v3970 = vand.u32 %v1817, 4294901760
    %v3971 = vsub.f32 %v1817, %v3970
    %v3972 = vand.u32 %v3971, 4294901760
    %v3973 = vsub.f32 %v3971, %v3972
    %v3974 = vand.u32 %v3973, 4294901760
    %3975 = vmatpush1.msra.mxu0 %v3974
    %3976 = vmatprep.subr.mxu0 0.0
    %v3977 = vand.u32 %v1818, 4294901760
    %v3978 = vsub.f32 %v1818, %v3977
    %v3979 = vand.u32 %v3978, 4294901760
    %v3980 = vsub.f32 %v3978, %v3979
    %v3981 = vand.u32 %v3980, 4294901760
    %3982 = vmatpush1.msra.mxu0 %v3981
    %3983 = vmatprep.subr.mxu0 0.0
    %v3984 = vand.u32 %v1819, 4294901760
    %v3985 = vsub.f32 %v1819, %v3984
    %v3986 = vand.u32 %v3985, 4294901760
    %v3987 = vsub.f32 %v3985, %v3986
    %v3988 = vand.u32 %v3987, 4294901760
    %3989 = vmatpush1.msra.mxu0 %v3988
    %3990 = vmatprep.subr.mxu0 0.0
    %v3991 = vand.u32 %v1820, 4294901760
    %v3992 = vsub.f32 %v1820, %v3991
    %v3993 = vand.u32 %v3992, 4294901760
    %v3994 = vsub.f32 %v3992, %v3993
    %v3995 = vand.u32 %v3994, 4294901760
    %3996 = vmatpush1.msra.mxu0 %v3995
    %3997 = vmatprep.subr.mxu0 0.0
    %v3998 = vand.u32 %v1821, 4294901760
    %v3999 = vsub.f32 %v1821, %v3998
    %v4000 = vand.u32 %v3999, 4294901760
    %v4001 = vsub.f32 %v3999, %v4000
    %v4002 = vand.u32 %v4001, 4294901760
    %4003 = vmatpush1.msra.mxu0 %v4002
    %4004 = vmatprep.subr.mxu0 0.0
    %v4005 = vand.u32 %v1822, 4294901760
    %v4006 = vsub.f32 %v1822, %v4005
    %v4007 = vand.u32 %v4006, 4294901760
    %v4008 = vsub.f32 %v4006, %v4007
    %v4009 = vand.u32 %v4008, 4294901760
    %4010 = vmatpush1.msra.mxu0 %v4009
    %4011 = vmatprep.subr.mxu0 0.0
    %v4012 = vand.u32 %v1823, 4294901760
    %v4013 = vsub.f32 %v1823, %v4012
    %v4014 = vand.u32 %v4013, 4294901760
    %v4015 = vsub.f32 %v4013, %v4014
    %v4016 = vand.u32 %v4015, 4294901760
    %4017 = vmatpush1.msra.mxu0 %v4016
    %4018 = vmatprep.subr.mxu0 0.0
    %v4019 = vand.u32 %v1824, 4294901760
    %v4020 = vsub.f32 %v1824, %v4019
    %v4021 = vand.u32 %v4020, 4294901760
    %v4022 = vsub.f32 %v4020, %v4021
    %v4023 = vand.u32 %v4022, 4294901760
    %4024 = vmatpush1.msra.mxu0 %v4023
    %4025 = vmatprep.subr.mxu0 0.0
    %v4026 = vand.u32 %v1825, 4294901760
    %v4027 = vsub.f32 %v1825, %v4026
    %v4028 = vand.u32 %v4027, 4294901760
    %v4029 = vsub.f32 %v4027, %v4028
    %v4030 = vand.u32 %v4029, 4294901760
    %4031 = vmatpush1.msra.mxu0 %v4030
    %4032 = vmatprep.subr.mxu0 0.0
    %v4033 = vand.u32 %v1826, 4294901760
    %v4034 = vsub.f32 %v1826, %v4033
    %v4035 = vand.u32 %v4034, 4294901760
    %v4036 = vsub.f32 %v4034, %v4035
    %v4037 = vand.u32 %v4036, 4294901760
    %4038 = vmatpush1.msra.mxu0 %v4037
    %4039 = vmatprep.subr.mxu0 0.0
    %v4040 = vand.u32 %v1827, 4294901760
    %v4041 = vsub.f32 %v1827, %v4040
    %v4042 = vand.u32 %v4041, 4294901760
    %v4043 = vsub.f32 %v4041, %v4042
    %v4044 = vand.u32 %v4043, 4294901760
    %4045 = vmatpush1.msra.mxu0 %v4044
    %4046 = vmatprep.subr.mxu0 0.0
    %v4047 = vand.u32 %v1828, 4294901760
    %v4048 = vsub.f32 %v1828, %v4047
    %v4049 = vand.u32 %v4048, 4294901760
    %v4050 = vsub.f32 %v4048, %v4049
    %v4051 = vand.u32 %v4050, 4294901760
    %4052 = vmatpush1.msra.mxu0 %v4051
    %v4053 = vand.u32 %v1721, 4294901760
    %4054 = vmatprep.mubr.f32.mxu0 %v4053
    %v4055 = vand.u32 %v1720, 4294901760
    %4056 = vmatmul.mubr.f32.gmra.mrb[0].mxu0 %v4055
    %v4057 = vpop.f32.mrb[0].mxu0
    %v4058 = vadd.f32 %v3826, %v4057
    %v4059 = vpop.f32.mrb[0].mxu0
    %4060 = vdwg.mxu0
    %4061 = vmatprep.subr.mxu0 0.0
    %v4062 = vand.u32 %v1797, 4294901760
    %v4063 = vsub.f32 %v1797, %v4062
    %4064 = vmatpush1.msra.mxu0 %v4063
    %4065 = vmatprep.subr.mxu0 0.0
    %v4066 = vand.u32 %v1798, 4294901760
    %v4067 = vsub.f32 %v1798, %v4066
    %4068 = vmatpush1.msra.mxu0 %v4067
    %4069 = vmatprep.subr.mxu0 0.0
    %v4070 = vand.u32 %v1799, 4294901760
    %v4071 = vsub.f32 %v1799, %v4070
    %4072 = vmatpush1.msra.mxu0 %v4071
    %4073 = vmatprep.subr.mxu0 0.0
    %v4074 = vand.u32 %v1800, 4294901760
    %v4075 = vsub.f32 %v1800, %v4074
    %4076 = vmatpush1.msra.mxu0 %v4075
    %4077 = vmatprep.subr.mxu0 0.0
    %v4078 = vand.u32 %v1801, 4294901760
    %v4079 = vsub.f32 %v1801, %v4078
    %4080 = vmatpush1.msra.mxu0 %v4079
    %4081 = vmatprep.subr.mxu0 0.0
    %v4082 = vand.u32 %v1802, 4294901760
    %v4083 = vsub.f32 %v1802, %v4082
    %4084 = vmatpush1.msra.mxu0 %v4083
    %4085 = vmatprep.subr.mxu0 0.0
    %v4086 = vand.u32 %v1803, 4294901760
    %v4087 = vsub.f32 %v1803, %v4086
    %4088 = vmatpush1.msra.mxu0 %v4087
    %4089 = vmatprep.subr.mxu0 0.0
    %v4090 = vand.u32 %v1804, 4294901760
    %v4091 = vsub.f32 %v1804, %v4090
    %4092 = vmatpush1.msra.mxu0 %v4091
    %4093 = vmatprep.subr.mxu0 0.0
    %v4094 = vand.u32 %v1805, 4294901760
    %v4095 = vsub.f32 %v1805, %v4094
    %4096 = vmatpush1.msra.mxu0 %v4095
    %4097 = vmatprep.subr.mxu0 0.0
    %v4098 = vand.u32 %v1806, 4294901760
    %v4099 = vsub.f32 %v1806, %v4098
    %4100 = vmatpush1.msra.mxu0 %v4099
    %4101 = vmatprep.subr.mxu0 0.0
    %v4102 = vand.u32 %v1807, 4294901760
    %v4103 = vsub.f32 %v1807, %v4102
    %4104 = vmatpush1.msra.mxu0 %v4103
    %4105 = vmatprep.subr.mxu0 0.0
    %v4106 = vand.u32 %v1808, 4294901760
    %v4107 = vsub.f32 %v1808, %v4106
    %4108 = vmatpush1.msra.mxu0 %v4107
    %4109 = vmatprep.subr.mxu0 0.0
    %v4110 = vand.u32 %v1809, 4294901760
    %v4111 = vsub.f32 %v1809, %v4110
    %4112 = vmatpush1.msra.mxu0 %v4111
    %4113 = vmatprep.subr.mxu0 0.0
    %v4114 = vand.u32 %v1810, 4294901760
    %v4115 = vsub.f32 %v1810, %v4114
    %4116 = vmatpush1.msra.mxu0 %v4115
    %4117 = vmatprep.subr.mxu0 0.0
    %v4118 = vand.u32 %v1811, 4294901760
    %v4119 = vsub.f32 %v1811, %v4118
    %4120 = vmatpush1.msra.mxu0 %v4119
    %4121 = vmatprep.subr.mxu0 0.0
    %v4122 = vand.u32 %v1812, 4294901760
    %v4123 = vsub.f32 %v1812, %v4122
    %4124 = vmatpush1.msra.mxu0 %v4123
    %4125 = vmatprep.subr.mxu0 0.0
    %v4126 = vand.u32 %v1813, 4294901760
    %v4127 = vsub.f32 %v1813, %v4126
    %4128 = vmatpush1.msra.mxu0 %v4127
    %4129 = vmatprep.subr.mxu0 0.0
    %v4130 = vand.u32 %v1814, 4294901760
    %v4131 = vsub.f32 %v1814, %v4130
    %4132 = vmatpush1.msra.mxu0 %v4131
    %4133 = vmatprep.subr.mxu0 0.0
    %v4134 = vand.u32 %v1815, 4294901760
    %v4135 = vsub.f32 %v1815, %v4134
    %4136 = vmatpush1.msra.mxu0 %v4135
    %4137 = vmatprep.subr.mxu0 0.0
    %v4138 = vand.u32 %v1816, 4294901760
    %v4139 = vsub.f32 %v1816, %v4138
    %4140 = vmatpush1.msra.mxu0 %v4139
    %4141 = vmatprep.subr.mxu0 0.0
    %v4142 = vand.u32 %v1817, 4294901760
    %v4143 = vsub.f32 %v1817, %v4142
    %4144 = vmatpush1.msra.mxu0 %v4143
    %4145 = vmatprep.subr.mxu0 0.0
    %v4146 = vand.u32 %v1818, 4294901760
    %v4147 = vsub.f32 %v1818, %v4146
    %4148 = vmatpush1.msra.mxu0 %v4147
    %4149 = vmatprep.subr.mxu0 0.0
    %v4150 = vand.u32 %v1819, 4294901760
    %v4151 = vsub.f32 %v1819, %v4150
    %4152 = vmatpush1.msra.mxu0 %v4151
    %4153 = vmatprep.subr.mxu0 0.0
    %v4154 = vand.u32 %v1820, 4294901760
    %v4155 = vsub.f32 %v1820, %v4154
    %4156 = vmatpush1.msra.mxu0 %v4155
    %4157 = vmatprep.subr.mxu0 0.0
    %v4158 = vand.u32 %v1821, 4294901760
    %v4159 = vsub.f32 %v1821, %v4158
    %4160 = vmatpush1.msra.mxu0 %v4159
    %4161 = vmatprep.subr.mxu0 0.0
    %v4162 = vand.u32 %v1822, 4294901760
    %v4163 = vsub.f32 %v1822, %v4162
    %4164 = vmatpush1.msra.mxu0 %v4163
    %4165 = vmatprep.subr.mxu0 0.0
    %v4166 = vand.u32 %v1823, 4294901760
    %v4167 = vsub.f32 %v1823, %v4166
    %4168 = vmatpush1.msra.mxu0 %v4167
    %4169 = vmatprep.subr.mxu0 0.0
    %v4170 = vand.u32 %v1824, 4294901760
    %v4171 = vsub.f32 %v1824, %v4170
    %4172 = vmatpush1.msra.mxu0 %v4171
    %4173 = vmatprep.subr.mxu0 0.0
    %v4174 = vand.u32 %v1825, 4294901760
    %v4175 = vsub.f32 %v1825, %v4174
    %4176 = vmatpush1.msra.mxu0 %v4175
    %4177 = vmatprep.subr.mxu0 0.0
    %v4178 = vand.u32 %v1826, 4294901760
    %v4179 = vsub.f32 %v1826, %v4178
    %4180 = vmatpush1.msra.mxu0 %v4179
    %4181 = vmatprep.subr.mxu0 0.0
    %v4182 = vand.u32 %v1827, 4294901760
    %v4183 = vsub.f32 %v1827, %v4182
    %4184 = vmatpush1.msra.mxu0 %v4183
    %4185 = vmatprep.subr.mxu0 0.0
    %v4186 = vand.u32 %v1828, 4294901760
    %v4187 = vsub.f32 %v1828, %v4186
    %4188 = vmatpush1.msra.mxu0 %v4187
    %v4189 = vand.u32 %v1721, 4294901760
    %v4190 = vsub.f32 %v1721, %v4189
    %4191 = vmatprep.mubr.f32.mxu0 %v4190
    %v4192 = vand.u32 %v1720, 4294901760
    %v4193 = vsub.f32 %v1720, %v4192
    %4194 = vmatmul.mubr.f32.gmra.mrb[0].mxu0 %v4193
    %v4195 = vpop.f32.mrb[0].mxu0
    %v4196 = vadd.f32 %v4058, %v4195
    %v4197 = vpop.f32.mrb[0].mxu0
    %4198 = vdwg.mxu0
    %4199 = vmatprep.subr.mxu0 0.0
    %v4200 = vand.u32 %v1797, 4294901760
    %4201 = vmatpush1.msra.mxu0 %v4200
    %4202 = vmatprep.subr.mxu0 0.0
    %v4203 = vand.u32 %v1798, 4294901760
    %4204 = vmatpush1.msra.mxu0 %v4203
    %4205 = vmatprep.subr.mxu0 0.0
    %v4206 = vand.u32 %v1799, 4294901760
    %4207 = vmatpush1.msra.mxu0 %v4206
    %4208 = vmatprep.subr.mxu0 0.0
    %v4209 = vand.u32 %v1800, 4294901760
    %4210 = vmatpush1.msra.mxu0 %v4209
    %4211 = vmatprep.subr.mxu0 0.0
    %v4212 = vand.u32 %v1801, 4294901760
    %4213 = vmatpush1.msra.mxu0 %v4212
    %4214 = vmatprep.subr.mxu0 0.0
    %v4215 = vand.u32 %v1802, 4294901760
    %4216 = vmatpush1.msra.mxu0 %v4215
    %4217 = vmatprep.subr.mxu0 0.0
    %v4218 = vand.u32 %v1803, 4294901760
    %4219 = vmatpush1.msra.mxu0 %v4218
    %4220 = vmatprep.subr.mxu0 0.0
    %v4221 = vand.u32 %v1804, 4294901760
    %4222 = vmatpush1.msra.mxu0 %v4221
    %4223 = vmatprep.subr.mxu0 0.0
    %v4224 = vand.u32 %v1805, 4294901760
    %4225 = vmatpush1.msra.mxu0 %v4224
    %4226 = vmatprep.subr.mxu0 0.0
    %v4227 = vand.u32 %v1806, 4294901760
    %4228 = vmatpush1.msra.mxu0 %v4227
    %4229 = vmatprep.subr.mxu0 0.0
    %v4230 = vand.u32 %v1807, 4294901760
    %4231 = vmatpush1.msra.mxu0 %v4230
    %4232 = vmatprep.subr.mxu0 0.0
    %v4233 = vand.u32 %v1808, 4294901760
    %4234 = vmatpush1.msra.mxu0 %v4233
    %4235 = vmatprep.subr.mxu0 0.0
    %v4236 = vand.u32 %v1809, 4294901760
    %4237 = vmatpush1.msra.mxu0 %v4236
    %4238 = vmatprep.subr.mxu0 0.0
    %v4239 = vand.u32 %v1810, 4294901760
    %4240 = vmatpush1.msra.mxu0 %v4239
    %4241 = vmatprep.subr.mxu0 0.0
    %v4242 = vand.u32 %v1811, 4294901760
    %4243 = vmatpush1.msra.mxu0 %v4242
    %4244 = vmatprep.subr.mxu0 0.0
    %v4245 = vand.u32 %v1812, 4294901760
    %4246 = vmatpush1.msra.mxu0 %v4245
    %4247 = vmatprep.subr.mxu0 0.0
    %v4248 = vand.u32 %v1813, 4294901760
    %4249 = vmatpush1.msra.mxu0 %v4248
    %4250 = vmatprep.subr.mxu0 0.0
    %v4251 = vand.u32 %v1814, 4294901760
    %4252 = vmatpush1.msra.mxu0 %v4251
    %4253 = vmatprep.subr.mxu0 0.0
    %v4254 = vand.u32 %v1815, 4294901760
    %4255 = vmatpush1.msra.mxu0 %v4254
    %4256 = vmatprep.subr.mxu0 0.0
    %v4257 = vand.u32 %v1816, 4294901760
    %4258 = vmatpush1.msra.mxu0 %v4257
    %4259 = vmatprep.subr.mxu0 0.0
    %v4260 = vand.u32 %v1817, 4294901760
    %4261 = vmatpush1.msra.mxu0 %v4260
    %4262 = vmatprep.subr.mxu0 0.0
    %v4263 = vand.u32 %v1818, 4294901760
    %4264 = vmatpush1.msra.mxu0 %v4263
    %4265 = vmatprep.subr.mxu0 0.0
    %v4266 = vand.u32 %v1819, 4294901760
    %4267 = vmatpush1.msra.mxu0 %v4266
    %4268 = vmatprep.subr.mxu0 0.0
    %v4269 = vand.u32 %v1820, 4294901760
    %4270 = vmatpush1.msra.mxu0 %v4269
    %4271 = vmatprep.subr.mxu0 0.0
    %v4272 = vand.u32 %v1821, 4294901760
    %4273 = vmatpush1.msra.mxu0 %v4272
    %4274 = vmatprep.subr.mxu0 0.0
    %v4275 = vand.u32 %v1822, 4294901760
    %4276 = vmatpush1.msra.mxu0 %v4275
    %4277 = vmatprep.subr.mxu0 0.0
    %v4278 = vand.u32 %v1823, 4294901760
    %4279 = vmatpush1.msra.mxu0 %v4278
    %4280 = vmatprep.subr.mxu0 0.0
    %v4281 = vand.u32 %v1824, 4294901760
    %4282 = vmatpush1.msra.mxu0 %v4281
    %4283 = vmatprep.subr.mxu0 0.0
    %v4284 = vand.u32 %v1825, 4294901760
    %4285 = vmatpush1.msra.mxu0 %v4284
    %4286 = vmatprep.subr.mxu0 0.0
    %v4287 = vand.u32 %v1826, 4294901760
    %4288 = vmatpush1.msra.mxu0 %v4287
    %4289 = vmatprep.subr.mxu0 0.0
    %v4290 = vand.u32 %v1827, 4294901760
    %4291 = vmatpush1.msra.mxu0 %v4290
    %4292 = vmatprep.subr.mxu0 0.0
    %v4293 = vand.u32 %v1828, 4294901760
    %4294 = vmatpush1.msra.mxu0 %v4293
    %v4295 = vand.u32 %v1721, 4294901760
    %v4296 = vsub.f32 %v1721, %v4295
    %v4297 = vand.u32 %v4296, 4294901760
    %4298 = vmatprep.mubr.f32.mxu0 %v4297
    %v4299 = vand.u32 %v1720, 4294901760
    %v4300 = vsub.f32 %v1720, %v4299
    %v4301 = vand.u32 %v4300, 4294901760
    %4302 = vmatmul.mubr.f32.gmra.mrb[0].mxu0 %v4301
    %v4303 = vpop.f32.mrb[0].mxu0
    %v4304 = vadd.f32 %v4196, %v4303
    %v4305 = vpop.f32.mrb[0].mxu0
    %4306 = vdwg.mxu0
    %4307 = vmatprep.subr.mxu0 0.0
    %v4308 = vand.u32 %v1797, 4294901760
    %v4309 = vsub.f32 %v1797, %v4308
    %v4310 = vand.u32 %v4309, 4294901760
    %4311 = vmatpush1.msra.mxu0 %v4310
    %4312 = vmatprep.subr.mxu0 0.0
    %v4313 = vand.u32 %v1798, 4294901760
    %v4314 = vsub.f32 %v1798, %v4313
    %v4315 = vand.u32 %v4314, 4294901760
    %4316 = vmatpush1.msra.mxu0 %v4315
    %4317 = vmatprep.subr.mxu0 0.0
    %v4318 = vand.u32 %v1799, 4294901760
    %v4319 = vsub.f32 %v1799, %v4318
    %v4320 = vand.u32 %v4319, 4294901760
    %4321 = vmatpush1.msra.mxu0 %v4320
    %4322 = vmatprep.subr.mxu0 0.0
    %v4323 = vand.u32 %v1800, 4294901760
    %v4324 = vsub.f32 %v1800, %v4323
    %v4325 = vand.u32 %v4324, 4294901760
    %4326 = vmatpush1.msra.mxu0 %v4325
    %4327 = vmatprep.subr.mxu0 0.0
    %v4328 = vand.u32 %v1801, 4294901760
    %v4329 = vsub.f32 %v1801, %v4328
    %v4330 = vand.u32 %v4329, 4294901760
    %4331 = vmatpush1.msra.mxu0 %v4330
    %4332 = vmatprep.subr.mxu0 0.0
    %v4333 = vand.u32 %v1802, 4294901760
    %v4334 = vsub.f32 %v1802, %v4333
    %v4335 = vand.u32 %v4334, 4294901760
    %4336 = vmatpush1.msra.mxu0 %v4335
    %4337 = vmatprep.subr.mxu0 0.0
    %v4338 = vand.u32 %v1803, 4294901760
    %v4339 = vsub.f32 %v1803, %v4338
    %v4340 = vand.u32 %v4339, 4294901760
    %4341 = vmatpush1.msra.mxu0 %v4340
    %4342 = vmatprep.subr.mxu0 0.0
    %v4343 = vand.u32 %v1804, 4294901760
    %v4344 = vsub.f32 %v1804, %v4343
    %v4345 = vand.u32 %v4344, 4294901760
    %4346 = vmatpush1.msra.mxu0 %v4345
    %4347 = vmatprep.subr.mxu0 0.0
    %v4348 = vand.u32 %v1805, 4294901760
    %v4349 = vsub.f32 %v1805, %v4348
    %v4350 = vand.u32 %v4349, 4294901760
    %4351 = vmatpush1.msra.mxu0 %v4350
    %4352 = vmatprep.subr.mxu0 0.0
    %v4353 = vand.u32 %v1806, 4294901760
    %v4354 = vsub.f32 %v1806, %v4353
    %v4355 = vand.u32 %v4354, 4294901760
    %4356 = vmatpush1.msra.mxu0 %v4355
    %4357 = vmatprep.subr.mxu0 0.0
    %v4358 = vand.u32 %v1807, 4294901760
    %v4359 = vsub.f32 %v1807, %v4358
    %v4360 = vand.u32 %v4359, 4294901760
    %4361 = vmatpush1.msra.mxu0 %v4360
    %4362 = vmatprep.subr.mxu0 0.0
    %v4363 = vand.u32 %v1808, 4294901760
    %v4364 = vsub.f32 %v1808, %v4363
    %v4365 = vand.u32 %v4364, 4294901760
    %4366 = vmatpush1.msra.mxu0 %v4365
    %4367 = vmatprep.subr.mxu0 0.0
    %v4368 = vand.u32 %v1809, 4294901760
    %v4369 = vsub.f32 %v1809, %v4368
    %v4370 = vand.u32 %v4369, 4294901760
    %4371 = vmatpush1.msra.mxu0 %v4370
    %4372 = vmatprep.subr.mxu0 0.0
    %v4373 = vand.u32 %v1810, 4294901760
    %v4374 = vsub.f32 %v1810, %v4373
    %v4375 = vand.u32 %v4374, 4294901760
    %4376 = vmatpush1.msra.mxu0 %v4375
    %4377 = vmatprep.subr.mxu0 0.0
    %v4378 = vand.u32 %v1811, 4294901760
    %v4379 = vsub.f32 %v1811, %v4378
    %v4380 = vand.u32 %v4379, 4294901760
    %4381 = vmatpush1.msra.mxu0 %v4380
    %4382 = vmatprep.subr.mxu0 0.0
    %v4383 = vand.u32 %v1812, 4294901760
    %v4384 = vsub.f32 %v1812, %v4383
    %v4385 = vand.u32 %v4384, 4294901760
    %4386 = vmatpush1.msra.mxu0 %v4385
    %4387 = vmatprep.subr.mxu0 0.0
    %v4388 = vand.u32 %v1813, 4294901760
    %v4389 = vsub.f32 %v1813, %v4388
    %v4390 = vand.u32 %v4389, 4294901760
    %4391 = vmatpush1.msra.mxu0 %v4390
    %4392 = vmatprep.subr.mxu0 0.0
    %v4393 = vand.u32 %v1814, 4294901760
    %v4394 = vsub.f32 %v1814, %v4393
    %v4395 = vand.u32 %v4394, 4294901760
    %4396 = vmatpush1.msra.mxu0 %v4395
    %4397 = vmatprep.subr.mxu0 0.0
    %v4398 = vand.u32 %v1815, 4294901760
    %v4399 = vsub.f32 %v1815, %v4398
    %v4400 = vand.u32 %v4399, 4294901760
    %4401 = vmatpush1.msra.mxu0 %v4400
    %4402 = vmatprep.subr.mxu0 0.0
    %v4403 = vand.u32 %v1816, 4294901760
    %v4404 = vsub.f32 %v1816, %v4403
    %v4405 = vand.u32 %v4404, 4294901760
    %4406 = vmatpush1.msra.mxu0 %v4405
    %4407 = vmatprep.subr.mxu0 0.0
    %v4408 = vand.u32 %v1817, 4294901760
    %v4409 = vsub.f32 %v1817, %v4408
    %v4410 = vand.u32 %v4409, 4294901760
    %4411 = vmatpush1.msra.mxu0 %v4410
    %4412 = vmatprep.subr.mxu0 0.0
    %v4413 = vand.u32 %v1818, 4294901760
    %v4414 = vsub.f32 %v1818, %v4413
    %v4415 = vand.u32 %v4414, 4294901760
    %4416 = vmatpush1.msra.mxu0 %v4415
    %4417 = vmatprep.subr.mxu0 0.0
    %v4418 = vand.u32 %v1819, 4294901760
    %v4419 = vsub.f32 %v1819, %v4418
    %v4420 = vand.u32 %v4419, 4294901760
    %4421 = vmatpush1.msra.mxu0 %v4420
    %4422 = vmatprep.subr.mxu0 0.0
    %v4423 = vand.u32 %v1820, 4294901760
    %v4424 = vsub.f32 %v1820, %v4423
    %v4425 = vand.u32 %v4424, 4294901760
    %4426 = vmatpush1.msra.mxu0 %v4425
    %4427 = vmatprep.subr.mxu0 0.0
    %v4428 = vand.u32 %v1821, 4294901760
    %v4429 = vsub.f32 %v1821, %v4428
    %v4430 = vand.u32 %v4429, 4294901760
    %4431 = vmatpush1.msra.mxu0 %v4430
    %4432 = vmatprep.subr.mxu0 0.0
    %v4433 = vand.u32 %v1822, 4294901760
    %v4434 = vsub.f32 %v1822, %v4433
    %v4435 = vand.u32 %v4434, 4294901760
    %4436 = vmatpush1.msra.mxu0 %v4435
    %4437 = vmatprep.subr.mxu0 0.0
    %v4438 = vand.u32 %v1823, 4294901760
    %v4439 = vsub.f32 %v1823, %v4438
    %v4440 = vand.u32 %v4439, 4294901760
    %4441 = vmatpush1.msra.mxu0 %v4440
    %4442 = vmatprep.subr.mxu0 0.0
    %v4443 = vand.u32 %v1824, 4294901760
    %v4444 = vsub.f32 %v1824, %v4443
    %v4445 = vand.u32 %v4444, 4294901760
    %4446 = vmatpush1.msra.mxu0 %v4445
    %4447 = vmatprep.subr.mxu0 0.0
    %v4448 = vand.u32 %v1825, 4294901760
    %v4449 = vsub.f32 %v1825, %v4448
    %v4450 = vand.u32 %v4449, 4294901760
    %4451 = vmatpush1.msra.mxu0 %v4450
    %4452 = vmatprep.subr.mxu0 0.0
    %v4453 = vand.u32 %v1826, 4294901760
    %v4454 = vsub.f32 %v1826, %v4453
    %v4455 = vand.u32 %v4454, 4294901760
    %4456 = vmatpush1.msra.mxu0 %v4455
    %4457 = vmatprep.subr.mxu0 0.0
    %v4458 = vand.u32 %v1827, 4294901760
    %v4459 = vsub.f32 %v1827, %v4458
    %v4460 = vand.u32 %v4459, 4294901760
    %4461 = vmatpush1.msra.mxu0 %v4460
    %4462 = vmatprep.subr.mxu0 0.0
    %v4463 = vand.u32 %v1828, 4294901760
    %v4464 = vsub.f32 %v1828, %v4463
    %v4465 = vand.u32 %v4464, 4294901760
    %4466 = vmatpush1.msra.mxu0 %v4465
    %v4467 = vand.u32 %v1721, 4294901760
    %4468 = vmatprep.mubr.f32.mxu0 %v4467
    %v4469 = vand.u32 %v1720, 4294901760
    %4470 = vmatmul.mubr.f32.gmra.mrb[0].mxu0 %v4469
    %v4471 = vpop.f32.mrb[0].mxu0
    %v4472 = vadd.f32 %v4304, %v4471
    %v4473 = vpop.f32.mrb[0].mxu0
    %4474 = vdwg.mxu0
    %4475 = vmatprep.subr.mxu0 0.0
    %v4476 = vand.u32 %v1797, 4294901760
    %4477 = vmatpush1.msra.mxu0 %v4476
    %4478 = vmatprep.subr.mxu0 0.0
    %v4479 = vand.u32 %v1798, 4294901760
    %4480 = vmatpush1.msra.mxu0 %v4479
    %4481 = vmatprep.subr.mxu0 0.0
    %v4482 = vand.u32 %v1799, 4294901760
    %4483 = vmatpush1.msra.mxu0 %v4482
    %4484 = vmatprep.subr.mxu0 0.0
    %v4485 = vand.u32 %v1800, 4294901760
    %4486 = vmatpush1.msra.mxu0 %v4485
    %4487 = vmatprep.subr.mxu0 0.0
    %v4488 = vand.u32 %v1801, 4294901760
    %4489 = vmatpush1.msra.mxu0 %v4488
    %4490 = vmatprep.subr.mxu0 0.0
    %v4491 = vand.u32 %v1802, 4294901760
    %4492 = vmatpush1.msra.mxu0 %v4491
    %4493 = vmatprep.subr.mxu0 0.0
    %v4494 = vand.u32 %v1803, 4294901760
    %4495 = vmatpush1.msra.mxu0 %v4494
    %4496 = vmatprep.subr.mxu0 0.0
    %v4497 = vand.u32 %v1804, 4294901760
    %4498 = vmatpush1.msra.mxu0 %v4497
    %4499 = vmatprep.subr.mxu0 0.0
    %v4500 = vand.u32 %v1805, 4294901760
    %4501 = vmatpush1.msra.mxu0 %v4500
    %4502 = vmatprep.subr.mxu0 0.0
    %v4503 = vand.u32 %v1806, 4294901760
    %4504 = vmatpush1.msra.mxu0 %v4503
    %4505 = vmatprep.subr.mxu0 0.0
    %v4506 = vand.u32 %v1807, 4294901760
    %4507 = vmatpush1.msra.mxu0 %v4506
    %4508 = vmatprep.subr.mxu0 0.0
    %v4509 = vand.u32 %v1808, 4294901760
    %4510 = vmatpush1.msra.mxu0 %v4509
    %4511 = vmatprep.subr.mxu0 0.0
    %v4512 = vand.u32 %v1809, 4294901760
    %4513 = vmatpush1.msra.mxu0 %v4512
    %4514 = vmatprep.subr.mxu0 0.0
    %v4515 = vand.u32 %v1810, 4294901760
    %4516 = vmatpush1.msra.mxu0 %v4515
    %4517 = vmatprep.subr.mxu0 0.0
    %v4518 = vand.u32 %v1811, 4294901760
    %4519 = vmatpush1.msra.mxu0 %v4518
    %4520 = vmatprep.subr.mxu0 0.0
    %v4521 = vand.u32 %v1812, 4294901760
    %4522 = vmatpush1.msra.mxu0 %v4521
    %4523 = vmatprep.subr.mxu0 0.0
    %v4524 = vand.u32 %v1813, 4294901760
    %4525 = vmatpush1.msra.mxu0 %v4524
    %4526 = vmatprep.subr.mxu0 0.0
    %v4527 = vand.u32 %v1814, 4294901760
    %4528 = vmatpush1.msra.mxu0 %v4527
    %4529 = vmatprep.subr.mxu0 0.0
    %v4530 = vand.u32 %v1815, 4294901760
    %4531 = vmatpush1.msra.mxu0 %v4530
    %4532 = vmatprep.subr.mxu0 0.0
    %v4533 = vand.u32 %v1816, 4294901760
    %4534 = vmatpush1.msra.mxu0 %v4533
    %4535 = vmatprep.subr.mxu0 0.0
    %v4536 = vand.u32 %v1817, 4294901760
    %4537 = vmatpush1.msra.mxu0 %v4536
    %4538 = vmatprep.subr.mxu0 0.0
    %v4539 = vand.u32 %v1818, 4294901760
    %4540 = vmatpush1.msra.mxu0 %v4539
    %4541 = vmatprep.subr.mxu0 0.0
    %v4542 = vand.u32 %v1819, 4294901760
    %4543 = vmatpush1.msra.mxu0 %v4542
    %4544 = vmatprep.subr.mxu0 0.0
    %v4545 = vand.u32 %v1820, 4294901760
    %4546 = vmatpush1.msra.mxu0 %v4545
    %4547 = vmatprep.subr.mxu0 0.0
    %v4548 = vand.u32 %v1821, 4294901760
    %4549 = vmatpush1.msra.mxu0 %v4548
    %4550 = vmatprep.subr.mxu0 0.0
    %v4551 = vand.u32 %v1822, 4294901760
    %4552 = vmatpush1.msra.mxu0 %v4551
    %4553 = vmatprep.subr.mxu0 0.0
    %v4554 = vand.u32 %v1823, 4294901760
    %4555 = vmatpush1.msra.mxu0 %v4554
    %4556 = vmatprep.subr.mxu0 0.0
    %v4557 = vand.u32 %v1824, 4294901760
    %4558 = vmatpush1.msra.mxu0 %v4557
    %4559 = vmatprep.subr.mxu0 0.0
    %v4560 = vand.u32 %v1825, 4294901760
    %4561 = vmatpush1.msra.mxu0 %v4560
    %4562 = vmatprep.subr.mxu0 0.0
    %v4563 = vand.u32 %v1826, 4294901760
    %4564 = vmatpush1.msra.mxu0 %v4563
    %4565 = vmatprep.subr.mxu0 0.0
    %v4566 = vand.u32 %v1827, 4294901760
    %4567 = vmatpush1.msra.mxu0 %v4566
    %4568 = vmatprep.subr.mxu0 0.0
    %v4569 = vand.u32 %v1828, 4294901760
    %4570 = vmatpush1.msra.mxu0 %v4569
    %v4571 = vand.u32 %v1721, 4294901760
    %4572 = vmatprep.mubr.f32.mxu0 %v4571
    %v4573 = vand.u32 %v1720, 4294901760
    %4574 = vmatmul.mubr.f32.gmra.mrb[0].mxu0 %v4573
    %v4575 = vpop.f32.mrb[0].mxu0
    %v4576 = vadd.f32 %v4472, %v4575
    %v4577 = vpop.f32.mrb[0].mxu0
    %4578 = vdwg.mxu0
    %4579 = vmatprep.subr.mxu0 0.0
    %v4580 = vand.u32 %v1829, 4294901760
    %4581 = vmatpush1.msra.mxu0 %v4580
    %4582 = vmatprep.subr.mxu0 0.0
    %v4583 = vand.u32 %v1830, 4294901760
    %4584 = vmatpush1.msra.mxu0 %v4583
    %4585 = vmatprep.subr.mxu0 0.0
    %v4586 = vand.u32 %v1831, 4294901760
    %4587 = vmatpush1.msra.mxu0 %v4586
    %4588 = vmatprep.subr.mxu0 0.0
    %v4589 = vand.u32 %v1832, 4294901760
    %4590 = vmatpush1.msra.mxu0 %v4589
    %4591 = vmatprep.subr.mxu0 0.0
    %v4592 = vand.u32 %v1833, 4294901760
    %4593 = vmatpush1.msra.mxu0 %v4592
    %4594 = vmatprep.subr.mxu0 0.0
    %v4595 = vand.u32 %v1834, 4294901760
    %4596 = vmatpush1.msra.mxu0 %v4595
    %4597 = vmatprep.subr.mxu0 0.0
    %v4598 = vand.u32 %v1835, 4294901760
    %4599 = vmatpush1.msra.mxu0 %v4598
    %4600 = vmatprep.subr.mxu0 0.0
    %v4601 = vand.u32 %v1836, 4294901760
    %4602 = vmatpush1.msra.mxu0 %v4601
    %4603 = vmatprep.subr.mxu0 0.0
    %v4604 = vand.u32 %v1837, 4294901760
    %4605 = vmatpush1.msra.mxu0 %v4604
    %4606 = vmatprep.subr.mxu0 0.0
    %v4607 = vand.u32 %v1838, 4294901760
    %4608 = vmatpush1.msra.mxu0 %v4607
    %4609 = vmatprep.subr.mxu0 0.0
    %v4610 = vand.u32 %v1839, 4294901760
    %4611 = vmatpush1.msra.mxu0 %v4610
    %4612 = vmatprep.subr.mxu0 0.0
    %v4613 = vand.u32 %v1840, 4294901760
    %4614 = vmatpush1.msra.mxu0 %v4613
    %4615 = vmatprep.subr.mxu0 0.0
    %v4616 = vand.u32 %v1841, 4294901760
    %4617 = vmatpush1.msra.mxu0 %v4616
    %4618 = vmatprep.subr.mxu0 0.0
    %v4619 = vand.u32 %v1842, 4294901760
    %4620 = vmatpush1.msra.mxu0 %v4619
    %4621 = vmatprep.subr.mxu0 0.0
    %v4622 = vand.u32 %v1843, 4294901760
    %4623 = vmatpush1.msra.mxu0 %v4622
    %4624 = vmatprep.subr.mxu0 0.0
    %v4625 = vand.u32 %v1844, 4294901760
    %4626 = vmatpush1.msra.mxu0 %v4625
    %4627 = vmatprep.subr.mxu0 0.0
    %v4628 = vand.u32 %v1845, 4294901760
    %4629 = vmatpush1.msra.mxu0 %v4628
    %4630 = vmatprep.subr.mxu0 0.0
    %v4631 = vand.u32 %v1846, 4294901760
    %4632 = vmatpush1.msra.mxu0 %v4631
    %4633 = vmatprep.subr.mxu0 0.0
    %v4634 = vand.u32 %v1847, 4294901760
    %4635 = vmatpush1.msra.mxu0 %v4634
    %4636 = vmatprep.subr.mxu0 0.0
    %v4637 = vand.u32 %v1848, 4294901760
    %4638 = vmatpush1.msra.mxu0 %v4637
    %4639 = vmatprep.subr.mxu0 0.0
    %v4640 = vand.u32 %v1849, 4294901760
    %4641 = vmatpush1.msra.mxu0 %v4640
    %4642 = vmatprep.subr.mxu0 0.0
    %v4643 = vand.u32 %v1850, 4294901760
    %4644 = vmatpush1.msra.mxu0 %v4643
    %4645 = vmatprep.subr.mxu0 0.0
    %v4646 = vand.u32 %v1851, 4294901760
    %4647 = vmatpush1.msra.mxu0 %v4646
    %4648 = vmatprep.subr.mxu0 0.0
    %v4649 = vand.u32 %v1852, 4294901760
    %4650 = vmatpush1.msra.mxu0 %v4649
    %4651 = vmatprep.subr.mxu0 0.0
    %v4652 = vand.u32 %v1853, 4294901760
    %4653 = vmatpush1.msra.mxu0 %v4652
    %4654 = vmatprep.subr.mxu0 0.0
    %v4655 = vand.u32 %v1854, 4294901760
    %4656 = vmatpush1.msra.mxu0 %v4655
    %4657 = vmatprep.subr.mxu0 0.0
    %v4658 = vand.u32 %v1855, 4294901760
    %4659 = vmatpush1.msra.mxu0 %v4658
    %4660 = vmatprep.subr.mxu0 0.0
    %v4661 = vand.u32 %v1856, 4294901760
    %4662 = vmatpush1.msra.mxu0 %v4661
    %4663 = vmatprep.subr.mxu0 0.0
    %v4664 = vand.u32 %v1857, 4294901760
    %4665 = vmatpush1.msra.mxu0 %v4664
    %4666 = vmatprep.subr.mxu0 0.0
    %v4667 = vand.u32 %v1858, 4294901760
    %4668 = vmatpush1.msra.mxu0 %v4667
    %4669 = vmatprep.subr.mxu0 0.0
    %v4670 = vand.u32 %v1859, 4294901760
    %4671 = vmatpush1.msra.mxu0 %v4670
    %4672 = vmatprep.subr.mxu0 0.0
    %v4673 = vand.u32 %v1860, 4294901760
    %4674 = vmatpush1.msra.mxu0 %v4673
    %v4675 = vand.u32 %v1723, 4294901760
    %v4676 = vsub.f32 %v1723, %v4675
    %v4677 = vand.u32 %v4676, 4294901760
    %v4678 = vsub.f32 %v4676, %v4677
    %v4679 = vand.u32 %v4678, 4294901760
    %4680 = vmatprep.mubr.f32.mxu0 %v4679
    %v4681 = vand.u32 %v1722, 4294901760
    %v4682 = vsub.f32 %v1722, %v4681
    %v4683 = vand.u32 %v4682, 4294901760
    %v4684 = vsub.f32 %v4682, %v4683
    %v4685 = vand.u32 %v4684, 4294901760
    %4686 = vmatmul.mubr.f32.gmra.mrb[0].mxu0 %v4685
    %v4687 = vpop.f32.mrb[0].mxu0
    %v4688 = vadd.f32 %v4576, %v4687
    %v4689 = vpop.f32.mrb[0].mxu0
    %4690 = vdwg.mxu0
    %4691 = vmatprep.subr.mxu0 0.0
    %v4692 = vand.u32 %v1829, 4294901760
    %v4693 = vsub.f32 %v1829, %v4692
    %v4694 = vand.u32 %v4693, 4294901760
    %v4695 = vsub.f32 %v4693, %v4694
    %v4696 = vand.u32 %v4695, 4294901760
    %4697 = vmatpush1.msra.mxu0 %v4696
    %4698 = vmatprep.subr.mxu0 0.0
    %v4699 = vand.u32 %v1830, 4294901760
    %v4700 = vsub.f32 %v1830, %v4699
    %v4701 = vand.u32 %v4700, 4294901760
    %v4702 = vsub.f32 %v4700, %v4701
    %v4703 = vand.u32 %v4702, 4294901760
    %4704 = vmatpush1.msra.mxu0 %v4703
    %4705 = vmatprep.subr.mxu0 0.0
    %v4706 = vand.u32 %v1831, 4294901760
    %v4707 = vsub.f32 %v1831, %v4706
    %v4708 = vand.u32 %v4707, 4294901760
    %v4709 = vsub.f32 %v4707, %v4708
    %v4710 = vand.u32 %v4709, 4294901760
    %4711 = vmatpush1.msra.mxu0 %v4710
    %4712 = vmatprep.subr.mxu0 0.0
    %v4713 = vand.u32 %v1832, 4294901760
    %v4714 = vsub.f32 %v1832, %v4713
    %v4715 = vand.u32 %v4714, 4294901760
    %v4716 = vsub.f32 %v4714, %v4715
    %v4717 = vand.u32 %v4716, 4294901760
    %4718 = vmatpush1.msra.mxu0 %v4717
    %4719 = vmatprep.subr.mxu0 0.0
    %v4720 = vand.u32 %v1833, 4294901760
    %v4721 = vsub.f32 %v1833, %v4720
    %v4722 = vand.u32 %v4721, 4294901760
    %v4723 = vsub.f32 %v4721, %v4722
    %v4724 = vand.u32 %v4723, 4294901760
    %4725 = vmatpush1.msra.mxu0 %v4724
    %4726 = vmatprep.subr.mxu0 0.0
    %v4727 = vand.u32 %v1834, 4294901760
    %v4728 = vsub.f32 %v1834, %v4727
    %v4729 = vand.u32 %v4728, 4294901760
    %v4730 = vsub.f32 %v4728, %v4729
    %v4731 = vand.u32 %v4730, 4294901760
    %4732 = vmatpush1.msra.mxu0 %v4731
    %4733 = vmatprep.subr.mxu0 0.0
    %v4734 = vand.u32 %v1835, 4294901760
    %v4735 = vsub.f32 %v1835, %v4734
    %v4736 = vand.u32 %v4735, 4294901760
    %v4737 = vsub.f32 %v4735, %v4736
    %v4738 = vand.u32 %v4737, 4294901760
    %4739 = vmatpush1.msra.mxu0 %v4738
    %4740 = vmatprep.subr.mxu0 0.0
    %v4741 = vand.u32 %v1836, 4294901760
    %v4742 = vsub.f32 %v1836, %v4741
    %v4743 = vand.u32 %v4742, 4294901760
    %v4744 = vsub.f32 %v4742, %v4743
    %v4745 = vand.u32 %v4744, 4294901760
    %4746 = vmatpush1.msra.mxu0 %v4745
    %4747 = vmatprep.subr.mxu0 0.0
    %v4748 = vand.u32 %v1837, 4294901760
    %v4749 = vsub.f32 %v1837, %v4748
    %v4750 = vand.u32 %v4749, 4294901760
    %v4751 = vsub.f32 %v4749, %v4750
    %v4752 = vand.u32 %v4751, 4294901760
    %4753 = vmatpush1.msra.mxu0 %v4752
    %4754 = vmatprep.subr.mxu0 0.0
    %v4755 = vand.u32 %v1838, 4294901760
    %v4756 = vsub.f32 %v1838, %v4755
    %v4757 = vand.u32 %v4756, 4294901760
    %v4758 = vsub.f32 %v4756, %v4757
    %v4759 = vand.u32 %v4758, 4294901760
    %4760 = vmatpush1.msra.mxu0 %v4759
    %4761 = vmatprep.subr.mxu0 0.0
    %v4762 = vand.u32 %v1839, 4294901760
    %v4763 = vsub.f32 %v1839, %v4762
    %v4764 = vand.u32 %v4763, 4294901760
    %v4765 = vsub.f32 %v4763, %v4764
    %v4766 = vand.u32 %v4765, 4294901760
    %4767 = vmatpush1.msra.mxu0 %v4766
    %4768 = vmatprep.subr.mxu0 0.0
    %v4769 = vand.u32 %v1840, 4294901760
    %v4770 = vsub.f32 %v1840, %v4769
    %v4771 = vand.u32 %v4770, 4294901760
    %v4772 = vsub.f32 %v4770, %v4771
    %v4773 = vand.u32 %v4772, 4294901760
    %4774 = vmatpush1.msra.mxu0 %v4773
    %4775 = vmatprep.subr.mxu0 0.0
    %v4776 = vand.u32 %v1841, 4294901760
    %v4777 = vsub.f32 %v1841, %v4776
    %v4778 = vand.u32 %v4777, 4294901760
    %v4779 = vsub.f32 %v4777, %v4778
    %v4780 = vand.u32 %v4779, 4294901760
    %4781 = vmatpush1.msra.mxu0 %v4780
    %4782 = vmatprep.subr.mxu0 0.0
    %v4783 = vand.u32 %v1842, 4294901760
    %v4784 = vsub.f32 %v1842, %v4783
    %v4785 = vand.u32 %v4784, 4294901760
    %v4786 = vsub.f32 %v4784, %v4785
    %v4787 = vand.u32 %v4786, 4294901760
    %4788 = vmatpush1.msra.mxu0 %v4787
    %4789 = vmatprep.subr.mxu0 0.0
    %v4790 = vand.u32 %v1843, 4294901760
    %v4791 = vsub.f32 %v1843, %v4790
    %v4792 = vand.u32 %v4791, 4294901760
    %v4793 = vsub.f32 %v4791, %v4792
    %v4794 = vand.u32 %v4793, 4294901760
    %4795 = vmatpush1.msra.mxu0 %v4794
    %4796 = vmatprep.subr.mxu0 0.0
    %v4797 = vand.u32 %v1844, 4294901760
    %v4798 = vsub.f32 %v1844, %v4797
    %v4799 = vand.u32 %v4798, 4294901760
    %v4800 = vsub.f32 %v4798, %v4799
    %v4801 = vand.u32 %v4800, 4294901760
    %4802 = vmatpush1.msra.mxu0 %v4801
    %4803 = vmatprep.subr.mxu0 0.0
    %v4804 = vand.u32 %v1845, 4294901760
    %v4805 = vsub.f32 %v1845, %v4804
    %v4806 = vand.u32 %v4805, 4294901760
    %v4807 = vsub.f32 %v4805, %v4806
    %v4808 = vand.u32 %v4807, 4294901760
    %4809 = vmatpush1.msra.mxu0 %v4808
    %4810 = vmatprep.subr.mxu0 0.0
    %v4811 = vand.u32 %v1846, 4294901760
    %v4812 = vsub.f32 %v1846, %v4811
    %v4813 = vand.u32 %v4812, 4294901760
    %v4814 = vsub.f32 %v4812, %v4813
    %v4815 = vand.u32 %v4814, 4294901760
    %4816 = vmatpush1.msra.mxu0 %v4815
    %4817 = vmatprep.subr.mxu0 0.0
    %v4818 = vand.u32 %v1847, 4294901760
    %v4819 = vsub.f32 %v1847, %v4818
    %v4820 = vand.u32 %v4819, 4294901760
    %v4821 = vsub.f32 %v4819, %v4820
    %v4822 = vand.u32 %v4821, 4294901760
    %4823 = vmatpush1.msra.mxu0 %v4822
    %4824 = vmatprep.subr.mxu0 0.0
    %v4825 = vand.u32 %v1848, 4294901760
    %v4826 = vsub.f32 %v1848, %v4825
    %v4827 = vand.u32 %v4826, 4294901760
    %v4828 = vsub.f32 %v4826, %v4827
    %v4829 = vand.u32 %v4828, 4294901760
    %4830 = vmatpush1.msra.mxu0 %v4829
    %4831 = vmatprep.subr.mxu0 0.0
    %v4832 = vand.u32 %v1849, 4294901760
    %v4833 = vsub.f32 %v1849, %v4832
    %v4834 = vand.u32 %v4833, 4294901760
    %v4835 = vsub.f32 %v4833, %v4834
    %v4836 = vand.u32 %v4835, 4294901760
    %4837 = vmatpush1.msra.mxu0 %v4836
    %4838 = vmatprep.subr.mxu0 0.0
    %v4839 = vand.u32 %v1850, 4294901760
    %v4840 = vsub.f32 %v1850, %v4839
    %v4841 = vand.u32 %v4840, 4294901760
    %v4842 = vsub.f32 %v4840, %v4841
    %v4843 = vand.u32 %v4842, 4294901760
    %4844 = vmatpush1.msra.mxu0 %v4843
    %4845 = vmatprep.subr.mxu0 0.0
    %v4846 = vand.u32 %v1851, 4294901760
    %v4847 = vsub.f32 %v1851, %v4846
    %v4848 = vand.u32 %v4847, 4294901760
    %v4849 = vsub.f32 %v4847, %v4848
    %v4850 = vand.u32 %v4849, 4294901760
    %4851 = vmatpush1.msra.mxu0 %v4850
    %4852 = vmatprep.subr.mxu0 0.0
    %v4853 = vand.u32 %v1852, 4294901760
    %v4854 = vsub.f32 %v1852, %v4853
    %v4855 = vand.u32 %v4854, 4294901760
    %v4856 = vsub.f32 %v4854, %v4855
    %v4857 = vand.u32 %v4856, 4294901760
    %4858 = vmatpush1.msra.mxu0 %v4857
    %4859 = vmatprep.subr.mxu0 0.0
    %v4860 = vand.u32 %v1853, 4294901760
    %v4861 = vsub.f32 %v1853, %v4860
    %v4862 = vand.u32 %v4861, 4294901760
    %v4863 = vsub.f32 %v4861, %v4862
    %v4864 = vand.u32 %v4863, 4294901760
    %4865 = vmatpush1.msra.mxu0 %v4864
    %4866 = vmatprep.subr.mxu0 0.0
    %v4867 = vand.u32 %v1854, 4294901760
    %v4868 = vsub.f32 %v1854, %v4867
    %v4869 = vand.u32 %v4868, 4294901760
    %v4870 = vsub.f32 %v4868, %v4869
    %v4871 = vand.u32 %v4870, 4294901760
    %4872 = vmatpush1.msra.mxu0 %v4871
    %4873 = vmatprep.subr.mxu0 0.0
    %v4874 = vand.u32 %v1855, 4294901760
    %v4875 = vsub.f32 %v1855, %v4874
    %v4876 = vand.u32 %v4875, 4294901760
    %v4877 = vsub.f32 %v4875, %v4876
    %v4878 = vand.u32 %v4877, 4294901760
    %4879 = vmatpush1.msra.mxu0 %v4878
    %4880 = vmatprep.subr.mxu0 0.0
    %v4881 = vand.u32 %v1856, 4294901760
    %v4882 = vsub.f32 %v1856, %v4881
    %v4883 = vand.u32 %v4882, 4294901760
    %v4884 = vsub.f32 %v4882, %v4883
    %v4885 = vand.u32 %v4884, 4294901760
    %4886 = vmatpush1.msra.mxu0 %v4885
    %4887 = vmatprep.subr.mxu0 0.0
    %v4888 = vand.u32 %v1857, 4294901760
    %v4889 = vsub.f32 %v1857, %v4888
    %v4890 = vand.u32 %v4889, 4294901760
    %v4891 = vsub.f32 %v4889, %v4890
    %v4892 = vand.u32 %v4891, 4294901760
    %4893 = vmatpush1.msra.mxu0 %v4892
    %4894 = vmatprep.subr.mxu0 0.0
    %v4895 = vand.u32 %v1858, 4294901760
    %v4896 = vsub.f32 %v1858, %v4895
    %v4897 = vand.u32 %v4896, 4294901760
    %v4898 = vsub.f32 %v4896, %v4897
    %v4899 = vand.u32 %v4898, 4294901760
    %4900 = vmatpush1.msra.mxu0 %v4899
    %4901 = vmatprep.subr.mxu0 0.0
    %v4902 = vand.u32 %v1859, 4294901760
    %v4903 = vsub.f32 %v1859, %v4902
    %v4904 = vand.u32 %v4903, 4294901760
    %v4905 = vsub.f32 %v4903, %v4904
    %v4906 = vand.u32 %v4905, 4294901760
    %4907 = vmatpush1.msra.mxu0 %v4906
    %4908 = vmatprep.subr.mxu0 0.0
    %v4909 = vand.u32 %v1860, 4294901760
    %v4910 = vsub.f32 %v1860, %v4909
    %v4911 = vand.u32 %v4910, 4294901760
    %v4912 = vsub.f32 %v4910, %v4911
    %v4913 = vand.u32 %v4912, 4294901760
    %4914 = vmatpush1.msra.mxu0 %v4913
    %v4915 = vand.u32 %v1723, 4294901760
    %4916 = vmatprep.mubr.f32.mxu0 %v4915
    %v4917 = vand.u32 %v1722, 4294901760
    %4918 = vmatmul.mubr.f32.gmra.mrb[0].mxu0 %v4917
    %v4919 = vpop.f32.mrb[0].mxu0
    %v4920 = vadd.f32 %v4688, %v4919
    %v4921 = vpop.f32.mrb[0].mxu0
    %4922 = vdwg.mxu0
    %4923 = vmatprep.subr.mxu0 0.0
    %v4924 = vand.u32 %v1829, 4294901760
    %v4925 = vsub.f32 %v1829, %v4924
    %4926 = vmatpush1.msra.mxu0 %v4925
    %4927 = vmatprep.subr.mxu0 0.0
    %v4928 = vand.u32 %v1830, 4294901760
    %v4929 = vsub.f32 %v1830, %v4928
    %4930 = vmatpush1.msra.mxu0 %v4929
    %4931 = vmatprep.subr.mxu0 0.0
    %v4932 = vand.u32 %v1831, 4294901760
    %v4933 = vsub.f32 %v1831, %v4932
    %4934 = vmatpush1.msra.mxu0 %v4933
    %4935 = vmatprep.subr.mxu0 0.0
    %v4936 = vand.u32 %v1832, 4294901760
    %v4937 = vsub.f32 %v1832, %v4936
    %4938 = vmatpush1.msra.mxu0 %v4937
    %4939 = vmatprep.subr.mxu0 0.0
    %v4940 = vand.u32 %v1833, 4294901760
    %v4941 = vsub.f32 %v1833, %v4940
    %4942 = vmatpush1.msra.mxu0 %v4941
    %4943 = vmatprep.subr.mxu0 0.0
    %v4944 = vand.u32 %v1834, 4294901760
    %v4945 = vsub.f32 %v1834, %v4944
    %4946 = vmatpush1.msra.mxu0 %v4945
    %4947 = vmatprep.subr.mxu0 0.0
    %v4948 = vand.u32 %v1835, 4294901760
    %v4949 = vsub.f32 %v1835, %v4948
    %4950 = vmatpush1.msra.mxu0 %v4949
    %4951 = vmatprep.subr.mxu0 0.0
    %v4952 = vand.u32 %v1836, 4294901760
    %v4953 = vsub.f32 %v1836, %v4952
    %4954 = vmatpush1.msra.mxu0 %v4953
    %4955 = vmatprep.subr.mxu0 0.0
    %v4956 = vand.u32 %v1837, 4294901760
    %v4957 = vsub.f32 %v1837, %v4956
    %4958 = vmatpush1.msra.mxu0 %v4957
    %4959 = vmatprep.subr.mxu0 0.0
    %v4960 = vand.u32 %v1838, 4294901760
    %v4961 = vsub.f32 %v1838, %v4960
    %4962 = vmatpush1.msra.mxu0 %v4961
    %4963 = vmatprep.subr.mxu0 0.0
    %v4964 = vand.u32 %v1839, 4294901760
    %v4965 = vsub.f32 %v1839, %v4964
    %4966 = vmatpush1.msra.mxu0 %v4965
    %4967 = vmatprep.subr.mxu0 0.0
    %v4968 = vand.u32 %v1840, 4294901760
    %v4969 = vsub.f32 %v1840, %v4968
    %4970 = vmatpush1.msra.mxu0 %v4969
    %4971 = vmatprep.subr.mxu0 0.0
    %v4972 = vand.u32 %v1841, 4294901760
    %v4973 = vsub.f32 %v1841, %v4972
    %4974 = vmatpush1.msra.mxu0 %v4973
    %4975 = vmatprep.subr.mxu0 0.0
    %v4976 = vand.u32 %v1842, 4294901760
    %v4977 = vsub.f32 %v1842, %v4976
    %4978 = vmatpush1.msra.mxu0 %v4977
    %4979 = vmatprep.subr.mxu0 0.0
    %v4980 = vand.u32 %v1843, 4294901760
    %v4981 = vsub.f32 %v1843, %v4980
    %4982 = vmatpush1.msra.mxu0 %v4981
    %4983 = vmatprep.subr.mxu0 0.0
    %v4984 = vand.u32 %v1844, 4294901760
    %v4985 = vsub.f32 %v1844, %v4984
    %4986 = vmatpush1.msra.mxu0 %v4985
    %4987 = vmatprep.subr.mxu0 0.0
    %v4988 = vand.u32 %v1845, 4294901760
    %v4989 = vsub.f32 %v1845, %v4988
    %4990 = vmatpush1.msra.mxu0 %v4989
    %4991 = vmatprep.subr.mxu0 0.0
    %v4992 = vand.u32 %v1846, 4294901760
    %v4993 = vsub.f32 %v1846, %v4992
    %4994 = vmatpush1.msra.mxu0 %v4993
    %4995 = vmatprep.subr.mxu0 0.0
    %v4996 = vand.u32 %v1847, 4294901760
    %v4997 = vsub.f32 %v1847, %v4996
    %4998 = vmatpush1.msra.mxu0 %v4997
    %4999 = vmatprep.subr.mxu0 0.0
    %v5000 = vand.u32 %v1848, 4294901760
    %v5001 = vsub.f32 %v1848, %v5000
    %5002 = vmatpush1.msra.mxu0 %v5001
    %5003 = vmatprep.subr.mxu0 0.0
    %v5004 = vand.u32 %v1849, 4294901760
    %v5005 = vsub.f32 %v1849, %v5004
    %5006 = vmatpush1.msra.mxu0 %v5005
    %5007 = vmatprep.subr.mxu0 0.0
    %v5008 = vand.u32 %v1850, 4294901760
    %v5009 = vsub.f32 %v1850, %v5008
    %5010 = vmatpush1.msra.mxu0 %v5009
    %5011 = vmatprep.subr.mxu0 0.0
    %v5012 = vand.u32 %v1851, 4294901760
    %v5013 = vsub.f32 %v1851, %v5012
    %5014 = vmatpush1.msra.mxu0 %v5013
    %5015 = vmatprep.subr.mxu0 0.0
    %v5016 = vand.u32 %v1852, 4294901760
    %v5017 = vsub.f32 %v1852, %v5016
    %5018 = vmatpush1.msra.mxu0 %v5017
    %5019 = vmatprep.subr.mxu0 0.0
    %v5020 = vand.u32 %v1853, 4294901760
    %v5021 = vsub.f32 %v1853, %v5020
    %5022 = vmatpush1.msra.mxu0 %v5021
    %5023 = vmatprep.subr.mxu0 0.0
    %v5024 = vand.u32 %v1854, 4294901760
    %v5025 = vsub.f32 %v1854, %v5024
    %5026 = vmatpush1.msra.mxu0 %v5025
    %5027 = vmatprep.subr.mxu0 0.0
    %v5028 = vand.u32 %v1855, 4294901760
    %v5029 = vsub.f32 %v1855, %v5028
    %5030 = vmatpush1.msra.mxu0 %v5029
    %5031 = vmatprep.subr.mxu0 0.0
    %v5032 = vand.u32 %v1856, 4294901760
    %v5033 = vsub.f32 %v1856, %v5032
    %5034 = vmatpush1.msra.mxu0 %v5033
    %5035 = vmatprep.subr.mxu0 0.0
    %v5036 = vand.u32 %v1857, 4294901760
    %v5037 = vsub.f32 %v1857, %v5036
    %5038 = vmatpush1.msra.mxu0 %v5037
    %5039 = vmatprep.subr.mxu0 0.0
    %v5040 = vand.u32 %v1858, 4294901760
    %v5041 = vsub.f32 %v1858, %v5040
    %5042 = vmatpush1.msra.mxu0 %v5041
    %5043 = vmatprep.subr.mxu0 0.0
    %v5044 = vand.u32 %v1859, 4294901760
    %v5045 = vsub.f32 %v1859, %v5044
    %5046 = vmatpush1.msra.mxu0 %v5045
    %5047 = vmatprep.subr.mxu0 0.0
    %v5048 = vand.u32 %v1860, 4294901760
    %v5049 = vsub.f32 %v1860, %v5048
    %5050 = vmatpush1.msra.mxu0 %v5049
    %v5051 = vand.u32 %v1723, 4294901760
    %v5052 = vsub.f32 %v1723, %v5051
    %5053 = vmatprep.mubr.f32.mxu0 %v5052
    %v5054 = vand.u32 %v1722, 4294901760
    %v5055 = vsub.f32 %v1722, %v5054
    %5056 = vmatmul.mubr.f32.gmra.mrb[0].mxu0 %v5055
    %v5057 = vpop.f32.mrb[0].mxu0
    %v5058 = vadd.f32 %v4920, %v5057
    %v5059 = vpop.f32.mrb[0].mxu0
    %5060 = vdwg.mxu0
    %5061 = vmatprep.subr.mxu0 0.0
    %v5062 = vand.u32 %v1829, 4294901760
    %5063 = vmatpush1.msra.mxu0 %v5062
    %5064 = vmatprep.subr.mxu0 0.0
    %v5065 = vand.u32 %v1830, 4294901760
    %5066 = vmatpush1.msra.mxu0 %v5065
    %5067 = vmatprep.subr.mxu0 0.0
    %v5068 = vand.u32 %v1831, 4294901760
    %5069 = vmatpush1.msra.mxu0 %v5068
    %5070 = vmatprep.subr.mxu0 0.0
    %v5071 = vand.u32 %v1832, 4294901760
    %5072 = vmatpush1.msra.mxu0 %v5071
    %5073 = vmatprep.subr.mxu0 0.0
    %v5074 = vand.u32 %v1833, 4294901760
    %5075 = vmatpush1.msra.mxu0 %v5074
    %5076 = vmatprep.subr.mxu0 0.0
    %v5077 = vand.u32 %v1834, 4294901760
    %5078 = vmatpush1.msra.mxu0 %v5077
    %5079 = vmatprep.subr.mxu0 0.0
    %v5080 = vand.u32 %v1835, 4294901760
    %5081 = vmatpush1.msra.mxu0 %v5080
    %5082 = vmatprep.subr.mxu0 0.0
    %v5083 = vand.u32 %v1836, 4294901760
    %5084 = vmatpush1.msra.mxu0 %v5083
    %5085 = vmatprep.subr.mxu0 0.0
    %v5086 = vand.u32 %v1837, 4294901760
    %5087 = vmatpush1.msra.mxu0 %v5086
    %5088 = vmatprep.subr.mxu0 0.0
    %v5089 = vand.u32 %v1838, 4294901760
    %5090 = vmatpush1.msra.mxu0 %v5089
    %5091 = vmatprep.subr.mxu0 0.0
    %v5092 = vand.u32 %v1839, 4294901760
    %5093 = vmatpush1.msra.mxu0 %v5092
    %5094 = vmatprep.subr.mxu0 0.0
    %v5095 = vand.u32 %v1840, 4294901760
    %5096 = vmatpush1.msra.mxu0 %v5095
    %5097 = vmatprep.subr.mxu0 0.0
    %v5098 = vand.u32 %v1841, 4294901760
    %5099 = vmatpush1.msra.mxu0 %v5098
    %5100 = vmatprep.subr.mxu0 0.0
    %v5101 = vand.u32 %v1842, 4294901760
    %5102 = vmatpush1.msra.mxu0 %v5101
    %5103 = vmatprep.subr.mxu0 0.0
    %v5104 = vand.u32 %v1843, 4294901760
    %5105 = vmatpush1.msra.mxu0 %v5104
    %5106 = vmatprep.subr.mxu0 0.0
    %v5107 = vand.u32 %v1844, 4294901760
    %5108 = vmatpush1.msra.mxu0 %v5107
    %5109 = vmatprep.subr.mxu0 0.0
    %v5110 = vand.u32 %v1845, 4294901760
    %5111 = vmatpush1.msra.mxu0 %v5110
    %5112 = vmatprep.subr.mxu0 0.0
    %v5113 = vand.u32 %v1846, 4294901760
    %5114 = vmatpush1.msra.mxu0 %v5113
    %5115 = vmatprep.subr.mxu0 0.0
    %v5116 = vand.u32 %v1847, 4294901760
    %5117 = vmatpush1.msra.mxu0 %v5116
    %5118 = vmatprep.subr.mxu0 0.0
    %v5119 = vand.u32 %v1848, 4294901760
    %5120 = vmatpush1.msra.mxu0 %v5119
    %5121 = vmatprep.subr.mxu0 0.0
    %v5122 = vand.u32 %v1849, 4294901760
    %5123 = vmatpush1.msra.mxu0 %v5122
    %5124 = vmatprep.subr.mxu0 0.0
    %v5125 = vand.u32 %v1850, 4294901760
    %5126 = vmatpush1.msra.mxu0 %v5125
    %5127 = vmatprep.subr.mxu0 0.0
    %v5128 = vand.u32 %v1851, 4294901760
    %5129 = vmatpush1.msra.mxu0 %v5128
    %5130 = vmatprep.subr.mxu0 0.0
    %v5131 = vand.u32 %v1852, 4294901760
    %5132 = vmatpush1.msra.mxu0 %v5131
    %5133 = vmatprep.subr.mxu0 0.0
    %v5134 = vand.u32 %v1853, 4294901760
    %5135 = vmatpush1.msra.mxu0 %v5134
    %5136 = vmatprep.subr.mxu0 0.0
    %v5137 = vand.u32 %v1854, 4294901760
    %5138 = vmatpush1.msra.mxu0 %v5137
    %5139 = vmatprep.subr.mxu0 0.0
    %v5140 = vand.u32 %v1855, 4294901760
    %5141 = vmatpush1.msra.mxu0 %v5140
    %5142 = vmatprep.subr.mxu0 0.0
    %v5143 = vand.u32 %v1856, 4294901760
    %5144 = vmatpush1.msra.mxu0 %v5143
    %5145 = vmatprep.subr.mxu0 0.0
    %v5146 = vand.u32 %v1857, 4294901760
    %5147 = vmatpush1.msra.mxu0 %v5146
    %5148 = vmatprep.subr.mxu0 0.0
    %v5149 = vand.u32 %v1858, 4294901760
    %5150 = vmatpush1.msra.mxu0 %v5149
    %5151 = vmatprep.subr.mxu0 0.0
    %v5152 = vand.u32 %v1859, 4294901760
    %5153 = vmatpush1.msra.mxu0 %v5152
    %5154 = vmatprep.subr.mxu0 0.0
    %v5155 = vand.u32 %v1860, 4294901760
    %5156 = vmatpush1.msra.mxu0 %v5155
    %v5157 = vand.u32 %v1723, 4294901760
    %v5158 = vsub.f32 %v1723, %v5157
    %v5159 = vand.u32 %v5158, 4294901760
    %5160 = vmatprep.mubr.f32.mxu0 %v5159
    %v5161 = vand.u32 %v1722, 4294901760
    %v5162 = vsub.f32 %v1722, %v5161
    %v5163 = vand.u32 %v5162, 4294901760
    %5164 = vmatmul.mubr.f32.gmra.mrb[0].mxu0 %v5163
    %v5165 = vpop.f32.mrb[0].mxu0
    %v5166 = vadd.f32 %v5058, %v5165
    %v5167 = vpop.f32.mrb[0].mxu0
    %5168 = vdwg.mxu0
    %5169 = vmatprep.subr.mxu0 0.0
    %v5170 = vand.u32 %v1829, 4294901760
    %v5171 = vsub.f32 %v1829, %v5170
    %v5172 = vand.u32 %v5171, 4294901760
    %5173 = vmatpush1.msra.mxu0 %v5172
    %5174 = vmatprep.subr.mxu0 0.0
    %v5175 = vand.u32 %v1830, 4294901760
    %v5176 = vsub.f32 %v1830, %v5175
    %v5177 = vand.u32 %v5176, 4294901760
    %5178 = vmatpush1.msra.mxu0 %v5177
    %5179 = vmatprep.subr.mxu0 0.0
    %v5180 = vand.u32 %v1831, 4294901760
    %v5181 = vsub.f32 %v1831, %v5180
    %v5182 = vand.u32 %v5181, 4294901760
    %5183 = vmatpush1.msra.mxu0 %v5182
    %5184 = vmatprep.subr.mxu0 0.0
    %v5185 = vand.u32 %v1832, 4294901760
    %v5186 = vsub.f32 %v1832, %v5185
    %v5187 = vand.u32 %v5186, 4294901760
    %5188 = vmatpush1.msra.mxu0 %v5187
    %5189 = vmatprep.subr.mxu0 0.0
    %v5190 = vand.u32 %v1833, 4294901760
    %v5191 = vsub.f32 %v1833, %v5190
    %v5192 = vand.u32 %v5191, 4294901760
    %5193 = vmatpush1.msra.mxu0 %v5192
    %5194 = vmatprep.subr.mxu0 0.0
    %v5195 = vand.u32 %v1834, 4294901760
    %v5196 = vsub.f32 %v1834, %v5195
    %v5197 = vand.u32 %v5196, 4294901760
    %5198 = vmatpush1.msra.mxu0 %v5197
    %5199 = vmatprep.subr.mxu0 0.0
    %v5200 = vand.u32 %v1835, 4294901760
    %v5201 = vsub.f32 %v1835, %v5200
    %v5202 = vand.u32 %v5201, 4294901760
    %5203 = vmatpush1.msra.mxu0 %v5202
    %5204 = vmatprep.subr.mxu0 0.0
    %v5205 = vand.u32 %v1836, 4294901760
    %v5206 = vsub.f32 %v1836, %v5205
    %v5207 = vand.u32 %v5206, 4294901760
    %5208 = vmatpush1.msra.mxu0 %v5207
    %5209 = vmatprep.subr.mxu0 0.0
    %v5210 = vand.u32 %v1837, 4294901760
    %v5211 = vsub.f32 %v1837, %v5210
    %v5212 = vand.u32 %v5211, 4294901760
    %5213 = vmatpush1.msra.mxu0 %v5212
    %5214 = vmatprep.subr.mxu0 0.0
    %v5215 = vand.u32 %v1838, 4294901760
    %v5216 = vsub.f32 %v1838, %v5215
    %v5217 = vand.u32 %v5216, 4294901760
    %5218 = vmatpush1.msra.mxu0 %v5217
    %5219 = vmatprep.subr.mxu0 0.0
    %v5220 = vand.u32 %v1839, 4294901760
    %v5221 = vsub.f32 %v1839, %v5220
    %v5222 = vand.u32 %v5221, 4294901760
    %5223 = vmatpush1.msra.mxu0 %v5222
    %5224 = vmatprep.subr.mxu0 0.0
    %v5225 = vand.u32 %v1840, 4294901760
    %v5226 = vsub.f32 %v1840, %v5225
    %v5227 = vand.u32 %v5226, 4294901760
    %5228 = vmatpush1.msra.mxu0 %v5227
    %5229 = vmatprep.subr.mxu0 0.0
    %v5230 = vand.u32 %v1841, 4294901760
    %v5231 = vsub.f32 %v1841, %v5230
    %v5232 = vand.u32 %v5231, 4294901760
    %5233 = vmatpush1.msra.mxu0 %v5232
    %5234 = vmatprep.subr.mxu0 0.0
    %v5235 = vand.u32 %v1842, 4294901760
    %v5236 = vsub.f32 %v1842, %v5235
    %v5237 = vand.u32 %v5236, 4294901760
    %5238 = vmatpush1.msra.mxu0 %v5237
    %5239 = vmatprep.subr.mxu0 0.0
    %v5240 = vand.u32 %v1843, 4294901760
    %v5241 = vsub.f32 %v1843, %v5240
    %v5242 = vand.u32 %v5241, 4294901760
    %5243 = vmatpush1.msra.mxu0 %v5242
    %5244 = vmatprep.subr.mxu0 0.0
    %v5245 = vand.u32 %v1844, 4294901760
    %v5246 = vsub.f32 %v1844, %v5245
    %v5247 = vand.u32 %v5246, 4294901760
    %5248 = vmatpush1.msra.mxu0 %v5247
    %5249 = vmatprep.subr.mxu0 0.0
    %v5250 = vand.u32 %v1845, 4294901760
    %v5251 = vsub.f32 %v1845, %v5250
    %v5252 = vand.u32 %v5251, 4294901760
    %5253 = vmatpush1.msra.mxu0 %v5252
    %5254 = vmatprep.subr.mxu0 0.0
    %v5255 = vand.u32 %v1846, 4294901760
    %v5256 = vsub.f32 %v1846, %v5255
    %v5257 = vand.u32 %v5256, 4294901760
    %5258 = vmatpush1.msra.mxu0 %v5257
    %5259 = vmatprep.subr.mxu0 0.0
    %v5260 = vand.u32 %v1847, 4294901760
    %v5261 = vsub.f32 %v1847, %v5260
    %v5262 = vand.u32 %v5261, 4294901760
    %5263 = vmatpush1.msra.mxu0 %v5262
    %5264 = vmatprep.subr.mxu0 0.0
    %v5265 = vand.u32 %v1848, 4294901760
    %v5266 = vsub.f32 %v1848, %v5265
    %v5267 = vand.u32 %v5266, 4294901760
    %5268 = vmatpush1.msra.mxu0 %v5267
    %5269 = vmatprep.subr.mxu0 0.0
    %v5270 = vand.u32 %v1849, 4294901760
    %v5271 = vsub.f32 %v1849, %v5270
    %v5272 = vand.u32 %v5271, 4294901760
    %5273 = vmatpush1.msra.mxu0 %v5272
    %5274 = vmatprep.subr.mxu0 0.0
    %v5275 = vand.u32 %v1850, 4294901760
    %v5276 = vsub.f32 %v1850, %v5275
    %v5277 = vand.u32 %v5276, 4294901760
    %5278 = vmatpush1.msra.mxu0 %v5277
    %5279 = vmatprep.subr.mxu0 0.0
    %v5280 = vand.u32 %v1851, 4294901760
    %v5281 = vsub.f32 %v1851, %v5280
    %v5282 = vand.u32 %v5281, 4294901760
    %5283 = vmatpush1.msra.mxu0 %v5282
    %5284 = vmatprep.subr.mxu0 0.0
    %v5285 = vand.u32 %v1852, 4294901760
    %v5286 = vsub.f32 %v1852, %v5285
    %v5287 = vand.u32 %v5286, 4294901760
    %5288 = vmatpush1.msra.mxu0 %v5287
    %5289 = vmatprep.subr.mxu0 0.0
    %v5290 = vand.u32 %v1853, 4294901760
    %v5291 = vsub.f32 %v1853, %v5290
    %v5292 = vand.u32 %v5291, 4294901760
    %5293 = vmatpush1.msra.mxu0 %v5292
    %5294 = vmatprep.subr.mxu0 0.0
    %v5295 = vand.u32 %v1854, 4294901760
    %v5296 = vsub.f32 %v1854, %v5295
    %v5297 = vand.u32 %v5296, 4294901760
    %5298 = vmatpush1.msra.mxu0 %v5297
    %5299 = vmatprep.subr.mxu0 0.0
    %v5300 = vand.u32 %v1855, 4294901760
    %v5301 = vsub.f32 %v1855, %v5300
    %v5302 = vand.u32 %v5301, 4294901760
    %5303 = vmatpush1.msra.mxu0 %v5302
    %5304 = vmatprep.subr.mxu0 0.0
    %v5305 = vand.u32 %v1856, 4294901760
    %v5306 = vsub.f32 %v1856, %v5305
    %v5307 = vand.u32 %v5306, 4294901760
    %5308 = vmatpush1.msra.mxu0 %v5307
    %5309 = vmatprep.subr.mxu0 0.0
    %v5310 = vand.u32 %v1857, 4294901760
    %v5311 = vsub.f32 %v1857, %v5310
    %v5312 = vand.u32 %v5311, 4294901760
    %5313 = vmatpush1.msra.mxu0 %v5312
    %5314 = vmatprep.subr.mxu0 0.0
    %v5315 = vand.u32 %v1858, 4294901760
    %v5316 = vsub.f32 %v1858, %v5315
    %v5317 = vand.u32 %v5316, 4294901760
    %5318 = vmatpush1.msra.mxu0 %v5317
    %5319 = vmatprep.subr.mxu0 0.0
    %v5320 = vand.u32 %v1859, 4294901760
    %v5321 = vsub.f32 %v1859, %v5320
    %v5322 = vand.u32 %v5321, 4294901760
    %5323 = vmatpush1.msra.mxu0 %v5322
    %5324 = vmatprep.subr.mxu0 0.0
    %v5325 = vand.u32 %v1860, 4294901760
    %v5326 = vsub.f32 %v1860, %v5325
    %v5327 = vand.u32 %v5326, 4294901760
    %5328 = vmatpush1.msra.mxu0 %v5327
    %v5329 = vand.u32 %v1723, 4294901760
    %5330 = vmatprep.mubr.f32.mxu0 %v5329
    %v5331 = vand.u32 %v1722, 4294901760
    %5332 = vmatmul.mubr.f32.gmra.mrb[0].mxu0 %v5331
    %v5333 = vpop.f32.mrb[0].mxu0
    %v5334 = vadd.f32 %v5166, %v5333
    %v5335 = vpop.f32.mrb[0].mxu0
    %5336 = vdwg.mxu0
    %5337 = vmatprep.subr.mxu0 0.0
    %v5338 = vand.u32 %v1829, 4294901760
    %5339 = vmatpush1.msra.mxu0 %v5338
    %5340 = vmatprep.subr.mxu0 0.0
    %v5341 = vand.u32 %v1830, 4294901760
    %5342 = vmatpush1.msra.mxu0 %v5341
    %5343 = vmatprep.subr.mxu0 0.0
    %v5344 = vand.u32 %v1831, 4294901760
    %5345 = vmatpush1.msra.mxu0 %v5344
    %5346 = vmatprep.subr.mxu0 0.0
    %v5347 = vand.u32 %v1832, 4294901760
    %5348 = vmatpush1.msra.mxu0 %v5347
    %5349 = vmatprep.subr.mxu0 0.0
    %v5350 = vand.u32 %v1833, 4294901760
    %5351 = vmatpush1.msra.mxu0 %v5350
    %5352 = vmatprep.subr.mxu0 0.0
    %v5353 = vand.u32 %v1834, 4294901760
    %5354 = vmatpush1.msra.mxu0 %v5353
    %5355 = vmatprep.subr.mxu0 0.0
    %v5356 = vand.u32 %v1835, 4294901760
    %5357 = vmatpush1.msra.mxu0 %v5356
    %5358 = vmatprep.subr.mxu0 0.0
    %v5359 = vand.u32 %v1836, 4294901760
    %5360 = vmatpush1.msra.mxu0 %v5359
    %5361 = vmatprep.subr.mxu0 0.0
    %v5362 = vand.u32 %v1837, 4294901760
    %5363 = vmatpush1.msra.mxu0 %v5362
    %5364 = vmatprep.subr.mxu0 0.0
    %v5365 = vand.u32 %v1838, 4294901760
    %5366 = vmatpush1.msra.mxu0 %v5365
    %5367 = vmatprep.subr.mxu0 0.0
    %v5368 = vand.u32 %v1839, 4294901760
    %5369 = vmatpush1.msra.mxu0 %v5368
    %5370 = vmatprep.subr.mxu0 0.0
    %v5371 = vand.u32 %v1840, 4294901760
    %5372 = vmatpush1.msra.mxu0 %v5371
    %5373 = vmatprep.subr.mxu0 0.0
    %v5374 = vand.u32 %v1841, 4294901760
    %5375 = vmatpush1.msra.mxu0 %v5374
    %5376 = vmatprep.subr.mxu0 0.0
    %v5377 = vand.u32 %v1842, 4294901760
    %5378 = vmatpush1.msra.mxu0 %v5377
    %5379 = vmatprep.subr.mxu0 0.0
    %v5380 = vand.u32 %v1843, 4294901760
    %5381 = vmatpush1.msra.mxu0 %v5380
    %5382 = vmatprep.subr.mxu0 0.0
    %v5383 = vand.u32 %v1844, 4294901760
    %5384 = vmatpush1.msra.mxu0 %v5383
    %5385 = vmatprep.subr.mxu0 0.0
    %v5386 = vand.u32 %v1845, 4294901760
    %5387 = vmatpush1.msra.mxu0 %v5386
    %5388 = vmatprep.subr.mxu0 0.0
    %v5389 = vand.u32 %v1846, 4294901760
    %5390 = vmatpush1.msra.mxu0 %v5389
    %5391 = vmatprep.subr.mxu0 0.0
    %v5392 = vand.u32 %v1847, 4294901760
    %5393 = vmatpush1.msra.mxu0 %v5392
    %5394 = vmatprep.subr.mxu0 0.0
    %v5395 = vand.u32 %v1848, 4294901760
    %5396 = vmatpush1.msra.mxu0 %v5395
    %5397 = vmatprep.subr.mxu0 0.0
    %v5398 = vand.u32 %v1849, 4294901760
    %5399 = vmatpush1.msra.mxu0 %v5398
    %5400 = vmatprep.subr.mxu0 0.0
    %v5401 = vand.u32 %v1850, 4294901760
    %5402 = vmatpush1.msra.mxu0 %v5401
    %5403 = vmatprep.subr.mxu0 0.0
    %v5404 = vand.u32 %v1851, 4294901760
    %5405 = vmatpush1.msra.mxu0 %v5404
    %5406 = vmatprep.subr.mxu0 0.0
    %v5407 = vand.u32 %v1852, 4294901760
    %5408 = vmatpush1.msra.mxu0 %v5407
    %5409 = vmatprep.subr.mxu0 0.0
    %v5410 = vand.u32 %v1853, 4294901760
    %5411 = vmatpush1.msra.mxu0 %v5410
    %5412 = vmatprep.subr.mxu0 0.0
    %v5413 = vand.u32 %v1854, 4294901760
    %5414 = vmatpush1.msra.mxu0 %v5413
    %5415 = vmatprep.subr.mxu0 0.0
    %v5416 = vand.u32 %v1855, 4294901760
    %5417 = vmatpush1.msra.mxu0 %v5416
    %5418 = vmatprep.subr.mxu0 0.0
    %v5419 = vand.u32 %v1856, 4294901760
    %5420 = vmatpush1.msra.mxu0 %v5419
    %5421 = vmatprep.subr.mxu0 0.0
    %v5422 = vand.u32 %v1857, 4294901760
    %5423 = vmatpush1.msra.mxu0 %v5422
    %5424 = vmatprep.subr.mxu0 0.0
    %v5425 = vand.u32 %v1858, 4294901760
    %5426 = vmatpush1.msra.mxu0 %v5425
    %5427 = vmatprep.subr.mxu0 0.0
    %v5428 = vand.u32 %v1859, 4294901760
    %5429 = vmatpush1.msra.mxu0 %v5428
    %5430 = vmatprep.subr.mxu0 0.0
    %v5431 = vand.u32 %v1860, 4294901760
    %5432 = vmatpush1.msra.mxu0 %v5431
    %v5433 = vand.u32 %v1723, 4294901760
    %5434 = vmatprep.mubr.f32.mxu0 %v5433
    %v5435 = vand.u32 %v1722, 4294901760
    %5436 = vmatmul.mubr.f32.gmra.mrb[0].mxu0 %v5435
    %v5437 = vpop.f32.mrb[0].mxu0
    %v5438 = vadd.f32 %v5334, %v5437
    %v5439 = vpop.f32.mrb[0].mxu0
    %5440 = vdwg.mxu0
    %5441 = vmatprep.subr.mxu0 0.0
    %v5442 = vand.u32 %v1861, 4294901760
    %5443 = vmatpush1.msra.mxu0 %v5442
    %5444 = vmatprep.subr.mxu0 0.0
    %v5445 = vand.u32 %v1862, 4294901760
    %5446 = vmatpush1.msra.mxu0 %v5445
    %5447 = vmatprep.subr.mxu0 0.0
    %v5448 = vand.u32 %v1863, 4294901760
    %5449 = vmatpush1.msra.mxu0 %v5448
    %5450 = vmatprep.subr.mxu0 0.0
    %v5451 = vand.u32 %v1864, 4294901760
    %5452 = vmatpush1.msra.mxu0 %v5451
    %5453 = vmatprep.subr.mxu0 0.0
    %v5454 = vand.u32 %v1865, 4294901760
    %5455 = vmatpush1.msra.mxu0 %v5454
    %5456 = vmatprep.subr.mxu0 0.0
    %v5457 = vand.u32 %v1866, 4294901760
    %5458 = vmatpush1.msra.mxu0 %v5457
    %5459 = vmatprep.subr.mxu0 0.0
    %v5460 = vand.u32 %v1867, 4294901760
    %5461 = vmatpush1.msra.mxu0 %v5460
    %5462 = vmatprep.subr.mxu0 0.0
    %v5463 = vand.u32 %v1868, 4294901760
    %5464 = vmatpush1.msra.mxu0 %v5463
    %5465 = vmatprep.subr.mxu0 0.0
    %v5466 = vand.u32 %v1869, 4294901760
    %5467 = vmatpush1.msra.mxu0 %v5466
    %5468 = vmatprep.subr.mxu0 0.0
    %v5469 = vand.u32 %v1870, 4294901760
    %5470 = vmatpush1.msra.mxu0 %v5469
    %5471 = vmatprep.subr.mxu0 0.0
    %v5472 = vand.u32 %v1871, 4294901760
    %5473 = vmatpush1.msra.mxu0 %v5472
    %5474 = vmatprep.subr.mxu0 0.0
    %v5475 = vand.u32 %v1872, 4294901760
    %5476 = vmatpush1.msra.mxu0 %v5475
    %5477 = vmatprep.subr.mxu0 0.0
    %v5478 = vand.u32 %v1873, 4294901760
    %5479 = vmatpush1.msra.mxu0 %v5478
    %5480 = vmatprep.subr.mxu0 0.0
    %v5481 = vand.u32 %v1874, 4294901760
    %5482 = vmatpush1.msra.mxu0 %v5481
    %5483 = vmatprep.subr.mxu0 0.0
    %v5484 = vand.u32 %v1875, 4294901760
    %5485 = vmatpush1.msra.mxu0 %v5484
    %5486 = vmatprep.subr.mxu0 0.0
    %v5487 = vand.u32 %v1876, 4294901760
    %5488 = vmatpush1.msra.mxu0 %v5487
    %5489 = vmatprep.subr.mxu0 0.0
    %v5490 = vand.u32 %v1877, 4294901760
    %5491 = vmatpush1.msra.mxu0 %v5490
    %5492 = vmatprep.subr.mxu0 0.0
    %v5493 = vand.u32 %v1878, 4294901760
    %5494 = vmatpush1.msra.mxu0 %v5493
    %5495 = vmatprep.subr.mxu0 0.0
    %v5496 = vand.u32 %v1879, 4294901760
    %5497 = vmatpush1.msra.mxu0 %v5496
    %5498 = vmatprep.subr.mxu0 0.0
    %v5499 = vand.u32 %v1880, 4294901760
    %5500 = vmatpush1.msra.mxu0 %v5499
    %5501 = vmatprep.subr.mxu0 0.0
    %v5502 = vand.u32 %v1881, 4294901760
    %5503 = vmatpush1.msra.mxu0 %v5502
    %5504 = vmatprep.subr.mxu0 0.0
    %v5505 = vand.u32 %v1882, 4294901760
    %5506 = vmatpush1.msra.mxu0 %v5505
    %5507 = vmatprep.subr.mxu0 0.0
    %v5508 = vand.u32 %v1883, 4294901760
    %5509 = vmatpush1.msra.mxu0 %v5508
    %5510 = vmatprep.subr.mxu0 0.0
    %v5511 = vand.u32 %v1884, 4294901760
    %5512 = vmatpush1.msra.mxu0 %v5511
    %5513 = vmatprep.subr.mxu0 0.0
    %v5514 = vand.u32 %v1885, 4294901760
    %5515 = vmatpush1.msra.mxu0 %v5514
    %5516 = vmatprep.subr.mxu0 0.0
    %v5517 = vand.u32 %v1886, 4294901760
    %5518 = vmatpush1.msra.mxu0 %v5517
    %5519 = vmatprep.subr.mxu0 0.0
    %v5520 = vand.u32 %v1887, 4294901760
    %5521 = vmatpush1.msra.mxu0 %v5520
    %5522 = vmatprep.subr.mxu0 0.0
    %v5523 = vand.u32 %v1888, 4294901760
    %5524 = vmatpush1.msra.mxu0 %v5523
    %5525 = vmatprep.subr.mxu0 0.0
    %v5526 = vand.u32 %v1889, 4294901760
    %5527 = vmatpush1.msra.mxu0 %v5526
    %5528 = vmatprep.subr.mxu0 0.0
    %v5529 = vand.u32 %v1890, 4294901760
    %5530 = vmatpush1.msra.mxu0 %v5529
    %5531 = vmatprep.subr.mxu0 0.0
    %v5532 = vand.u32 %v1891, 4294901760
    %5533 = vmatpush1.msra.mxu0 %v5532
    %5534 = vmatprep.subr.mxu0 0.0
    %v5535 = vand.u32 %v1892, 4294901760
    %5536 = vmatpush1.msra.mxu0 %v5535
    %v5537 = vand.u32 %v1725, 4294901760
    %v5538 = vsub.f32 %v1725, %v5537
    %v5539 = vand.u32 %v5538, 4294901760
    %v5540 = vsub.f32 %v5538, %v5539
    %v5541 = vand.u32 %v5540, 4294901760
    %5542 = vmatprep.mubr.f32.mxu0 %v5541
    %v5543 = vand.u32 %v1724, 4294901760
    %v5544 = vsub.f32 %v1724, %v5543
    %v5545 = vand.u32 %v5544, 4294901760
    %v5546 = vsub.f32 %v5544, %v5545
    %v5547 = vand.u32 %v5546, 4294901760
    %5548 = vmatmul.mubr.f32.gmra.mrb[0].mxu0 %v5547
    %v5549 = vpop.f32.mrb[0].mxu0
    %v5550 = vadd.f32 %v5438, %v5549
    %v5551 = vpop.f32.mrb[0].mxu0
    %5552 = vdwg.mxu0
    %5553 = vmatprep.subr.mxu0 0.0
    %v5554 = vand.u32 %v1861, 4294901760
    %v5555 = vsub.f32 %v1861, %v5554
    %v5556 = vand.u32 %v5555, 4294901760
    %v5557 = vsub.f32 %v5555, %v5556
    %v5558 = vand.u32 %v5557, 4294901760
    %5559 = vmatpush1.msra.mxu0 %v5558
    %5560 = vmatprep.subr.mxu0 0.0
    %v5561 = vand.u32 %v1862, 4294901760
    %v5562 = vsub.f32 %v1862, %v5561
    %v5563 = vand.u32 %v5562, 4294901760
    %v5564 = vsub.f32 %v5562, %v5563
    %v5565 = vand.u32 %v5564, 4294901760
    %5566 = vmatpush1.msra.mxu0 %v5565
    %5567 = vmatprep.subr.mxu0 0.0
    %v5568 = vand.u32 %v1863, 4294901760
    %v5569 = vsub.f32 %v1863, %v5568
    %v5570 = vand.u32 %v5569, 4294901760
    %v5571 = vsub.f32 %v5569, %v5570
    %v5572 = vand.u32 %v5571, 4294901760
    %5573 = vmatpush1.msra.mxu0 %v5572
    %5574 = vmatprep.subr.mxu0 0.0
    %v5575 = vand.u32 %v1864, 4294901760
    %v5576 = vsub.f32 %v1864, %v5575
    %v5577 = vand.u32 %v5576, 4294901760
    %v5578 = vsub.f32 %v5576, %v5577
    %v5579 = vand.u32 %v5578, 4294901760
    %5580 = vmatpush1.msra.mxu0 %v5579
    %5581 = vmatprep.subr.mxu0 0.0
    %v5582 = vand.u32 %v1865, 4294901760
    %v5583 = vsub.f32 %v1865, %v5582
    %v5584 = vand.u32 %v5583, 4294901760
    %v5585 = vsub.f32 %v5583, %v5584
    %v5586 = vand.u32 %v5585, 4294901760
    %5587 = vmatpush1.msra.mxu0 %v5586
    %5588 = vmatprep.subr.mxu0 0.0
    %v5589 = vand.u32 %v1866, 4294901760
    %v5590 = vsub.f32 %v1866, %v5589
    %v5591 = vand.u32 %v5590, 4294901760
    %v5592 = vsub.f32 %v5590, %v5591
    %v5593 = vand.u32 %v5592, 4294901760
    %5594 = vmatpush1.msra.mxu0 %v5593
    %5595 = vmatprep.subr.mxu0 0.0
    %v5596 = vand.u32 %v1867, 4294901760
    %v5597 = vsub.f32 %v1867, %v5596
    %v5598 = vand.u32 %v5597, 4294901760
    %v5599 = vsub.f32 %v5597, %v5598
    %v5600 = vand.u32 %v5599, 4294901760
    %5601 = vmatpush1.msra.mxu0 %v5600
    %5602 = vmatprep.subr.mxu0 0.0
    %v5603 = vand.u32 %v1868, 4294901760
    %v5604 = vsub.f32 %v1868, %v5603
    %v5605 = vand.u32 %v5604, 4294901760
    %v5606 = vsub.f32 %v5604, %v5605
    %v5607 = vand.u32 %v5606, 4294901760
    %5608 = vmatpush1.msra.mxu0 %v5607
    %5609 = vmatprep.subr.mxu0 0.0
    %v5610 = vand.u32 %v1869, 4294901760
    %v5611 = vsub.f32 %v1869, %v5610
    %v5612 = vand.u32 %v5611, 4294901760
    %v5613 = vsub.f32 %v5611, %v5612
    %v5614 = vand.u32 %v5613, 4294901760
    %5615 = vmatpush1.msra.mxu0 %v5614
    %5616 = vmatprep.subr.mxu0 0.0
    %v5617 = vand.u32 %v1870, 4294901760
    %v5618 = vsub.f32 %v1870, %v5617
    %v5619 = vand.u32 %v5618, 4294901760
    %v5620 = vsub.f32 %v5618, %v5619
    %v5621 = vand.u32 %v5620, 4294901760
    %5622 = vmatpush1.msra.mxu0 %v5621
    %5623 = vmatprep.subr.mxu0 0.0
    %v5624 = vand.u32 %v1871, 4294901760
    %v5625 = vsub.f32 %v1871, %v5624
    %v5626 = vand.u32 %v5625, 4294901760
    %v5627 = vsub.f32 %v5625, %v5626
    %v5628 = vand.u32 %v5627, 4294901760
    %5629 = vmatpush1.msra.mxu0 %v5628
    %5630 = vmatprep.subr.mxu0 0.0
    %v5631 = vand.u32 %v1872, 4294901760
    %v5632 = vsub.f32 %v1872, %v5631
    %v5633 = vand.u32 %v5632, 4294901760
    %v5634 = vsub.f32 %v5632, %v5633
    %v5635 = vand.u32 %v5634, 4294901760
    %5636 = vmatpush1.msra.mxu0 %v5635
    %5637 = vmatprep.subr.mxu0 0.0
    %v5638 = vand.u32 %v1873, 4294901760
    %v5639 = vsub.f32 %v1873, %v5638
    %v5640 = vand.u32 %v5639, 4294901760
    %v5641 = vsub.f32 %v5639, %v5640
    %v5642 = vand.u32 %v5641, 4294901760
    %5643 = vmatpush1.msra.mxu0 %v5642
    %5644 = vmatprep.subr.mxu0 0.0
    %v5645 = vand.u32 %v1874, 4294901760
    %v5646 = vsub.f32 %v1874, %v5645
    %v5647 = vand.u32 %v5646, 4294901760
    %v5648 = vsub.f32 %v5646, %v5647
    %v5649 = vand.u32 %v5648, 4294901760
    %5650 = vmatpush1.msra.mxu0 %v5649
    %5651 = vmatprep.subr.mxu0 0.0
    %v5652 = vand.u32 %v1875, 4294901760
    %v5653 = vsub.f32 %v1875, %v5652
    %v5654 = vand.u32 %v5653, 4294901760
    %v5655 = vsub.f32 %v5653, %v5654
    %v5656 = vand.u32 %v5655, 4294901760
    %5657 = vmatpush1.msra.mxu0 %v5656
    %5658 = vmatprep.subr.mxu0 0.0
    %v5659 = vand.u32 %v1876, 4294901760
    %v5660 = vsub.f32 %v1876, %v5659
    %v5661 = vand.u32 %v5660, 4294901760
    %v5662 = vsub.f32 %v5660, %v5661
    %v5663 = vand.u32 %v5662, 4294901760
    %5664 = vmatpush1.msra.mxu0 %v5663
    %5665 = vmatprep.subr.mxu0 0.0
    %v5666 = vand.u32 %v1877, 4294901760
    %v5667 = vsub.f32 %v1877, %v5666
    %v5668 = vand.u32 %v5667, 4294901760
    %v5669 = vsub.f32 %v5667, %v5668
    %v5670 = vand.u32 %v5669, 4294901760
    %5671 = vmatpush1.msra.mxu0 %v5670
    %5672 = vmatprep.subr.mxu0 0.0
    %v5673 = vand.u32 %v1878, 4294901760
    %v5674 = vsub.f32 %v1878, %v5673
    %v5675 = vand.u32 %v5674, 4294901760
    %v5676 = vsub.f32 %v5674, %v5675
    %v5677 = vand.u32 %v5676, 4294901760
    %5678 = vmatpush1.msra.mxu0 %v5677
    %5679 = vmatprep.subr.mxu0 0.0
    %v5680 = vand.u32 %v1879, 4294901760
    %v5681 = vsub.f32 %v1879, %v5680
    %v5682 = vand.u32 %v5681, 4294901760
    %v5683 = vsub.f32 %v5681, %v5682
    %v5684 = vand.u32 %v5683, 4294901760
    %5685 = vmatpush1.msra.mxu0 %v5684
    %5686 = vmatprep.subr.mxu0 0.0
    %v5687 = vand.u32 %v1880, 4294901760
    %v5688 = vsub.f32 %v1880, %v5687
    %v5689 = vand.u32 %v5688, 4294901760
    %v5690 = vsub.f32 %v5688, %v5689
    %v5691 = vand.u32 %v5690, 4294901760
    %5692 = vmatpush1.msra.mxu0 %v5691
    %5693 = vmatprep.subr.mxu0 0.0
    %v5694 = vand.u32 %v1881, 4294901760
    %v5695 = vsub.f32 %v1881, %v5694
    %v5696 = vand.u32 %v5695, 4294901760
    %v5697 = vsub.f32 %v5695, %v5696
    %v5698 = vand.u32 %v5697, 4294901760
    %5699 = vmatpush1.msra.mxu0 %v5698
    %5700 = vmatprep.subr.mxu0 0.0
    %v5701 = vand.u32 %v1882, 4294901760
    %v5702 = vsub.f32 %v1882, %v5701
    %v5703 = vand.u32 %v5702, 4294901760
    %v5704 = vsub.f32 %v5702, %v5703
    %v5705 = vand.u32 %v5704, 4294901760
    %5706 = vmatpush1.msra.mxu0 %v5705
    %5707 = vmatprep.subr.mxu0 0.0
    %v5708 = vand.u32 %v1883, 4294901760
    %v5709 = vsub.f32 %v1883, %v5708
    %v5710 = vand.u32 %v5709, 4294901760
    %v5711 = vsub.f32 %v5709, %v5710
    %v5712 = vand.u32 %v5711, 4294901760
    %5713 = vmatpush1.msra.mxu0 %v5712
    %5714 = vmatprep.subr.mxu0 0.0
    %v5715 = vand.u32 %v1884, 4294901760
    %v5716 = vsub.f32 %v1884, %v5715
    %v5717 = vand.u32 %v5716, 4294901760
    %v5718 = vsub.f32 %v5716, %v5717
    %v5719 = vand.u32 %v5718, 4294901760
    %5720 = vmatpush1.msra.mxu0 %v5719
    %5721 = vmatprep.subr.mxu0 0.0
    %v5722 = vand.u32 %v1885, 4294901760
    %v5723 = vsub.f32 %v1885, %v5722
    %v5724 = vand.u32 %v5723, 4294901760
    %v5725 = vsub.f32 %v5723, %v5724
    %v5726 = vand.u32 %v5725, 4294901760
    %5727 = vmatpush1.msra.mxu0 %v5726
    %5728 = vmatprep.subr.mxu0 0.0
    %v5729 = vand.u32 %v1886, 4294901760
    %v5730 = vsub.f32 %v1886, %v5729
    %v5731 = vand.u32 %v5730, 4294901760
    %v5732 = vsub.f32 %v5730, %v5731
    %v5733 = vand.u32 %v5732, 4294901760
    %5734 = vmatpush1.msra.mxu0 %v5733
    %5735 = vmatprep.subr.mxu0 0.0
    %v5736 = vand.u32 %v1887, 4294901760
    %v5737 = vsub.f32 %v1887, %v5736
    %v5738 = vand.u32 %v5737, 4294901760
    %v5739 = vsub.f32 %v5737, %v5738
    %v5740 = vand.u32 %v5739, 4294901760
    %5741 = vmatpush1.msra.mxu0 %v5740
    %5742 = vmatprep.subr.mxu0 0.0
    %v5743 = vand.u32 %v1888, 4294901760
    %v5744 = vsub.f32 %v1888, %v5743
    %v5745 = vand.u32 %v5744, 4294901760
    %v5746 = vsub.f32 %v5744, %v5745
    %v5747 = vand.u32 %v5746, 4294901760
    %5748 = vmatpush1.msra.mxu0 %v5747
    %5749 = vmatprep.subr.mxu0 0.0
    %v5750 = vand.u32 %v1889, 4294901760
    %v5751 = vsub.f32 %v1889, %v5750
    %v5752 = vand.u32 %v5751, 4294901760
    %v5753 = vsub.f32 %v5751, %v5752
    %v5754 = vand.u32 %v5753, 4294901760
    %5755 = vmatpush1.msra.mxu0 %v5754
    %5756 = vmatprep.subr.mxu0 0.0
    %v5757 = vand.u32 %v1890, 4294901760
    %v5758 = vsub.f32 %v1890, %v5757
    %v5759 = vand.u32 %v5758, 4294901760
    %v5760 = vsub.f32 %v5758, %v5759
    %v5761 = vand.u32 %v5760, 4294901760
    %5762 = vmatpush1.msra.mxu0 %v5761
    %5763 = vmatprep.subr.mxu0 0.0
    %v5764 = vand.u32 %v1891, 4294901760
    %v5765 = vsub.f32 %v1891, %v5764
    %v5766 = vand.u32 %v5765, 4294901760
    %v5767 = vsub.f32 %v5765, %v5766
    %v5768 = vand.u32 %v5767, 4294901760
    %5769 = vmatpush1.msra.mxu0 %v5768
    %5770 = vmatprep.subr.mxu0 0.0
    %v5771 = vand.u32 %v1892, 4294901760
    %v5772 = vsub.f32 %v1892, %v5771
    %v5773 = vand.u32 %v5772, 4294901760
    %v5774 = vsub.f32 %v5772, %v5773
    %v5775 = vand.u32 %v5774, 4294901760
    %5776 = vmatpush1.msra.mxu0 %v5775
    %v5777 = vand.u32 %v1725, 4294901760
    %5778 = vmatprep.mubr.f32.mxu0 %v5777
    %v5779 = vand.u32 %v1724, 4294901760
    %5780 = vmatmul.mubr.f32.gmra.mrb[0].mxu0 %v5779
    %v5781 = vpop.f32.mrb[0].mxu0
    %v5782 = vadd.f32 %v5550, %v5781
    %v5783 = vpop.f32.mrb[0].mxu0
    %5784 = vdwg.mxu0
    %5785 = vmatprep.subr.mxu0 0.0
    %v5786 = vand.u32 %v1861, 4294901760
    %v5787 = vsub.f32 %v1861, %v5786
    %5788 = vmatpush1.msra.mxu0 %v5787
    %5789 = vmatprep.subr.mxu0 0.0
    %v5790 = vand.u32 %v1862, 4294901760
    %v5791 = vsub.f32 %v1862, %v5790
    %5792 = vmatpush1.msra.mxu0 %v5791
    %5793 = vmatprep.subr.mxu0 0.0
    %v5794 = vand.u32 %v1863, 4294901760
    %v5795 = vsub.f32 %v1863, %v5794
    %5796 = vmatpush1.msra.mxu0 %v5795
    %5797 = vmatprep.subr.mxu0 0.0
    %v5798 = vand.u32 %v1864, 4294901760
    %v5799 = vsub.f32 %v1864, %v5798
    %5800 = vmatpush1.msra.mxu0 %v5799
    %5801 = vmatprep.subr.mxu0 0.0
    %v5802 = vand.u32 %v1865, 4294901760
    %v5803 = vsub.f32 %v1865, %v5802
    %5804 = vmatpush1.msra.mxu0 %v5803
    %5805 = vmatprep.subr.mxu0 0.0
    %v5806 = vand.u32 %v1866, 4294901760
    %v5807 = vsub.f32 %v1866, %v5806
    %5808 = vmatpush1.msra.mxu0 %v5807
    %5809 = vmatprep.subr.mxu0 0.0
    %v5810 = vand.u32 %v1867, 4294901760
    %v5811 = vsub.f32 %v1867, %v5810
    %5812 = vmatpush1.msra.mxu0 %v5811
    %5813 = vmatprep.subr.mxu0 0.0
    %v5814 = vand.u32 %v1868, 4294901760
    %v5815 = vsub.f32 %v1868, %v5814
    %5816 = vmatpush1.msra.mxu0 %v5815
    %5817 = vmatprep.subr.mxu0 0.0
    %v5818 = vand.u32 %v1869, 4294901760
    %v5819 = vsub.f32 %v1869, %v5818
    %5820 = vmatpush1.msra.mxu0 %v5819
    %5821 = vmatprep.subr.mxu0 0.0
    %v5822 = vand.u32 %v1870, 4294901760
    %v5823 = vsub.f32 %v1870, %v5822
    %5824 = vmatpush1.msra.mxu0 %v5823
    %5825 = vmatprep.subr.mxu0 0.0
    %v5826 = vand.u32 %v1871, 4294901760
    %v5827 = vsub.f32 %v1871, %v5826
    %5828 = vmatpush1.msra.mxu0 %v5827
    %5829 = vmatprep.subr.mxu0 0.0
    %v5830 = vand.u32 %v1872, 4294901760
    %v5831 = vsub.f32 %v1872, %v5830
    %5832 = vmatpush1.msra.mxu0 %v5831
    %5833 = vmatprep.subr.mxu0 0.0
    %v5834 = vand.u32 %v1873, 4294901760
    %v5835 = vsub.f32 %v1873, %v5834
    %5836 = vmatpush1.msra.mxu0 %v5835
    %5837 = vmatprep.subr.mxu0 0.0
    %v5838 = vand.u32 %v1874, 4294901760
    %v5839 = vsub.f32 %v1874, %v5838
    %5840 = vmatpush1.msra.mxu0 %v5839
    %5841 = vmatprep.subr.mxu0 0.0
    %v5842 = vand.u32 %v1875, 4294901760
    %v5843 = vsub.f32 %v1875, %v5842
    %5844 = vmatpush1.msra.mxu0 %v5843
    %5845 = vmatprep.subr.mxu0 0.0
    %v5846 = vand.u32 %v1876, 4294901760
    %v5847 = vsub.f32 %v1876, %v5846
    %5848 = vmatpush1.msra.mxu0 %v5847
    %5849 = vmatprep.subr.mxu0 0.0
    %v5850 = vand.u32 %v1877, 4294901760
    %v5851 = vsub.f32 %v1877, %v5850
    %5852 = vmatpush1.msra.mxu0 %v5851
    %5853 = vmatprep.subr.mxu0 0.0
    %v5854 = vand.u32 %v1878, 4294901760
    %v5855 = vsub.f32 %v1878, %v5854
    %5856 = vmatpush1.msra.mxu0 %v5855
    %5857 = vmatprep.subr.mxu0 0.0
    %v5858 = vand.u32 %v1879, 4294901760
    %v5859 = vsub.f32 %v1879, %v5858
    %5860 = vmatpush1.msra.mxu0 %v5859
    %5861 = vmatprep.subr.mxu0 0.0
    %v5862 = vand.u32 %v1880, 4294901760
    %v5863 = vsub.f32 %v1880, %v5862
    %5864 = vmatpush1.msra.mxu0 %v5863
    %5865 = vmatprep.subr.mxu0 0.0
    %v5866 = vand.u32 %v1881, 4294901760
    %v5867 = vsub.f32 %v1881, %v5866
    %5868 = vmatpush1.msra.mxu0 %v5867
    %5869 = vmatprep.subr.mxu0 0.0
    %v5870 = vand.u32 %v1882, 4294901760
    %v5871 = vsub.f32 %v1882, %v5870
    %5872 = vmatpush1.msra.mxu0 %v5871
    %5873 = vmatprep.subr.mxu0 0.0
    %v5874 = vand.u32 %v1883, 4294901760
    %v5875 = vsub.f32 %v1883, %v5874
    %5876 = vmatpush1.msra.mxu0 %v5875
    %5877 = vmatprep.subr.mxu0 0.0
    %v5878 = vand.u32 %v1884, 4294901760
    %v5879 = vsub.f32 %v1884, %v5878
    %5880 = vmatpush1.msra.mxu0 %v5879
    %5881 = vmatprep.subr.mxu0 0.0
    %v5882 = vand.u32 %v1885, 4294901760
    %v5883 = vsub.f32 %v1885, %v5882
    %5884 = vmatpush1.msra.mxu0 %v5883
    %5885 = vmatprep.subr.mxu0 0.0
    %v5886 = vand.u32 %v1886, 4294901760
    %v5887 = vsub.f32 %v1886, %v5886
    %5888 = vmatpush1.msra.mxu0 %v5887
    %5889 = vmatprep.subr.mxu0 0.0
    %v5890 = vand.u32 %v1887, 4294901760
    %v5891 = vsub.f32 %v1887, %v5890
    %5892 = vmatpush1.msra.mxu0 %v5891
    %5893 = vmatprep.subr.mxu0 0.0
    %v5894 = vand.u32 %v1888, 4294901760
    %v5895 = vsub.f32 %v1888, %v5894
    %5896 = vmatpush1.msra.mxu0 %v5895
    %5897 = vmatprep.subr.mxu0 0.0
    %v5898 = vand.u32 %v1889, 4294901760
    %v5899 = vsub.f32 %v1889, %v5898
    %5900 = vmatpush1.msra.mxu0 %v5899
    %5901 = vmatprep.subr.mxu0 0.0
    %v5902 = vand.u32 %v1890, 4294901760
    %v5903 = vsub.f32 %v1890, %v5902
    %5904 = vmatpush1.msra.mxu0 %v5903
    %5905 = vmatprep.subr.mxu0 0.0
    %v5906 = vand.u32 %v1891, 4294901760
    %v5907 = vsub.f32 %v1891, %v5906
    %5908 = vmatpush1.msra.mxu0 %v5907
    %5909 = vmatprep.subr.mxu0 0.0
    %v5910 = vand.u32 %v1892, 4294901760
    %v5911 = vsub.f32 %v1892, %v5910
    %5912 = vmatpush1.msra.mxu0 %v5911
    %v5913 = vand.u32 %v1725, 4294901760
    %v5914 = vsub.f32 %v1725, %v5913
    %5915 = vmatprep.mubr.f32.mxu0 %v5914
    %v5916 = vand.u32 %v1724, 4294901760
    %v5917 = vsub.f32 %v1724, %v5916
    %5918 = vmatmul.mubr.f32.gmra.mrb[0].mxu0 %v5917
    %v5919 = vpop.f32.mrb[0].mxu0
    %v5920 = vadd.f32 %v5782, %v5919
    %v5921 = vpop.f32.mrb[0].mxu0
    %5922 = vdwg.mxu0
    %5923 = vmatprep.subr.mxu0 0.0
    %v5924 = vand.u32 %v1861, 4294901760
    %5925 = vmatpush1.msra.mxu0 %v5924
    %5926 = vmatprep.subr.mxu0 0.0
    %v5927 = vand.u32 %v1862, 4294901760
    %5928 = vmatpush1.msra.mxu0 %v5927
    %5929 = vmatprep.subr.mxu0 0.0
    %v5930 = vand.u32 %v1863, 4294901760
    %5931 = vmatpush1.msra.mxu0 %v5930
    %5932 = vmatprep.subr.mxu0 0.0
    %v5933 = vand.u32 %v1864, 4294901760
    %5934 = vmatpush1.msra.mxu0 %v5933
    %5935 = vmatprep.subr.mxu0 0.0
    %v5936 = vand.u32 %v1865, 4294901760
    %5937 = vmatpush1.msra.mxu0 %v5936
    %5938 = vmatprep.subr.mxu0 0.0
    %v5939 = vand.u32 %v1866, 4294901760
    %5940 = vmatpush1.msra.mxu0 %v5939
    %5941 = vmatprep.subr.mxu0 0.0
    %v5942 = vand.u32 %v1867, 4294901760
    %5943 = vmatpush1.msra.mxu0 %v5942
    %5944 = vmatprep.subr.mxu0 0.0
    %v5945 = vand.u32 %v1868, 4294901760
    %5946 = vmatpush1.msra.mxu0 %v5945
    %5947 = vmatprep.subr.mxu0 0.0
    %v5948 = vand.u32 %v1869, 4294901760
    %5949 = vmatpush1.msra.mxu0 %v5948
    %5950 = vmatprep.subr.mxu0 0.0
    %v5951 = vand.u32 %v1870, 4294901760
    %5952 = vmatpush1.msra.mxu0 %v5951
    %5953 = vmatprep.subr.mxu0 0.0
    %v5954 = vand.u32 %v1871, 4294901760
    %5955 = vmatpush1.msra.mxu0 %v5954
    %5956 = vmatprep.subr.mxu0 0.0
    %v5957 = vand.u32 %v1872, 4294901760
    %5958 = vmatpush1.msra.mxu0 %v5957
    %5959 = vmatprep.subr.mxu0 0.0
    %v5960 = vand.u32 %v1873, 4294901760
    %5961 = vmatpush1.msra.mxu0 %v5960
    %5962 = vmatprep.subr.mxu0 0.0
    %v5963 = vand.u32 %v1874, 4294901760
    %5964 = vmatpush1.msra.mxu0 %v5963
    %5965 = vmatprep.subr.mxu0 0.0
    %v5966 = vand.u32 %v1875, 4294901760
    %5967 = vmatpush1.msra.mxu0 %v5966
    %5968 = vmatprep.subr.mxu0 0.0
    %v5969 = vand.u32 %v1876, 4294901760
    %5970 = vmatpush1.msra.mxu0 %v5969
    %5971 = vmatprep.subr.mxu0 0.0
    %v5972 = vand.u32 %v1877, 4294901760
    %5973 = vmatpush1.msra.mxu0 %v5972
    %5974 = vmatprep.subr.mxu0 0.0
    %v5975 = vand.u32 %v1878, 4294901760
    %5976 = vmatpush1.msra.mxu0 %v5975
    %5977 = vmatprep.subr.mxu0 0.0
    %v5978 = vand.u32 %v1879, 4294901760
    %5979 = vmatpush1.msra.mxu0 %v5978
    %5980 = vmatprep.subr.mxu0 0.0
    %v5981 = vand.u32 %v1880, 4294901760
    %5982 = vmatpush1.msra.mxu0 %v5981
    %5983 = vmatprep.subr.mxu0 0.0
    %v5984 = vand.u32 %v1881, 4294901760
    %5985 = vmatpush1.msra.mxu0 %v5984
    %5986 = vmatprep.subr.mxu0 0.0
    %v5987 = vand.u32 %v1882, 4294901760
    %5988 = vmatpush1.msra.mxu0 %v5987
    %5989 = vmatprep.subr.mxu0 0.0
    %v5990 = vand.u32 %v1883, 4294901760
    %5991 = vmatpush1.msra.mxu0 %v5990
    %5992 = vmatprep.subr.mxu0 0.0
    %v5993 = vand.u32 %v1884, 4294901760
    %5994 = vmatpush1.msra.mxu0 %v5993
    %5995 = vmatprep.subr.mxu0 0.0
    %v5996 = vand.u32 %v1885, 4294901760
    %5997 = vmatpush1.msra.mxu0 %v5996
    %5998 = vmatprep.subr.mxu0 0.0
    %v5999 = vand.u32 %v1886, 4294901760
    %6000 = vmatpush1.msra.mxu0 %v5999
    %6001 = vmatprep.subr.mxu0 0.0
    %v6002 = vand.u32 %v1887, 4294901760
    %6003 = vmatpush1.msra.mxu0 %v6002
    %6004 = vmatprep.subr.mxu0 0.0
    %v6005 = vand.u32 %v1888, 4294901760
    %6006 = vmatpush1.msra.mxu0 %v6005
    %6007 = vmatprep.subr.mxu0 0.0
    %v6008 = vand.u32 %v1889, 4294901760
    %6009 = vmatpush1.msra.mxu0 %v6008
    %6010 = vmatprep.subr.mxu0 0.0
    %v6011 = vand.u32 %v1890, 4294901760
    %6012 = vmatpush1.msra.mxu0 %v6011
    %6013 = vmatprep.subr.mxu0 0.0
    %v6014 = vand.u32 %v1891, 4294901760
    %6015 = vmatpush1.msra.mxu0 %v6014
    %6016 = vmatprep.subr.mxu0 0.0
    %v6017 = vand.u32 %v1892, 4294901760
    %6018 = vmatpush1.msra.mxu0 %v6017
    %v6019 = vand.u32 %v1725, 4294901760
    %v6020 = vsub.f32 %v1725, %v6019
    %v6021 = vand.u32 %v6020, 4294901760
    %6022 = vmatprep.mubr.f32.mxu0 %v6021
    %v6023 = vand.u32 %v1724, 4294901760
    %v6024 = vsub.f32 %v1724, %v6023
    %v6025 = vand.u32 %v6024, 4294901760
    %6026 = vmatmul.mubr.f32.gmra.mrb[0].mxu0 %v6025
    %v6027 = vpop.f32.mrb[0].mxu0
    %v6028 = vadd.f32 %v5920, %v6027
    %v6029 = vpop.f32.mrb[0].mxu0
    %6030 = vdwg.mxu0
    %6031 = vmatprep.subr.mxu0 0.0
    %v6032 = vand.u32 %v1861, 4294901760
    %v6033 = vsub.f32 %v1861, %v6032
    %v6034 = vand.u32 %v6033, 4294901760
    %6035 = vmatpush1.msra.mxu0 %v6034
    %6036 = vmatprep.subr.mxu0 0.0
    %v6037 = vand.u32 %v1862, 4294901760
    %v6038 = vsub.f32 %v1862, %v6037
    %v6039 = vand.u32 %v6038, 4294901760
    %6040 = vmatpush1.msra.mxu0 %v6039
    %6041 = vmatprep.subr.mxu0 0.0
    %v6042 = vand.u32 %v1863, 4294901760
    %v6043 = vsub.f32 %v1863, %v6042
    %v6044 = vand.u32 %v6043, 4294901760
    %6045 = vmatpush1.msra.mxu0 %v6044
    %6046 = vmatprep.subr.mxu0 0.0
    %v6047 = vand.u32 %v1864, 4294901760
    %v6048 = vsub.f32 %v1864, %v6047
    %v6049 = vand.u32 %v6048, 4294901760
    %6050 = vmatpush1.msra.mxu0 %v6049
    %6051 = vmatprep.subr.mxu0 0.0
    %v6052 = vand.u32 %v1865, 4294901760
    %v6053 = vsub.f32 %v1865, %v6052
    %v6054 = vand.u32 %v6053, 4294901760
    %6055 = vmatpush1.msra.mxu0 %v6054
    %6056 = vmatprep.subr.mxu0 0.0
    %v6057 = vand.u32 %v1866, 4294901760
    %v6058 = vsub.f32 %v1866, %v6057
    %v6059 = vand.u32 %v6058, 4294901760
    %6060 = vmatpush1.msra.mxu0 %v6059
    %6061 = vmatprep.subr.mxu0 0.0
    %v6062 = vand.u32 %v1867, 4294901760
    %v6063 = vsub.f32 %v1867, %v6062
    %v6064 = vand.u32 %v6063, 4294901760
    %6065 = vmatpush1.msra.mxu0 %v6064
    %6066 = vmatprep.subr.mxu0 0.0
    %v6067 = vand.u32 %v1868, 4294901760
    %v6068 = vsub.f32 %v1868, %v6067
    %v6069 = vand.u32 %v6068, 4294901760
    %6070 = vmatpush1.msra.mxu0 %v6069
    %6071 = vmatprep.subr.mxu0 0.0
    %v6072 = vand.u32 %v1869, 4294901760
    %v6073 = vsub.f32 %v1869, %v6072
    %v6074 = vand.u32 %v6073, 4294901760
    %6075 = vmatpush1.msra.mxu0 %v6074
    %6076 = vmatprep.subr.mxu0 0.0
    %v6077 = vand.u32 %v1870, 4294901760
    %v6078 = vsub.f32 %v1870, %v6077
    %v6079 = vand.u32 %v6078, 4294901760
    %6080 = vmatpush1.msra.mxu0 %v6079
    %6081 = vmatprep.subr.mxu0 0.0
    %v6082 = vand.u32 %v1871, 4294901760
    %v6083 = vsub.f32 %v1871, %v6082
    %v6084 = vand.u32 %v6083, 4294901760
    %6085 = vmatpush1.msra.mxu0 %v6084
    %6086 = vmatprep.subr.mxu0 0.0
    %v6087 = vand.u32 %v1872, 4294901760
    %v6088 = vsub.f32 %v1872, %v6087
    %v6089 = vand.u32 %v6088, 4294901760
    %6090 = vmatpush1.msra.mxu0 %v6089
    %6091 = vmatprep.subr.mxu0 0.0
    %v6092 = vand.u32 %v1873, 4294901760
    %v6093 = vsub.f32 %v1873, %v6092
    %v6094 = vand.u32 %v6093, 4294901760
    %6095 = vmatpush1.msra.mxu0 %v6094
    %6096 = vmatprep.subr.mxu0 0.0
    %v6097 = vand.u32 %v1874, 4294901760
    %v6098 = vsub.f32 %v1874, %v6097
    %v6099 = vand.u32 %v6098, 4294901760
    %6100 = vmatpush1.msra.mxu0 %v6099
    %6101 = vmatprep.subr.mxu0 0.0
    %v6102 = vand.u32 %v1875, 4294901760
    %v6103 = vsub.f32 %v1875, %v6102
    %v6104 = vand.u32 %v6103, 4294901760
    %6105 = vmatpush1.msra.mxu0 %v6104
    %6106 = vmatprep.subr.mxu0 0.0
    %v6107 = vand.u32 %v1876, 4294901760
    %v6108 = vsub.f32 %v1876, %v6107
    %v6109 = vand.u32 %v6108, 4294901760
    %6110 = vmatpush1.msra.mxu0 %v6109
    %6111 = vmatprep.subr.mxu0 0.0
    %v6112 = vand.u32 %v1877, 4294901760
    %v6113 = vsub.f32 %v1877, %v6112
    %v6114 = vand.u32 %v6113, 4294901760
    %6115 = vmatpush1.msra.mxu0 %v6114
    %6116 = vmatprep.subr.mxu0 0.0
    %v6117 = vand.u32 %v1878, 4294901760
    %v6118 = vsub.f32 %v1878, %v6117
    %v6119 = vand.u32 %v6118, 4294901760
    %6120 = vmatpush1.msra.mxu0 %v6119
    %6121 = vmatprep.subr.mxu0 0.0
    %v6122 = vand.u32 %v1879, 4294901760
    %v6123 = vsub.f32 %v1879, %v6122
    %v6124 = vand.u32 %v6123, 4294901760
    %6125 = vmatpush1.msra.mxu0 %v6124
    %6126 = vmatprep.subr.mxu0 0.0
    %v6127 = vand.u32 %v1880, 4294901760
    %v6128 = vsub.f32 %v1880, %v6127
    %v6129 = vand.u32 %v6128, 4294901760
    %6130 = vmatpush1.msra.mxu0 %v6129
    %6131 = vmatprep.subr.mxu0 0.0
    %v6132 = vand.u32 %v1881, 4294901760
    %v6133 = vsub.f32 %v1881, %v6132
    %v6134 = vand.u32 %v6133, 4294901760
    %6135 = vmatpush1.msra.mxu0 %v6134
    %6136 = vmatprep.subr.mxu0 0.0
    %v6137 = vand.u32 %v1882, 4294901760
    %v6138 = vsub.f32 %v1882, %v6137
    %v6139 = vand.u32 %v6138, 4294901760
    %6140 = vmatpush1.msra.mxu0 %v6139
    %6141 = vmatprep.subr.mxu0 0.0
    %v6142 = vand.u32 %v1883, 4294901760
    %v6143 = vsub.f32 %v1883, %v6142
    %v6144 = vand.u32 %v6143, 4294901760
    %6145 = vmatpush1.msra.mxu0 %v6144
    %6146 = vmatprep.subr.mxu0 0.0
    %v6147 = vand.u32 %v1884, 4294901760
    %v6148 = vsub.f32 %v1884, %v6147
    %v6149 = vand.u32 %v6148, 4294901760
    %6150 = vmatpush1.msra.mxu0 %v6149
    %6151 = vmatprep.subr.mxu0 0.0
    %v6152 = vand.u32 %v1885, 4294901760
    %v6153 = vsub.f32 %v1885, %v6152
    %v6154 = vand.u32 %v6153, 4294901760
    %6155 = vmatpush1.msra.mxu0 %v6154
    %6156 = vmatprep.subr.mxu0 0.0
    %v6157 = vand.u32 %v1886, 4294901760
    %v6158 = vsub.f32 %v1886, %v6157
    %v6159 = vand.u32 %v6158, 4294901760
    %6160 = vmatpush1.msra.mxu0 %v6159
    %6161 = vmatprep.subr.mxu0 0.0
    %v6162 = vand.u32 %v1887, 4294901760
    %v6163 = vsub.f32 %v1887, %v6162
    %v6164 = vand.u32 %v6163, 4294901760
    %6165 = vmatpush1.msra.mxu0 %v6164
    %6166 = vmatprep.subr.mxu0 0.0
    %v6167 = vand.u32 %v1888, 4294901760
    %v6168 = vsub.f32 %v1888, %v6167
    %v6169 = vand.u32 %v6168, 4294901760
    %6170 = vmatpush1.msra.mxu0 %v6169
    %6171 = vmatprep.subr.mxu0 0.0
    %v6172 = vand.u32 %v1889, 4294901760
    %v6173 = vsub.f32 %v1889, %v6172
    %v6174 = vand.u32 %v6173, 4294901760
    %6175 = vmatpush1.msra.mxu0 %v6174
    %6176 = vmatprep.subr.mxu0 0.0
    %v6177 = vand.u32 %v1890, 4294901760
    %v6178 = vsub.f32 %v1890, %v6177
    %v6179 = vand.u32 %v6178, 4294901760
    %6180 = vmatpush1.msra.mxu0 %v6179
    %6181 = vmatprep.subr.mxu0 0.0
    %v6182 = vand.u32 %v1891, 4294901760
    %v6183 = vsub.f32 %v1891, %v6182
    %v6184 = vand.u32 %v6183, 4294901760
    %6185 = vmatpush1.msra.mxu0 %v6184
    %6186 = vmatprep.subr.mxu0 0.0
    %v6187 = vand.u32 %v1892, 4294901760
    %v6188 = vsub.f32 %v1892, %v6187
    %v6189 = vand.u32 %v6188, 4294901760
    %6190 = vmatpush1.msra.mxu0 %v6189
    %v6191 = vand.u32 %v1725, 4294901760
    %6192 = vmatprep.mubr.f32.mxu0 %v6191
    %v6193 = vand.u32 %v1724, 4294901760
    %6194 = vmatmul.mubr.f32.gmra.mrb[0].mxu0 %v6193
    %v6195 = vpop.f32.mrb[0].mxu0
    %v6196 = vadd.f32 %v6028, %v6195
    %v6197 = vpop.f32.mrb[0].mxu0
    %6198 = vdwg.mxu0
    %6199 = vmatprep.subr.mxu0 0.0
    %v6200 = vand.u32 %v1861, 4294901760
    %6201 = vmatpush1.msra.mxu0 %v6200
    %6202 = vmatprep.subr.mxu0 0.0
    %v6203 = vand.u32 %v1862, 4294901760
    %6204 = vmatpush1.msra.mxu0 %v6203
    %6205 = vmatprep.subr.mxu0 0.0
    %v6206 = vand.u32 %v1863, 4294901760
    %6207 = vmatpush1.msra.mxu0 %v6206
    %6208 = vmatprep.subr.mxu0 0.0
    %v6209 = vand.u32 %v1864, 4294901760
    %6210 = vmatpush1.msra.mxu0 %v6209
    %6211 = vmatprep.subr.mxu0 0.0
    %v6212 = vand.u32 %v1865, 4294901760
    %6213 = vmatpush1.msra.mxu0 %v6212
    %6214 = vmatprep.subr.mxu0 0.0
    %v6215 = vand.u32 %v1866, 4294901760
    %6216 = vmatpush1.msra.mxu0 %v6215
    %6217 = vmatprep.subr.mxu0 0.0
    %v6218 = vand.u32 %v1867, 4294901760
    %6219 = vmatpush1.msra.mxu0 %v6218
    %6220 = vmatprep.subr.mxu0 0.0
    %v6221 = vand.u32 %v1868, 4294901760
    %6222 = vmatpush1.msra.mxu0 %v6221
    %6223 = vmatprep.subr.mxu0 0.0
    %v6224 = vand.u32 %v1869, 4294901760
    %6225 = vmatpush1.msra.mxu0 %v6224
    %6226 = vmatprep.subr.mxu0 0.0
    %v6227 = vand.u32 %v1870, 4294901760
    %6228 = vmatpush1.msra.mxu0 %v6227
    %6229 = vmatprep.subr.mxu0 0.0
    %v6230 = vand.u32 %v1871, 4294901760
    %6231 = vmatpush1.msra.mxu0 %v6230
    %6232 = vmatprep.subr.mxu0 0.0
    %v6233 = vand.u32 %v1872, 4294901760
    %6234 = vmatpush1.msra.mxu0 %v6233
    %6235 = vmatprep.subr.mxu0 0.0
    %v6236 = vand.u32 %v1873, 4294901760
    %6237 = vmatpush1.msra.mxu0 %v6236
    %6238 = vmatprep.subr.mxu0 0.0
    %v6239 = vand.u32 %v1874, 4294901760
    %6240 = vmatpush1.msra.mxu0 %v6239
    %6241 = vmatprep.subr.mxu0 0.0
    %v6242 = vand.u32 %v1875, 4294901760
    %6243 = vmatpush1.msra.mxu0 %v6242
    %6244 = vmatprep.subr.mxu0 0.0
    %v6245 = vand.u32 %v1876, 4294901760
    %6246 = vmatpush1.msra.mxu0 %v6245
    %6247 = vmatprep.subr.mxu0 0.0
    %v6248 = vand.u32 %v1877, 4294901760
    %6249 = vmatpush1.msra.mxu0 %v6248
    %6250 = vmatprep.subr.mxu0 0.0
    %v6251 = vand.u32 %v1878, 4294901760
    %6252 = vmatpush1.msra.mxu0 %v6251
    %6253 = vmatprep.subr.mxu0 0.0
    %v6254 = vand.u32 %v1879, 4294901760
    %6255 = vmatpush1.msra.mxu0 %v6254
    %6256 = vmatprep.subr.mxu0 0.0
    %v6257 = vand.u32 %v1880, 4294901760
    %6258 = vmatpush1.msra.mxu0 %v6257
    %6259 = vmatprep.subr.mxu0 0.0
    %v6260 = vand.u32 %v1881, 4294901760
    %6261 = vmatpush1.msra.mxu0 %v6260
    %6262 = vmatprep.subr.mxu0 0.0
    %v6263 = vand.u32 %v1882, 4294901760
    %6264 = vmatpush1.msra.mxu0 %v6263
    %6265 = vmatprep.subr.mxu0 0.0
    %v6266 = vand.u32 %v1883, 4294901760
    %6267 = vmatpush1.msra.mxu0 %v6266
    %6268 = vmatprep.subr.mxu0 0.0
    %v6269 = vand.u32 %v1884, 4294901760
    %6270 = vmatpush1.msra.mxu0 %v6269
    %6271 = vmatprep.subr.mxu0 0.0
    %v6272 = vand.u32 %v1885, 4294901760
    %6273 = vmatpush1.msra.mxu0 %v6272
    %6274 = vmatprep.subr.mxu0 0.0
    %v6275 = vand.u32 %v1886, 4294901760
    %6276 = vmatpush1.msra.mxu0 %v6275
    %6277 = vmatprep.subr.mxu0 0.0
    %v6278 = vand.u32 %v1887, 4294901760
    %6279 = vmatpush1.msra.mxu0 %v6278
    %6280 = vmatprep.subr.mxu0 0.0
    %v6281 = vand.u32 %v1888, 4294901760
    %6282 = vmatpush1.msra.mxu0 %v6281
    %6283 = vmatprep.subr.mxu0 0.0
    %v6284 = vand.u32 %v1889, 4294901760
    %6285 = vmatpush1.msra.mxu0 %v6284
    %6286 = vmatprep.subr.mxu0 0.0
    %v6287 = vand.u32 %v1890, 4294901760
    %6288 = vmatpush1.msra.mxu0 %v6287
    %6289 = vmatprep.subr.mxu0 0.0
    %v6290 = vand.u32 %v1891, 4294901760
    %6291 = vmatpush1.msra.mxu0 %v6290
    %6292 = vmatprep.subr.mxu0 0.0
    %v6293 = vand.u32 %v1892, 4294901760
    %6294 = vmatpush1.msra.mxu0 %v6293
    %v6295 = vand.u32 %v1725, 4294901760
    %6296 = vmatprep.mubr.f32.mxu0 %v6295
    %v6297 = vand.u32 %v1724, 4294901760
    %6298 = vmatmul.mubr.f32.gmra.mrb[0].mxu0 %v6297
    %v6299 = vpop.f32.mrb[0].mxu0
    %v6300 = vadd.f32 %v6196, %v6299
    %v6301 = vpop.f32.mrb[0].mxu0
    %6302 = vdwg.mxu0
    %6303 = vmatprep.subr.mxu0 0.0
    %v6304 = vand.u32 %v1893, 4294901760
    %6305 = vmatpush1.msra.mxu0 %v6304
    %6306 = vmatprep.subr.mxu0 0.0
    %v6307 = vand.u32 %v1894, 4294901760
    %6308 = vmatpush1.msra.mxu0 %v6307
    %6309 = vmatprep.subr.mxu0 0.0
    %v6310 = vand.u32 %v1895, 4294901760
    %6311 = vmatpush1.msra.mxu0 %v6310
    %6312 = vmatprep.subr.mxu0 0.0
    %v6313 = vand.u32 %v1896, 4294901760
    %6314 = vmatpush1.msra.mxu0 %v6313
    %6315 = vmatprep.subr.mxu0 0.0
    %v6316 = vand.u32 %v1897, 4294901760
    %6317 = vmatpush1.msra.mxu0 %v6316
    %6318 = vmatprep.subr.mxu0 0.0
    %v6319 = vand.u32 %v1898, 4294901760
    %6320 = vmatpush1.msra.mxu0 %v6319
    %6321 = vmatprep.subr.mxu0 0.0
    %v6322 = vand.u32 %v1899, 4294901760
    %6323 = vmatpush1.msra.mxu0 %v6322
    %6324 = vmatprep.subr.mxu0 0.0
    %v6325 = vand.u32 %v1900, 4294901760
    %6326 = vmatpush1.msra.mxu0 %v6325
    %6327 = vmatprep.subr.mxu0 0.0
    %v6328 = vand.u32 %v1901, 4294901760
    %6329 = vmatpush1.msra.mxu0 %v6328
    %6330 = vmatprep.subr.mxu0 0.0
    %v6331 = vand.u32 %v1902, 4294901760
    %6332 = vmatpush1.msra.mxu0 %v6331
    %6333 = vmatprep.subr.mxu0 0.0
    %v6334 = vand.u32 %v1903, 4294901760
    %6335 = vmatpush1.msra.mxu0 %v6334
    %6336 = vmatprep.subr.mxu0 0.0
    %v6337 = vand.u32 %v1904, 4294901760
    %6338 = vmatpush1.msra.mxu0 %v6337
    %6339 = vmatprep.subr.mxu0 0.0
    %v6340 = vand.u32 %v1905, 4294901760
    %6341 = vmatpush1.msra.mxu0 %v6340
    %6342 = vmatprep.subr.mxu0 0.0
    %v6343 = vand.u32 %v1906, 4294901760
    %6344 = vmatpush1.msra.mxu0 %v6343
    %6345 = vmatprep.subr.mxu0 0.0
    %v6346 = vand.u32 %v1907, 4294901760
    %6347 = vmatpush1.msra.mxu0 %v6346
    %6348 = vmatprep.subr.mxu0 0.0
    %v6349 = vand.u32 %v1908, 4294901760
    %6350 = vmatpush1.msra.mxu0 %v6349
    %6351 = vmatprep.subr.mxu0 0.0
    %v6352 = vand.u32 %v1909, 4294901760
    %6353 = vmatpush1.msra.mxu0 %v6352
    %6354 = vmatprep.subr.mxu0 0.0
    %v6355 = vand.u32 %v1910, 4294901760
    %6356 = vmatpush1.msra.mxu0 %v6355
    %6357 = vmatprep.subr.mxu0 0.0
    %v6358 = vand.u32 %v1911, 4294901760
    %6359 = vmatpush1.msra.mxu0 %v6358
    %6360 = vmatprep.subr.mxu0 0.0
    %v6361 = vand.u32 %v1912, 4294901760
    %6362 = vmatpush1.msra.mxu0 %v6361
    %6363 = vmatprep.subr.mxu0 0.0
    %v6364 = vand.u32 %v1913, 4294901760
    %6365 = vmatpush1.msra.mxu0 %v6364
    %6366 = vmatprep.subr.mxu0 0.0
    %v6367 = vand.u32 %v1914, 4294901760
    %6368 = vmatpush1.msra.mxu0 %v6367
    %6369 = vmatprep.subr.mxu0 0.0
    %v6370 = vand.u32 %v1915, 4294901760
    %6371 = vmatpush1.msra.mxu0 %v6370
    %6372 = vmatprep.subr.mxu0 0.0
    %v6373 = vand.u32 %v1916, 4294901760
    %6374 = vmatpush1.msra.mxu0 %v6373
    %6375 = vmatprep.subr.mxu0 0.0
    %v6376 = vand.u32 %v1917, 4294901760
    %6377 = vmatpush1.msra.mxu0 %v6376
    %6378 = vmatprep.subr.mxu0 0.0
    %v6379 = vand.u32 %v1918, 4294901760
    %6380 = vmatpush1.msra.mxu0 %v6379
    %6381 = vmatprep.subr.mxu0 0.0
    %v6382 = vand.u32 %v1919, 4294901760
    %6383 = vmatpush1.msra.mxu0 %v6382
    %6384 = vmatprep.subr.mxu0 0.0
    %v6385 = vand.u32 %v1920, 4294901760
    %6386 = vmatpush1.msra.mxu0 %v6385
    %6387 = vmatprep.subr.mxu0 0.0
    %v6388 = vand.u32 %v1921, 4294901760
    %6389 = vmatpush1.msra.mxu0 %v6388
    %6390 = vmatprep.subr.mxu0 0.0
    %v6391 = vand.u32 %v1922, 4294901760
    %6392 = vmatpush1.msra.mxu0 %v6391
    %6393 = vmatprep.subr.mxu0 0.0
    %v6394 = vand.u32 %v1923, 4294901760
    %6395 = vmatpush1.msra.mxu0 %v6394
    %6396 = vmatprep.subr.mxu0 0.0
    %v6397 = vand.u32 %v1924, 4294901760
    %6398 = vmatpush1.msra.mxu0 %v6397
    %v6399 = vand.u32 %v1727, 4294901760
    %v6400 = vsub.f32 %v1727, %v6399
    %v6401 = vand.u32 %v6400, 4294901760
    %v6402 = vsub.f32 %v6400, %v6401
    %v6403 = vand.u32 %v6402, 4294901760
    %6404 = vmatprep.mubr.f32.mxu0 %v6403
    %v6405 = vand.u32 %v1726, 4294901760
    %v6406 = vsub.f32 %v1726, %v6405
    %v6407 = vand.u32 %v6406, 4294901760
    %v6408 = vsub.f32 %v6406, %v6407
    %v6409 = vand.u32 %v6408, 4294901760
    %6410 = vmatmul.mubr.f32.gmra.mrb[0].mxu0 %v6409
    %v6411 = vpop.f32.mrb[0].mxu0
    %v6412 = vadd.f32 %v6300, %v6411
    %v6413 = vpop.f32.mrb[0].mxu0
    %6414 = vdwg.mxu0
    %6415 = vmatprep.subr.mxu0 0.0
    %v6416 = vand.u32 %v1893, 4294901760
    %v6417 = vsub.f32 %v1893, %v6416
    %v6418 = vand.u32 %v6417, 4294901760
    %v6419 = vsub.f32 %v6417, %v6418
    %v6420 = vand.u32 %v6419, 4294901760
    %6421 = vmatpush1.msra.mxu0 %v6420
    %6422 = vmatprep.subr.mxu0 0.0
    %v6423 = vand.u32 %v1894, 4294901760
    %v6424 = vsub.f32 %v1894, %v6423
    %v6425 = vand.u32 %v6424, 4294901760
    %v6426 = vsub.f32 %v6424, %v6425
    %v6427 = vand.u32 %v6426, 4294901760
    %6428 = vmatpush1.msra.mxu0 %v6427
    %6429 = vmatprep.subr.mxu0 0.0
    %v6430 = vand.u32 %v1895, 4294901760
    %v6431 = vsub.f32 %v1895, %v6430
    %v6432 = vand.u32 %v6431, 4294901760
    %v6433 = vsub.f32 %v6431, %v6432
    %v6434 = vand.u32 %v6433, 4294901760
    %6435 = vmatpush1.msra.mxu0 %v6434
    %6436 = vmatprep.subr.mxu0 0.0
    %v6437 = vand.u32 %v1896, 4294901760
    %v6438 = vsub.f32 %v1896, %v6437
    %v6439 = vand.u32 %v6438, 4294901760
    %v6440 = vsub.f32 %v6438, %v6439
    %v6441 = vand.u32 %v6440, 4294901760
    %6442 = vmatpush1.msra.mxu0 %v6441
    %6443 = vmatprep.subr.mxu0 0.0
    %v6444 = vand.u32 %v1897, 4294901760
    %v6445 = vsub.f32 %v1897, %v6444
    %v6446 = vand.u32 %v6445, 4294901760
    %v6447 = vsub.f32 %v6445, %v6446
    %v6448 = vand.u32 %v6447, 4294901760
    %6449 = vmatpush1.msra.mxu0 %v6448
    %6450 = vmatprep.subr.mxu0 0.0
    %v6451 = vand.u32 %v1898, 4294901760
    %v6452 = vsub.f32 %v1898, %v6451
    %v6453 = vand.u32 %v6452, 4294901760
    %v6454 = vsub.f32 %v6452, %v6453
    %v6455 = vand.u32 %v6454, 4294901760
    %6456 = vmatpush1.msra.mxu0 %v6455
    %6457 = vmatprep.subr.mxu0 0.0
    %v6458 = vand.u32 %v1899, 4294901760
    %v6459 = vsub.f32 %v1899, %v6458
    %v6460 = vand.u32 %v6459, 4294901760
    %v6461 = vsub.f32 %v6459, %v6460
    %v6462 = vand.u32 %v6461, 4294901760
    %6463 = vmatpush1.msra.mxu0 %v6462
    %6464 = vmatprep.subr.mxu0 0.0
    %v6465 = vand.u32 %v1900, 4294901760
    %v6466 = vsub.f32 %v1900, %v6465
    %v6467 = vand.u32 %v6466, 4294901760
    %v6468 = vsub.f32 %v6466, %v6467
    %v6469 = vand.u32 %v6468, 4294901760
    %6470 = vmatpush1.msra.mxu0 %v6469
    %6471 = vmatprep.subr.mxu0 0.0
    %v6472 = vand.u32 %v1901, 4294901760
    %v6473 = vsub.f32 %v1901, %v6472
    %v6474 = vand.u32 %v6473, 4294901760
    %v6475 = vsub.f32 %v6473, %v6474
    %v6476 = vand.u32 %v6475, 4294901760
    %6477 = vmatpush1.msra.mxu0 %v6476
    %6478 = vmatprep.subr.mxu0 0.0
    %v6479 = vand.u32 %v1902, 4294901760
    %v6480 = vsub.f32 %v1902, %v6479
    %v6481 = vand.u32 %v6480, 4294901760
    %v6482 = vsub.f32 %v6480, %v6481
    %v6483 = vand.u32 %v6482, 4294901760
    %6484 = vmatpush1.msra.mxu0 %v6483
    %6485 = vmatprep.subr.mxu0 0.0
    %v6486 = vand.u32 %v1903, 4294901760
    %v6487 = vsub.f32 %v1903, %v6486
    %v6488 = vand.u32 %v6487, 4294901760
    %v6489 = vsub.f32 %v6487, %v6488
    %v6490 = vand.u32 %v6489, 4294901760
    %6491 = vmatpush1.msra.mxu0 %v6490
    %6492 = vmatprep.subr.mxu0 0.0
    %v6493 = vand.u32 %v1904, 4294901760
    %v6494 = vsub.f32 %v1904, %v6493
    %v6495 = vand.u32 %v6494, 4294901760
    %v6496 = vsub.f32 %v6494, %v6495
    %v6497 = vand.u32 %v6496, 4294901760
    %6498 = vmatpush1.msra.mxu0 %v6497
    %6499 = vmatprep.subr.mxu0 0.0
    %v6500 = vand.u32 %v1905, 4294901760
    %v6501 = vsub.f32 %v1905, %v6500
    %v6502 = vand.u32 %v6501, 4294901760
    %v6503 = vsub.f32 %v6501, %v6502
    %v6504 = vand.u32 %v6503, 4294901760
    %6505 = vmatpush1.msra.mxu0 %v6504
    %6506 = vmatprep.subr.mxu0 0.0
    %v6507 = vand.u32 %v1906, 4294901760
    %v6508 = vsub.f32 %v1906, %v6507
    %v6509 = vand.u32 %v6508, 4294901760
    %v6510 = vsub.f32 %v6508, %v6509
    %v6511 = vand.u32 %v6510, 4294901760
    %6512 = vmatpush1.msra.mxu0 %v6511
    %6513 = vmatprep.subr.mxu0 0.0
    %v6514 = vand.u32 %v1907, 4294901760
    %v6515 = vsub.f32 %v1907, %v6514
    %v6516 = vand.u32 %v6515, 4294901760
    %v6517 = vsub.f32 %v6515, %v6516
    %v6518 = vand.u32 %v6517, 4294901760
    %6519 = vmatpush1.msra.mxu0 %v6518
    %6520 = vmatprep.subr.mxu0 0.0
    %v6521 = vand.u32 %v1908, 4294901760
    %v6522 = vsub.f32 %v1908, %v6521
    %v6523 = vand.u32 %v6522, 4294901760
    %v6524 = vsub.f32 %v6522, %v6523
    %v6525 = vand.u32 %v6524, 4294901760
    %6526 = vmatpush1.msra.mxu0 %v6525
    %6527 = vmatprep.subr.mxu0 0.0
    %v6528 = vand.u32 %v1909, 4294901760
    %v6529 = vsub.f32 %v1909, %v6528
    %v6530 = vand.u32 %v6529, 4294901760
    %v6531 = vsub.f32 %v6529, %v6530
    %v6532 = vand.u32 %v6531, 4294901760
    %6533 = vmatpush1.msra.mxu0 %v6532
    %6534 = vmatprep.subr.mxu0 0.0
    %v6535 = vand.u32 %v1910, 4294901760
    %v6536 = vsub.f32 %v1910, %v6535
    %v6537 = vand.u32 %v6536, 4294901760
    %v6538 = vsub.f32 %v6536, %v6537
    %v6539 = vand.u32 %v6538, 4294901760
    %6540 = vmatpush1.msra.mxu0 %v6539
    %6541 = vmatprep.subr.mxu0 0.0
    %v6542 = vand.u32 %v1911, 4294901760
    %v6543 = vsub.f32 %v1911, %v6542
    %v6544 = vand.u32 %v6543, 4294901760
    %v6545 = vsub.f32 %v6543, %v6544
    %v6546 = vand.u32 %v6545, 4294901760
    %6547 = vmatpush1.msra.mxu0 %v6546
    %6548 = vmatprep.subr.mxu0 0.0
    %v6549 = vand.u32 %v1912, 4294901760
    %v6550 = vsub.f32 %v1912, %v6549
    %v6551 = vand.u32 %v6550, 4294901760
    %v6552 = vsub.f32 %v6550, %v6551
    %v6553 = vand.u32 %v6552, 4294901760
    %6554 = vmatpush1.msra.mxu0 %v6553
    %6555 = vmatprep.subr.mxu0 0.0
    %v6556 = vand.u32 %v1913, 4294901760
    %v6557 = vsub.f32 %v1913, %v6556
    %v6558 = vand.u32 %v6557, 4294901760
    %v6559 = vsub.f32 %v6557, %v6558
    %v6560 = vand.u32 %v6559, 4294901760
    %6561 = vmatpush1.msra.mxu0 %v6560
    %6562 = vmatprep.subr.mxu0 0.0
    %v6563 = vand.u32 %v1914, 4294901760
    %v6564 = vsub.f32 %v1914, %v6563
    %v6565 = vand.u32 %v6564, 4294901760
    %v6566 = vsub.f32 %v6564, %v6565
    %v6567 = vand.u32 %v6566, 4294901760
    %6568 = vmatpush1.msra.mxu0 %v6567
    %6569 = vmatprep.subr.mxu0 0.0
    %v6570 = vand.u32 %v1915, 4294901760
    %v6571 = vsub.f32 %v1915, %v6570
    %v6572 = vand.u32 %v6571, 4294901760
    %v6573 = vsub.f32 %v6571, %v6572
    %v6574 = vand.u32 %v6573, 4294901760
    %6575 = vmatpush1.msra.mxu0 %v6574
    %6576 = vmatprep.subr.mxu0 0.0
    %v6577 = vand.u32 %v1916, 4294901760
    %v6578 = vsub.f32 %v1916, %v6577
    %v6579 = vand.u32 %v6578, 4294901760
    %v6580 = vsub.f32 %v6578, %v6579
    %v6581 = vand.u32 %v6580, 4294901760
    %6582 = vmatpush1.msra.mxu0 %v6581
    %6583 = vmatprep.subr.mxu0 0.0
    %v6584 = vand.u32 %v1917, 4294901760
    %v6585 = vsub.f32 %v1917, %v6584
    %v6586 = vand.u32 %v6585, 4294901760
    %v6587 = vsub.f32 %v6585, %v6586
    %v6588 = vand.u32 %v6587, 4294901760
    %6589 = vmatpush1.msra.mxu0 %v6588
    %6590 = vmatprep.subr.mxu0 0.0
    %v6591 = vand.u32 %v1918, 4294901760
    %v6592 = vsub.f32 %v1918, %v6591
    %v6593 = vand.u32 %v6592, 4294901760
    %v6594 = vsub.f32 %v6592, %v6593
    %v6595 = vand.u32 %v6594, 4294901760
    %6596 = vmatpush1.msra.mxu0 %v6595
    %6597 = vmatprep.subr.mxu0 0.0
    %v6598 = vand.u32 %v1919, 4294901760
    %v6599 = vsub.f32 %v1919, %v6598
    %v6600 = vand.u32 %v6599, 4294901760
    %v6601 = vsub.f32 %v6599, %v6600
    %v6602 = vand.u32 %v6601, 4294901760
    %6603 = vmatpush1.msra.mxu0 %v6602
    %6604 = vmatprep.subr.mxu0 0.0
    %v6605 = vand.u32 %v1920, 4294901760
    %v6606 = vsub.f32 %v1920, %v6605
    %v6607 = vand.u32 %v6606, 4294901760
    %v6608 = vsub.f32 %v6606, %v6607
    %v6609 = vand.u32 %v6608, 4294901760
    %6610 = vmatpush1.msra.mxu0 %v6609
    %6611 = vmatprep.subr.mxu0 0.0
    %v6612 = vand.u32 %v1921, 4294901760
    %v6613 = vsub.f32 %v1921, %v6612
    %v6614 = vand.u32 %v6613, 4294901760
    %v6615 = vsub.f32 %v6613, %v6614
    %v6616 = vand.u32 %v6615, 4294901760
    %6617 = vmatpush1.msra.mxu0 %v6616
    %6618 = vmatprep.subr.mxu0 0.0
    %v6619 = vand.u32 %v1922, 4294901760
    %v6620 = vsub.f32 %v1922, %v6619
    %v6621 = vand.u32 %v6620, 4294901760
    %v6622 = vsub.f32 %v6620, %v6621
    %v6623 = vand.u32 %v6622, 4294901760
    %6624 = vmatpush1.msra.mxu0 %v6623
    %6625 = vmatprep.subr.mxu0 0.0
    %v6626 = vand.u32 %v1923, 4294901760
    %v6627 = vsub.f32 %v1923, %v6626
    %v6628 = vand.u32 %v6627, 4294901760
    %v6629 = vsub.f32 %v6627, %v6628
    %v6630 = vand.u32 %v6629, 4294901760
    %6631 = vmatpush1.msra.mxu0 %v6630
    %6632 = vmatprep.subr.mxu0 0.0
    %v6633 = vand.u32 %v1924, 4294901760
    %v6634 = vsub.f32 %v1924, %v6633
    %v6635 = vand.u32 %v6634, 4294901760
    %v6636 = vsub.f32 %v6634, %v6635
    %v6637 = vand.u32 %v6636, 4294901760
    %6638 = vmatpush1.msra.mxu0 %v6637
    %v6639 = vand.u32 %v1727, 4294901760
    %6640 = vmatprep.mubr.f32.mxu0 %v6639
    %v6641 = vand.u32 %v1726, 4294901760
    %6642 = vmatmul.mubr.f32.gmra.mrb[0].mxu0 %v6641
    %v6643 = vpop.f32.mrb[0].mxu0
    %v6644 = vadd.f32 %v6412, %v6643
    %v6645 = vpop.f32.mrb[0].mxu0
    %6646 = vdwg.mxu0
    %6647 = vmatprep.subr.mxu0 0.0
    %v6648 = vand.u32 %v1893, 4294901760
    %v6649 = vsub.f32 %v1893, %v6648
    %6650 = vmatpush1.msra.mxu0 %v6649
    %6651 = vmatprep.subr.mxu0 0.0
    %v6652 = vand.u32 %v1894, 4294901760
    %v6653 = vsub.f32 %v1894, %v6652
    %6654 = vmatpush1.msra.mxu0 %v6653
    %6655 = vmatprep.subr.mxu0 0.0
    %v6656 = vand.u32 %v1895, 4294901760
    %v6657 = vsub.f32 %v1895, %v6656
    %6658 = vmatpush1.msra.mxu0 %v6657
    %6659 = vmatprep.subr.mxu0 0.0
    %v6660 = vand.u32 %v1896, 4294901760
    %v6661 = vsub.f32 %v1896, %v6660
    %6662 = vmatpush1.msra.mxu0 %v6661
    %6663 = vmatprep.subr.mxu0 0.0
    %v6664 = vand.u32 %v1897, 4294901760
    %v6665 = vsub.f32 %v1897, %v6664
    %6666 = vmatpush1.msra.mxu0 %v6665
    %6667 = vmatprep.subr.mxu0 0.0
    %v6668 = vand.u32 %v1898, 4294901760
    %v6669 = vsub.f32 %v1898, %v6668
    %6670 = vmatpush1.msra.mxu0 %v6669
    %6671 = vmatprep.subr.mxu0 0.0
    %v6672 = vand.u32 %v1899, 4294901760
    %v6673 = vsub.f32 %v1899, %v6672
    %6674 = vmatpush1.msra.mxu0 %v6673
    %6675 = vmatprep.subr.mxu0 0.0
    %v6676 = vand.u32 %v1900, 4294901760
    %v6677 = vsub.f32 %v1900, %v6676
    %6678 = vmatpush1.msra.mxu0 %v6677
    %6679 = vmatprep.subr.mxu0 0.0
    %v6680 = vand.u32 %v1901, 4294901760
    %v6681 = vsub.f32 %v1901, %v6680
    %6682 = vmatpush1.msra.mxu0 %v6681
    %6683 = vmatprep.subr.mxu0 0.0
    %v6684 = vand.u32 %v1902, 4294901760
    %v6685 = vsub.f32 %v1902, %v6684
    %6686 = vmatpush1.msra.mxu0 %v6685
    %6687 = vmatprep.subr.mxu0 0.0
    %v6688 = vand.u32 %v1903, 4294901760
    %v6689 = vsub.f32 %v1903, %v6688
    %6690 = vmatpush1.msra.mxu0 %v6689
    %6691 = vmatprep.subr.mxu0 0.0
    %v6692 = vand.u32 %v1904, 4294901760
    %v6693 = vsub.f32 %v1904, %v6692
    %6694 = vmatpush1.msra.mxu0 %v6693
    %6695 = vmatprep.subr.mxu0 0.0
    %v6696 = vand.u32 %v1905, 4294901760
    %v6697 = vsub.f32 %v1905, %v6696
    %6698 = vmatpush1.msra.mxu0 %v6697
    %6699 = vmatprep.subr.mxu0 0.0
    %v6700 = vand.u32 %v1906, 4294901760
    %v6701 = vsub.f32 %v1906, %v6700
    %6702 = vmatpush1.msra.mxu0 %v6701
    %6703 = vmatprep.subr.mxu0 0.0
    %v6704 = vand.u32 %v1907, 4294901760
    %v6705 = vsub.f32 %v1907, %v6704
    %6706 = vmatpush1.msra.mxu0 %v6705
    %6707 = vmatprep.subr.mxu0 0.0
    %v6708 = vand.u32 %v1908, 4294901760
    %v6709 = vsub.f32 %v1908, %v6708
    %6710 = vmatpush1.msra.mxu0 %v6709
    %6711 = vmatprep.subr.mxu0 0.0
    %v6712 = vand.u32 %v1909, 4294901760
    %v6713 = vsub.f32 %v1909, %v6712
    %6714 = vmatpush1.msra.mxu0 %v6713
    %6715 = vmatprep.subr.mxu0 0.0
    %v6716 = vand.u32 %v1910, 4294901760
    %v6717 = vsub.f32 %v1910, %v6716
    %6718 = vmatpush1.msra.mxu0 %v6717
    %6719 = vmatprep.subr.mxu0 0.0
    %v6720 = vand.u32 %v1911, 4294901760
    %v6721 = vsub.f32 %v1911, %v6720
    %6722 = vmatpush1.msra.mxu0 %v6721
    %6723 = vmatprep.subr.mxu0 0.0
    %v6724 = vand.u32 %v1912, 4294901760
    %v6725 = vsub.f32 %v1912, %v6724
    %6726 = vmatpush1.msra.mxu0 %v6725
    %6727 = vmatprep.subr.mxu0 0.0
    %v6728 = vand.u32 %v1913, 4294901760
    %v6729 = vsub.f32 %v1913, %v6728
    %6730 = vmatpush1.msra.mxu0 %v6729
    %6731 = vmatprep.subr.mxu0 0.0
    %v6732 = vand.u32 %v1914, 4294901760
    %v6733 = vsub.f32 %v1914, %v6732
    %6734 = vmatpush1.msra.mxu0 %v6733
    %6735 = vmatprep.subr.mxu0 0.0
    %v6736 = vand.u32 %v1915, 4294901760
    %v6737 = vsub.f32 %v1915, %v6736
    %6738 = vmatpush1.msra.mxu0 %v6737
    %6739 = vmatprep.subr.mxu0 0.0
    %v6740 = vand.u32 %v1916, 4294901760
    %v6741 = vsub.f32 %v1916, %v6740
    %6742 = vmatpush1.msra.mxu0 %v6741
    %6743 = vmatprep.subr.mxu0 0.0
    %v6744 = vand.u32 %v1917, 4294901760
    %v6745 = vsub.f32 %v1917, %v6744
    %6746 = vmatpush1.msra.mxu0 %v6745
    %6747 = vmatprep.subr.mxu0 0.0
    %v6748 = vand.u32 %v1918, 4294901760
    %v6749 = vsub.f32 %v1918, %v6748
    %6750 = vmatpush1.msra.mxu0 %v6749
    %6751 = vmatprep.subr.mxu0 0.0
    %v6752 = vand.u32 %v1919, 4294901760
    %v6753 = vsub.f32 %v1919, %v6752
    %6754 = vmatpush1.msra.mxu0 %v6753
    %6755 = vmatprep.subr.mxu0 0.0
    %v6756 = vand.u32 %v1920, 4294901760
    %v6757 = vsub.f32 %v1920, %v6756
    %6758 = vmatpush1.msra.mxu0 %v6757
    %6759 = vmatprep.subr.mxu0 0.0
    %v6760 = vand.u32 %v1921, 4294901760
    %v6761 = vsub.f32 %v1921, %v6760
    %6762 = vmatpush1.msra.mxu0 %v6761
    %6763 = vmatprep.subr.mxu0 0.0
    %v6764 = vand.u32 %v1922, 4294901760
    %v6765 = vsub.f32 %v1922, %v6764
    %6766 = vmatpush1.msra.mxu0 %v6765
    %6767 = vmatprep.subr.mxu0 0.0
    %v6768 = vand.u32 %v1923, 4294901760
    %v6769 = vsub.f32 %v1923, %v6768
    %6770 = vmatpush1.msra.mxu0 %v6769
    %6771 = vmatprep.subr.mxu0 0.0
    %v6772 = vand.u32 %v1924, 4294901760
    %v6773 = vsub.f32 %v1924, %v6772
    %6774 = vmatpush1.msra.mxu0 %v6773
    %v6775 = vand.u32 %v1727, 4294901760
    %v6776 = vsub.f32 %v1727, %v6775
    %6777 = vmatprep.mubr.f32.mxu0 %v6776
    %v6778 = vand.u32 %v1726, 4294901760
    %v6779 = vsub.f32 %v1726, %v6778
    %6780 = vmatmul.mubr.f32.gmra.mrb[0].mxu0 %v6779
    %v6781 = vpop.f32.mrb[0].mxu0
    %v6782 = vadd.f32 %v6644, %v6781
    %v6783 = vpop.f32.mrb[0].mxu0
    %6784 = vdwg.mxu0
    %6785 = vmatprep.subr.mxu0 0.0
    %v6786 = vand.u32 %v1893, 4294901760
    %6787 = vmatpush1.msra.mxu0 %v6786
    %6788 = vmatprep.subr.mxu0 0.0
    %v6789 = vand.u32 %v1894, 4294901760
    %6790 = vmatpush1.msra.mxu0 %v6789
    %6791 = vmatprep.subr.mxu0 0.0
    %v6792 = vand.u32 %v1895, 4294901760
    %6793 = vmatpush1.msra.mxu0 %v6792
    %6794 = vmatprep.subr.mxu0 0.0
    %v6795 = vand.u32 %v1896, 4294901760
    %6796 = vmatpush1.msra.mxu0 %v6795
    %6797 = vmatprep.subr.mxu0 0.0
    %v6798 = vand.u32 %v1897, 4294901760
    %6799 = vmatpush1.msra.mxu0 %v6798
    %6800 = vmatprep.subr.mxu0 0.0
    %v6801 = vand.u32 %v1898, 4294901760
    %6802 = vmatpush1.msra.mxu0 %v6801
    %6803 = vmatprep.subr.mxu0 0.0
    %v6804 = vand.u32 %v1899, 4294901760
    %6805 = vmatpush1.msra.mxu0 %v6804
    %6806 = vmatprep.subr.mxu0 0.0
    %v6807 = vand.u32 %v1900, 4294901760
    %6808 = vmatpush1.msra.mxu0 %v6807
    %6809 = vmatprep.subr.mxu0 0.0
    %v6810 = vand.u32 %v1901, 4294901760
    %6811 = vmatpush1.msra.mxu0 %v6810
    %6812 = vmatprep.subr.mxu0 0.0
    %v6813 = vand.u32 %v1902, 4294901760
    %6814 = vmatpush1.msra.mxu0 %v6813
    %6815 = vmatprep.subr.mxu0 0.0
    %v6816 = vand.u32 %v1903, 4294901760
    %6817 = vmatpush1.msra.mxu0 %v6816
    %6818 = vmatprep.subr.mxu0 0.0
    %v6819 = vand.u32 %v1904, 4294901760
    %6820 = vmatpush1.msra.mxu0 %v6819
    %6821 = vmatprep.subr.mxu0 0.0
    %v6822 = vand.u32 %v1905, 4294901760
    %6823 = vmatpush1.msra.mxu0 %v6822
    %6824 = vmatprep.subr.mxu0 0.0
    %v6825 = vand.u32 %v1906, 4294901760
    %6826 = vmatpush1.msra.mxu0 %v6825
    %6827 = vmatprep.subr.mxu0 0.0
    %v6828 = vand.u32 %v1907, 4294901760
    %6829 = vmatpush1.msra.mxu0 %v6828
    %6830 = vmatprep.subr.mxu0 0.0
    %v6831 = vand.u32 %v1908, 4294901760
    %6832 = vmatpush1.msra.mxu0 %v6831
    %6833 = vmatprep.subr.mxu0 0.0
    %v6834 = vand.u32 %v1909, 4294901760
    %6835 = vmatpush1.msra.mxu0 %v6834
    %6836 = vmatprep.subr.mxu0 0.0
    %v6837 = vand.u32 %v1910, 4294901760
    %6838 = vmatpush1.msra.mxu0 %v6837
    %6839 = vmatprep.subr.mxu0 0.0
    %v6840 = vand.u32 %v1911, 4294901760
    %6841 = vmatpush1.msra.mxu0 %v6840
    %6842 = vmatprep.subr.mxu0 0.0
    %v6843 = vand.u32 %v1912, 4294901760
    %6844 = vmatpush1.msra.mxu0 %v6843
    %6845 = vmatprep.subr.mxu0 0.0
    %v6846 = vand.u32 %v1913, 4294901760
    %6847 = vmatpush1.msra.mxu0 %v6846
    %6848 = vmatprep.subr.mxu0 0.0
    %v6849 = vand.u32 %v1914, 4294901760
    %6850 = vmatpush1.msra.mxu0 %v6849
    %6851 = vmatprep.subr.mxu0 0.0
    %v6852 = vand.u32 %v1915, 4294901760
    %6853 = vmatpush1.msra.mxu0 %v6852
    %6854 = vmatprep.subr.mxu0 0.0
    %v6855 = vand.u32 %v1916, 4294901760
    %6856 = vmatpush1.msra.mxu0 %v6855
    %6857 = vmatprep.subr.mxu0 0.0
    %v6858 = vand.u32 %v1917, 4294901760
    %6859 = vmatpush1.msra.mxu0 %v6858
    %6860 = vmatprep.subr.mxu0 0.0
    %v6861 = vand.u32 %v1918, 4294901760
    %6862 = vmatpush1.msra.mxu0 %v6861
    %6863 = vmatprep.subr.mxu0 0.0
    %v6864 = vand.u32 %v1919, 4294901760
    %6865 = vmatpush1.msra.mxu0 %v6864
    %6866 = vmatprep.subr.mxu0 0.0
    %v6867 = vand.u32 %v1920, 4294901760
    %6868 = vmatpush1.msra.mxu0 %v6867
    %6869 = vmatprep.subr.mxu0 0.0
    %v6870 = vand.u32 %v1921, 4294901760
    %6871 = vmatpush1.msra.mxu0 %v6870
    %6872 = vmatprep.subr.mxu0 0.0
    %v6873 = vand.u32 %v1922, 4294901760
    %6874 = vmatpush1.msra.mxu0 %v6873
    %6875 = vmatprep.subr.mxu0 0.0
    %v6876 = vand.u32 %v1923, 4294901760
    %6877 = vmatpush1.msra.mxu0 %v6876
    %6878 = vmatprep.subr.mxu0 0.0
    %v6879 = vand.u32 %v1924, 4294901760
    %6880 = vmatpush1.msra.mxu0 %v6879
    %v6881 = vand.u32 %v1727, 4294901760
    %v6882 = vsub.f32 %v1727, %v6881
    %v6883 = vand.u32 %v6882, 4294901760
    %6884 = vmatprep.mubr.f32.mxu0 %v6883
    %v6885 = vand.u32 %v1726, 4294901760
    %v6886 = vsub.f32 %v1726, %v6885
    %v6887 = vand.u32 %v6886, 4294901760
    %6888 = vmatmul.mubr.f32.gmra.mrb[0].mxu0 %v6887
    %v6889 = vpop.f32.mrb[0].mxu0
    %v6890 = vadd.f32 %v6782, %v6889
    %v6891 = vpop.f32.mrb[0].mxu0
    %6892 = vdwg.mxu0
    %6893 = vmatprep.subr.mxu0 0.0
    %v6894 = vand.u32 %v1893, 4294901760
    %v6895 = vsub.f32 %v1893, %v6894
    %v6896 = vand.u32 %v6895, 4294901760
    %6897 = vmatpush1.msra.mxu0 %v6896
    %6898 = vmatprep.subr.mxu0 0.0
    %v6899 = vand.u32 %v1894, 4294901760
    %v6900 = vsub.f32 %v1894, %v6899
    %v6901 = vand.u32 %v6900, 4294901760
    %6902 = vmatpush1.msra.mxu0 %v6901
    %6903 = vmatprep.subr.mxu0 0.0
    %v6904 = vand.u32 %v1895, 4294901760
    %v6905 = vsub.f32 %v1895, %v6904
    %v6906 = vand.u32 %v6905, 4294901760
    %6907 = vmatpush1.msra.mxu0 %v6906
    %6908 = vmatprep.subr.mxu0 0.0
    %v6909 = vand.u32 %v1896, 4294901760
    %v6910 = vsub.f32 %v1896, %v6909
    %v6911 = vand.u32 %v6910, 4294901760
    %6912 = vmatpush1.msra.mxu0 %v6911
    %6913 = vmatprep.subr.mxu0 0.0
    %v6914 = vand.u32 %v1897, 4294901760
    %v6915 = vsub.f32 %v1897, %v6914
    %v6916 = vand.u32 %v6915, 4294901760
    %6917 = vmatpush1.msra.mxu0 %v6916
    %6918 = vmatprep.subr.mxu0 0.0
    %v6919 = vand.u32 %v1898, 4294901760
    %v6920 = vsub.f32 %v1898, %v6919
    %v6921 = vand.u32 %v6920, 4294901760
    %6922 = vmatpush1.msra.mxu0 %v6921
    %6923 = vmatprep.subr.mxu0 0.0
    %v6924 = vand.u32 %v1899, 4294901760
    %v6925 = vsub.f32 %v1899, %v6924
    %v6926 = vand.u32 %v6925, 4294901760
    %6927 = vmatpush1.msra.mxu0 %v6926
    %6928 = vmatprep.subr.mxu0 0.0
    %v6929 = vand.u32 %v1900, 4294901760
    %v6930 = vsub.f32 %v1900, %v6929
    %v6931 = vand.u32 %v6930, 4294901760
    %6932 = vmatpush1.msra.mxu0 %v6931
    %6933 = vmatprep.subr.mxu0 0.0
    %v6934 = vand.u32 %v1901, 4294901760
    %v6935 = vsub.f32 %v1901, %v6934
    %v6936 = vand.u32 %v6935, 4294901760
    %6937 = vmatpush1.msra.mxu0 %v6936
    %6938 = vmatprep.subr.mxu0 0.0
    %v6939 = vand.u32 %v1902, 4294901760
    %v6940 = vsub.f32 %v1902, %v6939
    %v6941 = vand.u32 %v6940, 4294901760
    %6942 = vmatpush1.msra.mxu0 %v6941
    %6943 = vmatprep.subr.mxu0 0.0
    %v6944 = vand.u32 %v1903, 4294901760
    %v6945 = vsub.f32 %v1903, %v6944
    %v6946 = vand.u32 %v6945, 4294901760
    %6947 = vmatpush1.msra.mxu0 %v6946
    %6948 = vmatprep.subr.mxu0 0.0
    %v6949 = vand.u32 %v1904, 4294901760
    %v6950 = vsub.f32 %v1904, %v6949
    %v6951 = vand.u32 %v6950, 4294901760
    %6952 = vmatpush1.msra.mxu0 %v6951
    %6953 = vmatprep.subr.mxu0 0.0
    %v6954 = vand.u32 %v1905, 4294901760
    %v6955 = vsub.f32 %v1905, %v6954
    %v6956 = vand.u32 %v6955, 4294901760
    %6957 = vmatpush1.msra.mxu0 %v6956
    %6958 = vmatprep.subr.mxu0 0.0
    %v6959 = vand.u32 %v1906, 4294901760
    %v6960 = vsub.f32 %v1906, %v6959
    %v6961 = vand.u32 %v6960, 4294901760
    %6962 = vmatpush1.msra.mxu0 %v6961
    %6963 = vmatprep.subr.mxu0 0.0
    %v6964 = vand.u32 %v1907, 4294901760
    %v6965 = vsub.f32 %v1907, %v6964
    %v6966 = vand.u32 %v6965, 4294901760
    %6967 = vmatpush1.msra.mxu0 %v6966
    %6968 = vmatprep.subr.mxu0 0.0
    %v6969 = vand.u32 %v1908, 4294901760
    %v6970 = vsub.f32 %v1908, %v6969
    %v6971 = vand.u32 %v6970, 4294901760
    %6972 = vmatpush1.msra.mxu0 %v6971
    %6973 = vmatprep.subr.mxu0 0.0
    %v6974 = vand.u32 %v1909, 4294901760
    %v6975 = vsub.f32 %v1909, %v6974
    %v6976 = vand.u32 %v6975, 4294901760
    %6977 = vmatpush1.msra.mxu0 %v6976
    %6978 = vmatprep.subr.mxu0 0.0
    %v6979 = vand.u32 %v1910, 4294901760
    %v6980 = vsub.f32 %v1910, %v6979
    %v6981 = vand.u32 %v6980, 4294901760
    %6982 = vmatpush1.msra.mxu0 %v6981
    %6983 = vmatprep.subr.mxu0 0.0
    %v6984 = vand.u32 %v1911, 4294901760
    %v6985 = vsub.f32 %v1911, %v6984
    %v6986 = vand.u32 %v6985, 4294901760
    %6987 = vmatpush1.msra.mxu0 %v6986
    %6988 = vmatprep.subr.mxu0 0.0
    %v6989 = vand.u32 %v1912, 4294901760
    %v6990 = vsub.f32 %v1912, %v6989
    %v6991 = vand.u32 %v6990, 4294901760
    %6992 = vmatpush1.msra.mxu0 %v6991
    %6993 = vmatprep.subr.mxu0 0.0
    %v6994 = vand.u32 %v1913, 4294901760
    %v6995 = vsub.f32 %v1913, %v6994
    %v6996 = vand.u32 %v6995, 4294901760
    %6997 = vmatpush1.msra.mxu0 %v6996
    %6998 = vmatprep.subr.mxu0 0.0
    %v6999 = vand.u32 %v1914, 4294901760
    %v7000 = vsub.f32 %v1914, %v6999
    %v7001 = vand.u32 %v7000, 4294901760
    %7002 = vmatpush1.msra.mxu0 %v7001
    %7003 = vmatprep.subr.mxu0 0.0
    %v7004 = vand.u32 %v1915, 4294901760
    %v7005 = vsub.f32 %v1915, %v7004
    %v7006 = vand.u32 %v7005, 4294901760
    %7007 = vmatpush1.msra.mxu0 %v7006
    %7008 = vmatprep.subr.mxu0 0.0
    %v7009 = vand.u32 %v1916, 4294901760
    %v7010 = vsub.f32 %v1916, %v7009
    %v7011 = vand.u32 %v7010, 4294901760
    %7012 = vmatpush1.msra.mxu0 %v7011
    %7013 = vmatprep.subr.mxu0 0.0
    %v7014 = vand.u32 %v1917, 4294901760
    %v7015 = vsub.f32 %v1917, %v7014
    %v7016 = vand.u32 %v7015, 4294901760
    %7017 = vmatpush1.msra.mxu0 %v7016
    %7018 = vmatprep.subr.mxu0 0.0
    %v7019 = vand.u32 %v1918, 4294901760
    %v7020 = vsub.f32 %v1918, %v7019
    %v7021 = vand.u32 %v7020, 4294901760
    %7022 = vmatpush1.msra.mxu0 %v7021
    %7023 = vmatprep.subr.mxu0 0.0
    %v7024 = vand.u32 %v1919, 4294901760
    %v7025 = vsub.f32 %v1919, %v7024
    %v7026 = vand.u32 %v7025, 4294901760
    %7027 = vmatpush1.msra.mxu0 %v7026
    %7028 = vmatprep.subr.mxu0 0.0
    %v7029 = vand.u32 %v1920, 4294901760
    %v7030 = vsub.f32 %v1920, %v7029
    %v7031 = vand.u32 %v7030, 4294901760
    %7032 = vmatpush1.msra.mxu0 %v7031
    %7033 = vmatprep.subr.mxu0 0.0
    %v7034 = vand.u32 %v1921, 4294901760
    %v7035 = vsub.f32 %v1921, %v7034
    %v7036 = vand.u32 %v7035, 4294901760
    %7037 = vmatpush1.msra.mxu0 %v7036
    %7038 = vmatprep.subr.mxu0 0.0
    %v7039 = vand.u32 %v1922, 4294901760
    %v7040 = vsub.f32 %v1922, %v7039
    %v7041 = vand.u32 %v7040, 4294901760
    %7042 = vmatpush1.msra.mxu0 %v7041
    %7043 = vmatprep.subr.mxu0 0.0
    %v7044 = vand.u32 %v1923, 4294901760
    %v7045 = vsub.f32 %v1923, %v7044
    %v7046 = vand.u32 %v7045, 4294901760
    %7047 = vmatpush1.msra.mxu0 %v7046
    %7048 = vmatprep.subr.mxu0 0.0
    %v7049 = vand.u32 %v1924, 4294901760
    %v7050 = vsub.f32 %v1924, %v7049
    %v7051 = vand.u32 %v7050, 4294901760
    %7052 = vmatpush1.msra.mxu0 %v7051
    %v7053 = vand.u32 %v1727, 4294901760
    %7054 = vmatprep.mubr.f32.mxu0 %v7053
    %v7055 = vand.u32 %v1726, 4294901760
    %7056 = vmatmul.mubr.f32.gmra.mrb[0].mxu0 %v7055
    %v7057 = vpop.f32.mrb[0].mxu0
    %v7058 = vadd.f32 %v6890, %v7057
    %v7059 = vpop.f32.mrb[0].mxu0
    %7060 = vdwg.mxu0
    %7061 = vmatprep.subr.mxu0 0.0
    %v7062 = vand.u32 %v1893, 4294901760
    %7063 = vmatpush1.msra.mxu0 %v7062
    %7064 = vmatprep.subr.mxu0 0.0
    %v7065 = vand.u32 %v1894, 4294901760
    %7066 = vmatpush1.msra.mxu0 %v7065
    %7067 = vmatprep.subr.mxu0 0.0
    %v7068 = vand.u32 %v1895, 4294901760
    %7069 = vmatpush1.msra.mxu0 %v7068
    %7070 = vmatprep.subr.mxu0 0.0
    %v7071 = vand.u32 %v1896, 4294901760
    %7072 = vmatpush1.msra.mxu0 %v7071
    %7073 = vmatprep.subr.mxu0 0.0
    %v7074 = vand.u32 %v1897, 4294901760
    %7075 = vmatpush1.msra.mxu0 %v7074
    %7076 = vmatprep.subr.mxu0 0.0
    %v7077 = vand.u32 %v1898, 4294901760
    %7078 = vmatpush1.msra.mxu0 %v7077
    %7079 = vmatprep.subr.mxu0 0.0
    %v7080 = vand.u32 %v1899, 4294901760
    %7081 = vmatpush1.msra.mxu0 %v7080
    %7082 = vmatprep.subr.mxu0 0.0
    %v7083 = vand.u32 %v1900, 4294901760
    %7084 = vmatpush1.msra.mxu0 %v7083
    %7085 = vmatprep.subr.mxu0 0.0
    %v7086 = vand.u32 %v1901, 4294901760
    %7087 = vmatpush1.msra.mxu0 %v7086
    %7088 = vmatprep.subr.mxu0 0.0
    %v7089 = vand.u32 %v1902, 4294901760
    %7090 = vmatpush1.msra.mxu0 %v7089
    %7091 = vmatprep.subr.mxu0 0.0
    %v7092 = vand.u32 %v1903, 4294901760
    %7093 = vmatpush1.msra.mxu0 %v7092
    %7094 = vmatprep.subr.mxu0 0.0
    %v7095 = vand.u32 %v1904, 4294901760
    %7096 = vmatpush1.msra.mxu0 %v7095
    %7097 = vmatprep.subr.mxu0 0.0
    %v7098 = vand.u32 %v1905, 4294901760
    %7099 = vmatpush1.msra.mxu0 %v7098
    %7100 = vmatprep.subr.mxu0 0.0
    %v7101 = vand.u32 %v1906, 4294901760
    %7102 = vmatpush1.msra.mxu0 %v7101
    %7103 = vmatprep.subr.mxu0 0.0
    %v7104 = vand.u32 %v1907, 4294901760
    %7105 = vmatpush1.msra.mxu0 %v7104
    %7106 = vmatprep.subr.mxu0 0.0
    %v7107 = vand.u32 %v1908, 4294901760
    %7108 = vmatpush1.msra.mxu0 %v7107
    %7109 = vmatprep.subr.mxu0 0.0
    %v7110 = vand.u32 %v1909, 4294901760
    %7111 = vmatpush1.msra.mxu0 %v7110
    %7112 = vmatprep.subr.mxu0 0.0
    %v7113 = vand.u32 %v1910, 4294901760
    %7114 = vmatpush1.msra.mxu0 %v7113
    %7115 = vmatprep.subr.mxu0 0.0
    %v7116 = vand.u32 %v1911, 4294901760
    %7117 = vmatpush1.msra.mxu0 %v7116
    %7118 = vmatprep.subr.mxu0 0.0
    %v7119 = vand.u32 %v1912, 4294901760
    %7120 = vmatpush1.msra.mxu0 %v7119
    %7121 = vmatprep.subr.mxu0 0.0
    %v7122 = vand.u32 %v1913, 4294901760
    %7123 = vmatpush1.msra.mxu0 %v7122
    %7124 = vmatprep.subr.mxu0 0.0
    %v7125 = vand.u32 %v1914, 4294901760
    %7126 = vmatpush1.msra.mxu0 %v7125
    %7127 = vmatprep.subr.mxu0 0.0
    %v7128 = vand.u32 %v1915, 4294901760
    %7129 = vmatpush1.msra.mxu0 %v7128
    %7130 = vmatprep.subr.mxu0 0.0
    %v7131 = vand.u32 %v1916, 4294901760
    %7132 = vmatpush1.msra.mxu0 %v7131
    %7133 = vmatprep.subr.mxu0 0.0
    %v7134 = vand.u32 %v1917, 4294901760
    %7135 = vmatpush1.msra.mxu0 %v7134
    %7136 = vmatprep.subr.mxu0 0.0
    %v7137 = vand.u32 %v1918, 4294901760
    %7138 = vmatpush1.msra.mxu0 %v7137
    %7139 = vmatprep.subr.mxu0 0.0
    %v7140 = vand.u32 %v1919, 4294901760
    %7141 = vmatpush1.msra.mxu0 %v7140
    %7142 = vmatprep.subr.mxu0 0.0
    %v7143 = vand.u32 %v1920, 4294901760
    %7144 = vmatpush1.msra.mxu0 %v7143
    %7145 = vmatprep.subr.mxu0 0.0
    %v7146 = vand.u32 %v1921, 4294901760
    %7147 = vmatpush1.msra.mxu0 %v7146
    %7148 = vmatprep.subr.mxu0 0.0
    %v7149 = vand.u32 %v1922, 4294901760
    %7150 = vmatpush1.msra.mxu0 %v7149
    %7151 = vmatprep.subr.mxu0 0.0
    %v7152 = vand.u32 %v1923, 4294901760
    %7153 = vmatpush1.msra.mxu0 %v7152
    %7154 = vmatprep.subr.mxu0 0.0
    %v7155 = vand.u32 %v1924, 4294901760
    %7156 = vmatpush1.msra.mxu0 %v7155
    %v7157 = vand.u32 %v1727, 4294901760
    %7158 = vmatprep.mubr.f32.mxu0 %v7157
    %v7159 = vand.u32 %v1726, 4294901760
    %7160 = vmatmul.mubr.f32.gmra.mrb[0].mxu0 %v7159
    %v7161 = vpop.f32.mrb[0].mxu0
    %v7162 = vadd.f32 %v7058, %v7161
    %v7163 = vpop.f32.mrb[0].mxu0
    %7164 = vdwg.mxu0
    %7165 = vmatprep.subr.mxu0 0.0
    %v7166 = vand.u32 %v1925, 4294901760
    %7167 = vmatpush1.msra.mxu0 %v7166
    %7168 = vmatprep.subr.mxu0 0.0
    %v7169 = vand.u32 %v1926, 4294901760
    %7170 = vmatpush1.msra.mxu0 %v7169
    %7171 = vmatprep.subr.mxu0 0.0
    %v7172 = vand.u32 %v1927, 4294901760
    %7173 = vmatpush1.msra.mxu0 %v7172
    %7174 = vmatprep.subr.mxu0 0.0
    %v7175 = vand.u32 %v1928, 4294901760
    %7176 = vmatpush1.msra.mxu0 %v7175
    %7177 = vmatprep.subr.mxu0 0.0
    %v7178 = vand.u32 %v1929, 4294901760
    %7179 = vmatpush1.msra.mxu0 %v7178
    %7180 = vmatprep.subr.mxu0 0.0
    %v7181 = vand.u32 %v1930, 4294901760
    %7182 = vmatpush1.msra.mxu0 %v7181
    %7183 = vmatprep.subr.mxu0 0.0
    %v7184 = vand.u32 %v1931, 4294901760
    %7185 = vmatpush1.msra.mxu0 %v7184
    %7186 = vmatprep.subr.mxu0 0.0
    %v7187 = vand.u32 %v1932, 4294901760
    %7188 = vmatpush1.msra.mxu0 %v7187
    %7189 = vmatprep.subr.mxu0 0.0
    %v7190 = vand.u32 %v1933, 4294901760
    %7191 = vmatpush1.msra.mxu0 %v7190
    %7192 = vmatprep.subr.mxu0 0.0
    %v7193 = vand.u32 %v1934, 4294901760
    %7194 = vmatpush1.msra.mxu0 %v7193
    %7195 = vmatprep.subr.mxu0 0.0
    %v7196 = vand.u32 %v1935, 4294901760
    %7197 = vmatpush1.msra.mxu0 %v7196
    %7198 = vmatprep.subr.mxu0 0.0
    %v7199 = vand.u32 %v1936, 4294901760
    %7200 = vmatpush1.msra.mxu0 %v7199
    %7201 = vmatprep.subr.mxu0 0.0
    %v7202 = vand.u32 %v1937, 4294901760
    %7203 = vmatpush1.msra.mxu0 %v7202
    %7204 = vmatprep.subr.mxu0 0.0
    %v7205 = vand.u32 %v1938, 4294901760
    %7206 = vmatpush1.msra.mxu0 %v7205
    %7207 = vmatprep.subr.mxu0 0.0
    %v7208 = vand.u32 %v1939, 4294901760
    %7209 = vmatpush1.msra.mxu0 %v7208
    %7210 = vmatprep.subr.mxu0 0.0
    %v7211 = vand.u32 %v1940, 4294901760
    %7212 = vmatpush1.msra.mxu0 %v7211
    %7213 = vmatprep.subr.mxu0 0.0
    %v7214 = vand.u32 %v1941, 4294901760
    %7215 = vmatpush1.msra.mxu0 %v7214
    %7216 = vmatprep.subr.mxu0 0.0
    %v7217 = vand.u32 %v1942, 4294901760
    %7218 = vmatpush1.msra.mxu0 %v7217
    %7219 = vmatprep.subr.mxu0 0.0
    %v7220 = vand.u32 %v1943, 4294901760
    %7221 = vmatpush1.msra.mxu0 %v7220
    %7222 = vmatprep.subr.mxu0 0.0
    %v7223 = vand.u32 %v1944, 4294901760
    %7224 = vmatpush1.msra.mxu0 %v7223
    %7225 = vmatprep.subr.mxu0 0.0
    %v7226 = vand.u32 %v1945, 4294901760
    %7227 = vmatpush1.msra.mxu0 %v7226
    %7228 = vmatprep.subr.mxu0 0.0
    %v7229 = vand.u32 %v1946, 4294901760
    %7230 = vmatpush1.msra.mxu0 %v7229
    %7231 = vmatprep.subr.mxu0 0.0
    %v7232 = vand.u32 %v1947, 4294901760
    %7233 = vmatpush1.msra.mxu0 %v7232
    %7234 = vmatprep.subr.mxu0 0.0
    %v7235 = vand.u32 %v1948, 4294901760
    %7236 = vmatpush1.msra.mxu0 %v7235
    %7237 = vmatprep.subr.mxu0 0.0
    %v7238 = vand.u32 %v1949, 4294901760
    %7239 = vmatpush1.msra.mxu0 %v7238
    %7240 = vmatprep.subr.mxu0 0.0
    %v7241 = vand.u32 %v1950, 4294901760
    %7242 = vmatpush1.msra.mxu0 %v7241
    %7243 = vmatprep.subr.mxu0 0.0
    %v7244 = vand.u32 %v1951, 4294901760
    %7245 = vmatpush1.msra.mxu0 %v7244
    %7246 = vmatprep.subr.mxu0 0.0
    %v7247 = vand.u32 %v1952, 4294901760
    %7248 = vmatpush1.msra.mxu0 %v7247
    %7249 = vmatprep.subr.mxu0 0.0
    %v7250 = vand.u32 %v1953, 4294901760
    %7251 = vmatpush1.msra.mxu0 %v7250
    %7252 = vmatprep.subr.mxu0 0.0
    %v7253 = vand.u32 %v1954, 4294901760
    %7254 = vmatpush1.msra.mxu0 %v7253
    %7255 = vmatprep.subr.mxu0 0.0
    %v7256 = vand.u32 %v1955, 4294901760
    %7257 = vmatpush1.msra.mxu0 %v7256
    %7258 = vmatprep.subr.mxu0 0.0
    %v7259 = vand.u32 %v1956, 4294901760
    %7260 = vmatpush1.msra.mxu0 %v7259
    %v7261 = vand.u32 %v1729, 4294901760
    %v7262 = vsub.f32 %v1729, %v7261
    %v7263 = vand.u32 %v7262, 4294901760
    %v7264 = vsub.f32 %v7262, %v7263
    %v7265 = vand.u32 %v7264, 4294901760
    %7266 = vmatprep.mubr.f32.mxu0 %v7265
    %v7267 = vand.u32 %v1728, 4294901760
    %v7268 = vsub.f32 %v1728, %v7267
    %v7269 = vand.u32 %v7268, 4294901760
    %v7270 = vsub.f32 %v7268, %v7269
    %v7271 = vand.u32 %v7270, 4294901760
    %7272 = vmatmul.mubr.f32.gmra.mrb[0].mxu0 %v7271
    %v7273 = vpop.f32.mrb[0].mxu0
    %v7274 = vadd.f32 %v7162, %v7273
    %v7275 = vpop.f32.mrb[0].mxu0
    %7276 = vdwg.mxu0
    %7277 = vmatprep.subr.mxu0 0.0
    %v7278 = vand.u32 %v1925, 4294901760
    %v7279 = vsub.f32 %v1925, %v7278
    %v7280 = vand.u32 %v7279, 4294901760
    %v7281 = vsub.f32 %v7279, %v7280
    %v7282 = vand.u32 %v7281, 4294901760
    %7283 = vmatpush1.msra.mxu0 %v7282
    %7284 = vmatprep.subr.mxu0 0.0
    %v7285 = vand.u32 %v1926, 4294901760
    %v7286 = vsub.f32 %v1926, %v7285
    %v7287 = vand.u32 %v7286, 4294901760
    %v7288 = vsub.f32 %v7286, %v7287
    %v7289 = vand.u32 %v7288, 4294901760
    %7290 = vmatpush1.msra.mxu0 %v7289
    %7291 = vmatprep.subr.mxu0 0.0
    %v7292 = vand.u32 %v1927, 4294901760
    %v7293 = vsub.f32 %v1927, %v7292
    %v7294 = vand.u32 %v7293, 4294901760
    %v7295 = vsub.f32 %v7293, %v7294
    %v7296 = vand.u32 %v7295, 4294901760
    %7297 = vmatpush1.msra.mxu0 %v7296
    %7298 = vmatprep.subr.mxu0 0.0
    %v7299 = vand.u32 %v1928, 4294901760
    %v7300 = vsub.f32 %v1928, %v7299
    %v7301 = vand.u32 %v7300, 4294901760
    %v7302 = vsub.f32 %v7300, %v7301
    %v7303 = vand.u32 %v7302, 4294901760
    %7304 = vmatpush1.msra.mxu0 %v7303
    %7305 = vmatprep.subr.mxu0 0.0
    %v7306 = vand.u32 %v1929, 4294901760
    %v7307 = vsub.f32 %v1929, %v7306
    %v7308 = vand.u32 %v7307, 4294901760
    %v7309 = vsub.f32 %v7307, %v7308
    %v7310 = vand.u32 %v7309, 4294901760
    %7311 = vmatpush1.msra.mxu0 %v7310
    %7312 = vmatprep.subr.mxu0 0.0
    %v7313 = vand.u32 %v1930, 4294901760
    %v7314 = vsub.f32 %v1930, %v7313
    %v7315 = vand.u32 %v7314, 4294901760
    %v7316 = vsub.f32 %v7314, %v7315
    %v7317 = vand.u32 %v7316, 4294901760
    %7318 = vmatpush1.msra.mxu0 %v7317
    %7319 = vmatprep.subr.mxu0 0.0
    %v7320 = vand.u32 %v1931, 4294901760
    %v7321 = vsub.f32 %v1931, %v7320
    %v7322 = vand.u32 %v7321, 4294901760
    %v7323 = vsub.f32 %v7321, %v7322
    %v7324 = vand.u32 %v7323, 4294901760
    %7325 = vmatpush1.msra.mxu0 %v7324
    %7326 = vmatprep.subr.mxu0 0.0
    %v7327 = vand.u32 %v1932, 4294901760
    %v7328 = vsub.f32 %v1932, %v7327
    %v7329 = vand.u32 %v7328, 4294901760
    %v7330 = vsub.f32 %v7328, %v7329
    %v7331 = vand.u32 %v7330, 4294901760
    %7332 = vmatpush1.msra.mxu0 %v7331
    %7333 = vmatprep.subr.mxu0 0.0
    %v7334 = vand.u32 %v1933, 4294901760
    %v7335 = vsub.f32 %v1933, %v7334
    %v7336 = vand.u32 %v7335, 4294901760
    %v7337 = vsub.f32 %v7335, %v7336
    %v7338 = vand.u32 %v7337, 4294901760
    %7339 = vmatpush1.msra.mxu0 %v7338
    %7340 = vmatprep.subr.mxu0 0.0
    %v7341 = vand.u32 %v1934, 4294901760
    %v7342 = vsub.f32 %v1934, %v7341
    %v7343 = vand.u32 %v7342, 4294901760
    %v7344 = vsub.f32 %v7342, %v7343
    %v7345 = vand.u32 %v7344, 4294901760
    %7346 = vmatpush1.msra.mxu0 %v7345
    %7347 = vmatprep.subr.mxu0 0.0
    %v7348 = vand.u32 %v1935, 4294901760
    %v7349 = vsub.f32 %v1935, %v7348
    %v7350 = vand.u32 %v7349, 4294901760
    %v7351 = vsub.f32 %v7349, %v7350
    %v7352 = vand.u32 %v7351, 4294901760
    %7353 = vmatpush1.msra.mxu0 %v7352
    %7354 = vmatprep.subr.mxu0 0.0
    %v7355 = vand.u32 %v1936, 4294901760
    %v7356 = vsub.f32 %v1936, %v7355
    %v7357 = vand.u32 %v7356, 4294901760
    %v7358 = vsub.f32 %v7356, %v7357
    %v7359 = vand.u32 %v7358, 4294901760
    %7360 = vmatpush1.msra.mxu0 %v7359
    %7361 = vmatprep.subr.mxu0 0.0
    %v7362 = vand.u32 %v1937, 4294901760
    %v7363 = vsub.f32 %v1937, %v7362
    %v7364 = vand.u32 %v7363, 4294901760
    %v7365 = vsub.f32 %v7363, %v7364
    %v7366 = vand.u32 %v7365, 4294901760
    %7367 = vmatpush1.msra.mxu0 %v7366
    %7368 = vmatprep.subr.mxu0 0.0
    %v7369 = vand.u32 %v1938, 4294901760
    %v7370 = vsub.f32 %v1938, %v7369
    %v7371 = vand.u32 %v7370, 4294901760
    %v7372 = vsub.f32 %v7370, %v7371
    %v7373 = vand.u32 %v7372, 4294901760
    %7374 = vmatpush1.msra.mxu0 %v7373
    %7375 = vmatprep.subr.mxu0 0.0
    %v7376 = vand.u32 %v1939, 4294901760
    %v7377 = vsub.f32 %v1939, %v7376
    %v7378 = vand.u32 %v7377, 4294901760
    %v7379 = vsub.f32 %v7377, %v7378
    %v7380 = vand.u32 %v7379, 4294901760
    %7381 = vmatpush1.msra.mxu0 %v7380
    %7382 = vmatprep.subr.mxu0 0.0
    %v7383 = vand.u32 %v1940, 4294901760
    %v7384 = vsub.f32 %v1940, %v7383
    %v7385 = vand.u32 %v7384, 4294901760
    %v7386 = vsub.f32 %v7384, %v7385
    %v7387 = vand.u32 %v7386, 4294901760
    %7388 = vmatpush1.msra.mxu0 %v7387
    %7389 = vmatprep.subr.mxu0 0.0
    %v7390 = vand.u32 %v1941, 4294901760
    %v7391 = vsub.f32 %v1941, %v7390
    %v7392 = vand.u32 %v7391, 4294901760
    %v7393 = vsub.f32 %v7391, %v7392
    %v7394 = vand.u32 %v7393, 4294901760
    %7395 = vmatpush1.msra.mxu0 %v7394
    %7396 = vmatprep.subr.mxu0 0.0
    %v7397 = vand.u32 %v1942, 4294901760
    %v7398 = vsub.f32 %v1942, %v7397
    %v7399 = vand.u32 %v7398, 4294901760
    %v7400 = vsub.f32 %v7398, %v7399
    %v7401 = vand.u32 %v7400, 4294901760
    %7402 = vmatpush1.msra.mxu0 %v7401
    %7403 = vmatprep.subr.mxu0 0.0
    %v7404 = vand.u32 %v1943, 4294901760
    %v7405 = vsub.f32 %v1943, %v7404
    %v7406 = vand.u32 %v7405, 4294901760
    %v7407 = vsub.f32 %v7405, %v7406
    %v7408 = vand.u32 %v7407, 4294901760
    %7409 = vmatpush1.msra.mxu0 %v7408
    %7410 = vmatprep.subr.mxu0 0.0
    %v7411 = vand.u32 %v1944, 4294901760
    %v7412 = vsub.f32 %v1944, %v7411
    %v7413 = vand.u32 %v7412, 4294901760
    %v7414 = vsub.f32 %v7412, %v7413
    %v7415 = vand.u32 %v7414, 4294901760
    %7416 = vmatpush1.msra.mxu0 %v7415
    %7417 = vmatprep.subr.mxu0 0.0
    %v7418 = vand.u32 %v1945, 4294901760
    %v7419 = vsub.f32 %v1945, %v7418
    %v7420 = vand.u32 %v7419, 4294901760
    %v7421 = vsub.f32 %v7419, %v7420
    %v7422 = vand.u32 %v7421, 4294901760
    %7423 = vmatpush1.msra.mxu0 %v7422
    %7424 = vmatprep.subr.mxu0 0.0
    %v7425 = vand.u32 %v1946, 4294901760
    %v7426 = vsub.f32 %v1946, %v7425
    %v7427 = vand.u32 %v7426, 4294901760
    %v7428 = vsub.f32 %v7426, %v7427
    %v7429 = vand.u32 %v7428, 4294901760
    %7430 = vmatpush1.msra.mxu0 %v7429
    %7431 = vmatprep.subr.mxu0 0.0
    %v7432 = vand.u32 %v1947, 4294901760
    %v7433 = vsub.f32 %v1947, %v7432
    %v7434 = vand.u32 %v7433, 4294901760
    %v7435 = vsub.f32 %v7433, %v7434
    %v7436 = vand.u32 %v7435, 4294901760
    %7437 = vmatpush1.msra.mxu0 %v7436
    %7438 = vmatprep.subr.mxu0 0.0
    %v7439 = vand.u32 %v1948, 4294901760
    %v7440 = vsub.f32 %v1948, %v7439
    %v7441 = vand.u32 %v7440, 4294901760
    %v7442 = vsub.f32 %v7440, %v7441
    %v7443 = vand.u32 %v7442, 4294901760
    %7444 = vmatpush1.msra.mxu0 %v7443
    %7445 = vmatprep.subr.mxu0 0.0
    %v7446 = vand.u32 %v1949, 4294901760
    %v7447 = vsub.f32 %v1949, %v7446
    %v7448 = vand.u32 %v7447, 4294901760
    %v7449 = vsub.f32 %v7447, %v7448
    %v7450 = vand.u32 %v7449, 4294901760
    %7451 = vmatpush1.msra.mxu0 %v7450
    %7452 = vmatprep.subr.mxu0 0.0
    %v7453 = vand.u32 %v1950, 4294901760
    %v7454 = vsub.f32 %v1950, %v7453
    %v7455 = vand.u32 %v7454, 4294901760
    %v7456 = vsub.f32 %v7454, %v7455
    %v7457 = vand.u32 %v7456, 4294901760
    %7458 = vmatpush1.msra.mxu0 %v7457
    %7459 = vmatprep.subr.mxu0 0.0
    %v7460 = vand.u32 %v1951, 4294901760
    %v7461 = vsub.f32 %v1951, %v7460
    %v7462 = vand.u32 %v7461, 4294901760
    %v7463 = vsub.f32 %v7461, %v7462
    %v7464 = vand.u32 %v7463, 4294901760
    %7465 = vmatpush1.msra.mxu0 %v7464
    %7466 = vmatprep.subr.mxu0 0.0
    %v7467 = vand.u32 %v1952, 4294901760
    %v7468 = vsub.f32 %v1952, %v7467
    %v7469 = vand.u32 %v7468, 4294901760
    %v7470 = vsub.f32 %v7468, %v7469
    %v7471 = vand.u32 %v7470, 4294901760
    %7472 = vmatpush1.msra.mxu0 %v7471
    %7473 = vmatprep.subr.mxu0 0.0
    %v7474 = vand.u32 %v1953, 4294901760
    %v7475 = vsub.f32 %v1953, %v7474
    %v7476 = vand.u32 %v7475, 4294901760
    %v7477 = vsub.f32 %v7475, %v7476
    %v7478 = vand.u32 %v7477, 4294901760
    %7479 = vmatpush1.msra.mxu0 %v7478
    %7480 = vmatprep.subr.mxu0 0.0
    %v7481 = vand.u32 %v1954, 4294901760
    %v7482 = vsub.f32 %v1954, %v7481
    %v7483 = vand.u32 %v7482, 4294901760
    %v7484 = vsub.f32 %v7482, %v7483
    %v7485 = vand.u32 %v7484, 4294901760
    %7486 = vmatpush1.msra.mxu0 %v7485
    %7487 = vmatprep.subr.mxu0 0.0
    %v7488 = vand.u32 %v1955, 4294901760
    %v7489 = vsub.f32 %v1955, %v7488
    %v7490 = vand.u32 %v7489, 4294901760
    %v7491 = vsub.f32 %v7489, %v7490
    %v7492 = vand.u32 %v7491, 4294901760
    %7493 = vmatpush1.msra.mxu0 %v7492
    %7494 = vmatprep.subr.mxu0 0.0
    %v7495 = vand.u32 %v1956, 4294901760
    %v7496 = vsub.f32 %v1956, %v7495
    %v7497 = vand.u32 %v7496, 4294901760
    %v7498 = vsub.f32 %v7496, %v7497
    %v7499 = vand.u32 %v7498, 4294901760
    %7500 = vmatpush1.msra.mxu0 %v7499
    %v7501 = vand.u32 %v1729, 4294901760
    %7502 = vmatprep.mubr.f32.mxu0 %v7501
    %v7503 = vand.u32 %v1728, 4294901760
    %7504 = vmatmul.mubr.f32.gmra.mrb[0].mxu0 %v7503
    %v7505 = vpop.f32.mrb[0].mxu0
    %v7506 = vadd.f32 %v7274, %v7505
    %v7507 = vpop.f32.mrb[0].mxu0
    %7508 = vdwg.mxu0
    %7509 = vmatprep.subr.mxu0 0.0
    %v7510 = vand.u32 %v1925, 4294901760
    %v7511 = vsub.f32 %v1925, %v7510
    %7512 = vmatpush1.msra.mxu0 %v7511
    %7513 = vmatprep.subr.mxu0 0.0
    %v7514 = vand.u32 %v1926, 4294901760
    %v7515 = vsub.f32 %v1926, %v7514
    %7516 = vmatpush1.msra.mxu0 %v7515
    %7517 = vmatprep.subr.mxu0 0.0
    %v7518 = vand.u32 %v1927, 4294901760
    %v7519 = vsub.f32 %v1927, %v7518
    %7520 = vmatpush1.msra.mxu0 %v7519
    %7521 = vmatprep.subr.mxu0 0.0
    %v7522 = vand.u32 %v1928, 4294901760
    %v7523 = vsub.f32 %v1928, %v7522
    %7524 = vmatpush1.msra.mxu0 %v7523
    %7525 = vmatprep.subr.mxu0 0.0
    %v7526 = vand.u32 %v1929, 4294901760
    %v7527 = vsub.f32 %v1929, %v7526
    %7528 = vmatpush1.msra.mxu0 %v7527
    %7529 = vmatprep.subr.mxu0 0.0
    %v7530 = vand.u32 %v1930, 4294901760
    %v7531 = vsub.f32 %v1930, %v7530
    %7532 = vmatpush1.msra.mxu0 %v7531
    %7533 = vmatprep.subr.mxu0 0.0
    %v7534 = vand.u32 %v1931, 4294901760
    %v7535 = vsub.f32 %v1931, %v7534
    %7536 = vmatpush1.msra.mxu0 %v7535
    %7537 = vmatprep.subr.mxu0 0.0
    %v7538 = vand.u32 %v1932, 4294901760
    %v7539 = vsub.f32 %v1932, %v7538
    %7540 = vmatpush1.msra.mxu0 %v7539
    %7541 = vmatprep.subr.mxu0 0.0
    %v7542 = vand.u32 %v1933, 4294901760
    %v7543 = vsub.f32 %v1933, %v7542
    %7544 = vmatpush1.msra.mxu0 %v7543
    %7545 = vmatprep.subr.mxu0 0.0
    %v7546 = vand.u32 %v1934, 4294901760
    %v7547 = vsub.f32 %v1934, %v7546
    %7548 = vmatpush1.msra.mxu0 %v7547
    %7549 = vmatprep.subr.mxu0 0.0
    %v7550 = vand.u32 %v1935, 4294901760
    %v7551 = vsub.f32 %v1935, %v7550
    %7552 = vmatpush1.msra.mxu0 %v7551
    %7553 = vmatprep.subr.mxu0 0.0
    %v7554 = vand.u32 %v1936, 4294901760
    %v7555 = vsub.f32 %v1936, %v7554
    %7556 = vmatpush1.msra.mxu0 %v7555
    %7557 = vmatprep.subr.mxu0 0.0
    %v7558 = vand.u32 %v1937, 4294901760
    %v7559 = vsub.f32 %v1937, %v7558
    %7560 = vmatpush1.msra.mxu0 %v7559
    %7561 = vmatprep.subr.mxu0 0.0
    %v7562 = vand.u32 %v1938, 4294901760
    %v7563 = vsub.f32 %v1938, %v7562
    %7564 = vmatpush1.msra.mxu0 %v7563
    %7565 = vmatprep.subr.mxu0 0.0
    %v7566 = vand.u32 %v1939, 4294901760
    %v7567 = vsub.f32 %v1939, %v7566
    %7568 = vmatpush1.msra.mxu0 %v7567
    %7569 = vmatprep.subr.mxu0 0.0
    %v7570 = vand.u32 %v1940, 4294901760
    %v7571 = vsub.f32 %v1940, %v7570
    %7572 = vmatpush1.msra.mxu0 %v7571
    %7573 = vmatprep.subr.mxu0 0.0
    %v7574 = vand.u32 %v1941, 4294901760
    %v7575 = vsub.f32 %v1941, %v7574
    %7576 = vmatpush1.msra.mxu0 %v7575
    %7577 = vmatprep.subr.mxu0 0.0
    %v7578 = vand.u32 %v1942, 4294901760
    %v7579 = vsub.f32 %v1942, %v7578
    %7580 = vmatpush1.msra.mxu0 %v7579
    %7581 = vmatprep.subr.mxu0 0.0
    %v7582 = vand.u32 %v1943, 4294901760
    %v7583 = vsub.f32 %v1943, %v7582
    %7584 = vmatpush1.msra.mxu0 %v7583
    %7585 = vmatprep.subr.mxu0 0.0
    %v7586 = vand.u32 %v1944, 4294901760
    %v7587 = vsub.f32 %v1944, %v7586
    %7588 = vmatpush1.msra.mxu0 %v7587
    %7589 = vmatprep.subr.mxu0 0.0
    %v7590 = vand.u32 %v1945, 4294901760
    %v7591 = vsub.f32 %v1945, %v7590
    %7592 = vmatpush1.msra.mxu0 %v7591
    %7593 = vmatprep.subr.mxu0 0.0
    %v7594 = vand.u32 %v1946, 4294901760
    %v7595 = vsub.f32 %v1946, %v7594
    %7596 = vmatpush1.msra.mxu0 %v7595
    %7597 = vmatprep.subr.mxu0 0.0
    %v7598 = vand.u32 %v1947, 4294901760
    %v7599 = vsub.f32 %v1947, %v7598
    %7600 = vmatpush1.msra.mxu0 %v7599
    %7601 = vmatprep.subr.mxu0 0.0
    %v7602 = vand.u32 %v1948, 4294901760
    %v7603 = vsub.f32 %v1948, %v7602
    %7604 = vmatpush1.msra.mxu0 %v7603
    %7605 = vmatprep.subr.mxu0 0.0
    %v7606 = vand.u32 %v1949, 4294901760
    %v7607 = vsub.f32 %v1949, %v7606
    %7608 = vmatpush1.msra.mxu0 %v7607
    %7609 = vmatprep.subr.mxu0 0.0
    %v7610 = vand.u32 %v1950, 4294901760
    %v7611 = vsub.f32 %v1950, %v7610
    %7612 = vmatpush1.msra.mxu0 %v7611
    %7613 = vmatprep.subr.mxu0 0.0
    %v7614 = vand.u32 %v1951, 4294901760
    %v7615 = vsub.f32 %v1951, %v7614
    %7616 = vmatpush1.msra.mxu0 %v7615
    %7617 = vmatprep.subr.mxu0 0.0
    %v7618 = vand.u32 %v1952, 4294901760
    %v7619 = vsub.f32 %v1952, %v7618
    %7620 = vmatpush1.msra.mxu0 %v7619
    %7621 = vmatprep.subr.mxu0 0.0
    %v7622 = vand.u32 %v1953, 4294901760
    %v7623 = vsub.f32 %v1953, %v7622
    %7624 = vmatpush1.msra.mxu0 %v7623
    %7625 = vmatprep.subr.mxu0 0.0
    %v7626 = vand.u32 %v1954, 4294901760
    %v7627 = vsub.f32 %v1954, %v7626
    %7628 = vmatpush1.msra.mxu0 %v7627
    %7629 = vmatprep.subr.mxu0 0.0
    %v7630 = vand.u32 %v1955, 4294901760
    %v7631 = vsub.f32 %v1955, %v7630
    %7632 = vmatpush1.msra.mxu0 %v7631
    %7633 = vmatprep.subr.mxu0 0.0
    %v7634 = vand.u32 %v1956, 4294901760
    %v7635 = vsub.f32 %v1956, %v7634
    %7636 = vmatpush1.msra.mxu0 %v7635
    %v7637 = vand.u32 %v1729, 4294901760
    %v7638 = vsub.f32 %v1729, %v7637
    %7639 = vmatprep.mubr.f32.mxu0 %v7638
    %v7640 = vand.u32 %v1728, 4294901760
    %v7641 = vsub.f32 %v1728, %v7640
    %7642 = vmatmul.mubr.f32.gmra.mrb[0].mxu0 %v7641
    %v7643 = vpop.f32.mrb[0].mxu0
    %v7644 = vadd.f32 %v7506, %v7643
    %v7645 = vpop.f32.mrb[0].mxu0
    %7646 = vdwg.mxu0
    %7647 = vmatprep.subr.mxu0 0.0
    %v7648 = vand.u32 %v1925, 4294901760
    %7649 = vmatpush1.msra.mxu0 %v7648
    %7650 = vmatprep.subr.mxu0 0.0
    %v7651 = vand.u32 %v1926, 4294901760
    %7652 = vmatpush1.msra.mxu0 %v7651
    %7653 = vmatprep.subr.mxu0 0.0
    %v7654 = vand.u32 %v1927, 4294901760
    %7655 = vmatpush1.msra.mxu0 %v7654
    %7656 = vmatprep.subr.mxu0 0.0
    %v7657 = vand.u32 %v1928, 4294901760
    %7658 = vmatpush1.msra.mxu0 %v7657
    %7659 = vmatprep.subr.mxu0 0.0
    %v7660 = vand.u32 %v1929, 4294901760
    %7661 = vmatpush1.msra.mxu0 %v7660
    %7662 = vmatprep.subr.mxu0 0.0
    %v7663 = vand.u32 %v1930, 4294901760
    %7664 = vmatpush1.msra.mxu0 %v7663
    %7665 = vmatprep.subr.mxu0 0.0
    %v7666 = vand.u32 %v1931, 4294901760
    %7667 = vmatpush1.msra.mxu0 %v7666
    %7668 = vmatprep.subr.mxu0 0.0
    %v7669 = vand.u32 %v1932, 4294901760
    %7670 = vmatpush1.msra.mxu0 %v7669
    %7671 = vmatprep.subr.mxu0 0.0
    %v7672 = vand.u32 %v1933, 4294901760
    %7673 = vmatpush1.msra.mxu0 %v7672
    %7674 = vmatprep.subr.mxu0 0.0
    %v7675 = vand.u32 %v1934, 4294901760
    %7676 = vmatpush1.msra.mxu0 %v7675
    %7677 = vmatprep.subr.mxu0 0.0
    %v7678 = vand.u32 %v1935, 4294901760
    %7679 = vmatpush1.msra.mxu0 %v7678
    %7680 = vmatprep.subr.mxu0 0.0
    %v7681 = vand.u32 %v1936, 4294901760
    %7682 = vmatpush1.msra.mxu0 %v7681
    %7683 = vmatprep.subr.mxu0 0.0
    %v7684 = vand.u32 %v1937, 4294901760
    %7685 = vmatpush1.msra.mxu0 %v7684
    %7686 = vmatprep.subr.mxu0 0.0
    %v7687 = vand.u32 %v1938, 4294901760
    %7688 = vmatpush1.msra.mxu0 %v7687
    %7689 = vmatprep.subr.mxu0 0.0
    %v7690 = vand.u32 %v1939, 4294901760
    %7691 = vmatpush1.msra.mxu0 %v7690
    %7692 = vmatprep.subr.mxu0 0.0
    %v7693 = vand.u32 %v1940, 4294901760
    %7694 = vmatpush1.msra.mxu0 %v7693
    %7695 = vmatprep.subr.mxu0 0.0
    %v7696 = vand.u32 %v1941, 4294901760
    %7697 = vmatpush1.msra.mxu0 %v7696
    %7698 = vmatprep.subr.mxu0 0.0
    %v7699 = vand.u32 %v1942, 4294901760
    %7700 = vmatpush1.msra.mxu0 %v7699
    %7701 = vmatprep.subr.mxu0 0.0
    %v7702 = vand.u32 %v1943, 4294901760
    %7703 = vmatpush1.msra.mxu0 %v7702
    %7704 = vmatprep.subr.mxu0 0.0
    %v7705 = vand.u32 %v1944, 4294901760
    %7706 = vmatpush1.msra.mxu0 %v7705
    %7707 = vmatprep.subr.mxu0 0.0
    %v7708 = vand.u32 %v1945, 4294901760
    %7709 = vmatpush1.msra.mxu0 %v7708
    %7710 = vmatprep.subr.mxu0 0.0
    %v7711 = vand.u32 %v1946, 4294901760
    %7712 = vmatpush1.msra.mxu0 %v7711
    %7713 = vmatprep.subr.mxu0 0.0
    %v7714 = vand.u32 %v1947, 4294901760
    %7715 = vmatpush1.msra.mxu0 %v7714
    %7716 = vmatprep.subr.mxu0 0.0
    %v7717 = vand.u32 %v1948, 4294901760
    %7718 = vmatpush1.msra.mxu0 %v7717
    %7719 = vmatprep.subr.mxu0 0.0
    %v7720 = vand.u32 %v1949, 4294901760
    %7721 = vmatpush1.msra.mxu0 %v7720
    %7722 = vmatprep.subr.mxu0 0.0
    %v7723 = vand.u32 %v1950, 4294901760
    %7724 = vmatpush1.msra.mxu0 %v7723
    %7725 = vmatprep.subr.mxu0 0.0
    %v7726 = vand.u32 %v1951, 4294901760
    %7727 = vmatpush1.msra.mxu0 %v7726
    %7728 = vmatprep.subr.mxu0 0.0
    %v7729 = vand.u32 %v1952, 4294901760
    %7730 = vmatpush1.msra.mxu0 %v7729
    %7731 = vmatprep.subr.mxu0 0.0
    %v7732 = vand.u32 %v1953, 4294901760
    %7733 = vmatpush1.msra.mxu0 %v7732
    %7734 = vmatprep.subr.mxu0 0.0
    %v7735 = vand.u32 %v1954, 4294901760
    %7736 = vmatpush1.msra.mxu0 %v7735
    %7737 = vmatprep.subr.mxu0 0.0
    %v7738 = vand.u32 %v1955, 4294901760
    %7739 = vmatpush1.msra.mxu0 %v7738
    %7740 = vmatprep.subr.mxu0 0.0
    %v7741 = vand.u32 %v1956, 4294901760
    %7742 = vmatpush1.msra.mxu0 %v7741
    %v7743 = vand.u32 %v1729, 4294901760
    %v7744 = vsub.f32 %v1729, %v7743
    %v7745 = vand.u32 %v7744, 4294901760
    %7746 = vmatprep.mubr.f32.mxu0 %v7745
    %v7747 = vand.u32 %v1728, 4294901760
    %v7748 = vsub.f32 %v1728, %v7747
    %v7749 = vand.u32 %v7748, 4294901760
    %7750 = vmatmul.mubr.f32.gmra.mrb[0].mxu0 %v7749
    %v7751 = vpop.f32.mrb[0].mxu0
    %v7752 = vadd.f32 %v7644, %v7751
    %v7753 = vpop.f32.mrb[0].mxu0
    %7754 = vdwg.mxu0
    %7755 = vmatprep.subr.mxu0 0.0
    %v7756 = vand.u32 %v1925, 4294901760
    %v7757 = vsub.f32 %v1925, %v7756
    %v7758 = vand.u32 %v7757, 4294901760
    %7759 = vmatpush1.msra.mxu0 %v7758
    %7760 = vmatprep.subr.mxu0 0.0
    %v7761 = vand.u32 %v1926, 4294901760
    %v7762 = vsub.f32 %v1926, %v7761
    %v7763 = vand.u32 %v7762, 4294901760
    %7764 = vmatpush1.msra.mxu0 %v7763
    %7765 = vmatprep.subr.mxu0 0.0
    %v7766 = vand.u32 %v1927, 4294901760
    %v7767 = vsub.f32 %v1927, %v7766
    %v7768 = vand.u32 %v7767, 4294901760
    %7769 = vmatpush1.msra.mxu0 %v7768
    %7770 = vmatprep.subr.mxu0 0.0
    %v7771 = vand.u32 %v1928, 4294901760
    %v7772 = vsub.f32 %v1928, %v7771
    %v7773 = vand.u32 %v7772, 4294901760
    %7774 = vmatpush1.msra.mxu0 %v7773
    %7775 = vmatprep.subr.mxu0 0.0
    %v7776 = vand.u32 %v1929, 4294901760
    %v7777 = vsub.f32 %v1929, %v7776
    %v7778 = vand.u32 %v7777, 4294901760
    %7779 = vmatpush1.msra.mxu0 %v7778
    %7780 = vmatprep.subr.mxu0 0.0
    %v7781 = vand.u32 %v1930, 4294901760
    %v7782 = vsub.f32 %v1930, %v7781
    %v7783 = vand.u32 %v7782, 4294901760
    %7784 = vmatpush1.msra.mxu0 %v7783
    %7785 = vmatprep.subr.mxu0 0.0
    %v7786 = vand.u32 %v1931, 4294901760
    %v7787 = vsub.f32 %v1931, %v7786
    %v7788 = vand.u32 %v7787, 4294901760
    %7789 = vmatpush1.msra.mxu0 %v7788
    %7790 = vmatprep.subr.mxu0 0.0
    %v7791 = vand.u32 %v1932, 4294901760
    %v7792 = vsub.f32 %v1932, %v7791
    %v7793 = vand.u32 %v7792, 4294901760
    %7794 = vmatpush1.msra.mxu0 %v7793
    %7795 = vmatprep.subr.mxu0 0.0
    %v7796 = vand.u32 %v1933, 4294901760
    %v7797 = vsub.f32 %v1933, %v7796
    %v7798 = vand.u32 %v7797, 4294901760
    %7799 = vmatpush1.msra.mxu0 %v7798
    %7800 = vmatprep.subr.mxu0 0.0
    %v7801 = vand.u32 %v1934, 4294901760
    %v7802 = vsub.f32 %v1934, %v7801
    %v7803 = vand.u32 %v7802, 4294901760
    %7804 = vmatpush1.msra.mxu0 %v7803
    %7805 = vmatprep.subr.mxu0 0.0
    %v7806 = vand.u32 %v1935, 4294901760
    %v7807 = vsub.f32 %v1935, %v7806
    %v7808 = vand.u32 %v7807, 4294901760
    %7809 = vmatpush1.msra.mxu0 %v7808
    %7810 = vmatprep.subr.mxu0 0.0
    %v7811 = vand.u32 %v1936, 4294901760
    %v7812 = vsub.f32 %v1936, %v7811
    %v7813 = vand.u32 %v7812, 4294901760
    %7814 = vmatpush1.msra.mxu0 %v7813
    %7815 = vmatprep.subr.mxu0 0.0
    %v7816 = vand.u32 %v1937, 4294901760
    %v7817 = vsub.f32 %v1937, %v7816
    %v7818 = vand.u32 %v7817, 4294901760
    %7819 = vmatpush1.msra.mxu0 %v7818
    %7820 = vmatprep.subr.mxu0 0.0
    %v7821 = vand.u32 %v1938, 4294901760
    %v7822 = vsub.f32 %v1938, %v7821
    %v7823 = vand.u32 %v7822, 4294901760
    %7824 = vmatpush1.msra.mxu0 %v7823
    %7825 = vmatprep.subr.mxu0 0.0
    %v7826 = vand.u32 %v1939, 4294901760
    %v7827 = vsub.f32 %v1939, %v7826
    %v7828 = vand.u32 %v7827, 4294901760
    %7829 = vmatpush1.msra.mxu0 %v7828
    %7830 = vmatprep.subr.mxu0 0.0
    %v7831 = vand.u32 %v1940, 4294901760
    %v7832 = vsub.f32 %v1940, %v7831
    %v7833 = vand.u32 %v7832, 4294901760
    %7834 = vmatpush1.msra.mxu0 %v7833
    %7835 = vmatprep.subr.mxu0 0.0
    %v7836 = vand.u32 %v1941, 4294901760
    %v7837 = vsub.f32 %v1941, %v7836
    %v7838 = vand.u32 %v7837, 4294901760
    %7839 = vmatpush1.msra.mxu0 %v7838
    %7840 = vmatprep.subr.mxu0 0.0
    %v7841 = vand.u32 %v1942, 4294901760
    %v7842 = vsub.f32 %v1942, %v7841
    %v7843 = vand.u32 %v7842, 4294901760
    %7844 = vmatpush1.msra.mxu0 %v7843
    %7845 = vmatprep.subr.mxu0 0.0
    %v7846 = vand.u32 %v1943, 4294901760
    %v7847 = vsub.f32 %v1943, %v7846
    %v7848 = vand.u32 %v7847, 4294901760
    %7849 = vmatpush1.msra.mxu0 %v7848
    %7850 = vmatprep.subr.mxu0 0.0
    %v7851 = vand.u32 %v1944, 4294901760
    %v7852 = vsub.f32 %v1944, %v7851
    %v7853 = vand.u32 %v7852, 4294901760
    %7854 = vmatpush1.msra.mxu0 %v7853
    %7855 = vmatprep.subr.mxu0 0.0
    %v7856 = vand.u32 %v1945, 4294901760
    %v7857 = vsub.f32 %v1945, %v7856
    %v7858 = vand.u32 %v7857, 4294901760
    %7859 = vmatpush1.msra.mxu0 %v7858
    %7860 = vmatprep.subr.mxu0 0.0
    %v7861 = vand.u32 %v1946, 4294901760
    %v7862 = vsub.f32 %v1946, %v7861
    %v7863 = vand.u32 %v7862, 4294901760
    %7864 = vmatpush1.msra.mxu0 %v7863
    %7865 = vmatprep.subr.mxu0 0.0
    %v7866 = vand.u32 %v1947, 4294901760
    %v7867 = vsub.f32 %v1947, %v7866
    %v7868 = vand.u32 %v7867, 4294901760
    %7869 = vmatpush1.msra.mxu0 %v7868
    %7870 = vmatprep.subr.mxu0 0.0
    %v7871 = vand.u32 %v1948, 4294901760
    %v7872 = vsub.f32 %v1948, %v7871
    %v7873 = vand.u32 %v7872, 4294901760
    %7874 = vmatpush1.msra.mxu0 %v7873
    %7875 = vmatprep.subr.mxu0 0.0
    %v7876 = vand.u32 %v1949, 4294901760
    %v7877 = vsub.f32 %v1949, %v7876
    %v7878 = vand.u32 %v7877, 4294901760
    %7879 = vmatpush1.msra.mxu0 %v7878
    %7880 = vmatprep.subr.mxu0 0.0
    %v7881 = vand.u32 %v1950, 4294901760
    %v7882 = vsub.f32 %v1950, %v7881
    %v7883 = vand.u32 %v7882, 4294901760
    %7884 = vmatpush1.msra.mxu0 %v7883
    %7885 = vmatprep.subr.mxu0 0.0
    %v7886 = vand.u32 %v1951, 4294901760
    %v7887 = vsub.f32 %v1951, %v7886
    %v7888 = vand.u32 %v7887, 4294901760
    %7889 = vmatpush1.msra.mxu0 %v7888
    %7890 = vmatprep.subr.mxu0 0.0
    %v7891 = vand.u32 %v1952, 4294901760
    %v7892 = vsub.f32 %v1952, %v7891
    %v7893 = vand.u32 %v7892, 4294901760
    %7894 = vmatpush1.msra.mxu0 %v7893
    %7895 = vmatprep.subr.mxu0 0.0
    %v7896 = vand.u32 %v1953, 4294901760
    %v7897 = vsub.f32 %v1953, %v7896
    %v7898 = vand.u32 %v7897, 4294901760
    %7899 = vmatpush1.msra.mxu0 %v7898
    %7900 = vmatprep.subr.mxu0 0.0
    %v7901 = vand.u32 %v1954, 4294901760
    %v7902 = vsub.f32 %v1954, %v7901
    %v7903 = vand.u32 %v7902, 4294901760
    %7904 = vmatpush1.msra.mxu0 %v7903
    %7905 = vmatprep.subr.mxu0 0.0
    %v7906 = vand.u32 %v1955, 4294901760
    %v7907 = vsub.f32 %v1955, %v7906
    %v7908 = vand.u32 %v7907, 4294901760
    %7909 = vmatpush1.msra.mxu0 %v7908
    %7910 = vmatprep.subr.mxu0 0.0
    %v7911 = vand.u32 %v1956, 4294901760
    %v7912 = vsub.f32 %v1956, %v7911
    %v7913 = vand.u32 %v7912, 4294901760
    %7914 = vmatpush1.msra.mxu0 %v7913
    %v7915 = vand.u32 %v1729, 4294901760
    %7916 = vmatprep.mubr.f32.mxu0 %v7915
    %v7917 = vand.u32 %v1728, 4294901760
    %7918 = vmatmul.mubr.f32.gmra.mrb[0].mxu0 %v7917
    %v7919 = vpop.f32.mrb[0].mxu0
    %v7920 = vadd.f32 %v7752, %v7919
    %v7921 = vpop.f32.mrb[0].mxu0
    %7922 = vdwg.mxu0
    %7923 = vmatprep.subr.mxu0 0.0
    %v7924 = vand.u32 %v1925, 4294901760
    %7925 = vmatpush1.msra.mxu0 %v7924
    %7926 = vmatprep.subr.mxu0 0.0
    %v7927 = vand.u32 %v1926, 4294901760
    %7928 = vmatpush1.msra.mxu0 %v7927
    %7929 = vmatprep.subr.mxu0 0.0
    %v7930 = vand.u32 %v1927, 4294901760
    %7931 = vmatpush1.msra.mxu0 %v7930
    %7932 = vmatprep.subr.mxu0 0.0
    %v7933 = vand.u32 %v1928, 4294901760
    %7934 = vmatpush1.msra.mxu0 %v7933
    %7935 = vmatprep.subr.mxu0 0.0
    %v7936 = vand.u32 %v1929, 4294901760
    %7937 = vmatpush1.msra.mxu0 %v7936
    %7938 = vmatprep.subr.mxu0 0.0
    %v7939 = vand.u32 %v1930, 4294901760
    %7940 = vmatpush1.msra.mxu0 %v7939
    %7941 = vmatprep.subr.mxu0 0.0
    %v7942 = vand.u32 %v1931, 4294901760
    %7943 = vmatpush1.msra.mxu0 %v7942
    %7944 = vmatprep.subr.mxu0 0.0
    %v7945 = vand.u32 %v1932, 4294901760
    %7946 = vmatpush1.msra.mxu0 %v7945
    %7947 = vmatprep.subr.mxu0 0.0
    %v7948 = vand.u32 %v1933, 4294901760
    %7949 = vmatpush1.msra.mxu0 %v7948
    %7950 = vmatprep.subr.mxu0 0.0
    %v7951 = vand.u32 %v1934, 4294901760
    %7952 = vmatpush1.msra.mxu0 %v7951
    %7953 = vmatprep.subr.mxu0 0.0
    %v7954 = vand.u32 %v1935, 4294901760
    %7955 = vmatpush1.msra.mxu0 %v7954
    %7956 = vmatprep.subr.mxu0 0.0
    %v7957 = vand.u32 %v1936, 4294901760
    %7958 = vmatpush1.msra.mxu0 %v7957
    %7959 = vmatprep.subr.mxu0 0.0
    %v7960 = vand.u32 %v1937, 4294901760
    %7961 = vmatpush1.msra.mxu0 %v7960
    %7962 = vmatprep.subr.mxu0 0.0
    %v7963 = vand.u32 %v1938, 4294901760
    %7964 = vmatpush1.msra.mxu0 %v7963
    %7965 = vmatprep.subr.mxu0 0.0
    %v7966 = vand.u32 %v1939, 4294901760
    %7967 = vmatpush1.msra.mxu0 %v7966
    %7968 = vmatprep.subr.mxu0 0.0
    %v7969 = vand.u32 %v1940, 4294901760
    %7970 = vmatpush1.msra.mxu0 %v7969
    %7971 = vmatprep.subr.mxu0 0.0
    %v7972 = vand.u32 %v1941, 4294901760
    %7973 = vmatpush1.msra.mxu0 %v7972
    %7974 = vmatprep.subr.mxu0 0.0
    %v7975 = vand.u32 %v1942, 4294901760
    %7976 = vmatpush1.msra.mxu0 %v7975
    %7977 = vmatprep.subr.mxu0 0.0
    %v7978 = vand.u32 %v1943, 4294901760
    %7979 = vmatpush1.msra.mxu0 %v7978
    %7980 = vmatprep.subr.mxu0 0.0
    %v7981 = vand.u32 %v1944, 4294901760
    %7982 = vmatpush1.msra.mxu0 %v7981
    %7983 = vmatprep.subr.mxu0 0.0
    %v7984 = vand.u32 %v1945, 4294901760
    %7985 = vmatpush1.msra.mxu0 %v7984
    %7986 = vmatprep.subr.mxu0 0.0
    %v7987 = vand.u32 %v1946, 4294901760
    %7988 = vmatpush1.msra.mxu0 %v7987
    %7989 = vmatprep.subr.mxu0 0.0
    %v7990 = vand.u32 %v1947, 4294901760
    %7991 = vmatpush1.msra.mxu0 %v7990
    %7992 = vmatprep.subr.mxu0 0.0
    %v7993 = vand.u32 %v1948, 4294901760
    %7994 = vmatpush1.msra.mxu0 %v7993
    %7995 = vmatprep.subr.mxu0 0.0
    %v7996 = vand.u32 %v1949, 4294901760
    %7997 = vmatpush1.msra.mxu0 %v7996
    %7998 = vmatprep.subr.mxu0 0.0
    %v7999 = vand.u32 %v1950, 4294901760
    %8000 = vmatpush1.msra.mxu0 %v7999
    %8001 = vmatprep.subr.mxu0 0.0
    %v8002 = vand.u32 %v1951, 4294901760
    %8003 = vmatpush1.msra.mxu0 %v8002
    %8004 = vmatprep.subr.mxu0 0.0
    %v8005 = vand.u32 %v1952, 4294901760
    %8006 = vmatpush1.msra.mxu0 %v8005
    %8007 = vmatprep.subr.mxu0 0.0
    %v8008 = vand.u32 %v1953, 4294901760
    %8009 = vmatpush1.msra.mxu0 %v8008
    %8010 = vmatprep.subr.mxu0 0.0
    %v8011 = vand.u32 %v1954, 4294901760
    %8012 = vmatpush1.msra.mxu0 %v8011
    %8013 = vmatprep.subr.mxu0 0.0
    %v8014 = vand.u32 %v1955, 4294901760
    %8015 = vmatpush1.msra.mxu0 %v8014
    %8016 = vmatprep.subr.mxu0 0.0
    %v8017 = vand.u32 %v1956, 4294901760
    %8018 = vmatpush1.msra.mxu0 %v8017
    %v8019 = vand.u32 %v1729, 4294901760
    %8020 = vmatprep.mubr.f32.mxu0 %v8019
    %v8021 = vand.u32 %v1728, 4294901760
    %8022 = vmatmul.mubr.f32.gmra.mrb[0].mxu0 %v8021
    %v8023 = vpop.f32.mrb[0].mxu0
    %v8024 = vadd.f32 %v7920, %v8023
    %v8025 = vpop.f32.mrb[0].mxu0
    %8026 = vdwg.mxu0
    %8027 = vmatprep.subr.mxu0 0.0
    %v8028 = vand.u32 %v1957, 4294901760
    %8029 = vmatpush1.msra.mxu0 %v8028
    %8030 = vmatprep.subr.mxu0 0.0
    %v8031 = vand.u32 %v1958, 4294901760
    %8032 = vmatpush1.msra.mxu0 %v8031
    %8033 = vmatprep.subr.mxu0 0.0
    %v8034 = vand.u32 %v1959, 4294901760
    %8035 = vmatpush1.msra.mxu0 %v8034
    %8036 = vmatprep.subr.mxu0 0.0
    %v8037 = vand.u32 %v1960, 4294901760
    %8038 = vmatpush1.msra.mxu0 %v8037
    %8039 = vmatprep.subr.mxu0 0.0
    %v8040 = vand.u32 %v1961, 4294901760
    %8041 = vmatpush1.msra.mxu0 %v8040
    %8042 = vmatprep.subr.mxu0 0.0
    %v8043 = vand.u32 %v1962, 4294901760
    %8044 = vmatpush1.msra.mxu0 %v8043
    %8045 = vmatprep.subr.mxu0 0.0
    %v8046 = vand.u32 %v1963, 4294901760
    %8047 = vmatpush1.msra.mxu0 %v8046
    %8048 = vmatprep.subr.mxu0 0.0
    %v8049 = vand.u32 %v1964, 4294901760
    %8050 = vmatpush1.msra.mxu0 %v8049
    %8051 = vmatprep.subr.mxu0 0.0
    %v8052 = vand.u32 %v1965, 4294901760
    %8053 = vmatpush1.msra.mxu0 %v8052
    %8054 = vmatprep.subr.mxu0 0.0
    %v8055 = vand.u32 %v1966, 4294901760
    %8056 = vmatpush1.msra.mxu0 %v8055
    %8057 = vmatprep.subr.mxu0 0.0
    %v8058 = vand.u32 %v1967, 4294901760
    %8059 = vmatpush1.msra.mxu0 %v8058
    %8060 = vmatprep.subr.mxu0 0.0
    %v8061 = vand.u32 %v1968, 4294901760
    %8062 = vmatpush1.msra.mxu0 %v8061
    %8063 = vmatprep.subr.mxu0 0.0
    %v8064 = vand.u32 %v1969, 4294901760
    %8065 = vmatpush1.msra.mxu0 %v8064
    %8066 = vmatprep.subr.mxu0 0.0
    %v8067 = vand.u32 %v1970, 4294901760
    %8068 = vmatpush1.msra.mxu0 %v8067
    %8069 = vmatprep.subr.mxu0 0.0
    %v8070 = vand.u32 %v1971, 4294901760
    %8071 = vmatpush1.msra.mxu0 %v8070
    %8072 = vmatprep.subr.mxu0 0.0
    %v8073 = vand.u32 %v1972, 4294901760
    %8074 = vmatpush1.msra.mxu0 %v8073
    %8075 = vmatprep.subr.mxu0 0.0
    %v8076 = vand.u32 %v1973, 4294901760
    %8077 = vmatpush1.msra.mxu0 %v8076
    %8078 = vmatprep.subr.mxu0 0.0
    %v8079 = vand.u32 %v1974, 4294901760
    %8080 = vmatpush1.msra.mxu0 %v8079
    %8081 = vmatprep.subr.mxu0 0.0
    %v8082 = vand.u32 %v1975, 4294901760
    %8083 = vmatpush1.msra.mxu0 %v8082
    %8084 = vmatprep.subr.mxu0 0.0
    %v8085 = vand.u32 %v1976, 4294901760
    %8086 = vmatpush1.msra.mxu0 %v8085
    %8087 = vmatprep.subr.mxu0 0.0
    %v8088 = vand.u32 %v1977, 4294901760
    %8089 = vmatpush1.msra.mxu0 %v8088
    %8090 = vmatprep.subr.mxu0 0.0
    %v8091 = vand.u32 %v1978, 4294901760
    %8092 = vmatpush1.msra.mxu0 %v8091
    %8093 = vmatprep.subr.mxu0 0.0
    %v8094 = vand.u32 %v1979, 4294901760
    %8095 = vmatpush1.msra.mxu0 %v8094
    %8096 = vmatprep.subr.mxu0 0.0
    %v8097 = vand.u32 %v1980, 4294901760
    %8098 = vmatpush1.msra.mxu0 %v8097
    %8099 = vmatprep.subr.mxu0 0.0
    %v8100 = vand.u32 %v1981, 4294901760
    %8101 = vmatpush1.msra.mxu0 %v8100
    %8102 = vmatprep.subr.mxu0 0.0
    %v8103 = vand.u32 %v1982, 4294901760
    %8104 = vmatpush1.msra.mxu0 %v8103
    %8105 = vmatprep.subr.mxu0 0.0
    %v8106 = vand.u32 %v1983, 4294901760
    %8107 = vmatpush1.msra.mxu0 %v8106
    %8108 = vmatprep.subr.mxu0 0.0
    %v8109 = vand.u32 %v1984, 4294901760
    %8110 = vmatpush1.msra.mxu0 %v8109
    %8111 = vmatprep.subr.mxu0 0.0
    %v8112 = vand.u32 %v1985, 4294901760
    %8113 = vmatpush1.msra.mxu0 %v8112
    %8114 = vmatprep.subr.mxu0 0.0
    %v8115 = vand.u32 %v1986, 4294901760
    %8116 = vmatpush1.msra.mxu0 %v8115
    %8117 = vmatprep.subr.mxu0 0.0
    %v8118 = vand.u32 %v1987, 4294901760
    %8119 = vmatpush1.msra.mxu0 %v8118
    %8120 = vmatprep.subr.mxu0 0.0
    %v8121 = vand.u32 %v1988, 4294901760
    %8122 = vmatpush1.msra.mxu0 %v8121
    %v8123 = vand.u32 %v1731, 4294901760
    %v8124 = vsub.f32 %v1731, %v8123
    %v8125 = vand.u32 %v8124, 4294901760
    %v8126 = vsub.f32 %v8124, %v8125
    %v8127 = vand.u32 %v8126, 4294901760
    %8128 = vmatprep.mubr.f32.mxu0 %v8127
    %v8129 = vand.u32 %v1730, 4294901760
    %v8130 = vsub.f32 %v1730, %v8129
    %v8131 = vand.u32 %v8130, 4294901760
    %v8132 = vsub.f32 %v8130, %v8131
    %v8133 = vand.u32 %v8132, 4294901760
    %8134 = vmatmul.mubr.f32.gmra.mrb[0].mxu0 %v8133
    %v8135 = vpop.f32.mrb[0].mxu0
    %v8136 = vadd.f32 %v8024, %v8135
    %v8137 = vpop.f32.mrb[0].mxu0
    %8138 = vdwg.mxu0
    %8139 = vmatprep.subr.mxu0 0.0
    %v8140 = vand.u32 %v1957, 4294901760
    %v8141 = vsub.f32 %v1957, %v8140
    %v8142 = vand.u32 %v8141, 4294901760
    %v8143 = vsub.f32 %v8141, %v8142
    %v8144 = vand.u32 %v8143, 4294901760
    %8145 = vmatpush1.msra.mxu0 %v8144
    %8146 = vmatprep.subr.mxu0 0.0
    %v8147 = vand.u32 %v1958, 4294901760
    %v8148 = vsub.f32 %v1958, %v8147
    %v8149 = vand.u32 %v8148, 4294901760
    %v8150 = vsub.f32 %v8148, %v8149
    %v8151 = vand.u32 %v8150, 4294901760
    %8152 = vmatpush1.msra.mxu0 %v8151
    %8153 = vmatprep.subr.mxu0 0.0
    %v8154 = vand.u32 %v1959, 4294901760
    %v8155 = vsub.f32 %v1959, %v8154
    %v8156 = vand.u32 %v8155, 4294901760
    %v8157 = vsub.f32 %v8155, %v8156
    %v8158 = vand.u32 %v8157, 4294901760
    %8159 = vmatpush1.msra.mxu0 %v8158
    %8160 = vmatprep.subr.mxu0 0.0
    %v8161 = vand.u32 %v1960, 4294901760
    %v8162 = vsub.f32 %v1960, %v8161
    %v8163 = vand.u32 %v8162, 4294901760
    %v8164 = vsub.f32 %v8162, %v8163
    %v8165 = vand.u32 %v8164, 4294901760
    %8166 = vmatpush1.msra.mxu0 %v8165
    %8167 = vmatprep.subr.mxu0 0.0
    %v8168 = vand.u32 %v1961, 4294901760
    %v8169 = vsub.f32 %v1961, %v8168
    %v8170 = vand.u32 %v8169, 4294901760
    %v8171 = vsub.f32 %v8169, %v8170
    %v8172 = vand.u32 %v8171, 4294901760
    %8173 = vmatpush1.msra.mxu0 %v8172
    %8174 = vmatprep.subr.mxu0 0.0
    %v8175 = vand.u32 %v1962, 4294901760
    %v8176 = vsub.f32 %v1962, %v8175
    %v8177 = vand.u32 %v8176, 4294901760
    %v8178 = vsub.f32 %v8176, %v8177
    %v8179 = vand.u32 %v8178, 4294901760
    %8180 = vmatpush1.msra.mxu0 %v8179
    %8181 = vmatprep.subr.mxu0 0.0
    %v8182 = vand.u32 %v1963, 4294901760
    %v8183 = vsub.f32 %v1963, %v8182
    %v8184 = vand.u32 %v8183, 4294901760
    %v8185 = vsub.f32 %v8183, %v8184
    %v8186 = vand.u32 %v8185, 4294901760
    %8187 = vmatpush1.msra.mxu0 %v8186
    %8188 = vmatprep.subr.mxu0 0.0
    %v8189 = vand.u32 %v1964, 4294901760
    %v8190 = vsub.f32 %v1964, %v8189
    %v8191 = vand.u32 %v8190, 4294901760
    %v8192 = vsub.f32 %v8190, %v8191
    %v8193 = vand.u32 %v8192, 4294901760
    %8194 = vmatpush1.msra.mxu0 %v8193
    %8195 = vmatprep.subr.mxu0 0.0
    %v8196 = vand.u32 %v1965, 4294901760
    %v8197 = vsub.f32 %v1965, %v8196
    %v8198 = vand.u32 %v8197, 4294901760
    %v8199 = vsub.f32 %v8197, %v8198
    %v8200 = vand.u32 %v8199, 4294901760
    %8201 = vmatpush1.msra.mxu0 %v8200
    %8202 = vmatprep.subr.mxu0 0.0
    %v8203 = vand.u32 %v1966, 4294901760
    %v8204 = vsub.f32 %v1966, %v8203
    %v8205 = vand.u32 %v8204, 4294901760
    %v8206 = vsub.f32 %v8204, %v8205
    %v8207 = vand.u32 %v8206, 4294901760
    %8208 = vmatpush1.msra.mxu0 %v8207
    %8209 = vmatprep.subr.mxu0 0.0
    %v8210 = vand.u32 %v1967, 4294901760
    %v8211 = vsub.f32 %v1967, %v8210
    %v8212 = vand.u32 %v8211, 4294901760
    %v8213 = vsub.f32 %v8211, %v8212
    %v8214 = vand.u32 %v8213, 4294901760
    %8215 = vmatpush1.msra.mxu0 %v8214
    %8216 = vmatprep.subr.mxu0 0.0
    %v8217 = vand.u32 %v1968, 4294901760
    %v8218 = vsub.f32 %v1968, %v8217
    %v8219 = vand.u32 %v8218, 4294901760
    %v8220 = vsub.f32 %v8218, %v8219
    %v8221 = vand.u32 %v8220, 4294901760
    %8222 = vmatpush1.msra.mxu0 %v8221
    %8223 = vmatprep.subr.mxu0 0.0
    %v8224 = vand.u32 %v1969, 4294901760
    %v8225 = vsub.f32 %v1969, %v8224
    %v8226 = vand.u32 %v8225, 4294901760
    %v8227 = vsub.f32 %v8225, %v8226
    %v8228 = vand.u32 %v8227, 4294901760
    %8229 = vmatpush1.msra.mxu0 %v8228
    %8230 = vmatprep.subr.mxu0 0.0
    %v8231 = vand.u32 %v1970, 4294901760
    %v8232 = vsub.f32 %v1970, %v8231
    %v8233 = vand.u32 %v8232, 4294901760
    %v8234 = vsub.f32 %v8232, %v8233
    %v8235 = vand.u32 %v8234, 4294901760
    %8236 = vmatpush1.msra.mxu0 %v8235
    %8237 = vmatprep.subr.mxu0 0.0
    %v8238 = vand.u32 %v1971, 4294901760
    %v8239 = vsub.f32 %v1971, %v8238
    %v8240 = vand.u32 %v8239, 4294901760
    %v8241 = vsub.f32 %v8239, %v8240
    %v8242 = vand.u32 %v8241, 4294901760
    %8243 = vmatpush1.msra.mxu0 %v8242
    %8244 = vmatprep.subr.mxu0 0.0
    %v8245 = vand.u32 %v1972, 4294901760
    %v8246 = vsub.f32 %v1972, %v8245
    %v8247 = vand.u32 %v8246, 4294901760
    %v8248 = vsub.f32 %v8246, %v8247
    %v8249 = vand.u32 %v8248, 4294901760
    %8250 = vmatpush1.msra.mxu0 %v8249
    %8251 = vmatprep.subr.mxu0 0.0
    %v8252 = vand.u32 %v1973, 4294901760
    %v8253 = vsub.f32 %v1973, %v8252
    %v8254 = vand.u32 %v8253, 4294901760
    %v8255 = vsub.f32 %v8253, %v8254
    %v8256 = vand.u32 %v8255, 4294901760
    %8257 = vmatpush1.msra.mxu0 %v8256
    %8258 = vmatprep.subr.mxu0 0.0
    %v8259 = vand.u32 %v1974, 4294901760
    %v8260 = vsub.f32 %v1974, %v8259
    %v8261 = vand.u32 %v8260, 4294901760
    %v8262 = vsub.f32 %v8260, %v8261
    %v8263 = vand.u32 %v8262, 4294901760
    %8264 = vmatpush1.msra.mxu0 %v8263
    %8265 = vmatprep.subr.mxu0 0.0
    %v8266 = vand.u32 %v1975, 4294901760
    %v8267 = vsub.f32 %v1975, %v8266
    %v8268 = vand.u32 %v8267, 4294901760
    %v8269 = vsub.f32 %v8267, %v8268
    %v8270 = vand.u32 %v8269, 4294901760
    %8271 = vmatpush1.msra.mxu0 %v8270
    %8272 = vmatprep.subr.mxu0 0.0
    %v8273 = vand.u32 %v1976, 4294901760
    %v8274 = vsub.f32 %v1976, %v8273
    %v8275 = vand.u32 %v8274, 4294901760
    %v8276 = vsub.f32 %v8274, %v8275
    %v8277 = vand.u32 %v8276, 4294901760
    %8278 = vmatpush1.msra.mxu0 %v8277
    %8279 = vmatprep.subr.mxu0 0.0
    %v8280 = vand.u32 %v1977, 4294901760
    %v8281 = vsub.f32 %v1977, %v8280
    %v8282 = vand.u32 %v8281, 4294901760
    %v8283 = vsub.f32 %v8281, %v8282
    %v8284 = vand.u32 %v8283, 4294901760
    %8285 = vmatpush1.msra.mxu0 %v8284
    %8286 = vmatprep.subr.mxu0 0.0
    %v8287 = vand.u32 %v1978, 4294901760
    %v8288 = vsub.f32 %v1978, %v8287
    %v8289 = vand.u32 %v8288, 4294901760
    %v8290 = vsub.f32 %v8288, %v8289
    %v8291 = vand.u32 %v8290, 4294901760
    %8292 = vmatpush1.msra.mxu0 %v8291
    %8293 = vmatprep.subr.mxu0 0.0
    %v8294 = vand.u32 %v1979, 4294901760
    %v8295 = vsub.f32 %v1979, %v8294
    %v8296 = vand.u32 %v8295, 4294901760
    %v8297 = vsub.f32 %v8295, %v8296
    %v8298 = vand.u32 %v8297, 4294901760
    %8299 = vmatpush1.msra.mxu0 %v8298
    %8300 = vmatprep.subr.mxu0 0.0
    %v8301 = vand.u32 %v1980, 4294901760
    %v8302 = vsub.f32 %v1980, %v8301
    %v8303 = vand.u32 %v8302, 4294901760
    %v8304 = vsub.f32 %v8302, %v8303
    %v8305 = vand.u32 %v8304, 4294901760
    %8306 = vmatpush1.msra.mxu0 %v8305
    %8307 = vmatprep.subr.mxu0 0.0
    %v8308 = vand.u32 %v1981, 4294901760
    %v8309 = vsub.f32 %v1981, %v8308
    %v8310 = vand.u32 %v8309, 4294901760
    %v8311 = vsub.f32 %v8309, %v8310
    %v8312 = vand.u32 %v8311, 4294901760
    %8313 = vmatpush1.msra.mxu0 %v8312
    %8314 = vmatprep.subr.mxu0 0.0
    %v8315 = vand.u32 %v1982, 4294901760
    %v8316 = vsub.f32 %v1982, %v8315
    %v8317 = vand.u32 %v8316, 4294901760
    %v8318 = vsub.f32 %v8316, %v8317
    %v8319 = vand.u32 %v8318, 4294901760
    %8320 = vmatpush1.msra.mxu0 %v8319
    %8321 = vmatprep.subr.mxu0 0.0
    %v8322 = vand.u32 %v1983, 4294901760
    %v8323 = vsub.f32 %v1983, %v8322
    %v8324 = vand.u32 %v8323, 4294901760
    %v8325 = vsub.f32 %v8323, %v8324
    %v8326 = vand.u32 %v8325, 4294901760
    %8327 = vmatpush1.msra.mxu0 %v8326
    %8328 = vmatprep.subr.mxu0 0.0
    %v8329 = vand.u32 %v1984, 4294901760
    %v8330 = vsub.f32 %v1984, %v8329
    %v8331 = vand.u32 %v8330, 4294901760
    %v8332 = vsub.f32 %v8330, %v8331
    %v8333 = vand.u32 %v8332, 4294901760
    %8334 = vmatpush1.msra.mxu0 %v8333
    %8335 = vmatprep.subr.mxu0 0.0
    %v8336 = vand.u32 %v1985, 4294901760
    %v8337 = vsub.f32 %v1985, %v8336
    %v8338 = vand.u32 %v8337, 4294901760
    %v8339 = vsub.f32 %v8337, %v8338
    %v8340 = vand.u32 %v8339, 4294901760
    %8341 = vmatpush1.msra.mxu0 %v8340
    %8342 = vmatprep.subr.mxu0 0.0
    %v8343 = vand.u32 %v1986, 4294901760
    %v8344 = vsub.f32 %v1986, %v8343
    %v8345 = vand.u32 %v8344, 4294901760
    %v8346 = vsub.f32 %v8344, %v8345
    %v8347 = vand.u32 %v8346, 4294901760
    %8348 = vmatpush1.msra.mxu0 %v8347
    %8349 = vmatprep.subr.mxu0 0.0
    %v8350 = vand.u32 %v1987, 4294901760
    %v8351 = vsub.f32 %v1987, %v8350
    %v8352 = vand.u32 %v8351, 4294901760
    %v8353 = vsub.f32 %v8351, %v8352
    %v8354 = vand.u32 %v8353, 4294901760
    %8355 = vmatpush1.msra.mxu0 %v8354
    %8356 = vmatprep.subr.mxu0 0.0
    %v8357 = vand.u32 %v1988, 4294901760
    %v8358 = vsub.f32 %v1988, %v8357
    %v8359 = vand.u32 %v8358, 4294901760
    %v8360 = vsub.f32 %v8358, %v8359
    %v8361 = vand.u32 %v8360, 4294901760
    %8362 = vmatpush1.msra.mxu0 %v8361
    %v8363 = vand.u32 %v1731, 4294901760
    %8364 = vmatprep.mubr.f32.mxu0 %v8363
    %v8365 = vand.u32 %v1730, 4294901760
    %8366 = vmatmul.mubr.f32.gmra.mrb[0].mxu0 %v8365
    %v8367 = vpop.f32.mrb[0].mxu0
    %v8368 = vadd.f32 %v8136, %v8367
    %v8369 = vpop.f32.mrb[0].mxu0
    %8370 = vdwg.mxu0
    %8371 = vmatprep.subr.mxu0 0.0
    %v8372 = vand.u32 %v1957, 4294901760
    %v8373 = vsub.f32 %v1957, %v8372
    %8374 = vmatpush1.msra.mxu0 %v8373
    %8375 = vmatprep.subr.mxu0 0.0
    %v8376 = vand.u32 %v1958, 4294901760
    %v8377 = vsub.f32 %v1958, %v8376
    %8378 = vmatpush1.msra.mxu0 %v8377
    %8379 = vmatprep.subr.mxu0 0.0
    %v8380 = vand.u32 %v1959, 4294901760
    %v8381 = vsub.f32 %v1959, %v8380
    %8382 = vmatpush1.msra.mxu0 %v8381
    %8383 = vmatprep.subr.mxu0 0.0
    %v8384 = vand.u32 %v1960, 4294901760
    %v8385 = vsub.f32 %v1960, %v8384
    %8386 = vmatpush1.msra.mxu0 %v8385
    %8387 = vmatprep.subr.mxu0 0.0
    %v8388 = vand.u32 %v1961, 4294901760
    %v8389 = vsub.f32 %v1961, %v8388
    %8390 = vmatpush1.msra.mxu0 %v8389
    %8391 = vmatprep.subr.mxu0 0.0
    %v8392 = vand.u32 %v1962, 4294901760
    %v8393 = vsub.f32 %v1962, %v8392
    %8394 = vmatpush1.msra.mxu0 %v8393
    %8395 = vmatprep.subr.mxu0 0.0
    %v8396 = vand.u32 %v1963, 4294901760
    %v8397 = vsub.f32 %v1963, %v8396
    %8398 = vmatpush1.msra.mxu0 %v8397
    %8399 = vmatprep.subr.mxu0 0.0
    %v8400 = vand.u32 %v1964, 4294901760
    %v8401 = vsub.f32 %v1964, %v8400
    %8402 = vmatpush1.msra.mxu0 %v8401
    %8403 = vmatprep.subr.mxu0 0.0
    %v8404 = vand.u32 %v1965, 4294901760
    %v8405 = vsub.f32 %v1965, %v8404
    %8406 = vmatpush1.msra.mxu0 %v8405
    %8407 = vmatprep.subr.mxu0 0.0
    %v8408 = vand.u32 %v1966, 4294901760
    %v8409 = vsub.f32 %v1966, %v8408
    %8410 = vmatpush1.msra.mxu0 %v8409
    %8411 = vmatprep.subr.mxu0 0.0
    %v8412 = vand.u32 %v1967, 4294901760
    %v8413 = vsub.f32 %v1967, %v8412
    %8414 = vmatpush1.msra.mxu0 %v8413
    %8415 = vmatprep.subr.mxu0 0.0
    %v8416 = vand.u32 %v1968, 4294901760
    %v8417 = vsub.f32 %v1968, %v8416
    %8418 = vmatpush1.msra.mxu0 %v8417
    %8419 = vmatprep.subr.mxu0 0.0
    %v8420 = vand.u32 %v1969, 4294901760
    %v8421 = vsub.f32 %v1969, %v8420
    %8422 = vmatpush1.msra.mxu0 %v8421
    %8423 = vmatprep.subr.mxu0 0.0
    %v8424 = vand.u32 %v1970, 4294901760
    %v8425 = vsub.f32 %v1970, %v8424
    %8426 = vmatpush1.msra.mxu0 %v8425
    %8427 = vmatprep.subr.mxu0 0.0
    %v8428 = vand.u32 %v1971, 4294901760
    %v8429 = vsub.f32 %v1971, %v8428
    %8430 = vmatpush1.msra.mxu0 %v8429
    %8431 = vmatprep.subr.mxu0 0.0
    %v8432 = vand.u32 %v1972, 4294901760
    %v8433 = vsub.f32 %v1972, %v8432
    %8434 = vmatpush1.msra.mxu0 %v8433
    %8435 = vmatprep.subr.mxu0 0.0
    %v8436 = vand.u32 %v1973, 4294901760
    %v8437 = vsub.f32 %v1973, %v8436
    %8438 = vmatpush1.msra.mxu0 %v8437
    %8439 = vmatprep.subr.mxu0 0.0
    %v8440 = vand.u32 %v1974, 4294901760
    %v8441 = vsub.f32 %v1974, %v8440
    %8442 = vmatpush1.msra.mxu0 %v8441
    %8443 = vmatprep.subr.mxu0 0.0
    %v8444 = vand.u32 %v1975, 4294901760
    %v8445 = vsub.f32 %v1975, %v8444
    %8446 = vmatpush1.msra.mxu0 %v8445
    %8447 = vmatprep.subr.mxu0 0.0
    %v8448 = vand.u32 %v1976, 4294901760
    %v8449 = vsub.f32 %v1976, %v8448
    %8450 = vmatpush1.msra.mxu0 %v8449
    %8451 = vmatprep.subr.mxu0 0.0
    %v8452 = vand.u32 %v1977, 4294901760
    %v8453 = vsub.f32 %v1977, %v8452
    %8454 = vmatpush1.msra.mxu0 %v8453
    %8455 = vmatprep.subr.mxu0 0.0
    %v8456 = vand.u32 %v1978, 4294901760
    %v8457 = vsub.f32 %v1978, %v8456
    %8458 = vmatpush1.msra.mxu0 %v8457
    %8459 = vmatprep.subr.mxu0 0.0
    %v8460 = vand.u32 %v1979, 4294901760
    %v8461 = vsub.f32 %v1979, %v8460
    %8462 = vmatpush1.msra.mxu0 %v8461
    %8463 = vmatprep.subr.mxu0 0.0
    %v8464 = vand.u32 %v1980, 4294901760
    %v8465 = vsub.f32 %v1980, %v8464
    %8466 = vmatpush1.msra.mxu0 %v8465
    %8467 = vmatprep.subr.mxu0 0.0
    %v8468 = vand.u32 %v1981, 4294901760
    %v8469 = vsub.f32 %v1981, %v8468
    %8470 = vmatpush1.msra.mxu0 %v8469
    %8471 = vmatprep.subr.mxu0 0.0
    %v8472 = vand.u32 %v1982, 4294901760
    %v8473 = vsub.f32 %v1982, %v8472
    %8474 = vmatpush1.msra.mxu0 %v8473
    %8475 = vmatprep.subr.mxu0 0.0
    %v8476 = vand.u32 %v1983, 4294901760
    %v8477 = vsub.f32 %v1983, %v8476
    %8478 = vmatpush1.msra.mxu0 %v8477
    %8479 = vmatprep.subr.mxu0 0.0
    %v8480 = vand.u32 %v1984, 4294901760
    %v8481 = vsub.f32 %v1984, %v8480
    %8482 = vmatpush1.msra.mxu0 %v8481
    %8483 = vmatprep.subr.mxu0 0.0
    %v8484 = vand.u32 %v1985, 4294901760
    %v8485 = vsub.f32 %v1985, %v8484
    %8486 = vmatpush1.msra.mxu0 %v8485
    %8487 = vmatprep.subr.mxu0 0.0
    %v8488 = vand.u32 %v1986, 4294901760
    %v8489 = vsub.f32 %v1986, %v8488
    %8490 = vmatpush1.msra.mxu0 %v8489
    %8491 = vmatprep.subr.mxu0 0.0
    %v8492 = vand.u32 %v1987, 4294901760
    %v8493 = vsub.f32 %v1987, %v8492
    %8494 = vmatpush1.msra.mxu0 %v8493
    %8495 = vmatprep.subr.mxu0 0.0
    %v8496 = vand.u32 %v1988, 4294901760
    %v8497 = vsub.f32 %v1988, %v8496
    %8498 = vmatpush1.msra.mxu0 %v8497
    %v8499 = vand.u32 %v1731, 4294901760
    %v8500 = vsub.f32 %v1731, %v8499
    %8501 = vmatprep.mubr.f32.mxu0 %v8500
    %v8502 = vand.u32 %v1730, 4294901760
    %v8503 = vsub.f32 %v1730, %v8502
    %8504 = vmatmul.mubr.f32.gmra.mrb[0].mxu0 %v8503
    %v8505 = vpop.f32.mrb[0].mxu0
    %v8506 = vadd.f32 %v8368, %v8505
    %v8507 = vpop.f32.mrb[0].mxu0
    %8508 = vdwg.mxu0
    %8509 = vmatprep.subr.mxu0 0.0
    %v8510 = vand.u32 %v1957, 4294901760
    %8511 = vmatpush1.msra.mxu0 %v8510
    %8512 = vmatprep.subr.mxu0 0.0
    %v8513 = vand.u32 %v1958, 4294901760
    %8514 = vmatpush1.msra.mxu0 %v8513
    %8515 = vmatprep.subr.mxu0 0.0
    %v8516 = vand.u32 %v1959, 4294901760
    %8517 = vmatpush1.msra.mxu0 %v8516
    %8518 = vmatprep.subr.mxu0 0.0
    %v8519 = vand.u32 %v1960, 4294901760
    %8520 = vmatpush1.msra.mxu0 %v8519
    %8521 = vmatprep.subr.mxu0 0.0
    %v8522 = vand.u32 %v1961, 4294901760
    %8523 = vmatpush1.msra.mxu0 %v8522
    %8524 = vmatprep.subr.mxu0 0.0
    %v8525 = vand.u32 %v1962, 4294901760
    %8526 = vmatpush1.msra.mxu0 %v8525
    %8527 = vmatprep.subr.mxu0 0.0
    %v8528 = vand.u32 %v1963, 4294901760
    %8529 = vmatpush1.msra.mxu0 %v8528
    %8530 = vmatprep.subr.mxu0 0.0
    %v8531 = vand.u32 %v1964, 4294901760
    %8532 = vmatpush1.msra.mxu0 %v8531
    %8533 = vmatprep.subr.mxu0 0.0
    %v8534 = vand.u32 %v1965, 4294901760
    %8535 = vmatpush1.msra.mxu0 %v8534
    %8536 = vmatprep.subr.mxu0 0.0
    %v8537 = vand.u32 %v1966, 4294901760
    %8538 = vmatpush1.msra.mxu0 %v8537
    %8539 = vmatprep.subr.mxu0 0.0
    %v8540 = vand.u32 %v1967, 4294901760
    %8541 = vmatpush1.msra.mxu0 %v8540
    %8542 = vmatprep.subr.mxu0 0.0
    %v8543 = vand.u32 %v1968, 4294901760
    %8544 = vmatpush1.msra.mxu0 %v8543
    %8545 = vmatprep.subr.mxu0 0.0
    %v8546 = vand.u32 %v1969, 4294901760
    %8547 = vmatpush1.msra.mxu0 %v8546
    %8548 = vmatprep.subr.mxu0 0.0
    %v8549 = vand.u32 %v1970, 4294901760
    %8550 = vmatpush1.msra.mxu0 %v8549
    %8551 = vmatprep.subr.mxu0 0.0
    %v8552 = vand.u32 %v1971, 4294901760
    %8553 = vmatpush1.msra.mxu0 %v8552
    %8554 = vmatprep.subr.mxu0 0.0
    %v8555 = vand.u32 %v1972, 4294901760
    %8556 = vmatpush1.msra.mxu0 %v8555
    %8557 = vmatprep.subr.mxu0 0.0
    %v8558 = vand.u32 %v1973, 4294901760
    %8559 = vmatpush1.msra.mxu0 %v8558
    %8560 = vmatprep.subr.mxu0 0.0
    %v8561 = vand.u32 %v1974, 4294901760
    %8562 = vmatpush1.msra.mxu0 %v8561
    %8563 = vmatprep.subr.mxu0 0.0
    %v8564 = vand.u32 %v1975, 4294901760
    %8565 = vmatpush1.msra.mxu0 %v8564
    %8566 = vmatprep.subr.mxu0 0.0
    %v8567 = vand.u32 %v1976, 4294901760
    %8568 = vmatpush1.msra.mxu0 %v8567
    %8569 = vmatprep.subr.mxu0 0.0
    %v8570 = vand.u32 %v1977, 4294901760
    %8571 = vmatpush1.msra.mxu0 %v8570
    %8572 = vmatprep.subr.mxu0 0.0
    %v8573 = vand.u32 %v1978, 4294901760
    %8574 = vmatpush1.msra.mxu0 %v8573
    %8575 = vmatprep.subr.mxu0 0.0
    %v8576 = vand.u32 %v1979, 4294901760
    %8577 = vmatpush1.msra.mxu0 %v8576
    %8578 = vmatprep.subr.mxu0 0.0
    %v8579 = vand.u32 %v1980, 4294901760
    %8580 = vmatpush1.msra.mxu0 %v8579
    %8581 = vmatprep.subr.mxu0 0.0
    %v8582 = vand.u32 %v1981, 4294901760
    %8583 = vmatpush1.msra.mxu0 %v8582
    %8584 = vmatprep.subr.mxu0 0.0
    %v8585 = vand.u32 %v1982, 4294901760
    %8586 = vmatpush1.msra.mxu0 %v8585
    %8587 = vmatprep.subr.mxu0 0.0
    %v8588 = vand.u32 %v1983, 4294901760
    %8589 = vmatpush1.msra.mxu0 %v8588
    %8590 = vmatprep.subr.mxu0 0.0
    %v8591 = vand.u32 %v1984, 4294901760
    %8592 = vmatpush1.msra.mxu0 %v8591
    %8593 = vmatprep.subr.mxu0 0.0
    %v8594 = vand.u32 %v1985, 4294901760
    %8595 = vmatpush1.msra.mxu0 %v8594
    %8596 = vmatprep.subr.mxu0 0.0
    %v8597 = vand.u32 %v1986, 4294901760
    %8598 = vmatpush1.msra.mxu0 %v8597
    %8599 = vmatprep.subr.mxu0 0.0
    %v8600 = vand.u32 %v1987, 4294901760
    %8601 = vmatpush1.msra.mxu0 %v8600
    %8602 = vmatprep.subr.mxu0 0.0
    %v8603 = vand.u32 %v1988, 4294901760
    %8604 = vmatpush1.msra.mxu0 %v8603
    %v8605 = vand.u32 %v1731, 4294901760
    %v8606 = vsub.f32 %v1731, %v8605
    %v8607 = vand.u32 %v8606, 4294901760
    %8608 = vmatprep.mubr.f32.mxu0 %v8607
    %v8609 = vand.u32 %v1730, 4294901760
    %v8610 = vsub.f32 %v1730, %v8609
    %v8611 = vand.u32 %v8610, 4294901760
    %8612 = vmatmul.mubr.f32.gmra.mrb[0].mxu0 %v8611
    %v8613 = vpop.f32.mrb[0].mxu0
    %v8614 = vadd.f32 %v8506, %v8613
    %v8615 = vpop.f32.mrb[0].mxu0
    %8616 = vdwg.mxu0
    %8617 = vmatprep.subr.mxu0 0.0
    %v8618 = vand.u32 %v1957, 4294901760
    %v8619 = vsub.f32 %v1957, %v8618
    %v8620 = vand.u32 %v8619, 4294901760
    %8621 = vmatpush1.msra.mxu0 %v8620
    %8622 = vmatprep.subr.mxu0 0.0
    %v8623 = vand.u32 %v1958, 4294901760
    %v8624 = vsub.f32 %v1958, %v8623
    %v8625 = vand.u32 %v8624, 4294901760
    %8626 = vmatpush1.msra.mxu0 %v8625
    %8627 = vmatprep.subr.mxu0 0.0
    %v8628 = vand.u32 %v1959, 4294901760
    %v8629 = vsub.f32 %v1959, %v8628
    %v8630 = vand.u32 %v8629, 4294901760
    %8631 = vmatpush1.msra.mxu0 %v8630
    %8632 = vmatprep.subr.mxu0 0.0
    %v8633 = vand.u32 %v1960, 4294901760
    %v8634 = vsub.f32 %v1960, %v8633
    %v8635 = vand.u32 %v8634, 4294901760
    %8636 = vmatpush1.msra.mxu0 %v8635
    %8637 = vmatprep.subr.mxu0 0.0
    %v8638 = vand.u32 %v1961, 4294901760
    %v8639 = vsub.f32 %v1961, %v8638
    %v8640 = vand.u32 %v8639, 4294901760
    %8641 = vmatpush1.msra.mxu0 %v8640
    %8642 = vmatprep.subr.mxu0 0.0
    %v8643 = vand.u32 %v1962, 4294901760
    %v8644 = vsub.f32 %v1962, %v8643
    %v8645 = vand.u32 %v8644, 4294901760
    %8646 = vmatpush1.msra.mxu0 %v8645
    %8647 = vmatprep.subr.mxu0 0.0
    %v8648 = vand.u32 %v1963, 4294901760
    %v8649 = vsub.f32 %v1963, %v8648
    %v8650 = vand.u32 %v8649, 4294901760
    %8651 = vmatpush1.msra.mxu0 %v8650
    %8652 = vmatprep.subr.mxu0 0.0
    %v8653 = vand.u32 %v1964, 4294901760
    %v8654 = vsub.f32 %v1964, %v8653
    %v8655 = vand.u32 %v8654, 4294901760
    %8656 = vmatpush1.msra.mxu0 %v8655
    %8657 = vmatprep.subr.mxu0 0.0
    %v8658 = vand.u32 %v1965, 4294901760
    %v8659 = vsub.f32 %v1965, %v8658
    %v8660 = vand.u32 %v8659, 4294901760
    %8661 = vmatpush1.msra.mxu0 %v8660
    %8662 = vmatprep.subr.mxu0 0.0
    %v8663 = vand.u32 %v1966, 4294901760
    %v8664 = vsub.f32 %v1966, %v8663
    %v8665 = vand.u32 %v8664, 4294901760
    %8666 = vmatpush1.msra.mxu0 %v8665
    %8667 = vmatprep.subr.mxu0 0.0
    %v8668 = vand.u32 %v1967, 4294901760
    %v8669 = vsub.f32 %v1967, %v8668
    %v8670 = vand.u32 %v8669, 4294901760
    %8671 = vmatpush1.msra.mxu0 %v8670
    %8672 = vmatprep.subr.mxu0 0.0
    %v8673 = vand.u32 %v1968, 4294901760
    %v8674 = vsub.f32 %v1968, %v8673
    %v8675 = vand.u32 %v8674, 4294901760
    %8676 = vmatpush1.msra.mxu0 %v8675
    %8677 = vmatprep.subr.mxu0 0.0
    %v8678 = vand.u32 %v1969, 4294901760
    %v8679 = vsub.f32 %v1969, %v8678
    %v8680 = vand.u32 %v8679, 4294901760
    %8681 = vmatpush1.msra.mxu0 %v8680
    %8682 = vmatprep.subr.mxu0 0.0
    %v8683 = vand.u32 %v1970, 4294901760
    %v8684 = vsub.f32 %v1970, %v8683
    %v8685 = vand.u32 %v8684, 4294901760
    %8686 = vmatpush1.msra.mxu0 %v8685
    %8687 = vmatprep.subr.mxu0 0.0
    %v8688 = vand.u32 %v1971, 4294901760
    %v8689 = vsub.f32 %v1971, %v8688
    %v8690 = vand.u32 %v8689, 4294901760
    %8691 = vmatpush1.msra.mxu0 %v8690
    %8692 = vmatprep.subr.mxu0 0.0
    %v8693 = vand.u32 %v1972, 4294901760
    %v8694 = vsub.f32 %v1972, %v8693
    %v8695 = vand.u32 %v8694, 4294901760
    %8696 = vmatpush1.msra.mxu0 %v8695
    %8697 = vmatprep.subr.mxu0 0.0
    %v8698 = vand.u32 %v1973, 4294901760
    %v8699 = vsub.f32 %v1973, %v8698
    %v8700 = vand.u32 %v8699, 4294901760
    %8701 = vmatpush1.msra.mxu0 %v8700
    %8702 = vmatprep.subr.mxu0 0.0
    %v8703 = vand.u32 %v1974, 4294901760
    %v8704 = vsub.f32 %v1974, %v8703
    %v8705 = vand.u32 %v8704, 4294901760
    %8706 = vmatpush1.msra.mxu0 %v8705
    %8707 = vmatprep.subr.mxu0 0.0
    %v8708 = vand.u32 %v1975, 4294901760
    %v8709 = vsub.f32 %v1975, %v8708
    %v8710 = vand.u32 %v8709, 4294901760
    %8711 = vmatpush1.msra.mxu0 %v8710
    %8712 = vmatprep.subr.mxu0 0.0
    %v8713 = vand.u32 %v1976, 4294901760
    %v8714 = vsub.f32 %v1976, %v8713
    %v8715 = vand.u32 %v8714, 4294901760
    %8716 = vmatpush1.msra.mxu0 %v8715
    %8717 = vmatprep.subr.mxu0 0.0
    %v8718 = vand.u32 %v1977, 4294901760
    %v8719 = vsub.f32 %v1977, %v8718
    %v8720 = vand.u32 %v8719, 4294901760
    %8721 = vmatpush1.msra.mxu0 %v8720
    %8722 = vmatprep.subr.mxu0 0.0
    %v8723 = vand.u32 %v1978, 4294901760
    %v8724 = vsub.f32 %v1978, %v8723
    %v8725 = vand.u32 %v8724, 4294901760
    %8726 = vmatpush1.msra.mxu0 %v8725
    %8727 = vmatprep.subr.mxu0 0.0
    %v8728 = vand.u32 %v1979, 4294901760
    %v8729 = vsub.f32 %v1979, %v8728
    %v8730 = vand.u32 %v8729, 4294901760
    %8731 = vmatpush1.msra.mxu0 %v8730
    %8732 = vmatprep.subr.mxu0 0.0
    %v8733 = vand.u32 %v1980, 4294901760
    %v8734 = vsub.f32 %v1980, %v8733
    %v8735 = vand.u32 %v8734, 4294901760
    %8736 = vmatpush1.msra.mxu0 %v8735
    %8737 = vmatprep.subr.mxu0 0.0
    %v8738 = vand.u32 %v1981, 4294901760
    %v8739 = vsub.f32 %v1981, %v8738
    %v8740 = vand.u32 %v8739, 4294901760
    %8741 = vmatpush1.msra.mxu0 %v8740
    %8742 = vmatprep.subr.mxu0 0.0
    %v8743 = vand.u32 %v1982, 4294901760
    %v8744 = vsub.f32 %v1982, %v8743
    %v8745 = vand.u32 %v8744, 4294901760
    %8746 = vmatpush1.msra.mxu0 %v8745
    %8747 = vmatprep.subr.mxu0 0.0
    %v8748 = vand.u32 %v1983, 4294901760
    %v8749 = vsub.f32 %v1983, %v8748
    %v8750 = vand.u32 %v8749, 4294901760
    %8751 = vmatpush1.msra.mxu0 %v8750
    %8752 = vmatprep.subr.mxu0 0.0
    %v8753 = vand.u32 %v1984, 4294901760
    %v8754 = vsub.f32 %v1984, %v8753
    %v8755 = vand.u32 %v8754, 4294901760
    %8756 = vmatpush1.msra.mxu0 %v8755
    %8757 = vmatprep.subr.mxu0 0.0
    %v8758 = vand.u32 %v1985, 4294901760
    %v8759 = vsub.f32 %v1985, %v8758
    %v8760 = vand.u32 %v8759, 4294901760
    %8761 = vmatpush1.msra.mxu0 %v8760
    %8762 = vmatprep.subr.mxu0 0.0
    %v8763 = vand.u32 %v1986, 4294901760
    %v8764 = vsub.f32 %v1986, %v8763
    %v8765 = vand.u32 %v8764, 4294901760
    %8766 = vmatpush1.msra.mxu0 %v8765
    %8767 = vmatprep.subr.mxu0 0.0
    %v8768 = vand.u32 %v1987, 4294901760
    %v8769 = vsub.f32 %v1987, %v8768
    %v8770 = vand.u32 %v8769, 4294901760
    %8771 = vmatpush1.msra.mxu0 %v8770
    %8772 = vmatprep.subr.mxu0 0.0
    %v8773 = vand.u32 %v1988, 4294901760
    %v8774 = vsub.f32 %v1988, %v8773
    %v8775 = vand.u32 %v8774, 4294901760
    %8776 = vmatpush1.msra.mxu0 %v8775
    %v8777 = vand.u32 %v1731, 4294901760
    %8778 = vmatprep.mubr.f32.mxu0 %v8777
    %v8779 = vand.u32 %v1730, 4294901760
    %8780 = vmatmul.mubr.f32.gmra.mrb[0].mxu0 %v8779
    %v8781 = vpop.f32.mrb[0].mxu0
    %v8782 = vadd.f32 %v8614, %v8781
    %v8783 = vpop.f32.mrb[0].mxu0
    %8784 = vdwg.mxu0
    %8785 = vmatprep.subr.mxu0 0.0
    %v8786 = vand.u32 %v1957, 4294901760
    %8787 = vmatpush1.msra.mxu0 %v8786
    %8788 = vmatprep.subr.mxu0 0.0
    %v8789 = vand.u32 %v1958, 4294901760
    %8790 = vmatpush1.msra.mxu0 %v8789
    %8791 = vmatprep.subr.mxu0 0.0
    %v8792 = vand.u32 %v1959, 4294901760
    %8793 = vmatpush1.msra.mxu0 %v8792
    %8794 = vmatprep.subr.mxu0 0.0
    %v8795 = vand.u32 %v1960, 4294901760
    %8796 = vmatpush1.msra.mxu0 %v8795
    %8797 = vmatprep.subr.mxu0 0.0
    %v8798 = vand.u32 %v1961, 4294901760
    %8799 = vmatpush1.msra.mxu0 %v8798
    %8800 = vmatprep.subr.mxu0 0.0
    %v8801 = vand.u32 %v1962, 4294901760
    %8802 = vmatpush1.msra.mxu0 %v8801
    %8803 = vmatprep.subr.mxu0 0.0
    %v8804 = vand.u32 %v1963, 4294901760
    %8805 = vmatpush1.msra.mxu0 %v8804
    %8806 = vmatprep.subr.mxu0 0.0
    %v8807 = vand.u32 %v1964, 4294901760
    %8808 = vmatpush1.msra.mxu0 %v8807
    %8809 = vmatprep.subr.mxu0 0.0
    %v8810 = vand.u32 %v1965, 4294901760
    %8811 = vmatpush1.msra.mxu0 %v8810
    %8812 = vmatprep.subr.mxu0 0.0
    %v8813 = vand.u32 %v1966, 4294901760
    %8814 = vmatpush1.msra.mxu0 %v8813
    %8815 = vmatprep.subr.mxu0 0.0
    %v8816 = vand.u32 %v1967, 4294901760
    %8817 = vmatpush1.msra.mxu0 %v8816
    %8818 = vmatprep.subr.mxu0 0.0
    %v8819 = vand.u32 %v1968, 4294901760
    %8820 = vmatpush1.msra.mxu0 %v8819
    %8821 = vmatprep.subr.mxu0 0.0
    %v8822 = vand.u32 %v1969, 4294901760
    %8823 = vmatpush1.msra.mxu0 %v8822
    %8824 = vmatprep.subr.mxu0 0.0
    %v8825 = vand.u32 %v1970, 4294901760
    %8826 = vmatpush1.msra.mxu0 %v8825
    %8827 = vmatprep.subr.mxu0 0.0
    %v8828 = vand.u32 %v1971, 4294901760
    %8829 = vmatpush1.msra.mxu0 %v8828
    %8830 = vmatprep.subr.mxu0 0.0
    %v8831 = vand.u32 %v1972, 4294901760
    %8832 = vmatpush1.msra.mxu0 %v8831
    %8833 = vmatprep.subr.mxu0 0.0
    %v8834 = vand.u32 %v1973, 4294901760
    %8835 = vmatpush1.msra.mxu0 %v8834
    %8836 = vmatprep.subr.mxu0 0.0
    %v8837 = vand.u32 %v1974, 4294901760
    %8838 = vmatpush1.msra.mxu0 %v8837
    %8839 = vmatprep.subr.mxu0 0.0
    %v8840 = vand.u32 %v1975, 4294901760
    %8841 = vmatpush1.msra.mxu0 %v8840
    %8842 = vmatprep.subr.mxu0 0.0
    %v8843 = vand.u32 %v1976, 4294901760
    %8844 = vmatpush1.msra.mxu0 %v8843
    %8845 = vmatprep.subr.mxu0 0.0
    %v8846 = vand.u32 %v1977, 4294901760
    %8847 = vmatpush1.msra.mxu0 %v8846
    %8848 = vmatprep.subr.mxu0 0.0
    %v8849 = vand.u32 %v1978, 4294901760
    %8850 = vmatpush1.msra.mxu0 %v8849
    %8851 = vmatprep.subr.mxu0 0.0
    %v8852 = vand.u32 %v1979, 4294901760
    %8853 = vmatpush1.msra.mxu0 %v8852
    %8854 = vmatprep.subr.mxu0 0.0
    %v8855 = vand.u32 %v1980, 4294901760
    %8856 = vmatpush1.msra.mxu0 %v8855
    %8857 = vmatprep.subr.mxu0 0.0
    %v8858 = vand.u32 %v1981, 4294901760
    %8859 = vmatpush1.msra.mxu0 %v8858
    %8860 = vmatprep.subr.mxu0 0.0
    %v8861 = vand.u32 %v1982, 4294901760
    %8862 = vmatpush1.msra.mxu0 %v8861
    %8863 = vmatprep.subr.mxu0 0.0
    %v8864 = vand.u32 %v1983, 4294901760
    %8865 = vmatpush1.msra.mxu0 %v8864
    %8866 = vmatprep.subr.mxu0 0.0
    %v8867 = vand.u32 %v1984, 4294901760
    %8868 = vmatpush1.msra.mxu0 %v8867
    %8869 = vmatprep.subr.mxu0 0.0
    %v8870 = vand.u32 %v1985, 4294901760
    %8871 = vmatpush1.msra.mxu0 %v8870
    %8872 = vmatprep.subr.mxu0 0.0
    %v8873 = vand.u32 %v1986, 4294901760
    %8874 = vmatpush1.msra.mxu0 %v8873
    %8875 = vmatprep.subr.mxu0 0.0
    %v8876 = vand.u32 %v1987, 4294901760
    %8877 = vmatpush1.msra.mxu0 %v8876
    %8878 = vmatprep.subr.mxu0 0.0
    %v8879 = vand.u32 %v1988, 4294901760
    %8880 = vmatpush1.msra.mxu0 %v8879
    %v8881 = vand.u32 %v1731, 4294901760
    %8882 = vmatprep.mubr.f32.mxu0 %v8881
    %v8883 = vand.u32 %v1730, 4294901760
    %8884 = vmatmul.mubr.f32.gmra.mrb[0].mxu0 %v8883
    %v8885 = vpop.f32.mrb[0].mxu0
    %v8886 = vadd.f32 %v8782, %v8885
    %v8887 = vpop.f32.mrb[0].mxu0
    %8888 = vdwg.mxu0
    %v8889 = vmax.f32 %v8886, 0.0
    %v8890 = vld [vmem:[%s1 + $0x10] sm:$0xff]
    %v8891 = vld [vmem:[%s1 + $0x18] sm:$0xff]
    %v8892 = vld [vmem:[%s1 + $0x20] sm:$0xff]
    %v8893 = vld [vmem:[%s1 + $0x28] sm:$0xff]
    %v8894 = vld [vmem:[%s1 + $0x9] sm:$0x1]
    %v8895 = vlaneseq
    %v8896 = vshrl.u32 %v8895, 7
    %v8897 = vsub.s32 0, %v8896
    %v8898 = vrot.slane %v8894, %v8897
    %vm8899 = vcmask 261120
    %v8901 = vsel %vm8899, %v8889, 0
    %8903 = vmatprep.subr.mxu0 0.0
    %v8904 = vand.u32 %v8890, 4294901760
    %8905 = vmatpush1.msra.mxu0 %v8904
    %8906 = vmatprep.subr.mxu0 0.0
    %v8907 = vand.u32 %v8891, 4294901760
    %8908 = vmatpush1.msra.mxu0 %v8907
    %8909 = vmatprep.subr.mxu0 0.0
    %v8910 = vand.u32 %v8892, 4294901760
    %8911 = vmatpush1.msra.mxu0 %v8910
    %8912 = vmatprep.subr.mxu0 0.0
    %v8913 = vand.u32 %v8893, 4294901760
    %8914 = vmatpush1.msra.mxu0 %v8913
    %8915 = vmatprep.subr.mxu0 0.0
    %8916 = vmatpush1.msra.mxu0 0.0
    %8917 = vmatprep.subr.mxu0 0.0
    %8918 = vmatpush1.msra.mxu0 0.0
    %8919 = vmatprep.subr.mxu0 0.0
    %8920 = vmatpush1.msra.mxu0 0.0
    %8921 = vmatprep.subr.mxu0 0.0
    %8922 = vmatpush1.msra.mxu0 0.0
    %8923 = vmatprep.subr.mxu0 0.0
    %8924 = vmatpush1.msra.mxu0 0.0
    %8925 = vmatprep.subr.mxu0 0.0
    %8926 = vmatpush1.msra.mxu0 0.0
    %8927 = vmatprep.subr.mxu0 0.0
    %8928 = vmatpush1.msra.mxu0 0.0
    %8929 = vmatprep.subr.mxu0 0.0
    %8930 = vmatpush1.msra.mxu0 0.0
    %8931 = vmatprep.subr.mxu0 0.0
    %8932 = vmatpush1.msra.mxu0 0.0
    %8933 = vmatprep.subr.mxu0 0.0
    %8934 = vmatpush1.msra.mxu0 0.0
    %8935 = vmatprep.subr.mxu0 0.0
    %8936 = vmatpush1.msra.mxu0 0.0
    %8937 = vmatprep.subr.mxu0 0.0
    %8938 = vmatpush1.msra.mxu0 0.0
    %8939 = vmatprep.subr.mxu0 0.0
    %8940 = vmatpush1.msra.mxu0 0.0
    %8941 = vmatprep.subr.mxu0 0.0
    %8942 = vmatpush1.msra.mxu0 0.0
    %8943 = vmatprep.subr.mxu0 0.0
    %8944 = vmatpush1.msra.mxu0 0.0
    %8945 = vmatprep.subr.mxu0 0.0
    %8946 = vmatpush1.msra.mxu0 0.0
    %8947 = vmatprep.subr.mxu0 0.0
    %8948 = vmatpush1.msra.mxu0 0.0
    %8949 = vmatprep.subr.mxu0 0.0
    %8950 = vmatpush1.msra.mxu0 0.0
    %8951 = vmatprep.subr.mxu0 0.0
    %8952 = vmatpush1.msra.mxu0 0.0
    %8953 = vmatprep.subr.mxu0 0.0
    %8954 = vmatpush1.msra.mxu0 0.0
    %8955 = vmatprep.subr.mxu0 0.0
    %8956 = vmatpush1.msra.mxu0 0.0
    %8957 = vmatprep.subr.mxu0 0.0
    %8958 = vmatpush1.msra.mxu0 0.0
    %8959 = vmatprep.subr.mxu0 0.0
    %8960 = vmatpush1.msra.mxu0 0.0
    %8961 = vmatprep.subr.mxu0 0.0
    %8962 = vmatpush1.msra.mxu0 0.0
    %8963 = vmatprep.subr.mxu0 0.0
    %8964 = vmatpush1.msra.mxu0 0.0
    %8965 = vmatprep.subr.mxu0 0.0
    %8966 = vmatpush1.msra.mxu0 0.0
    %8967 = vmatprep.subr.mxu0 0.0
    %8968 = vmatpush1.msra.mxu0 0.0
    %8969 = vmatprep.subr.mxu0 0.0
    %8970 = vmatpush1.msra.mxu0 0.0
    %8971 = vmatprep.mubr.f32.mxu0 0.0
    %v8972 = vand.u32 %v8901, 4294901760
    %v8973 = vsub.f32 %v8901, %v8972
    %v8974 = vand.u32 %v8973, 4294901760
    %v8975 = vsub.f32 %v8973, %v8974
    %v8976 = vand.u32 %v8975, 4294901760
    %8977 = vmatmul.mubr.f32.gmra.mrb[0].mxu0 %v8976
    %v8978 = vpop.f32.mrb[0].mxu0
    %v8979 = vadd.f32 %v8898, %v8978
    %v8980 = vpop.f32.mrb[0].mxu0
    %8981 = vdwg.mxu0
    %8982 = vmatprep.subr.mxu0 0.0
    %v8983 = vand.u32 %v8890, 4294901760
    %v8984 = vsub.f32 %v8890, %v8983
    %v8985 = vand.u32 %v8984, 4294901760
    %v8986 = vsub.f32 %v8984, %v8985
    %v8987 = vand.u32 %v8986, 4294901760
    %8988 = vmatpush1.msra.mxu0 %v8987
    %8989 = vmatprep.subr.mxu0 0.0
    %v8990 = vand.u32 %v8891, 4294901760
    %v8991 = vsub.f32 %v8891, %v8990
    %v8992 = vand.u32 %v8991, 4294901760
    %v8993 = vsub.f32 %v8991, %v8992
    %v8994 = vand.u32 %v8993, 4294901760
    %8995 = vmatpush1.msra.mxu0 %v8994
    %8996 = vmatprep.subr.mxu0 0.0
    %v8997 = vand.u32 %v8892, 4294901760
    %v8998 = vsub.f32 %v8892, %v8997
    %v8999 = vand.u32 %v8998, 4294901760
    %v9000 = vsub.f32 %v8998, %v8999
    %v9001 = vand.u32 %v9000, 4294901760
    %9002 = vmatpush1.msra.mxu0 %v9001
    %9003 = vmatprep.subr.mxu0 0.0
    %v9004 = vand.u32 %v8893, 4294901760
    %v9005 = vsub.f32 %v8893, %v9004
    %v9006 = vand.u32 %v9005, 4294901760
    %v9007 = vsub.f32 %v9005, %v9006
    %v9008 = vand.u32 %v9007, 4294901760
    %9009 = vmatpush1.msra.mxu0 %v9008
    %9010 = vmatprep.subr.mxu0 0.0
    %9011 = vmatpush1.msra.mxu0 0.0
    %9012 = vmatprep.subr.mxu0 0.0
    %9013 = vmatpush1.msra.mxu0 0.0
    %9014 = vmatprep.subr.mxu0 0.0
    %9015 = vmatpush1.msra.mxu0 0.0
    %9016 = vmatprep.subr.mxu0 0.0
    %9017 = vmatpush1.msra.mxu0 0.0
    %9018 = vmatprep.subr.mxu0 0.0
    %9019 = vmatpush1.msra.mxu0 0.0
    %9020 = vmatprep.subr.mxu0 0.0
    %9021 = vmatpush1.msra.mxu0 0.0
    %9022 = vmatprep.subr.mxu0 0.0
    %9023 = vmatpush1.msra.mxu0 0.0
    %9024 = vmatprep.subr.mxu0 0.0
    %9025 = vmatpush1.msra.mxu0 0.0
    %9026 = vmatprep.subr.mxu0 0.0
    %9027 = vmatpush1.msra.mxu0 0.0
    %9028 = vmatprep.subr.mxu0 0.0
    %9029 = vmatpush1.msra.mxu0 0.0
    %9030 = vmatprep.subr.mxu0 0.0
    %9031 = vmatpush1.msra.mxu0 0.0
    %9032 = vmatprep.subr.mxu0 0.0
    %9033 = vmatpush1.msra.mxu0 0.0
    %9034 = vmatprep.subr.mxu0 0.0
    %9035 = vmatpush1.msra.mxu0 0.0
    %9036 = vmatprep.subr.mxu0 0.0
    %9037 = vmatpush1.msra.mxu0 0.0
    %9038 = vmatprep.subr.mxu0 0.0
    %9039 = vmatpush1.msra.mxu0 0.0
    %9040 = vmatprep.subr.mxu0 0.0
    %9041 = vmatpush1.msra.mxu0 0.0
    %9042 = vmatprep.subr.mxu0 0.0
    %9043 = vmatpush1.msra.mxu0 0.0
    %9044 = vmatprep.subr.mxu0 0.0
    %9045 = vmatpush1.msra.mxu0 0.0
    %9046 = vmatprep.subr.mxu0 0.0
    %9047 = vmatpush1.msra.mxu0 0.0
    %9048 = vmatprep.subr.mxu0 0.0
    %9049 = vmatpush1.msra.mxu0 0.0
    %9050 = vmatprep.subr.mxu0 0.0
    %9051 = vmatpush1.msra.mxu0 0.0
    %9052 = vmatprep.subr.mxu0 0.0
    %9053 = vmatpush1.msra.mxu0 0.0
    %9054 = vmatprep.subr.mxu0 0.0
    %9055 = vmatpush1.msra.mxu0 0.0
    %9056 = vmatprep.subr.mxu0 0.0
    %9057 = vmatpush1.msra.mxu0 0.0
    %9058 = vmatprep.subr.mxu0 0.0
    %9059 = vmatpush1.msra.mxu0 0.0
    %9060 = vmatprep.subr.mxu0 0.0
    %9061 = vmatpush1.msra.mxu0 0.0
    %9062 = vmatprep.subr.mxu0 0.0
    %9063 = vmatpush1.msra.mxu0 0.0
    %9064 = vmatprep.subr.mxu0 0.0
    %9065 = vmatpush1.msra.mxu0 0.0
    %9066 = vmatprep.mubr.f32.mxu0 0.0
    %v9067 = vand.u32 %v8901, 4294901760
    %9068 = vmatmul.mubr.f32.gmra.mrb[0].mxu0 %v9067
    %v9069 = vpop.f32.mrb[0].mxu0
    %v9070 = vadd.f32 %v8979, %v9069
    %v9071 = vpop.f32.mrb[0].mxu0
    %9072 = vdwg.mxu0
    %9073 = vmatprep.subr.mxu0 0.0
    %v9074 = vand.u32 %v8890, 4294901760
    %v9075 = vsub.f32 %v8890, %v9074
    %9076 = vmatpush1.msra.mxu0 %v9075
    %9077 = vmatprep.subr.mxu0 0.0
    %v9078 = vand.u32 %v8891, 4294901760
    %v9079 = vsub.f32 %v8891, %v9078
    %9080 = vmatpush1.msra.mxu0 %v9079
    %9081 = vmatprep.subr.mxu0 0.0
    %v9082 = vand.u32 %v8892, 4294901760
    %v9083 = vsub.f32 %v8892, %v9082
    %9084 = vmatpush1.msra.mxu0 %v9083
    %9085 = vmatprep.subr.mxu0 0.0
    %v9086 = vand.u32 %v8893, 4294901760
    %v9087 = vsub.f32 %v8893, %v9086
    %9088 = vmatpush1.msra.mxu0 %v9087
    %9089 = vmatprep.subr.mxu0 0.0
    %9090 = vmatpush1.msra.mxu0 0.0
    %9091 = vmatprep.subr.mxu0 0.0
    %9092 = vmatpush1.msra.mxu0 0.0
    %9093 = vmatprep.subr.mxu0 0.0
    %9094 = vmatpush1.msra.mxu0 0.0
    %9095 = vmatprep.subr.mxu0 0.0
    %9096 = vmatpush1.msra.mxu0 0.0
    %9097 = vmatprep.subr.mxu0 0.0
    %9098 = vmatpush1.msra.mxu0 0.0
    %9099 = vmatprep.subr.mxu0 0.0
    %9100 = vmatpush1.msra.mxu0 0.0
    %9101 = vmatprep.subr.mxu0 0.0
    %9102 = vmatpush1.msra.mxu0 0.0
    %9103 = vmatprep.subr.mxu0 0.0
    %9104 = vmatpush1.msra.mxu0 0.0
    %9105 = vmatprep.subr.mxu0 0.0
    %9106 = vmatpush1.msra.mxu0 0.0
    %9107 = vmatprep.subr.mxu0 0.0
    %9108 = vmatpush1.msra.mxu0 0.0
    %9109 = vmatprep.subr.mxu0 0.0
    %9110 = vmatpush1.msra.mxu0 0.0
    %9111 = vmatprep.subr.mxu0 0.0
    %9112 = vmatpush1.msra.mxu0 0.0
    %9113 = vmatprep.subr.mxu0 0.0
    %9114 = vmatpush1.msra.mxu0 0.0
    %9115 = vmatprep.subr.mxu0 0.0
    %9116 = vmatpush1.msra.mxu0 0.0
    %9117 = vmatprep.subr.mxu0 0.0
    %9118 = vmatpush1.msra.mxu0 0.0
    %9119 = vmatprep.subr.mxu0 0.0
    %9120 = vmatpush1.msra.mxu0 0.0
    %9121 = vmatprep.subr.mxu0 0.0
    %9122 = vmatpush1.msra.mxu0 0.0
    %9123 = vmatprep.subr.mxu0 0.0
    %9124 = vmatpush1.msra.mxu0 0.0
    %9125 = vmatprep.subr.mxu0 0.0
    %9126 = vmatpush1.msra.mxu0 0.0
    %9127 = vmatprep.subr.mxu0 0.0
    %9128 = vmatpush1.msra.mxu0 0.0
    %9129 = vmatprep.subr.mxu0 0.0
    %9130 = vmatpush1.msra.mxu0 0.0
    %9131 = vmatprep.subr.mxu0 0.0
    %9132 = vmatpush1.msra.mxu0 0.0
    %9133 = vmatprep.subr.mxu0 0.0
    %9134 = vmatpush1.msra.mxu0 0.0
    %9135 = vmatprep.subr.mxu0 0.0
    %9136 = vmatpush1.msra.mxu0 0.0
    %9137 = vmatprep.subr.mxu0 0.0
    %9138 = vmatpush1.msra.mxu0 0.0
    %9139 = vmatprep.subr.mxu0 0.0
    %9140 = vmatpush1.msra.mxu0 0.0
    %9141 = vmatprep.subr.mxu0 0.0
    %9142 = vmatpush1.msra.mxu0 0.0
    %9143 = vmatprep.subr.mxu0 0.0
    %9144 = vmatpush1.msra.mxu0 0.0
    %9145 = vmatprep.mubr.f32.mxu0 0.0
    %v9146 = vand.u32 %v8901, 4294901760
    %v9147 = vsub.f32 %v8901, %v9146
    %9148 = vmatmul.mubr.f32.gmra.mrb[0].mxu0 %v9147
    %v9149 = vpop.f32.mrb[0].mxu0
    %v9150 = vadd.f32 %v9070, %v9149
    %v9151 = vpop.f32.mrb[0].mxu0
    %9152 = vdwg.mxu0
    %9153 = vmatprep.subr.mxu0 0.0
    %v9154 = vand.u32 %v8890, 4294901760
    %9155 = vmatpush1.msra.mxu0 %v9154
    %9156 = vmatprep.subr.mxu0 0.0
    %v9157 = vand.u32 %v8891, 4294901760
    %9158 = vmatpush1.msra.mxu0 %v9157
    %9159 = vmatprep.subr.mxu0 0.0
    %v9160 = vand.u32 %v8892, 4294901760
    %9161 = vmatpush1.msra.mxu0 %v9160
    %9162 = vmatprep.subr.mxu0 0.0
    %v9163 = vand.u32 %v8893, 4294901760
    %9164 = vmatpush1.msra.mxu0 %v9163
    %9165 = vmatprep.subr.mxu0 0.0
    %9166 = vmatpush1.msra.mxu0 0.0
    %9167 = vmatprep.subr.mxu0 0.0
    %9168 = vmatpush1.msra.mxu0 0.0
    %9169 = vmatprep.subr.mxu0 0.0
    %9170 = vmatpush1.msra.mxu0 0.0
    %9171 = vmatprep.subr.mxu0 0.0
    %9172 = vmatpush1.msra.mxu0 0.0
    %9173 = vmatprep.subr.mxu0 0.0
    %9174 = vmatpush1.msra.mxu0 0.0
    %9175 = vmatprep.subr.mxu0 0.0
    %9176 = vmatpush1.msra.mxu0 0.0
    %9177 = vmatprep.subr.mxu0 0.0
    %9178 = vmatpush1.msra.mxu0 0.0
    %9179 = vmatprep.subr.mxu0 0.0
    %9180 = vmatpush1.msra.mxu0 0.0
    %9181 = vmatprep.subr.mxu0 0.0
    %9182 = vmatpush1.msra.mxu0 0.0
    %9183 = vmatprep.subr.mxu0 0.0
    %9184 = vmatpush1.msra.mxu0 0.0
    %9185 = vmatprep.subr.mxu0 0.0
    %9186 = vmatpush1.msra.mxu0 0.0
    %9187 = vmatprep.subr.mxu0 0.0
    %9188 = vmatpush1.msra.mxu0 0.0
    %9189 = vmatprep.subr.mxu0 0.0
    %9190 = vmatpush1.msra.mxu0 0.0
    %9191 = vmatprep.subr.mxu0 0.0
    %9192 = vmatpush1.msra.mxu0 0.0
    %9193 = vmatprep.subr.mxu0 0.0
    %9194 = vmatpush1.msra.mxu0 0.0
    %9195 = vmatprep.subr.mxu0 0.0
    %9196 = vmatpush1.msra.mxu0 0.0
    %9197 = vmatprep.subr.mxu0 0.0
    %9198 = vmatpush1.msra.mxu0 0.0
    %9199 = vmatprep.subr.mxu0 0.0
    %9200 = vmatpush1.msra.mxu0 0.0
    %9201 = vmatprep.subr.mxu0 0.0
    %9202 = vmatpush1.msra.mxu0 0.0
    %9203 = vmatprep.subr.mxu0 0.0
    %9204 = vmatpush1.msra.mxu0 0.0
    %9205 = vmatprep.subr.mxu0 0.0
    %9206 = vmatpush1.msra.mxu0 0.0
    %9207 = vmatprep.subr.mxu0 0.0
    %9208 = vmatpush1.msra.mxu0 0.0
    %9209 = vmatprep.subr.mxu0 0.0
    %9210 = vmatpush1.msra.mxu0 0.0
    %9211 = vmatprep.subr.mxu0 0.0
    %9212 = vmatpush1.msra.mxu0 0.0
    %9213 = vmatprep.subr.mxu0 0.0
    %9214 = vmatpush1.msra.mxu0 0.0
    %9215 = vmatprep.subr.mxu0 0.0
    %9216 = vmatpush1.msra.mxu0 0.0
    %9217 = vmatprep.subr.mxu0 0.0
    %9218 = vmatpush1.msra.mxu0 0.0
    %9219 = vmatprep.subr.mxu0 0.0
    %9220 = vmatpush1.msra.mxu0 0.0
    %9221 = vmatprep.mubr.f32.mxu0 0.0
    %v9222 = vand.u32 %v8901, 4294901760
    %v9223 = vsub.f32 %v8901, %v9222
    %v9224 = vand.u32 %v9223, 4294901760
    %9225 = vmatmul.mubr.f32.gmra.mrb[0].mxu0 %v9224
    %v9226 = vpop.f32.mrb[0].mxu0
    %v9227 = vadd.f32 %v9150, %v9226
    %v9228 = vpop.f32.mrb[0].mxu0
    %9229 = vdwg.mxu0
    %9230 = vmatprep.subr.mxu0 0.0
    %v9231 = vand.u32 %v8890, 4294901760
    %v9232 = vsub.f32 %v8890, %v9231
    %v9233 = vand.u32 %v9232, 4294901760
    %9234 = vmatpush1.msra.mxu0 %v9233
    %9235 = vmatprep.subr.mxu0 0.0
    %v9236 = vand.u32 %v8891, 4294901760
    %v9237 = vsub.f32 %v8891, %v9236
    %v9238 = vand.u32 %v9237, 4294901760
    %9239 = vmatpush1.msra.mxu0 %v9238
    %9240 = vmatprep.subr.mxu0 0.0
    %v9241 = vand.u32 %v8892, 4294901760
    %v9242 = vsub.f32 %v8892, %v9241
    %v9243 = vand.u32 %v9242, 4294901760
    %9244 = vmatpush1.msra.mxu0 %v9243
    %9245 = vmatprep.subr.mxu0 0.0
    %v9246 = vand.u32 %v8893, 4294901760
    %v9247 = vsub.f32 %v8893, %v9246
    %v9248 = vand.u32 %v9247, 4294901760
    %9249 = vmatpush1.msra.mxu0 %v9248
    %9250 = vmatprep.subr.mxu0 0.0
    %9251 = vmatpush1.msra.mxu0 0.0
    %9252 = vmatprep.subr.mxu0 0.0
    %9253 = vmatpush1.msra.mxu0 0.0
    %9254 = vmatprep.subr.mxu0 0.0
    %9255 = vmatpush1.msra.mxu0 0.0
    %9256 = vmatprep.subr.mxu0 0.0
    %9257 = vmatpush1.msra.mxu0 0.0
    %9258 = vmatprep.subr.mxu0 0.0
    %9259 = vmatpush1.msra.mxu0 0.0
    %9260 = vmatprep.subr.mxu0 0.0
    %9261 = vmatpush1.msra.mxu0 0.0
    %9262 = vmatprep.subr.mxu0 0.0
    %9263 = vmatpush1.msra.mxu0 0.0
    %9264 = vmatprep.subr.mxu0 0.0
    %9265 = vmatpush1.msra.mxu0 0.0
    %9266 = vmatprep.subr.mxu0 0.0
    %9267 = vmatpush1.msra.mxu0 0.0
    %9268 = vmatprep.subr.mxu0 0.0
    %9269 = vmatpush1.msra.mxu0 0.0
    %9270 = vmatprep.subr.mxu0 0.0
    %9271 = vmatpush1.msra.mxu0 0.0
    %9272 = vmatprep.subr.mxu0 0.0
    %9273 = vmatpush1.msra.mxu0 0.0
    %9274 = vmatprep.subr.mxu0 0.0
    %9275 = vmatpush1.msra.mxu0 0.0
    %9276 = vmatprep.subr.mxu0 0.0
    %9277 = vmatpush1.msra.mxu0 0.0
    %9278 = vmatprep.subr.mxu0 0.0
    %9279 = vmatpush1.msra.mxu0 0.0
    %9280 = vmatprep.subr.mxu0 0.0
    %9281 = vmatpush1.msra.mxu0 0.0
    %9282 = vmatprep.subr.mxu0 0.0
    %9283 = vmatpush1.msra.mxu0 0.0
    %9284 = vmatprep.subr.mxu0 0.0
    %9285 = vmatpush1.msra.mxu0 0.0
    %9286 = vmatprep.subr.mxu0 0.0
    %9287 = vmatpush1.msra.mxu0 0.0
    %9288 = vmatprep.subr.mxu0 0.0
    %9289 = vmatpush1.msra.mxu0 0.0
    %9290 = vmatprep.subr.mxu0 0.0
    %9291 = vmatpush1.msra.mxu0 0.0
    %9292 = vmatprep.subr.mxu0 0.0
    %9293 = vmatpush1.msra.mxu0 0.0
    %9294 = vmatprep.subr.mxu0 0.0
    %9295 = vmatpush1.msra.mxu0 0.0
    %9296 = vmatprep.subr.mxu0 0.0
    %9297 = vmatpush1.msra.mxu0 0.0
    %9298 = vmatprep.subr.mxu0 0.0
    %9299 = vmatpush1.msra.mxu0 0.0
    %9300 = vmatprep.subr.mxu0 0.0
    %9301 = vmatpush1.msra.mxu0 0.0
    %9302 = vmatprep.subr.mxu0 0.0
    %9303 = vmatpush1.msra.mxu0 0.0
    %9304 = vmatprep.subr.mxu0 0.0
    %9305 = vmatpush1.msra.mxu0 0.0
    %9306 = vmatprep.mubr.f32.mxu0 0.0
    %v9307 = vand.u32 %v8901, 4294901760
    %9308 = vmatmul.mubr.f32.gmra.mrb[0].mxu0 %v9307
    %v9309 = vpop.f32.mrb[0].mxu0
    %v9310 = vadd.f32 %v9227, %v9309
    %v9311 = vpop.f32.mrb[0].mxu0
    %9312 = vdwg.mxu0
    %9313 = vmatprep.subr.mxu0 0.0
    %v9314 = vand.u32 %v8890, 4294901760
    %9315 = vmatpush1.msra.mxu0 %v9314
    %9316 = vmatprep.subr.mxu0 0.0
    %v9317 = vand.u32 %v8891, 4294901760
    %9318 = vmatpush1.msra.mxu0 %v9317
    %9319 = vmatprep.subr.mxu0 0.0
    %v9320 = vand.u32 %v8892, 4294901760
    %9321 = vmatpush1.msra.mxu0 %v9320
    %9322 = vmatprep.subr.mxu0 0.0
    %v9323 = vand.u32 %v8893, 4294901760
    %9324 = vmatpush1.msra.mxu0 %v9323
    %9325 = vmatprep.subr.mxu0 0.0
    %9326 = vmatpush1.msra.mxu0 0.0
    %9327 = vmatprep.subr.mxu0 0.0
    %9328 = vmatpush1.msra.mxu0 0.0
    %9329 = vmatprep.subr.mxu0 0.0
    %9330 = vmatpush1.msra.mxu0 0.0
    %9331 = vmatprep.subr.mxu0 0.0
    %9332 = vmatpush1.msra.mxu0 0.0
    %9333 = vmatprep.subr.mxu0 0.0
    %9334 = vmatpush1.msra.mxu0 0.0
    %9335 = vmatprep.subr.mxu0 0.0
    %9336 = vmatpush1.msra.mxu0 0.0
    %9337 = vmatprep.subr.mxu0 0.0
    %9338 = vmatpush1.msra.mxu0 0.0
    %9339 = vmatprep.subr.mxu0 0.0
    %9340 = vmatpush1.msra.mxu0 0.0
    %9341 = vmatprep.subr.mxu0 0.0
    %9342 = vmatpush1.msra.mxu0 0.0
    %9343 = vmatprep.subr.mxu0 0.0
    %9344 = vmatpush1.msra.mxu0 0.0
    %9345 = vmatprep.subr.mxu0 0.0
    %9346 = vmatpush1.msra.mxu0 0.0
    %9347 = vmatprep.subr.mxu0 0.0
    %9348 = vmatpush1.msra.mxu0 0.0
    %9349 = vmatprep.subr.mxu0 0.0
    %9350 = vmatpush1.msra.mxu0 0.0
    %9351 = vmatprep.subr.mxu0 0.0
    %9352 = vmatpush1.msra.mxu0 0.0
    %9353 = vmatprep.subr.mxu0 0.0
    %9354 = vmatpush1.msra.mxu0 0.0
    %9355 = vmatprep.subr.mxu0 0.0
    %9356 = vmatpush1.msra.mxu0 0.0
    %9357 = vmatprep.subr.mxu0 0.0
    %9358 = vmatpush1.msra.mxu0 0.0
    %9359 = vmatprep.subr.mxu0 0.0
    %9360 = vmatpush1.msra.mxu0 0.0
    %9361 = vmatprep.subr.mxu0 0.0
    %9362 = vmatpush1.msra.mxu0 0.0
    %9363 = vmatprep.subr.mxu0 0.0
    %9364 = vmatpush1.msra.mxu0 0.0
    %9365 = vmatprep.subr.mxu0 0.0
    %9366 = vmatpush1.msra.mxu0 0.0
    %9367 = vmatprep.subr.mxu0 0.0
    %9368 = vmatpush1.msra.mxu0 0.0
    %9369 = vmatprep.subr.mxu0 0.0
    %9370 = vmatpush1.msra.mxu0 0.0
    %9371 = vmatprep.subr.mxu0 0.0
    %9372 = vmatpush1.msra.mxu0 0.0
    %9373 = vmatprep.subr.mxu0 0.0
    %9374 = vmatpush1.msra.mxu0 0.0
    %9375 = vmatprep.subr.mxu0 0.0
    %9376 = vmatpush1.msra.mxu0 0.0
    %9377 = vmatprep.subr.mxu0 0.0
    %9378 = vmatpush1.msra.mxu0 0.0
    %9379 = vmatprep.subr.mxu0 0.0
    %9380 = vmatpush1.msra.mxu0 0.0
    %9381 = vmatprep.mubr.f32.mxu0 0.0
    %v9382 = vand.u32 %v8901, 4294901760
    %9383 = vmatmul.mubr.f32.gmra.mrb[0].mxu0 %v9382
    %v9384 = vpop.f32.mrb[0].mxu0
    %v9385 = vadd.f32 %v9310, %v9384
    %v9386 = vpop.f32.mrb[0].mxu0
    %9387 = vdwg.mxu0
    %v9388 = vmax.f32 %v9385, 0.0
    %v9389 = vld [vmem:[%s1 + $0x30] sm:$0xff]
    %v9390 = vld [vmem:[%s1 + $0x38] sm:$0xff]
    %v9391 = vld [vmem:[%s1 + $0x40] sm:$0xff]
    %v9392 = vld [vmem:[%s1 + $0x48] sm:$0xff]
    %v9393 = vld [vmem:[%s1 + $0xa] sm:$0x1]
    %v9394 = vlaneseq
    %v9395 = vshrl.u32 %v9394, 7
    %v9396 = vsub.s32 0, %v9395
    %v9397 = vrot.slane %v9393, %v9396
    %v9399 = vsel %vm8899, %v9388, 0
    %9401 = vmatprep.subr.mxu0 0.0
    %v9402 = vand.u32 %v9389, 4294901760
    %9403 = vmatpush1.msra.mxu0 %v9402
    %9404 = vmatprep.subr.mxu0 0.0
    %v9405 = vand.u32 %v9390, 4294901760
    %9406 = vmatpush1.msra.mxu0 %v9405
    %9407 = vmatprep.subr.mxu0 0.0
    %v9408 = vand.u32 %v9391, 4294901760
    %9409 = vmatpush1.msra.mxu0 %v9408
    %9410 = vmatprep.subr.mxu0 0.0
    %v9411 = vand.u32 %v9392, 4294901760
    %9412 = vmatpush1.msra.mxu0 %v9411
    %9413 = vmatprep.subr.mxu0 0.0
    %9414 = vmatpush1.msra.mxu0 0.0
    %9415 = vmatprep.subr.mxu0 0.0
    %9416 = vmatpush1.msra.mxu0 0.0
    %9417 = vmatprep.subr.mxu0 0.0
    %9418 = vmatpush1.msra.mxu0 0.0
    %9419 = vmatprep.subr.mxu0 0.0
    %9420 = vmatpush1.msra.mxu0 0.0
    %9421 = vmatprep.subr.mxu0 0.0
    %9422 = vmatpush1.msra.mxu0 0.0
    %9423 = vmatprep.subr.mxu0 0.0
    %9424 = vmatpush1.msra.mxu0 0.0
    %9425 = vmatprep.subr.mxu0 0.0
    %9426 = vmatpush1.msra.mxu0 0.0
    %9427 = vmatprep.subr.mxu0 0.0
    %9428 = vmatpush1.msra.mxu0 0.0
    %9429 = vmatprep.subr.mxu0 0.0
    %9430 = vmatpush1.msra.mxu0 0.0
    %9431 = vmatprep.subr.mxu0 0.0
    %9432 = vmatpush1.msra.mxu0 0.0
    %9433 = vmatprep.subr.mxu0 0.0
    %9434 = vmatpush1.msra.mxu0 0.0
    %9435 = vmatprep.subr.mxu0 0.0
    %9436 = vmatpush1.msra.mxu0 0.0
    %9437 = vmatprep.subr.mxu0 0.0
    %9438 = vmatpush1.msra.mxu0 0.0
    %9439 = vmatprep.subr.mxu0 0.0
    %9440 = vmatpush1.msra.mxu0 0.0
    %9441 = vmatprep.subr.mxu0 0.0
    %9442 = vmatpush1.msra.mxu0 0.0
    %9443 = vmatprep.subr.mxu0 0.0
    %9444 = vmatpush1.msra.mxu0 0.0
    %9445 = vmatprep.subr.mxu0 0.0
    %9446 = vmatpush1.msra.mxu0 0.0
    %9447 = vmatprep.subr.mxu0 0.0
    %9448 = vmatpush1.msra.mxu0 0.0
    %9449 = vmatprep.subr.mxu0 0.0
    %9450 = vmatpush1.msra.mxu0 0.0
    %9451 = vmatprep.subr.mxu0 0.0
    %9452 = vmatpush1.msra.mxu0 0.0
    %9453 = vmatprep.subr.mxu0 0.0
    %9454 = vmatpush1.msra.mxu0 0.0
    %9455 = vmatprep.subr.mxu0 0.0
    %9456 = vmatpush1.msra.mxu0 0.0
    %9457 = vmatprep.subr.mxu0 0.0
    %9458 = vmatpush1.msra.mxu0 0.0
    %9459 = vmatprep.subr.mxu0 0.0
    %9460 = vmatpush1.msra.mxu0 0.0
    %9461 = vmatprep.subr.mxu0 0.0
    %9462 = vmatpush1.msra.mxu0 0.0
    %9463 = vmatprep.subr.mxu0 0.0
    %9464 = vmatpush1.msra.mxu0 0.0
    %9465 = vmatprep.subr.mxu0 0.0
    %9466 = vmatpush1.msra.mxu0 0.0
    %9467 = vmatprep.subr.mxu0 0.0
    %9468 = vmatpush1.msra.mxu0 0.0
    %9469 = vmatprep.mubr.f32.mxu0 0.0
    %v9470 = vand.u32 %v9399, 4294901760
    %v9471 = vsub.f32 %v9399, %v9470
    %v9472 = vand.u32 %v9471, 4294901760
    %v9473 = vsub.f32 %v9471, %v9472
    %v9474 = vand.u32 %v9473, 4294901760
    %9475 = vmatmul.mubr.f32.gmra.mrb[0].mxu0 %v9474
    %v9476 = vpop.f32.mrb[0].mxu0
    %v9477 = vadd.f32 %v9397, %v9476
    %v9478 = vpop.f32.mrb[0].mxu0
    %9479 = vdwg.mxu0
    %9480 = vmatprep.subr.mxu0 0.0
    %v9481 = vand.u32 %v9389, 4294901760
    %v9482 = vsub.f32 %v9389, %v9481
    %v9483 = vand.u32 %v9482, 4294901760
    %v9484 = vsub.f32 %v9482, %v9483
    %v9485 = vand.u32 %v9484, 4294901760
    %9486 = vmatpush1.msra.mxu0 %v9485
    %9487 = vmatprep.subr.mxu0 0.0
    %v9488 = vand.u32 %v9390, 4294901760
    %v9489 = vsub.f32 %v9390, %v9488
    %v9490 = vand.u32 %v9489, 4294901760
    %v9491 = vsub.f32 %v9489, %v9490
    %v9492 = vand.u32 %v9491, 4294901760
    %9493 = vmatpush1.msra.mxu0 %v9492
    %9494 = vmatprep.subr.mxu0 0.0
    %v9495 = vand.u32 %v9391, 4294901760
    %v9496 = vsub.f32 %v9391, %v9495
    %v9497 = vand.u32 %v9496, 4294901760
    %v9498 = vsub.f32 %v9496, %v9497
    %v9499 = vand.u32 %v9498, 4294901760
    %9500 = vmatpush1.msra.mxu0 %v9499
    %9501 = vmatprep.subr.mxu0 0.0
    %v9502 = vand.u32 %v9392, 4294901760
    %v9503 = vsub.f32 %v9392, %v9502
    %v9504 = vand.u32 %v9503, 4294901760
    %v9505 = vsub.f32 %v9503, %v9504
    %v9506 = vand.u32 %v9505, 4294901760
    %9507 = vmatpush1.msra.mxu0 %v9506
    %9508 = vmatprep.subr.mxu0 0.0
    %9509 = vmatpush1.msra.mxu0 0.0
    %9510 = vmatprep.subr.mxu0 0.0
    %9511 = vmatpush1.msra.mxu0 0.0
    %9512 = vmatprep.subr.mxu0 0.0
    %9513 = vmatpush1.msra.mxu0 0.0
    %9514 = vmatprep.subr.mxu0 0.0
    %9515 = vmatpush1.msra.mxu0 0.0
    %9516 = vmatprep.subr.mxu0 0.0
    %9517 = vmatpush1.msra.mxu0 0.0
    %9518 = vmatprep.subr.mxu0 0.0
    %9519 = vmatpush1.msra.mxu0 0.0
    %9520 = vmatprep.subr.mxu0 0.0
    %9521 = vmatpush1.msra.mxu0 0.0
    %9522 = vmatprep.subr.mxu0 0.0
    %9523 = vmatpush1.msra.mxu0 0.0
    %9524 = vmatprep.subr.mxu0 0.0
    %9525 = vmatpush1.msra.mxu0 0.0
    %9526 = vmatprep.subr.mxu0 0.0
    %9527 = vmatpush1.msra.mxu0 0.0
    %9528 = vmatprep.subr.mxu0 0.0
    %9529 = vmatpush1.msra.mxu0 0.0
    %9530 = vmatprep.subr.mxu0 0.0
    %9531 = vmatpush1.msra.mxu0 0.0
    %9532 = vmatprep.subr.mxu0 0.0
    %9533 = vmatpush1.msra.mxu0 0.0
    %9534 = vmatprep.subr.mxu0 0.0
    %9535 = vmatpush1.msra.mxu0 0.0
    %9536 = vmatprep.subr.mxu0 0.0
    %9537 = vmatpush1.msra.mxu0 0.0
    %9538 = vmatprep.subr.mxu0 0.0
    %9539 = vmatpush1.msra.mxu0 0.0
    %9540 = vmatprep.subr.mxu0 0.0
    %9541 = vmatpush1.msra.mxu0 0.0
    %9542 = vmatprep.subr.mxu0 0.0
    %9543 = vmatpush1.msra.mxu0 0.0
    %9544 = vmatprep.subr.mxu0 0.0
    %9545 = vmatpush1.msra.mxu0 0.0
    %9546 = vmatprep.subr.mxu0 0.0
    %9547 = vmatpush1.msra.mxu0 0.0
    %9548 = vmatprep.subr.mxu0 0.0
    %9549 = vmatpush1.msra.mxu0 0.0
    %9550 = vmatprep.subr.mxu0 0.0
    %9551 = vmatpush1.msra.mxu0 0.0
    %9552 = vmatprep.subr.mxu0 0.0
    %9553 = vmatpush1.msra.mxu0 0.0
    %9554 = vmatprep.subr.mxu0 0.0
    %9555 = vmatpush1.msra.mxu0 0.0
    %9556 = vmatprep.subr.mxu0 0.0
    %9557 = vmatpush1.msra.mxu0 0.0
    %9558 = vmatprep.subr.mxu0 0.0
    %9559 = vmatpush1.msra.mxu0 0.0
    %9560 = vmatprep.subr.mxu0 0.0
    %9561 = vmatpush1.msra.mxu0 0.0
    %9562 = vmatprep.subr.mxu0 0.0
    %9563 = vmatpush1.msra.mxu0 0.0
    %9564 = vmatprep.mubr.f32.mxu0 0.0
    %v9565 = vand.u32 %v9399, 4294901760
    %9566 = vmatmul.mubr.f32.gmra.mrb[0].mxu0 %v9565
    %v9567 = vpop.f32.mrb[0].mxu0
    %v9568 = vadd.f32 %v9477, %v9567
    %v9569 = vpop.f32.mrb[0].mxu0
    %9570 = vdwg.mxu0
    %9571 = vmatprep.subr.mxu0 0.0
    %v9572 = vand.u32 %v9389, 4294901760
    %v9573 = vsub.f32 %v9389, %v9572
    %9574 = vmatpush1.msra.mxu0 %v9573
    %9575 = vmatprep.subr.mxu0 0.0
    %v9576 = vand.u32 %v9390, 4294901760
    %v9577 = vsub.f32 %v9390, %v9576
    %9578 = vmatpush1.msra.mxu0 %v9577
    %9579 = vmatprep.subr.mxu0 0.0
    %v9580 = vand.u32 %v9391, 4294901760
    %v9581 = vsub.f32 %v9391, %v9580
    %9582 = vmatpush1.msra.mxu0 %v9581
    %9583 = vmatprep.subr.mxu0 0.0
    %v9584 = vand.u32 %v9392, 4294901760
    %v9585 = vsub.f32 %v9392, %v9584
    %9586 = vmatpush1.msra.mxu0 %v9585
    %9587 = vmatprep.subr.mxu0 0.0
    %9588 = vmatpush1.msra.mxu0 0.0
    %9589 = vmatprep.subr.mxu0 0.0
    %9590 = vmatpush1.msra.mxu0 0.0
    %9591 = vmatprep.subr.mxu0 0.0
    %9592 = vmatpush1.msra.mxu0 0.0
    %9593 = vmatprep.subr.mxu0 0.0
    %9594 = vmatpush1.msra.mxu0 0.0
    %9595 = vmatprep.subr.mxu0 0.0
    %9596 = vmatpush1.msra.mxu0 0.0
    %9597 = vmatprep.subr.mxu0 0.0
    %9598 = vmatpush1.msra.mxu0 0.0
    %9599 = vmatprep.subr.mxu0 0.0
    %9600 = vmatpush1.msra.mxu0 0.0
    %9601 = vmatprep.subr.mxu0 0.0
    %9602 = vmatpush1.msra.mxu0 0.0
    %9603 = vmatprep.subr.mxu0 0.0
    %9604 = vmatpush1.msra.mxu0 0.0
    %9605 = vmatprep.subr.mxu0 0.0
    %9606 = vmatpush1.msra.mxu0 0.0
    %9607 = vmatprep.subr.mxu0 0.0
    %9608 = vmatpush1.msra.mxu0 0.0
    %9609 = vmatprep.subr.mxu0 0.0
    %9610 = vmatpush1.msra.mxu0 0.0
    %9611 = vmatprep.subr.mxu0 0.0
    %9612 = vmatpush1.msra.mxu0 0.0
    %9613 = vmatprep.subr.mxu0 0.0
    %9614 = vmatpush1.msra.mxu0 0.0
    %9615 = vmatprep.subr.mxu0 0.0
    %9616 = vmatpush1.msra.mxu0 0.0
    %9617 = vmatprep.subr.mxu0 0.0
    %9618 = vmatpush1.msra.mxu0 0.0
    %9619 = vmatprep.subr.mxu0 0.0
    %9620 = vmatpush1.msra.mxu0 0.0
    %9621 = vmatprep.subr.mxu0 0.0
    %9622 = vmatpush1.msra.mxu0 0.0
    %9623 = vmatprep.subr.mxu0 0.0
    %9624 = vmatpush1.msra.mxu0 0.0
    %9625 = vmatprep.subr.mxu0 0.0
    %9626 = vmatpush1.msra.mxu0 0.0
    %9627 = vmatprep.subr.mxu0 0.0
    %9628 = vmatpush1.msra.mxu0 0.0
    %9629 = vmatprep.subr.mxu0 0.0
    %9630 = vmatpush1.msra.mxu0 0.0
    %9631 = vmatprep.subr.mxu0 0.0
    %9632 = vmatpush1.msra.mxu0 0.0
    %9633 = vmatprep.subr.mxu0 0.0
    %9634 = vmatpush1.msra.mxu0 0.0
    %9635 = vmatprep.subr.mxu0 0.0
    %9636 = vmatpush1.msra.mxu0 0.0
    %9637 = vmatprep.subr.mxu0 0.0
    %9638 = vmatpush1.msra.mxu0 0.0
    %9639 = vmatprep.subr.mxu0 0.0
    %9640 = vmatpush1.msra.mxu0 0.0
    %9641 = vmatprep.subr.mxu0 0.0
    %9642 = vmatpush1.msra.mxu0 0.0
    %9643 = vmatprep.mubr.f32.mxu0 0.0
    %v9644 = vand.u32 %v9399, 4294901760
    %v9645 = vsub.f32 %v9399, %v9644
    %9646 = vmatmul.mubr.f32.gmra.mrb[0].mxu0 %v9645
    %v9647 = vpop.f32.mrb[0].mxu0
    %v9648 = vadd.f32 %v9568, %v9647
    %v9649 = vpop.f32.mrb[0].mxu0
    %9650 = vdwg.mxu0
    %9651 = vmatprep.subr.mxu0 0.0
    %v9652 = vand.u32 %v9389, 4294901760
    %9653 = vmatpush1.msra.mxu0 %v9652
    %9654 = vmatprep.subr.mxu0 0.0
    %v9655 = vand.u32 %v9390, 4294901760
    %9656 = vmatpush1.msra.mxu0 %v9655
    %9657 = vmatprep.subr.mxu0 0.0
    %v9658 = vand.u32 %v9391, 4294901760
    %9659 = vmatpush1.msra.mxu0 %v9658
    %9660 = vmatprep.subr.mxu0 0.0
    %v9661 = vand.u32 %v9392, 4294901760
    %9662 = vmatpush1.msra.mxu0 %v9661
    %9663 = vmatprep.subr.mxu0 0.0
    %9664 = vmatpush1.msra.mxu0 0.0
    %9665 = vmatprep.subr.mxu0 0.0
    %9666 = vmatpush1.msra.mxu0 0.0
    %9667 = vmatprep.subr.mxu0 0.0
    %9668 = vmatpush1.msra.mxu0 0.0
    %9669 = vmatprep.subr.mxu0 0.0
    %9670 = vmatpush1.msra.mxu0 0.0
    %9671 = vmatprep.subr.mxu0 0.0
    %9672 = vmatpush1.msra.mxu0 0.0
    %9673 = vmatprep.subr.mxu0 0.0
    %9674 = vmatpush1.msra.mxu0 0.0
    %9675 = vmatprep.subr.mxu0 0.0
    %9676 = vmatpush1.msra.mxu0 0.0
    %9677 = vmatprep.subr.mxu0 0.0
    %9678 = vmatpush1.msra.mxu0 0.0
    %9679 = vmatprep.subr.mxu0 0.0
    %9680 = vmatpush1.msra.mxu0 0.0
    %9681 = vmatprep.subr.mxu0 0.0
    %9682 = vmatpush1.msra.mxu0 0.0
    %9683 = vmatprep.subr.mxu0 0.0
    %9684 = vmatpush1.msra.mxu0 0.0
    %9685 = vmatprep.subr.mxu0 0.0
    %9686 = vmatpush1.msra.mxu0 0.0
    %9687 = vmatprep.subr.mxu0 0.0
    %9688 = vmatpush1.msra.mxu0 0.0
    %9689 = vmatprep.subr.mxu0 0.0
    %9690 = vmatpush1.msra.mxu0 0.0
    %9691 = vmatprep.subr.mxu0 0.0
    %9692 = vmatpush1.msra.mxu0 0.0
    %9693 = vmatprep.subr.mxu0 0.0
    %9694 = vmatpush1.msra.mxu0 0.0
    %9695 = vmatprep.subr.mxu0 0.0
    %9696 = vmatpush1.msra.mxu0 0.0
    %9697 = vmatprep.subr.mxu0 0.0
    %9698 = vmatpush1.msra.mxu0 0.0
    %9699 = vmatprep.subr.mxu0 0.0
    %9700 = vmatpush1.msra.mxu0 0.0
    %9701 = vmatprep.subr.mxu0 0.0
    %9702 = vmatpush1.msra.mxu0 0.0
    %9703 = vmatprep.subr.mxu0 0.0
    %9704 = vmatpush1.msra.mxu0 0.0
    %9705 = vmatprep.subr.mxu0 0.0
    %9706 = vmatpush1.msra.mxu0 0.0
    %9707 = vmatprep.subr.mxu0 0.0
    %9708 = vmatpush1.msra.mxu0 0.0
    %9709 = vmatprep.subr.mxu0 0.0
    %9710 = vmatpush1.msra.mxu0 0.0
    %9711 = vmatprep.subr.mxu0 0.0
    %9712 = vmatpush1.msra.mxu0 0.0
    %9713 = vmatprep.subr.mxu0 0.0
    %9714 = vmatpush1.msra.mxu0 0.0
    %9715 = vmatprep.subr.mxu0 0.0
    %9716 = vmatpush1.msra.mxu0 0.0
    %9717 = vmatprep.subr.mxu0 0.0
    %9718 = vmatpush1.msra.mxu0 0.0
    %9719 = vmatprep.mubr.f32.mxu0 0.0
    %v9720 = vand.u32 %v9399, 4294901760
    %v9721 = vsub.f32 %v9399, %v9720
    %v9722 = vand.u32 %v9721, 4294901760
    %9723 = vmatmul.mubr.f32.gmra.mrb[0].mxu0 %v9722
    %v9724 = vpop.f32.mrb[0].mxu0
    %v9725 = vadd.f32 %v9648, %v9724
    %v9726 = vpop.f32.mrb[0].mxu0
    %9727 = vdwg.mxu0
    %9728 = vmatprep.subr.mxu0 0.0
    %v9729 = vand.u32 %v9389, 4294901760
    %v9730 = vsub.f32 %v9389, %v9729
    %v9731 = vand.u32 %v9730, 4294901760
    %9732 = vmatpush1.msra.mxu0 %v9731
    %9733 = vmatprep.subr.mxu0 0.0
    %v9734 = vand.u32 %v9390, 4294901760
    %v9735 = vsub.f32 %v9390, %v9734
    %v9736 = vand.u32 %v9735, 4294901760
    %9737 = vmatpush1.msra.mxu0 %v9736
    %9738 = vmatprep.subr.mxu0 0.0
    %v9739 = vand.u32 %v9391, 4294901760
    %v9740 = vsub.f32 %v9391, %v9739
    %v9741 = vand.u32 %v9740, 4294901760
    %9742 = vmatpush1.msra.mxu0 %v9741
    %9743 = vmatprep.subr.mxu0 0.0
    %v9744 = vand.u32 %v9392, 4294901760
    %v9745 = vsub.f32 %v9392, %v9744
    %v9746 = vand.u32 %v9745, 4294901760
    %9747 = vmatpush1.msra.mxu0 %v9746
    %9748 = vmatprep.subr.mxu0 0.0
    %9749 = vmatpush1.msra.mxu0 0.0
    %9750 = vmatprep.subr.mxu0 0.0
    %9751 = vmatpush1.msra.mxu0 0.0
    %9752 = vmatprep.subr.mxu0 0.0
    %9753 = vmatpush1.msra.mxu0 0.0
    %9754 = vmatprep.subr.mxu0 0.0
    %9755 = vmatpush1.msra.mxu0 0.0
    %9756 = vmatprep.subr.mxu0 0.0
    %9757 = vmatpush1.msra.mxu0 0.0
    %9758 = vmatprep.subr.mxu0 0.0
    %9759 = vmatpush1.msra.mxu0 0.0
    %9760 = vmatprep.subr.mxu0 0.0
    %9761 = vmatpush1.msra.mxu0 0.0
    %9762 = vmatprep.subr.mxu0 0.0
    %9763 = vmatpush1.msra.mxu0 0.0
    %9764 = vmatprep.subr.mxu0 0.0
    %9765 = vmatpush1.msra.mxu0 0.0
    %9766 = vmatprep.subr.mxu0 0.0
    %9767 = vmatpush1.msra.mxu0 0.0
    %9768 = vmatprep.subr.mxu0 0.0
    %9769 = vmatpush1.msra.mxu0 0.0
    %9770 = vmatprep.subr.mxu0 0.0
    %9771 = vmatpush1.msra.mxu0 0.0
    %9772 = vmatprep.subr.mxu0 0.0
    %9773 = vmatpush1.msra.mxu0 0.0
    %9774 = vmatprep.subr.mxu0 0.0
    %9775 = vmatpush1.msra.mxu0 0.0
    %9776 = vmatprep.subr.mxu0 0.0
    %9777 = vmatpush1.msra.mxu0 0.0
    %9778 = vmatprep.subr.mxu0 0.0
    %9779 = vmatpush1.msra.mxu0 0.0
    %9780 = vmatprep.subr.mxu0 0.0
    %9781 = vmatpush1.msra.mxu0 0.0
    %9782 = vmatprep.subr.mxu0 0.0
    %9783 = vmatpush1.msra.mxu0 0.0
    %9784 = vmatprep.subr.mxu0 0.0
    %9785 = vmatpush1.msra.mxu0 0.0
    %9786 = vmatprep.subr.mxu0 0.0
    %9787 = vmatpush1.msra.mxu0 0.0
    %9788 = vmatprep.subr.mxu0 0.0
    %9789 = vmatpush1.msra.mxu0 0.0
    %9790 = vmatprep.subr.mxu0 0.0
    %9791 = vmatpush1.msra.mxu0 0.0
    %9792 = vmatprep.subr.mxu0 0.0
    %9793 = vmatpush1.msra.mxu0 0.0
    %9794 = vmatprep.subr.mxu0 0.0
    %9795 = vmatpush1.msra.mxu0 0.0
    %9796 = vmatprep.subr.mxu0 0.0
    %9797 = vmatpush1.msra.mxu0 0.0
    %9798 = vmatprep.subr.mxu0 0.0
    %9799 = vmatpush1.msra.mxu0 0.0
    %9800 = vmatprep.subr.mxu0 0.0
    %9801 = vmatpush1.msra.mxu0 0.0
    %9802 = vmatprep.subr.mxu0 0.0
    %9803 = vmatpush1.msra.mxu0 0.0
    %9804 = vmatprep.mubr.f32.mxu0 0.0
    %v9805 = vand.u32 %v9399, 4294901760
    %9806 = vmatmul.mubr.f32.gmra.mrb[0].mxu0 %v9805
    %v9807 = vpop.f32.mrb[0].mxu0
    %v9808 = vadd.f32 %v9725, %v9807
    %v9809 = vpop.f32.mrb[0].mxu0
    %9810 = vdwg.mxu0
    %9811 = vmatprep.subr.mxu0 0.0
    %v9812 = vand.u32 %v9389, 4294901760
    %9813 = vmatpush1.msra.mxu0 %v9812
    %9814 = vmatprep.subr.mxu0 0.0
    %v9815 = vand.u32 %v9390, 4294901760
    %9816 = vmatpush1.msra.mxu0 %v9815
    %9817 = vmatprep.subr.mxu0 0.0
    %v9818 = vand.u32 %v9391, 4294901760
    %9819 = vmatpush1.msra.mxu0 %v9818
    %9820 = vmatprep.subr.mxu0 0.0
    %v9821 = vand.u32 %v9392, 4294901760
    %9822 = vmatpush1.msra.mxu0 %v9821
    %9823 = vmatprep.subr.mxu0 0.0
    %9824 = vmatpush1.msra.mxu0 0.0
    %9825 = vmatprep.subr.mxu0 0.0
    %9826 = vmatpush1.msra.mxu0 0.0
    %9827 = vmatprep.subr.mxu0 0.0
    %9828 = vmatpush1.msra.mxu0 0.0
    %9829 = vmatprep.subr.mxu0 0.0
    %9830 = vmatpush1.msra.mxu0 0.0
    %9831 = vmatprep.subr.mxu0 0.0
    %9832 = vmatpush1.msra.mxu0 0.0
    %9833 = vmatprep.subr.mxu0 0.0
    %9834 = vmatpush1.msra.mxu0 0.0
    %9835 = vmatprep.subr.mxu0 0.0
    %9836 = vmatpush1.msra.mxu0 0.0
    %9837 = vmatprep.subr.mxu0 0.0
    %9838 = vmatpush1.msra.mxu0 0.0
    %9839 = vmatprep.subr.mxu0 0.0
    %9840 = vmatpush1.msra.mxu0 0.0
    %9841 = vmatprep.subr.mxu0 0.0
    %9842 = vmatpush1.msra.mxu0 0.0
    %9843 = vmatprep.subr.mxu0 0.0
    %9844 = vmatpush1.msra.mxu0 0.0
    %9845 = vmatprep.subr.mxu0 0.0
    %9846 = vmatpush1.msra.mxu0 0.0
    %9847 = vmatprep.subr.mxu0 0.0
    %9848 = vmatpush1.msra.mxu0 0.0
    %9849 = vmatprep.subr.mxu0 0.0
    %9850 = vmatpush1.msra.mxu0 0.0
    %9851 = vmatprep.subr.mxu0 0.0
    %9852 = vmatpush1.msra.mxu0 0.0
    %9853 = vmatprep.subr.mxu0 0.0
    %9854 = vmatpush1.msra.mxu0 0.0
    %9855 = vmatprep.subr.mxu0 0.0
    %9856 = vmatpush1.msra.mxu0 0.0
    %9857 = vmatprep.subr.mxu0 0.0
    %9858 = vmatpush1.msra.mxu0 0.0
    %9859 = vmatprep.subr.mxu0 0.0
    %9860 = vmatpush1.msra.mxu0 0.0
    %9861 = vmatprep.subr.mxu0 0.0
    %9862 = vmatpush1.msra.mxu0 0.0
    %9863 = vmatprep.subr.mxu0 0.0
    %9864 = vmatpush1.msra.mxu0 0.0
    %9865 = vmatprep.subr.mxu0 0.0
    %9866 = vmatpush1.msra.mxu0 0.0
    %9867 = vmatprep.subr.mxu0 0.0
    %9868 = vmatpush1.msra.mxu0 0.0
    %9869 = vmatprep.subr.mxu0 0.0
    %9870 = vmatpush1.msra.mxu0 0.0
    %9871 = vmatprep.subr.mxu0 0.0
    %9872 = vmatpush1.msra.mxu0 0.0
    %9873 = vmatprep.subr.mxu0 0.0
    %9874 = vmatpush1.msra.mxu0 0.0
    %9875 = vmatprep.subr.mxu0 0.0
    %9876 = vmatpush1.msra.mxu0 0.0
    %9877 = vmatprep.subr.mxu0 0.0
    %9878 = vmatpush1.msra.mxu0 0.0
    %9879 = vmatprep.mubr.f32.mxu0 0.0
    %v9880 = vand.u32 %v9399, 4294901760
    %9881 = vmatmul.mubr.f32.gmra.mrb[0].mxu0 %v9880
    %v9882 = vpop.f32.mrb[0].mxu0
    %v9883 = vadd.f32 %v9808, %v9882
    %v9884 = vpop.f32.mrb[0].mxu0
    %9885 = vdwg.mxu0
    %v9886 = vmax.f32 %v9883, 0.0
    %v9887 = vld [vmem:[%s1 + $0x50] sm:$0xff]
    %v9888 = vld [vmem:[%s1 + $0x58] sm:$0xff]
    %v9889 = vld [vmem:[%s1 + $0x60] sm:$0xff]
    %v9890 = vld [vmem:[%s1 + $0x68] sm:$0xff]
    %v9891 = vld [vmem:[%s1 + $0xb] sm:$0x1]
    %v9892 = vlaneseq
    %v9893 = vshrl.u32 %v9892, 7
    %v9894 = vsub.s32 0, %v9893
    %v9895 = vrot.slane %v9891, %v9894
    %v9897 = vsel %vm8899, %v9886, 0
    %9899 = vmatprep.subr.mxu0 0.0
    %v9900 = vand.u32 %v9887, 4294901760
    %9901 = vmatpush1.msra.mxu0 %v9900
    %9902 = vmatprep.subr.mxu0 0.0
    %v9903 = vand.u32 %v9888, 4294901760
    %9904 = vmatpush1.msra.mxu0 %v9903
    %9905 = vmatprep.subr.mxu0 0.0
    %v9906 = vand.u32 %v9889, 4294901760
    %9907 = vmatpush1.msra.mxu0 %v9906
    %9908 = vmatprep.subr.mxu0 0.0
    %v9909 = vand.u32 %v9890, 4294901760
    %9910 = vmatpush1.msra.mxu0 %v9909
    %9911 = vmatprep.subr.mxu0 0.0
    %9912 = vmatpush1.msra.mxu0 0.0
    %9913 = vmatprep.subr.mxu0 0.0
    %9914 = vmatpush1.msra.mxu0 0.0
    %9915 = vmatprep.subr.mxu0 0.0
    %9916 = vmatpush1.msra.mxu0 0.0
    %9917 = vmatprep.subr.mxu0 0.0
    %9918 = vmatpush1.msra.mxu0 0.0
    %9919 = vmatprep.subr.mxu0 0.0
    %9920 = vmatpush1.msra.mxu0 0.0
    %9921 = vmatprep.subr.mxu0 0.0
    %9922 = vmatpush1.msra.mxu0 0.0
    %9923 = vmatprep.subr.mxu0 0.0
    %9924 = vmatpush1.msra.mxu0 0.0
    %9925 = vmatprep.subr.mxu0 0.0
    %9926 = vmatpush1.msra.mxu0 0.0
    %9927 = vmatprep.subr.mxu0 0.0
    %9928 = vmatpush1.msra.mxu0 0.0
    %9929 = vmatprep.subr.mxu0 0.0
    %9930 = vmatpush1.msra.mxu0 0.0
    %9931 = vmatprep.subr.mxu0 0.0
    %9932 = vmatpush1.msra.mxu0 0.0
    %9933 = vmatprep.subr.mxu0 0.0
    %9934 = vmatpush1.msra.mxu0 0.0
    %9935 = vmatprep.subr.mxu0 0.0
    %9936 = vmatpush1.msra.mxu0 0.0
    %9937 = vmatprep.subr.mxu0 0.0
    %9938 = vmatpush1.msra.mxu0 0.0
    %9939 = vmatprep.subr.mxu0 0.0
    %9940 = vmatpush1.msra.mxu0 0.0
    %9941 = vmatprep.subr.mxu0 0.0
    %9942 = vmatpush1.msra.mxu0 0.0
    %9943 = vmatprep.subr.mxu0 0.0
    %9944 = vmatpush1.msra.mxu0 0.0
    %9945 = vmatprep.subr.mxu0 0.0
    %9946 = vmatpush1.msra.mxu0 0.0
    %9947 = vmatprep.subr.mxu0 0.0
    %9948 = vmatpush1.msra.mxu0 0.0
    %9949 = vmatprep.subr.mxu0 0.0
    %9950 = vmatpush1.msra.mxu0 0.0
    %9951 = vmatprep.subr.mxu0 0.0
    %9952 = vmatpush1.msra.mxu0 0.0
    %9953 = vmatprep.subr.mxu0 0.0
    %9954 = vmatpush1.msra.mxu0 0.0
    %9955 = vmatprep.subr.mxu0 0.0
    %9956 = vmatpush1.msra.mxu0 0.0
    %9957 = vmatprep.subr.mxu0 0.0
    %9958 = vmatpush1.msra.mxu0 0.0
    %9959 = vmatprep.subr.mxu0 0.0
    %9960 = vmatpush1.msra.mxu0 0.0
    %9961 = vmatprep.subr.mxu0 0.0
    %9962 = vmatpush1.msra.mxu0 0.0
    %9963 = vmatprep.subr.mxu0 0.0
    %9964 = vmatpush1.msra.mxu0 0.0
    %9965 = vmatprep.subr.mxu0 0.0
    %9966 = vmatpush1.msra.mxu0 0.0
    %9967 = vmatprep.mubr.f32.mxu0 0.0
    %v9968 = vand.u32 %v9897, 4294901760
    %v9969 = vsub.f32 %v9897, %v9968
    %v9970 = vand.u32 %v9969, 4294901760
    %v9971 = vsub.f32 %v9969, %v9970
    %v9972 = vand.u32 %v9971, 4294901760
    %9973 = vmatmul.mubr.f32.gmra.mrb[0].mxu0 %v9972
    %v9974 = vpop.f32.mrb[0].mxu0
    %v9975 = vadd.f32 %v9895, %v9974
    %v9976 = vpop.f32.mrb[0].mxu0
    %9977 = vdwg.mxu0
    %9978 = vmatprep.subr.mxu0 0.0
    %v9979 = vand.u32 %v9887, 4294901760
    %v9980 = vsub.f32 %v9887, %v9979
    %v9981 = vand.u32 %v9980, 4294901760
    %v9982 = vsub.f32 %v9980, %v9981
    %v9983 = vand.u32 %v9982, 4294901760
    %9984 = vmatpush1.msra.mxu0 %v9983
    %9985 = vmatprep.subr.mxu0 0.0
    %v9986 = vand.u32 %v9888, 4294901760
    %v9987 = vsub.f32 %v9888, %v9986
    %v9988 = vand.u32 %v9987, 4294901760
    %v9989 = vsub.f32 %v9987, %v9988
    %v9990 = vand.u32 %v9989, 4294901760
    %9991 = vmatpush1.msra.mxu0 %v9990
    %9992 = vmatprep.subr.mxu0 0.0
    %v9993 = vand.u32 %v9889, 4294901760
    %v9994 = vsub.f32 %v9889, %v9993
    %v9995 = vand.u32 %v9994, 4294901760
    %v9996 = vsub.f32 %v9994, %v9995
    %v9997 = vand.u32 %v9996, 4294901760
    %9998 = vmatpush1.msra.mxu0 %v9997
    %9999 = vmatprep.subr.mxu0 0.0
    %v10000 = vand.u32 %v9890, 4294901760
    %v10001 = vsub.f32 %v9890, %v10000
    %v10002 = vand.u32 %v10001, 4294901760
    %v10003 = vsub.f32 %v10001, %v10002
    %v10004 = vand.u32 %v10003, 4294901760
    %10005 = vmatpush1.msra.mxu0 %v10004
    %10006 = vmatprep.subr.mxu0 0.0
    %10007 = vmatpush1.msra.mxu0 0.0
    %10008 = vmatprep.subr.mxu0 0.0
    %10009 = vmatpush1.msra.mxu0 0.0
    %10010 = vmatprep.subr.mxu0 0.0
    %10011 = vmatpush1.msra.mxu0 0.0
    %10012 = vmatprep.subr.mxu0 0.0
    %10013 = vmatpush1.msra.mxu0 0.0
    %10014 = vmatprep.subr.mxu0 0.0
    %10015 = vmatpush1.msra.mxu0 0.0
    %10016 = vmatprep.subr.mxu0 0.0
    %10017 = vmatpush1.msra.mxu0 0.0
    %10018 = vmatprep.subr.mxu0 0.0
    %10019 = vmatpush1.msra.mxu0 0.0
    %10020 = vmatprep.subr.mxu0 0.0
    %10021 = vmatpush1.msra.mxu0 0.0
    %10022 = vmatprep.subr.mxu0 0.0
    %10023 = vmatpush1.msra.mxu0 0.0
    %10024 = vmatprep.subr.mxu0 0.0
    %10025 = vmatpush1.msra.mxu0 0.0
    %10026 = vmatprep.subr.mxu0 0.0
    %10027 = vmatpush1.msra.mxu0 0.0
    %10028 = vmatprep.subr.mxu0 0.0
    %10029 = vmatpush1.msra.mxu0 0.0
    %10030 = vmatprep.subr.mxu0 0.0
    %10031 = vmatpush1.msra.mxu0 0.0
    %10032 = vmatprep.subr.mxu0 0.0
    %10033 = vmatpush1.msra.mxu0 0.0
    %10034 = vmatprep.subr.mxu0 0.0
    %10035 = vmatpush1.msra.mxu0 0.0
    %10036 = vmatprep.subr.mxu0 0.0
    %10037 = vmatpush1.msra.mxu0 0.0
    %10038 = vmatprep.subr.mxu0 0.0
    %10039 = vmatpush1.msra.mxu0 0.0
    %10040 = vmatprep.subr.mxu0 0.0
    %10041 = vmatpush1.msra.mxu0 0.0
    %10042 = vmatprep.subr.mxu0 0.0
    %10043 = vmatpush1.msra.mxu0 0.0
    %10044 = vmatprep.subr.mxu0 0.0
    %10045 = vmatpush1.msra.mxu0 0.0
    %10046 = vmatprep.subr.mxu0 0.0
    %10047 = vmatpush1.msra.mxu0 0.0
    %10048 = vmatprep.subr.mxu0 0.0
    %10049 = vmatpush1.msra.mxu0 0.0
    %10050 = vmatprep.subr.mxu0 0.0
    %10051 = vmatpush1.msra.mxu0 0.0
    %10052 = vmatprep.subr.mxu0 0.0
    %10053 = vmatpush1.msra.mxu0 0.0
    %10054 = vmatprep.subr.mxu0 0.0
    %10055 = vmatpush1.msra.mxu0 0.0
    %10056 = vmatprep.subr.mxu0 0.0
    %10057 = vmatpush1.msra.mxu0 0.0
    %10058 = vmatprep.subr.mxu0 0.0
    %10059 = vmatpush1.msra.mxu0 0.0
    %10060 = vmatprep.subr.mxu0 0.0
    %10061 = vmatpush1.msra.mxu0 0.0
    %10062 = vmatprep.mubr.f32.mxu0 0.0
    %v10063 = vand.u32 %v9897, 4294901760
    %10064 = vmatmul.mubr.f32.gmra.mrb[0].mxu0 %v10063
    %v10065 = vpop.f32.mrb[0].mxu0
    %v10066 = vadd.f32 %v9975, %v10065
    %v10067 = vpop.f32.mrb[0].mxu0
    %10068 = vdwg.mxu0
    %10069 = vmatprep.subr.mxu0 0.0
    %v10070 = vand.u32 %v9887, 4294901760
    %v10071 = vsub.f32 %v9887, %v10070
    %10072 = vmatpush1.msra.mxu0 %v10071
    %10073 = vmatprep.subr.mxu0 0.0
    %v10074 = vand.u32 %v9888, 4294901760
    %v10075 = vsub.f32 %v9888, %v10074
    %10076 = vmatpush1.msra.mxu0 %v10075
    %10077 = vmatprep.subr.mxu0 0.0
    %v10078 = vand.u32 %v9889, 4294901760
    %v10079 = vsub.f32 %v9889, %v10078
    %10080 = vmatpush1.msra.mxu0 %v10079
    %10081 = vmatprep.subr.mxu0 0.0
    %v10082 = vand.u32 %v9890, 4294901760
    %v10083 = vsub.f32 %v9890, %v10082
    %10084 = vmatpush1.msra.mxu0 %v10083
    %10085 = vmatprep.subr.mxu0 0.0
    %10086 = vmatpush1.msra.mxu0 0.0
    %10087 = vmatprep.subr.mxu0 0.0
    %10088 = vmatpush1.msra.mxu0 0.0
    %10089 = vmatprep.subr.mxu0 0.0
    %10090 = vmatpush1.msra.mxu0 0.0
    %10091 = vmatprep.subr.mxu0 0.0
    %10092 = vmatpush1.msra.mxu0 0.0
    %10093 = vmatprep.subr.mxu0 0.0
    %10094 = vmatpush1.msra.mxu0 0.0
    %10095 = vmatprep.subr.mxu0 0.0
    %10096 = vmatpush1.msra.mxu0 0.0
    %10097 = vmatprep.subr.mxu0 0.0
    %10098 = vmatpush1.msra.mxu0 0.0
    %10099 = vmatprep.subr.mxu0 0.0
    %10100 = vmatpush1.msra.mxu0 0.0
    %10101 = vmatprep.subr.mxu0 0.0
    %10102 = vmatpush1.msra.mxu0 0.0
    %10103 = vmatprep.subr.mxu0 0.0
    %10104 = vmatpush1.msra.mxu0 0.0
    %10105 = vmatprep.subr.mxu0 0.0
    %10106 = vmatpush1.msra.mxu0 0.0
    %10107 = vmatprep.subr.mxu0 0.0
    %10108 = vmatpush1.msra.mxu0 0.0
    %10109 = vmatprep.subr.mxu0 0.0
    %10110 = vmatpush1.msra.mxu0 0.0
    %10111 = vmatprep.subr.mxu0 0.0
    %10112 = vmatpush1.msra.mxu0 0.0
    %10113 = vmatprep.subr.mxu0 0.0
    %10114 = vmatpush1.msra.mxu0 0.0
    %10115 = vmatprep.subr.mxu0 0.0
    %10116 = vmatpush1.msra.mxu0 0.0
    %10117 = vmatprep.subr.mxu0 0.0
    %10118 = vmatpush1.msra.mxu0 0.0
    %10119 = vmatprep.subr.mxu0 0.0
    %10120 = vmatpush1.msra.mxu0 0.0
    %10121 = vmatprep.subr.mxu0 0.0
    %10122 = vmatpush1.msra.mxu0 0.0
    %10123 = vmatprep.subr.mxu0 0.0
    %10124 = vmatpush1.msra.mxu0 0.0
    %10125 = vmatprep.subr.mxu0 0.0
    %10126 = vmatpush1.msra.mxu0 0.0
    %10127 = vmatprep.subr.mxu0 0.0
    %10128 = vmatpush1.msra.mxu0 0.0
    %10129 = vmatprep.subr.mxu0 0.0
    %10130 = vmatpush1.msra.mxu0 0.0
    %10131 = vmatprep.subr.mxu0 0.0
    %10132 = vmatpush1.msra.mxu0 0.0
    %10133 = vmatprep.subr.mxu0 0.0
    %10134 = vmatpush1.msra.mxu0 0.0
    %10135 = vmatprep.subr.mxu0 0.0
    %10136 = vmatpush1.msra.mxu0 0.0
    %10137 = vmatprep.subr.mxu0 0.0
    %10138 = vmatpush1.msra.mxu0 0.0
    %10139 = vmatprep.subr.mxu0 0.0
    %10140 = vmatpush1.msra.mxu0 0.0
    %10141 = vmatprep.mubr.f32.mxu0 0.0
    %v10142 = vand.u32 %v9897, 4294901760
    %v10143 = vsub.f32 %v9897, %v10142
    %10144 = vmatmul.mubr.f32.gmra.mrb[0].mxu0 %v10143
    %v10145 = vpop.f32.mrb[0].mxu0
    %v10146 = vadd.f32 %v10066, %v10145
    %v10147 = vpop.f32.mrb[0].mxu0
    %10148 = vdwg.mxu0
    %10149 = vmatprep.subr.mxu0 0.0
    %v10150 = vand.u32 %v9887, 4294901760
    %10151 = vmatpush1.msra.mxu0 %v10150
    %10152 = vmatprep.subr.mxu0 0.0
    %v10153 = vand.u32 %v9888, 4294901760
    %10154 = vmatpush1.msra.mxu0 %v10153
    %10155 = vmatprep.subr.mxu0 0.0
    %v10156 = vand.u32 %v9889, 4294901760
    %10157 = vmatpush1.msra.mxu0 %v10156
    %10158 = vmatprep.subr.mxu0 0.0
    %v10159 = vand.u32 %v9890, 4294901760
    %10160 = vmatpush1.msra.mxu0 %v10159
    %10161 = vmatprep.subr.mxu0 0.0
    %10162 = vmatpush1.msra.mxu0 0.0
    %10163 = vmatprep.subr.mxu0 0.0
    %10164 = vmatpush1.msra.mxu0 0.0
    %10165 = vmatprep.subr.mxu0 0.0
    %10166 = vmatpush1.msra.mxu0 0.0
    %10167 = vmatprep.subr.mxu0 0.0
    %10168 = vmatpush1.msra.mxu0 0.0
    %10169 = vmatprep.subr.mxu0 0.0
    %10170 = vmatpush1.msra.mxu0 0.0
    %10171 = vmatprep.subr.mxu0 0.0
    %10172 = vmatpush1.msra.mxu0 0.0
    %10173 = vmatprep.subr.mxu0 0.0
    %10174 = vmatpush1.msra.mxu0 0.0
    %10175 = vmatprep.subr.mxu0 0.0
    %10176 = vmatpush1.msra.mxu0 0.0
    %10177 = vmatprep.subr.mxu0 0.0
    %10178 = vmatpush1.msra.mxu0 0.0
    %10179 = vmatprep.subr.mxu0 0.0
    %10180 = vmatpush1.msra.mxu0 0.0
    %10181 = vmatprep.subr.mxu0 0.0
    %10182 = vmatpush1.msra.mxu0 0.0
    %10183 = vmatprep.subr.mxu0 0.0
    %10184 = vmatpush1.msra.mxu0 0.0
    %10185 = vmatprep.subr.mxu0 0.0
    %10186 = vmatpush1.msra.mxu0 0.0
    %10187 = vmatprep.subr.mxu0 0.0
    %10188 = vmatpush1.msra.mxu0 0.0
    %10189 = vmatprep.subr.mxu0 0.0
    %10190 = vmatpush1.msra.mxu0 0.0
    %10191 = vmatprep.subr.mxu0 0.0
    %10192 = vmatpush1.msra.mxu0 0.0
    %10193 = vmatprep.subr.mxu0 0.0
    %10194 = vmatpush1.msra.mxu0 0.0
    %10195 = vmatprep.subr.mxu0 0.0
    %10196 = vmatpush1.msra.mxu0 0.0
    %10197 = vmatprep.subr.mxu0 0.0
    %10198 = vmatpush1.msra.mxu0 0.0
    %10199 = vmatprep.subr.mxu0 0.0
    %10200 = vmatpush1.msra.mxu0 0.0
    %10201 = vmatprep.subr.mxu0 0.0
    %10202 = vmatpush1.msra.mxu0 0.0
    %10203 = vmatprep.subr.mxu0 0.0
    %10204 = vmatpush1.msra.mxu0 0.0
    %10205 = vmatprep.subr.mxu0 0.0
    %10206 = vmatpush1.msra.mxu0 0.0
    %10207 = vmatprep.subr.mxu0 0.0
    %10208 = vmatpush1.msra.mxu0 0.0
    %10209 = vmatprep.subr.mxu0 0.0
    %10210 = vmatpush1.msra.mxu0 0.0
    %10211 = vmatprep.subr.mxu0 0.0
    %10212 = vmatpush1.msra.mxu0 0.0
    %10213 = vmatprep.subr.mxu0 0.0
    %10214 = vmatpush1.msra.mxu0 0.0
    %10215 = vmatprep.subr.mxu0 0.0
    %10216 = vmatpush1.msra.mxu0 0.0
    %10217 = vmatprep.mubr.f32.mxu0 0.0
    %v10218 = vand.u32 %v9897, 4294901760
    %v10219 = vsub.f32 %v9897, %v10218
    %v10220 = vand.u32 %v10219, 4294901760
    %10221 = vmatmul.mubr.f32.gmra.mrb[0].mxu0 %v10220
    %v10222 = vpop.f32.mrb[0].mxu0
    %v10223 = vadd.f32 %v10146, %v10222
    %v10224 = vpop.f32.mrb[0].mxu0
    %10225 = vdwg.mxu0
    %10226 = vmatprep.subr.mxu0 0.0
    %v10227 = vand.u32 %v9887, 4294901760
    %v10228 = vsub.f32 %v9887, %v10227
    %v10229 = vand.u32 %v10228, 4294901760
    %10230 = vmatpush1.msra.mxu0 %v10229
    %10231 = vmatprep.subr.mxu0 0.0
    %v10232 = vand.u32 %v9888, 4294901760
    %v10233 = vsub.f32 %v9888, %v10232
    %v10234 = vand.u32 %v10233, 4294901760
    %10235 = vmatpush1.msra.mxu0 %v10234
    %10236 = vmatprep.subr.mxu0 0.0
    %v10237 = vand.u32 %v9889, 4294901760
    %v10238 = vsub.f32 %v9889, %v10237
    %v10239 = vand.u32 %v10238, 4294901760
    %10240 = vmatpush1.msra.mxu0 %v10239
    %10241 = vmatprep.subr.mxu0 0.0
    %v10242 = vand.u32 %v9890, 4294901760
    %v10243 = vsub.f32 %v9890, %v10242
    %v10244 = vand.u32 %v10243, 4294901760
    %10245 = vmatpush1.msra.mxu0 %v10244
    %10246 = vmatprep.subr.mxu0 0.0
    %10247 = vmatpush1.msra.mxu0 0.0
    %10248 = vmatprep.subr.mxu0 0.0
    %10249 = vmatpush1.msra.mxu0 0.0
    %10250 = vmatprep.subr.mxu0 0.0
    %10251 = vmatpush1.msra.mxu0 0.0
    %10252 = vmatprep.subr.mxu0 0.0
    %10253 = vmatpush1.msra.mxu0 0.0
    %10254 = vmatprep.subr.mxu0 0.0
    %10255 = vmatpush1.msra.mxu0 0.0
    %10256 = vmatprep.subr.mxu0 0.0
    %10257 = vmatpush1.msra.mxu0 0.0
    %10258 = vmatprep.subr.mxu0 0.0
    %10259 = vmatpush1.msra.mxu0 0.0
    %10260 = vmatprep.subr.mxu0 0.0
    %10261 = vmatpush1.msra.mxu0 0.0
    %10262 = vmatprep.subr.mxu0 0.0
    %10263 = vmatpush1.msra.mxu0 0.0
    %10264 = vmatprep.subr.mxu0 0.0
    %10265 = vmatpush1.msra.mxu0 0.0
    %10266 = vmatprep.subr.mxu0 0.0
    %10267 = vmatpush1.msra.mxu0 0.0
    %10268 = vmatprep.subr.mxu0 0.0
    %10269 = vmatpush1.msra.mxu0 0.0
    %10270 = vmatprep.subr.mxu0 0.0
    %10271 = vmatpush1.msra.mxu0 0.0
    %10272 = vmatprep.subr.mxu0 0.0
    %10273 = vmatpush1.msra.mxu0 0.0
    %10274 = vmatprep.subr.mxu0 0.0
    %10275 = vmatpush1.msra.mxu0 0.0
    %10276 = vmatprep.subr.mxu0 0.0
    %10277 = vmatpush1.msra.mxu0 0.0
    %10278 = vmatprep.subr.mxu0 0.0
    %10279 = vmatpush1.msra.mxu0 0.0
    %10280 = vmatprep.subr.mxu0 0.0
    %10281 = vmatpush1.msra.mxu0 0.0
    %10282 = vmatprep.subr.mxu0 0.0
    %10283 = vmatpush1.msra.mxu0 0.0
    %10284 = vmatprep.subr.mxu0 0.0
    %10285 = vmatpush1.msra.mxu0 0.0
    %10286 = vmatprep.subr.mxu0 0.0
    %10287 = vmatpush1.msra.mxu0 0.0
    %10288 = vmatprep.subr.mxu0 0.0
    %10289 = vmatpush1.msra.mxu0 0.0
    %10290 = vmatprep.subr.mxu0 0.0
    %10291 = vmatpush1.msra.mxu0 0.0
    %10292 = vmatprep.subr.mxu0 0.0
    %10293 = vmatpush1.msra.mxu0 0.0
    %10294 = vmatprep.subr.mxu0 0.0
    %10295 = vmatpush1.msra.mxu0 0.0
    %10296 = vmatprep.subr.mxu0 0.0
    %10297 = vmatpush1.msra.mxu0 0.0
    %10298 = vmatprep.subr.mxu0 0.0
    %10299 = vmatpush1.msra.mxu0 0.0
    %10300 = vmatprep.subr.mxu0 0.0
    %10301 = vmatpush1.msra.mxu0 0.0
    %10302 = vmatprep.mubr.f32.mxu0 0.0
    %v10303 = vand.u32 %v9897, 4294901760
    %10304 = vmatmul.mubr.f32.gmra.mrb[0].mxu0 %v10303
    %v10305 = vpop.f32.mrb[0].mxu0
    %v10306 = vadd.f32 %v10223, %v10305
    %v10307 = vpop.f32.mrb[0].mxu0
    %10308 = vdwg.mxu0
    %10309 = vmatprep.subr.mxu0 0.0
    %v10310 = vand.u32 %v9887, 4294901760
    %10311 = vmatpush1.msra.mxu0 %v10310
    %10312 = vmatprep.subr.mxu0 0.0
    %v10313 = vand.u32 %v9888, 4294901760
    %10314 = vmatpush1.msra.mxu0 %v10313
    %10315 = vmatprep.subr.mxu0 0.0
    %v10316 = vand.u32 %v9889, 4294901760
    %10317 = vmatpush1.msra.mxu0 %v10316
    %10318 = vmatprep.subr.mxu0 0.0
    %v10319 = vand.u32 %v9890, 4294901760
    %10320 = vmatpush1.msra.mxu0 %v10319
    %10321 = vmatprep.subr.mxu0 0.0
    %10322 = vmatpush1.msra.mxu0 0.0
    %10323 = vmatprep.subr.mxu0 0.0
    %10324 = vmatpush1.msra.mxu0 0.0
    %10325 = vmatprep.subr.mxu0 0.0
    %10326 = vmatpush1.msra.mxu0 0.0
    %10327 = vmatprep.subr.mxu0 0.0
    %10328 = vmatpush1.msra.mxu0 0.0
    %10329 = vmatprep.subr.mxu0 0.0
    %10330 = vmatpush1.msra.mxu0 0.0
    %10331 = vmatprep.subr.mxu0 0.0
    %10332 = vmatpush1.msra.mxu0 0.0
    %10333 = vmatprep.subr.mxu0 0.0
    %10334 = vmatpush1.msra.mxu0 0.0
    %10335 = vmatprep.subr.mxu0 0.0
    %10336 = vmatpush1.msra.mxu0 0.0
    %10337 = vmatprep.subr.mxu0 0.0
    %10338 = vmatpush1.msra.mxu0 0.0
    %10339 = vmatprep.subr.mxu0 0.0
    %10340 = vmatpush1.msra.mxu0 0.0
    %10341 = vmatprep.subr.mxu0 0.0
    %10342 = vmatpush1.msra.mxu0 0.0
    %10343 = vmatprep.subr.mxu0 0.0
    %10344 = vmatpush1.msra.mxu0 0.0
    %10345 = vmatprep.subr.mxu0 0.0
    %10346 = vmatpush1.msra.mxu0 0.0
    %10347 = vmatprep.subr.mxu0 0.0
    %10348 = vmatpush1.msra.mxu0 0.0
    %10349 = vmatprep.subr.mxu0 0.0
    %10350 = vmatpush1.msra.mxu0 0.0
    %10351 = vmatprep.subr.mxu0 0.0
    %10352 = vmatpush1.msra.mxu0 0.0
    %10353 = vmatprep.subr.mxu0 0.0
    %10354 = vmatpush1.msra.mxu0 0.0
    %10355 = vmatprep.subr.mxu0 0.0
    %10356 = vmatpush1.msra.mxu0 0.0
    %10357 = vmatprep.subr.mxu0 0.0
    %10358 = vmatpush1.msra.mxu0 0.0
    %10359 = vmatprep.subr.mxu0 0.0
    %10360 = vmatpush1.msra.mxu0 0.0
    %10361 = vmatprep.subr.mxu0 0.0
    %10362 = vmatpush1.msra.mxu0 0.0
    %10363 = vmatprep.subr.mxu0 0.0
    %10364 = vmatpush1.msra.mxu0 0.0
    %10365 = vmatprep.subr.mxu0 0.0
    %10366 = vmatpush1.msra.mxu0 0.0
    %10367 = vmatprep.subr.mxu0 0.0
    %10368 = vmatpush1.msra.mxu0 0.0
    %10369 = vmatprep.subr.mxu0 0.0
    %10370 = vmatpush1.msra.mxu0 0.0
    %10371 = vmatprep.subr.mxu0 0.0
    %10372 = vmatpush1.msra.mxu0 0.0
    %10373 = vmatprep.subr.mxu0 0.0
    %10374 = vmatpush1.msra.mxu0 0.0
    %10375 = vmatprep.subr.mxu0 0.0
    %10376 = vmatpush1.msra.mxu0 0.0
    %10377 = vmatprep.mubr.f32.mxu0 0.0
    %v10378 = vand.u32 %v9897, 4294901760
    %10379 = vmatmul.mubr.f32.gmra.mrb[0].mxu0 %v10378
    %v10380 = vpop.f32.mrb[0].mxu0
    %v10381 = vadd.f32 %v10306, %v10380
    %v10382 = vpop.f32.mrb[0].mxu0
    %10383 = vdwg.mxu0
    %10384 = vst [vmem:[#allocation5] sm:$0x3] %v10381
    // Predicated region
    $region18: #{mdp_model_forward.1} parent=1 // pred_check
      _
    $region19: #{mdp_model_forward.1} parent=1 // pred_check_branch
      %10386 = sbr.rel (0) target = $region21
    $region20: #{mdp_model_forward.1} parent=1 // pred_region
      %s10388 = ssub.s32 32, 32
      %10389 = vsyncadd [#allocation4], %s10388
      %s10391 = sshll.u32 [#allocation5], 4
      %s10392 = int_to_ptr.vmem [resolvable:$true] %s10391
      %10394 = dma.vmem_to_hbm [thread:$0]  %s10392, 32, %s3, [#allocation4]
    $region21: #{mdp_model_forward.1} parent=1 // pred_fallthru
      _
    // Predicated region
    $region22: #{mdp_model_forward.1} parent=1 // pred_check
      _
    $region23: #{mdp_model_forward.1} parent=1 // pred_check_branch
      %10396 = sbr.rel (0) target = $region25
    $region24: #{mdp_model_forward.1} parent=1 // pred_region
      %10397 = dma.done [#allocation4], 32
    $region25: #{mdp_model_forward.1} parent=1 // pred_fallthru
      _
    %10398 = vsyncpa [#allocation3], 1
    %10399 = vsyncpa [#allocation4], 1

</llo_original>
